<compile_context>
chip_gen: v5e
topology: v5e:2x2
jax: 0.10.0
libtpu: 0.0.40
codegen_flags: <defaults>
</compile_context>

<pallas_src>
import functools

import jax
import jax.numpy as jnp
from jax.experimental import pallas as pl
from jax.experimental.pallas import tpu as pltpu

_LANE = 128
_TARGET_ROWS = 4096  # 4K rows x 128 lanes x 4B = 2 MiB per f32 slab -> comfortable on v5e/v6e/v7x


def _round_up(x, m):
    return (x + m - 1) // m * m


def _vmem_limit_bytes():
    # Raise the scoped-VMEM cap (default 16/32 MiB) but never past half the physical capacity,
    # so the same setting is safe on v5e/v6e (128 MiB) and v7x (64 MiB).
    try:
        cap = pltpu.get_tpu_info().vmem_capacity_bytes
        return int(min(cap // 2, 96 * 1024 * 1024))
    except Exception:
        return 32 * 1024 * 1024


# --------------------------- kernels ---------------------------

def _conv_stats_kernel(bd, hh, ww, cin, halo_ref, w_ref, conv_ref, stats_ref, tap_ref):
    """conv3x3x3 for one depth-block tile + per-channel sum/sumsq accumulation.

    halo_ref : (bd+2, hh+2, ww+2, cin)  padded input tile (depth halo included)
    w_ref    : (27*cin, coutp)          packed weights, resident across the grid
    conv_ref : (mt, coutp)              raw conv output tile, mt = bd*hh*ww
    stats_ref: (2, coutp)               [sum, sumsq] accumulated over the whole grid
    tap_ref  : (mt, 27*cin)             VMEM scratch: im2col matrix built in-kernel
    """
    mt = bd * hh * ww

    # In-kernel im2col: 27 statically shifted views of the halo tile written into VMEM scratch.
    for kd in range(3):
        for kh in range(3):
            for kw in range(3):
                t = (kd * 3 + kh) * 3 + kw
                slab = halo_ref[kd:kd + bd, kh:kh + hh, kw:kw + ww, :]
                tap_ref[:, t * cin:(t + 1) * cin] = slab.reshape(mt, cin)

    # Single large-K contraction (K = 27*cin); accumulation stays inside the MXU.
    acc = jnp.dot(tap_ref[...], w_ref[...], preferred_element_type=jnp.float32)  # (mt, coutp)
    conv_ref[...] = acc

    # Global BatchNorm statistics: per-channel sum / sum-of-squares accumulated across the grid.
    @pl.when(pl.program_id(0) == 0)
    def _init():
        stats_ref[...] = jnp.zeros_like(stats_ref)

    sums = jnp.concatenate(
        [jnp.sum(acc, axis=0, keepdims=True),
         jnp.sum(acc * acc, axis=0, keepdims=True)],
        axis=0)                                   # (2, coutp)
    stats_ref[...] = stats_ref[...] + sums


def _bn_apply_kernel(add_residual, *refs):
    """Fused BN affine (y = conv*scale + shift) [+ residual] + ReLU for one tile."""
    if add_residual:
        conv_ref, scale_ref, shift_ref, res_ref, out_ref = refs
    else:
        conv_ref, scale_ref, shift_ref, out_ref = refs
        res_ref = None
    y = conv_ref[...] * scale_ref[...] + shift_ref[...]
    if res_ref is not None:
        y = y + res_ref[...]
    out_ref[...] = jnp.maximum(y, 0.0).astype(out_ref.dtype)


# ------------------------ pallas_call wrappers ------------------------

def _conv_stats(halos, w2d, bd, hh, ww, coutp):
    g = halos.shape[0]
    cin = halos.shape[-1]
    mt = bd * hh * ww
    kernel = functools.partial(_conv_stats_kernel, bd, hh, ww, cin)
    return pl.pallas_call(
        kernel,
        out_shape=(jax.ShapeDtypeStruct((g, mt, coutp), jnp.float32),
                   jax.ShapeDtypeStruct((2, coutp), jnp.float32)),
        grid=(g,),
        in_specs=[
            pl.BlockSpec((None, bd + 2, hh + 2, ww + 2, cin), lambda i: (i, 0, 0, 0, 0)),
            pl.BlockSpec((27 * cin, coutp), lambda i: (0, 0)),  # weights resident across the grid
        ],
        out_specs=(
            pl.BlockSpec((None, mt, coutp), lambda i: (i, 0, 0)),
            pl.BlockSpec((2, coutp), lambda i: (0, 0)),         # accumulator across the grid
        ),
        scratch_shapes=[pltpu.VMEM((mt, 27 * cin), jnp.float32)],
        compiler_params=pltpu.CompilerParams(
            dimension_semantics=("arbitrary",),                 # stats reduce over this axis
            vmem_limit_bytes=_vmem_limit_bytes()),
    )(halos, w2d)


def _bn_apply(conv, scale, shift, residual=None):
    g, mt, coutp = conv.shape
    add_res = residual is not None
    inputs = [conv, scale, shift]
    in_specs = [
        pl.BlockSpec((None, mt, coutp), lambda i: (i, 0, 0)),
        pl.BlockSpec((1, coutp), lambda i: (0, 0)),
        pl.BlockSpec((1, coutp), lambda i: (0, 0)),
    ]
    if add_res:
        inputs.append(residual)
        in_specs.append(pl.BlockSpec((None, mt, coutp), lambda i: (i, 0, 0)))
    return pl.pallas_call(
        functools.partial(_bn_apply_kernel, add_res),
        out_shape=jax.ShapeDtypeStruct((g, mt, coutp), jnp.float32),
        grid=(g,),
        in_specs=in_specs,
        out_specs=pl.BlockSpec((None, mt, coutp), lambda i: (i, 0, 0)),
        compiler_params=pltpu.CompilerParams(
            dimension_semantics=("parallel",),                  # independent tiles -> megacore
            vmem_limit_bytes=_vmem_limit_bytes()),
    )(*inputs)


# ------------------------ host-side glue ------------------------

def _pick_bd(d_out, hh, ww):
    best = 1
    for cand in range(1, d_out + 1):
        if d_out % cand == 0 and cand * hh * ww <= _TARGET_ROWS:
            best = cand
    return best


def _halo_blocks(x5, bd):
    """(N, D, H, W, C) -> (N*(D//bd), bd+2, H+2, W+2, C): overlapping depth slabs (halo = 1)."""
    n, d, h, w, c = x5.shape
    ndb = d // bd
    xp = jnp.pad(x5, ((0, 0), (1, 1), (1, 1), (1, 1), (0, 0)))
    idx = jnp.arange(ndb)[:, None] * bd + jnp.arange(bd + 2)[None, :]
    slabs = jnp.take(xp, idx, axis=1)                # (n, ndb, bd+2, h+2, w+2, c)
    return slabs.reshape(n * ndb, bd + 2, h + 2, w + 2, c)


def _pack_weights(w_oidhw, coutp):
    """PyTorch (Cout, Cin, 3, 3, 3) -> (27*Cin, Coutp); K ordered as (kd, kh, kw, cin)."""
    cout, cin = w_oidhw.shape[0], w_oidhw.shape[1]
    w2d = jnp.transpose(w_oidhw, (2, 3, 4, 1, 0)).reshape(27 * cin, cout)
    return jnp.pad(w2d, ((0, 0), (0, coutp - cout))).astype(jnp.float32)


def _bn_affine(stats, gamma, beta, m_total, coutp, eps):
    """Fold batch-stats BN into one scale/shift so the kernel epilogue is a single FMA."""
    cout = gamma.shape[0]
    g = jnp.pad(gamma.astype(jnp.float32), (0, coutp - cout))
    b = jnp.pad(beta.astype(jnp.float32), (0, coutp - cout))
    mean = stats[0] / m_total
    var = jnp.maximum(stats[1] / m_total - mean * mean, 0.0)
    scale = g * jax.lax.rsqrt(var + eps)
    shift = b - mean * scale
    return scale.reshape(1, coutp), shift.reshape(1, coutp)


def basic_block_forward(x_ncdhw, params, stride=1, eps=1e-5):
    """BasicBlock forward. x_ncdhw: (N, inplanes, D, H, W) f32 -> (N, planes, D, H, W)."""
    if stride != 1:
        # TODO(synk): stride>1 / downsample (1x1x1 conv + BN) branch not implemented; the module
        # instantiates this block with downsample=None, stride=1.
        raise NotImplementedError("only the stride=1 / downsample=None configuration is supported")

    x = jnp.transpose(x_ncdhw, (0, 2, 3, 4, 1)).astype(jnp.float32)    # NCDHW -> NDHWC
    n, d, h, w, cin = x.shape
    planes = params["conv1_w"].shape[0]
    assert cin == planes, "identity residual requires inplanes == planes"

    coutp = max(_LANE, _round_up(planes, _LANE))   # lane-dense channel layout (padded lanes stay 0)
    bd = _pick_bd(d, h, w)
    ndb = d // bd
    g = n * ndb
    mt = bd * h * w
    m_total = float(n * d * h * w)

    w1_2d = _pack_weights(params["conv1_w"], coutp)
    w2_2d = _pack_weights(params["conv2_w"], coutp)

    # conv1 -> bn1 -> relu
    conv1, stats1 = _conv_stats(_halo_blocks(x, bd), w1_2d, bd, h, w, coutp)
    scale1, shift1 = _bn_affine(stats1, params["bn1_gamma"], params["bn1_beta"], m_total, coutp, eps)
    out1 = _bn_apply(conv1, scale1, shift1)                            # (g, mt, coutp)

    # conv2 -> bn2 -> +identity -> relu
    out1_sp = out1.reshape(n, ndb, bd, h, w, coutp).reshape(n, d, h, w, coutp)[..., :planes]
    conv2, stats2 = _conv_stats(_halo_blocks(out1_sp, bd), w2_2d, bd, h, w, coutp)
    scale2, shift2 = _bn_affine(stats2, params["bn2_gamma"], params["bn2_beta"], m_total, coutp, eps)

    res = jnp.pad(x, ((0, 0), (0, 0), (0, 0), (0, 0), (0, coutp - cin)))
    res = res.reshape(n, ndb, bd, h, w, coutp).reshape(g, mt, coutp)
    out2 = _bn_apply(conv2, scale2, shift2, residual=res)              # (g, mt, coutp)

    y = out2.reshape(n, ndb, bd, h, w, coutp).reshape(n, d, h, w, coutp)[..., :planes]
    return jnp.transpose(y, (0, 4, 1, 2, 3))                           # NDHWC -> NCDHW


# ---------------- pure-JAX reference for verification ----------------

def _ref_conv(x, w):
    return jax.lax.conv_general_dilated(
        x, w, window_strides=(1, 1, 1), padding=((1, 1),) * 3,
        dimension_numbers=("NCDHW", "OIDHW", "NCDHW"),
        precision=jax.lax.Precision.HIGHEST)


def _ref_bn(y, gamma, beta, eps=1e-5):
    mean = y.mean(axis=(0, 2, 3, 4), keepdims=True)
    var = ((y - mean) ** 2).mean(axis=(0, 2, 3, 4), keepdims=True)
    g = gamma.reshape(1, -1, 1, 1, 1)
    b = beta.reshape(1, -1, 1, 1, 1)
    return (y - mean) * jax.lax.rsqrt(var + eps) * g + b


def _ref_forward(x, p, eps=1e-5):
    out = jnp.maximum(_ref_bn(_ref_conv(x, p["conv1_w"]), p["bn1_gamma"], p["bn1_beta"], eps), 0.0)
    out = _ref_bn(_ref_conv(out, p["conv2_w"]), p["bn2_gamma"], p["bn2_beta"], eps)
    return jnp.maximum(out + x, 0.0)


if __name__ == "__main__":
    key = jax.random.PRNGKey(0)
    k1, k2, k3, k4, k5, k6, kx = jax.random.split(key, 7)

    N, inplanes, planes, D, H, W = 2, 8, 8, 8, 8, 8

    params = {
        "conv1_w": jax.random.normal(k1, (planes, inplanes, 3, 3, 3), jnp.float32)
                   * (2.0 / (inplanes * 27)) ** 0.5,
        "conv2_w": jax.random.normal(k2, (planes, planes, 3, 3, 3), jnp.float32)
                   * (2.0 / (planes * 27)) ** 0.5,
        "bn1_gamma": 1.0 + 0.1 * jax.random.normal(k3, (planes,), jnp.float32),
        "bn1_beta": 0.1 * jax.random.normal(k4, (planes,), jnp.float32),
        "bn2_gamma": 1.0 + 0.1 * jax.random.normal(k5, (planes,), jnp.float32),
        "bn2_beta": 0.1 * jax.random.normal(k6, (planes,), jnp.float32),
    }

    x = jax.random.normal(kx, (N, inplanes, D, H, W), jnp.float32)

    out = jax.block_until_ready(basic_block_forward(x, params))
    ref = jax.block_until_ready(_ref_forward(x, params))

    assert out.shape == (N, planes, D, H, W), out.shape
    max_err = float(jnp.max(jnp.abs(out - ref)))
    assert jnp.allclose(out, ref, atol=5e-3, rtol=5e-3), max_err

    print("KERNEL_OK")
</pallas_src>

<mosaic_0001>
module attributes {stable_mosaic.version = 11 : i64} {
  func.func @_conv_stats_kernel(%arg0: i32, %arg1: memref<1x10x10x10x8xf32, #tpu.memory_space<vmem>>, %arg2: memref<216x128xf32, #tpu.memory_space<vmem>>, %arg3: memref<1x512x128xf32, #tpu.memory_space<vmem>>, %arg4: memref<2x128xf32, #tpu.memory_space<vmem>>, %arg5: memref<512x216xf32, #tpu.memory_space<vmem>>) attributes {dimension_semantics = [#tpu.dimension_semantics<arbitrary>], iteration_bounds = array<i64: 2>, scalar_prefetch = 0 : i64, scratch_operands = 1 : i64, tpu.core_type = #tpu.core_type<tc>, window_params = [{transform_indices = @transform_0, window_bounds = array<i64: 1, 10, 10, 10, 8>}, {pipeline_mode = #tpu.pipeline_mode<synchronous>, transform_indices = @transform_1, window_bounds = array<i64: 216, 128>}, {transform_indices = @transform_2, window_bounds = array<i64: 1, 512, 128>}, {pipeline_mode = #tpu.pipeline_mode<synchronous>, transform_indices = @transform_3, window_bounds = array<i64: 2, 128>}]} {
    %c0 = arith.constant 0 : index
    %c0_0 = arith.constant 0 : index
    %c0_1 = arith.constant 0 : index
    %c0_2 = arith.constant 0 : index
    %c0_3 = arith.constant 0 : index
    %0 = vector.load %arg1[%c0, %c0_0, %c0_1, %c0_2, %c0_3] : memref<1x10x10x10x8xf32, #tpu.memory_space<vmem>>, vector<1x8x8x8x8xf32>
    %1 = vector.shape_cast %0 : vector<1x8x8x8x8xf32> to vector<8x8x8x8xf32>
    %2 = vector.shape_cast %1 : vector<8x8x8x8xf32> to vector<512x8xf32>
    %c0_4 = arith.constant 0 : index
    %c0_5 = arith.constant 0 : index
    %3 = vector.load %arg5[%c0_4, %c0_5] : memref<512x216xf32, #tpu.memory_space<vmem>>, vector<512x8xf32>
    tpu.vector_store %arg5[%c0_4, %c0_5], %2 {strides = array<i32>} : memref<512x216xf32, #tpu.memory_space<vmem>>, vector<512x8xf32>,
    %c0_6 = arith.constant 0 : index
    %c0_7 = arith.constant 0 : index
    %c0_8 = arith.constant 0 : index
    %c1 = arith.constant 1 : index
    %c0_9 = arith.constant 0 : index
    %4 = vector.load %arg1[%c0_6, %c0_7, %c0_8, %c1, %c0_9] : memref<1x10x10x10x8xf32, #tpu.memory_space<vmem>>, vector<1x8x8x8x8xf32>
    %5 = vector.shape_cast %4 : vector<1x8x8x8x8xf32> to vector<8x8x8x8xf32>
    %6 = vector.shape_cast %5 : vector<8x8x8x8xf32> to vector<512x8xf32>
    %c0_10 = arith.constant 0 : index
    %c8 = arith.constant 8 : index
    %7 = vector.load %arg5[%c0_10, %c8] : memref<512x216xf32, #tpu.memory_space<vmem>>, vector<512x8xf32>
    tpu.vector_store %arg5[%c0_10, %c8], %6 {strides = array<i32>} : memref<512x216xf32, #tpu.memory_space<vmem>>, vector<512x8xf32>,
    %c0_11 = arith.constant 0 : index
    %c0_12 = arith.constant 0 : index
    %c0_13 = arith.constant 0 : index
    %c2 = arith.constant 2 : index
    %c0_14 = arith.constant 0 : index
    %8 = vector.load %arg1[%c0_11, %c0_12, %c0_13, %c2, %c0_14] : memref<1x10x10x10x8xf32, #tpu.memory_space<vmem>>, vector<1x8x8x8x8xf32>
    %9 = vector.shape_cast %8 : vector<1x8x8x8x8xf32> to vector<8x8x8x8xf32>
    %10 = vector.shape_cast %9 : vector<8x8x8x8xf32> to vector<512x8xf32>
    %c0_15 = arith.constant 0 : index
    %c16 = arith.constant 16 : index
    %11 = vector.load %arg5[%c0_15, %c16] : memref<512x216xf32, #tpu.memory_space<vmem>>, vector<512x8xf32>
    tpu.vector_store %arg5[%c0_15, %c16], %10 {strides = array<i32>} : memref<512x216xf32, #tpu.memory_space<vmem>>, vector<512x8xf32>,
    %c0_16 = arith.constant 0 : index
    %c0_17 = arith.constant 0 : index
    %c1_18 = arith.constant 1 : index
    %c0_19 = arith.constant 0 : index
    %c0_20 = arith.constant 0 : index
    %12 = vector.load %arg1[%c0_16, %c0_17, %c1_18, %c0_19, %c0_20] : memref<1x10x10x10x8xf32, #tpu.memory_space<vmem>>, vector<1x8x8x8x8xf32>
    %13 = vector.shape_cast %12 : vector<1x8x8x8x8xf32> to vector<8x8x8x8xf32>
    %14 = vector.shape_cast %13 : vector<8x8x8x8xf32> to vector<512x8xf32>
    %c0_21 = arith.constant 0 : index
    %c24 = arith.constant 24 : index
    %15 = vector.load %arg5[%c0_21, %c24] : memref<512x216xf32, #tpu.memory_space<vmem>>, vector<512x8xf32>
    tpu.vector_store %arg5[%c0_21, %c24], %14 {strides = array<i32>} : memref<512x216xf32, #tpu.memory_space<vmem>>, vector<512x8xf32>,
    %c0_22 = arith.constant 0 : index
    %c0_23 = arith.constant 0 : index
    %c1_24 = arith.constant 1 : index
    %c1_25 = arith.constant 1 : index
    %c0_26 = arith.constant 0 : index
    %16 = vector.load %arg1[%c0_22, %c0_23, %c1_24, %c1_25, %c0_26] : memref<1x10x10x10x8xf32, #tpu.memory_space<vmem>>, vector<1x8x8x8x8xf32>
    %17 = vector.shape_cast %16 : vector<1x8x8x8x8xf32> to vector<8x8x8x8xf32>
    %18 = vector.shape_cast %17 : vector<8x8x8x8xf32> to vector<512x8xf32>
    %c0_27 = arith.constant 0 : index
    %c32 = arith.constant 32 : index
    %19 = vector.load %arg5[%c0_27, %c32] : memref<512x216xf32, #tpu.memory_space<vmem>>, vector<512x8xf32>
    tpu.vector_store %arg5[%c0_27, %c32], %18 {strides = array<i32>} : memref<512x216xf32, #tpu.memory_space<vmem>>, vector<512x8xf32>,
    %c0_28 = arith.constant 0 : index
    %c0_29 = arith.constant 0 : index
    %c1_30 = arith.constant 1 : index
    %c2_31 = arith.constant 2 : index
    %c0_32 = arith.constant 0 : index
    %20 = vector.load %arg1[%c0_28, %c0_29, %c1_30, %c2_31, %c0_32] : memref<1x10x10x10x8xf32, #tpu.memory_space<vmem>>, vector<1x8x8x8x8xf32>
    %21 = vector.shape_cast %20 : vector<1x8x8x8x8xf32> to vector<8x8x8x8xf32>
    %22 = vector.shape_cast %21 : vector<8x8x8x8xf32> to vector<512x8xf32>
    %c0_33 = arith.constant 0 : index
    %c40 = arith.constant 40 : index
    %23 = vector.load %arg5[%c0_33, %c40] : memref<512x216xf32, #tpu.memory_space<vmem>>, vector<512x8xf32>
    tpu.vector_store %arg5[%c0_33, %c40], %22 {strides = array<i32>} : memref<512x216xf32, #tpu.memory_space<vmem>>, vector<512x8xf32>,
    %c0_34 = arith.constant 0 : index
    %c0_35 = arith.constant 0 : index
    %c2_36 = arith.constant 2 : index
    %c0_37 = arith.constant 0 : index
    %c0_38 = arith.constant 0 : index
    %24 = vector.load %arg1[%c0_34, %c0_35, %c2_36, %c0_37, %c0_38] : memref<1x10x10x10x8xf32, #tpu.memory_space<vmem>>, vector<1x8x8x8x8xf32>
    %25 = vector.shape_cast %24 : vector<1x8x8x8x8xf32> to vector<8x8x8x8xf32>
    %26 = vector.shape_cast %25 : vector<8x8x8x8xf32> to vector<512x8xf32>
    %c0_39 = arith.constant 0 : index
    %c48 = arith.constant 48 : index
    %27 = vector.load %arg5[%c0_39, %c48] : memref<512x216xf32, #tpu.memory_space<vmem>>, vector<512x8xf32>
    tpu.vector_store %arg5[%c0_39, %c48], %26 {strides = array<i32>} : memref<512x216xf32, #tpu.memory_space<vmem>>, vector<512x8xf32>,
    %c0_40 = arith.constant 0 : index
    %c0_41 = arith.constant 0 : index
    %c2_42 = arith.constant 2 : index
    %c1_43 = arith.constant 1 : index
    %c0_44 = arith.constant 0 : index
    %28 = vector.load %arg1[%c0_40, %c0_41, %c2_42, %c1_43, %c0_44] : memref<1x10x10x10x8xf32, #tpu.memory_space<vmem>>, vector<1x8x8x8x8xf32>
    %29 = vector.shape_cast %28 : vector<1x8x8x8x8xf32> to vector<8x8x8x8xf32>
    %30 = vector.shape_cast %29 : vector<8x8x8x8xf32> to vector<512x8xf32>
    %c0_45 = arith.constant 0 : index
    %c56 = arith.constant 56 : index
    %31 = vector.load %arg5[%c0_45, %c56] : memref<512x216xf32, #tpu.memory_space<vmem>>, vector<512x8xf32>
    tpu.vector_store %arg5[%c0_45, %c56], %30 {strides = array<i32>} : memref<512x216xf32, #tpu.memory_space<vmem>>, vector<512x8xf32>,
    %c0_46 = arith.constant 0 : index
    %c0_47 = arith.constant 0 : index
    %c2_48 = arith.constant 2 : index
    %c2_49 = arith.constant 2 : index
    %c0_50 = arith.constant 0 : index
    %32 = vector.load %arg1[%c0_46, %c0_47, %c2_48, %c2_49, %c0_50] : memref<1x10x10x10x8xf32, #tpu.memory_space<vmem>>, vector<1x8x8x8x8xf32>
    %33 = vector.shape_cast %32 : vector<1x8x8x8x8xf32> to vector<8x8x8x8xf32>
    %34 = vector.shape_cast %33 : vector<8x8x8x8xf32> to vector<512x8xf32>
    %c0_51 = arith.constant 0 : index
    %c64 = arith.constant 64 : index
    %35 = vector.load %arg5[%c0_51, %c64] : memref<512x216xf32, #tpu.memory_space<vmem>>, vector<512x8xf32>
    tpu.vector_store %arg5[%c0_51, %c64], %34 {strides = array<i32>} : memref<512x216xf32, #tpu.memory_space<vmem>>, vector<512x8xf32>,
    %c0_52 = arith.constant 0 : index
    %c1_53 = arith.constant 1 : index
    %c0_54 = arith.constant 0 : index
    %c0_55 = arith.constant 0 : index
    %c0_56 = arith.constant 0 : index
    %36 = vector.load %arg1[%c0_52, %c1_53, %c0_54, %c0_55, %c0_56] : memref<1x10x10x10x8xf32, #tpu.memory_space<vmem>>, vector<1x8x8x8x8xf32>
    %37 = vector.shape_cast %36 : vector<1x8x8x8x8xf32> to vector<8x8x8x8xf32>
    %38 = vector.shape_cast %37 : vector<8x8x8x8xf32> to vector<512x8xf32>
    %c0_57 = arith.constant 0 : index
    %c72 = arith.constant 72 : index
    %39 = vector.load %arg5[%c0_57, %c72] : memref<512x216xf32, #tpu.memory_space<vmem>>, vector<512x8xf32>
    tpu.vector_store %arg5[%c0_57, %c72], %38 {strides = array<i32>} : memref<512x216xf32, #tpu.memory_space<vmem>>, vector<512x8xf32>,
    %c0_58 = arith.constant 0 : index
    %c1_59 = arith.constant 1 : index
    %c0_60 = arith.constant 0 : index
    %c1_61 = arith.constant 1 : index
    %c0_62 = arith.constant 0 : index
    %40 = vector.load %arg1[%c0_58, %c1_59, %c0_60, %c1_61, %c0_62] : memref<1x10x10x10x8xf32, #tpu.memory_space<vmem>>, vector<1x8x8x8x8xf32>
    %41 = vector.shape_cast %40 : vector<1x8x8x8x8xf32> to vector<8x8x8x8xf32>
    %42 = vector.shape_cast %41 : vector<8x8x8x8xf32> to vector<512x8xf32>
    %c0_63 = arith.constant 0 : index
    %c80 = arith.constant 80 : index
    %43 = vector.load %arg5[%c0_63, %c80] : memref<512x216xf32, #tpu.memory_space<vmem>>, vector<512x8xf32>
    tpu.vector_store %arg5[%c0_63, %c80], %42 {strides = array<i32>} : memref<512x216xf32, #tpu.memory_space<vmem>>, vector<512x8xf32>,
    %c0_64 = arith.constant 0 : index
    %c1_65 = arith.constant 1 : index
    %c0_66 = arith.constant 0 : index
    %c2_67 = arith.constant 2 : index
    %c0_68 = arith.constant 0 : index
    %44 = vector.load %arg1[%c0_64, %c1_65, %c0_66, %c2_67, %c0_68] : memref<1x10x10x10x8xf32, #tpu.memory_space<vmem>>, vector<1x8x8x8x8xf32>
    %45 = vector.shape_cast %44 : vector<1x8x8x8x8xf32> to vector<8x8x8x8xf32>
    %46 = vector.shape_cast %45 : vector<8x8x8x8xf32> to vector<512x8xf32>
    %c0_69 = arith.constant 0 : index
    %c88 = arith.constant 88 : index
    %47 = vector.load %arg5[%c0_69, %c88] : memref<512x216xf32, #tpu.memory_space<vmem>>, vector<512x8xf32>
    tpu.vector_store %arg5[%c0_69, %c88], %46 {strides = array<i32>} : memref<512x216xf32, #tpu.memory_space<vmem>>, vector<512x8xf32>,
    %c0_70 = arith.constant 0 : index
    %c1_71 = arith.constant 1 : index
    %c1_72 = arith.constant 1 : index
    %c0_73 = arith.constant 0 : index
    %c0_74 = arith.constant 0 : index
    %48 = vector.load %arg1[%c0_70, %c1_71, %c1_72, %c0_73, %c0_74] : memref<1x10x10x10x8xf32, #tpu.memory_space<vmem>>, vector<1x8x8x8x8xf32>
    %49 = vector.shape_cast %48 : vector<1x8x8x8x8xf32> to vector<8x8x8x8xf32>
    %50 = vector.shape_cast %49 : vector<8x8x8x8xf32> to vector<512x8xf32>
    %c0_75 = arith.constant 0 : index
    %c96 = arith.constant 96 : index
    %51 = vector.load %arg5[%c0_75, %c96] : memref<512x216xf32, #tpu.memory_space<vmem>>, vector<512x8xf32>
    tpu.vector_store %arg5[%c0_75, %c96], %50 {strides = array<i32>} : memref<512x216xf32, #tpu.memory_space<vmem>>, vector<512x8xf32>,
    %c0_76 = arith.constant 0 : index
    %c1_77 = arith.constant 1 : index
    %c1_78 = arith.constant 1 : index
    %c1_79 = arith.constant 1 : index
    %c0_80 = arith.constant 0 : index
    %52 = vector.load %arg1[%c0_76, %c1_77, %c1_78, %c1_79, %c0_80] : memref<1x10x10x10x8xf32, #tpu.memory_space<vmem>>, vector<1x8x8x8x8xf32>
    %53 = vector.shape_cast %52 : vector<1x8x8x8x8xf32> to vector<8x8x8x8xf32>
    %54 = vector.shape_cast %53 : vector<8x8x8x8xf32> to vector<512x8xf32>
    %c0_81 = arith.constant 0 : index
    %c104 = arith.constant 104 : index
    %55 = vector.load %arg5[%c0_81, %c104] : memref<512x216xf32, #tpu.memory_space<vmem>>, vector<512x8xf32>
    tpu.vector_store %arg5[%c0_81, %c104], %54 {strides = array<i32>} : memref<512x216xf32, #tpu.memory_space<vmem>>, vector<512x8xf32>,
    %c0_82 = arith.constant 0 : index
    %c1_83 = arith.constant 1 : index
    %c1_84 = arith.constant 1 : index
    %c2_85 = arith.constant 2 : index
    %c0_86 = arith.constant 0 : index
    %56 = vector.load %arg1[%c0_82, %c1_83, %c1_84, %c2_85, %c0_86] : memref<1x10x10x10x8xf32, #tpu.memory_space<vmem>>, vector<1x8x8x8x8xf32>
    %57 = vector.shape_cast %56 : vector<1x8x8x8x8xf32> to vector<8x8x8x8xf32>
    %58 = vector.shape_cast %57 : vector<8x8x8x8xf32> to vector<512x8xf32>
    %c0_87 = arith.constant 0 : index
    %c112 = arith.constant 112 : index
    %59 = vector.load %arg5[%c0_87, %c112] : memref<512x216xf32, #tpu.memory_space<vmem>>, vector<512x8xf32>
    tpu.vector_store %arg5[%c0_87, %c112], %58 {strides = array<i32>} : memref<512x216xf32, #tpu.memory_space<vmem>>, vector<512x8xf32>,
    %c0_88 = arith.constant 0 : index
    %c1_89 = arith.constant 1 : index
    %c2_90 = arith.constant 2 : index
    %c0_91 = arith.constant 0 : index
    %c0_92 = arith.constant 0 : index
    %60 = vector.load %arg1[%c0_88, %c1_89, %c2_90, %c0_91, %c0_92] : memref<1x10x10x10x8xf32, #tpu.memory_space<vmem>>, vector<1x8x8x8x8xf32>
    %61 = vector.shape_cast %60 : vector<1x8x8x8x8xf32> to vector<8x8x8x8xf32>
    %62 = vector.shape_cast %61 : vector<8x8x8x8xf32> to vector<512x8xf32>
    %c0_93 = arith.constant 0 : index
    %c120 = arith.constant 120 : index
    %63 = vector.load %arg5[%c0_93, %c120] : memref<512x216xf32, #tpu.memory_space<vmem>>, vector<512x8xf32>
    tpu.vector_store %arg5[%c0_93, %c120], %62 {strides = array<i32>} : memref<512x216xf32, #tpu.memory_space<vmem>>, vector<512x8xf32>,
    %c0_94 = arith.constant 0 : index
    %c1_95 = arith.constant 1 : index
    %c2_96 = arith.constant 2 : index
    %c1_97 = arith.constant 1 : index
    %c0_98 = arith.constant 0 : index
    %64 = vector.load %arg1[%c0_94, %c1_95, %c2_96, %c1_97, %c0_98] : memref<1x10x10x10x8xf32, #tpu.memory_space<vmem>>, vector<1x8x8x8x8xf32>
    %65 = vector.shape_cast %64 : vector<1x8x8x8x8xf32> to vector<8x8x8x8xf32>
    %66 = vector.shape_cast %65 : vector<8x8x8x8xf32> to vector<512x8xf32>
    %c0_99 = arith.constant 0 : index
    %c128 = arith.constant 128 : index
    %67 = vector.load %arg5[%c0_99, %c128] : memref<512x216xf32, #tpu.memory_space<vmem>>, vector<512x8xf32>
    tpu.vector_store %arg5[%c0_99, %c128], %66 {strides = array<i32>} : memref<512x216xf32, #tpu.memory_space<vmem>>, vector<512x8xf32>,
    %c0_100 = arith.constant 0 : index
    %c1_101 = arith.constant 1 : index
    %c2_102 = arith.constant 2 : index
    %c2_103 = arith.constant 2 : index
    %c0_104 = arith.constant 0 : index
    %68 = vector.load %arg1[%c0_100, %c1_101, %c2_102, %c2_103, %c0_104] : memref<1x10x10x10x8xf32, #tpu.memory_space<vmem>>, vector<1x8x8x8x8xf32>
    %69 = vector.shape_cast %68 : vector<1x8x8x8x8xf32> to vector<8x8x8x8xf32>
    %70 = vector.shape_cast %69 : vector<8x8x8x8xf32> to vector<512x8xf32>
    %c0_105 = arith.constant 0 : index
    %c136 = arith.constant 136 : index
    %71 = vector.load %arg5[%c0_105, %c136] : memref<512x216xf32, #tpu.memory_space<vmem>>, vector<512x8xf32>
    tpu.vector_store %arg5[%c0_105, %c136], %70 {strides = array<i32>} : memref<512x216xf32, #tpu.memory_space<vmem>>, vector<512x8xf32>,
    %c0_106 = arith.constant 0 : index
    %c2_107 = arith.constant 2 : index
    %c0_108 = arith.constant 0 : index
    %c0_109 = arith.constant 0 : index
    %c0_110 = arith.constant 0 : index
    %72 = vector.load %arg1[%c0_106, %c2_107, %c0_108, %c0_109, %c0_110] : memref<1x10x10x10x8xf32, #tpu.memory_space<vmem>>, vector<1x8x8x8x8xf32>
    %73 = vector.shape_cast %72 : vector<1x8x8x8x8xf32> to vector<8x8x8x8xf32>
    %74 = vector.shape_cast %73 : vector<8x8x8x8xf32> to vector<512x8xf32>
    %c0_111 = arith.constant 0 : index
    %c144 = arith.constant 144 : index
    %75 = vector.load %arg5[%c0_111, %c144] : memref<512x216xf32, #tpu.memory_space<vmem>>, vector<512x8xf32>
    tpu.vector_store %arg5[%c0_111, %c144], %74 {strides = array<i32>} : memref<512x216xf32, #tpu.memory_space<vmem>>, vector<512x8xf32>,
    %c0_112 = arith.constant 0 : index
    %c2_113 = arith.constant 2 : index
    %c0_114 = arith.constant 0 : index
    %c1_115 = arith.constant 1 : index
    %c0_116 = arith.constant 0 : index
    %76 = vector.load %arg1[%c0_112, %c2_113, %c0_114, %c1_115, %c0_116] : memref<1x10x10x10x8xf32, #tpu.memory_space<vmem>>, vector<1x8x8x8x8xf32>
    %77 = vector.shape_cast %76 : vector<1x8x8x8x8xf32> to vector<8x8x8x8xf32>
    %78 = vector.shape_cast %77 : vector<8x8x8x8xf32> to vector<512x8xf32>
    %c0_117 = arith.constant 0 : index
    %c152 = arith.constant 152 : index
    %79 = vector.load %arg5[%c0_117, %c152] : memref<512x216xf32, #tpu.memory_space<vmem>>, vector<512x8xf32>
    tpu.vector_store %arg5[%c0_117, %c152], %78 {strides = array<i32>} : memref<512x216xf32, #tpu.memory_space<vmem>>, vector<512x8xf32>,
    %c0_118 = arith.constant 0 : index
    %c2_119 = arith.constant 2 : index
    %c0_120 = arith.constant 0 : index
    %c2_121 = arith.constant 2 : index
    %c0_122 = arith.constant 0 : index
    %80 = vector.load %arg1[%c0_118, %c2_119, %c0_120, %c2_121, %c0_122] : memref<1x10x10x10x8xf32, #tpu.memory_space<vmem>>, vector<1x8x8x8x8xf32>
    %81 = vector.shape_cast %80 : vector<1x8x8x8x8xf32> to vector<8x8x8x8xf32>
    %82 = vector.shape_cast %81 : vector<8x8x8x8xf32> to vector<512x8xf32>
    %c0_123 = arith.constant 0 : index
    %c160 = arith.constant 160 : index
    %83 = vector.load %arg5[%c0_123, %c160] : memref<512x216xf32, #tpu.memory_space<vmem>>, vector<512x8xf32>
    tpu.vector_store %arg5[%c0_123, %c160], %82 {strides = array<i32>} : memref<512x216xf32, #tpu.memory_space<vmem>>, vector<512x8xf32>,
    %c0_124 = arith.constant 0 : index
    %c2_125 = arith.constant 2 : index
    %c1_126 = arith.constant 1 : index
    %c0_127 = arith.constant 0 : index
    %c0_128 = arith.constant 0 : index
    %84 = vector.load %arg1[%c0_124, %c2_125, %c1_126, %c0_127, %c0_128] : memref<1x10x10x10x8xf32, #tpu.memory_space<vmem>>, vector<1x8x8x8x8xf32>
    %85 = vector.shape_cast %84 : vector<1x8x8x8x8xf32> to vector<8x8x8x8xf32>
    %86 = vector.shape_cast %85 : vector<8x8x8x8xf32> to vector<512x8xf32>
    %c0_129 = arith.constant 0 : index
    %c168 = arith.constant 168 : index
    %87 = vector.load %arg5[%c0_129, %c168] : memref<512x216xf32, #tpu.memory_space<vmem>>, vector<512x8xf32>
    tpu.vector_store %arg5[%c0_129, %c168], %86 {strides = array<i32>} : memref<512x216xf32, #tpu.memory_space<vmem>>, vector<512x8xf32>,
    %c0_130 = arith.constant 0 : index
    %c2_131 = arith.constant 2 : index
    %c1_132 = arith.constant 1 : index
    %c1_133 = arith.constant 1 : index
    %c0_134 = arith.constant 0 : index
    %88 = vector.load %arg1[%c0_130, %c2_131, %c1_132, %c1_133, %c0_134] : memref<1x10x10x10x8xf32, #tpu.memory_space<vmem>>, vector<1x8x8x8x8xf32>
    %89 = vector.shape_cast %88 : vector<1x8x8x8x8xf32> to vector<8x8x8x8xf32>
    %90 = vector.shape_cast %89 : vector<8x8x8x8xf32> to vector<512x8xf32>
    %c0_135 = arith.constant 0 : index
    %c176 = arith.constant 176 : index
    %91 = vector.load %arg5[%c0_135, %c176] : memref<512x216xf32, #tpu.memory_space<vmem>>, vector<512x8xf32>
    tpu.vector_store %arg5[%c0_135, %c176], %90 {strides = array<i32>} : memref<512x216xf32, #tpu.memory_space<vmem>>, vector<512x8xf32>,
    %c0_136 = arith.constant 0 : index
    %c2_137 = arith.constant 2 : index
    %c1_138 = arith.constant 1 : index
    %c2_139 = arith.constant 2 : index
    %c0_140 = arith.constant 0 : index
    %92 = vector.load %arg1[%c0_136, %c2_137, %c1_138, %c2_139, %c0_140] : memref<1x10x10x10x8xf32, #tpu.memory_space<vmem>>, vector<1x8x8x8x8xf32>
    %93 = vector.shape_cast %92 : vector<1x8x8x8x8xf32> to vector<8x8x8x8xf32>
    %94 = vector.shape_cast %93 : vector<8x8x8x8xf32> to vector<512x8xf32>
    %c0_141 = arith.constant 0 : index
    %c184 = arith.constant 184 : index
    %95 = vector.load %arg5[%c0_141, %c184] : memref<512x216xf32, #tpu.memory_space<vmem>>, vector<512x8xf32>
    tpu.vector_store %arg5[%c0_141, %c184], %94 {strides = array<i32>} : memref<512x216xf32, #tpu.memory_space<vmem>>, vector<512x8xf32>,
    %c0_142 = arith.constant 0 : index
    %c2_143 = arith.constant 2 : index
    %c2_144 = arith.constant 2 : index
    %c0_145 = arith.constant 0 : index
    %c0_146 = arith.constant 0 : index
    %96 = vector.load %arg1[%c0_142, %c2_143, %c2_144, %c0_145, %c0_146] : memref<1x10x10x10x8xf32, #tpu.memory_space<vmem>>, vector<1x8x8x8x8xf32>
    %97 = vector.shape_cast %96 : vector<1x8x8x8x8xf32> to vector<8x8x8x8xf32>
    %98 = vector.shape_cast %97 : vector<8x8x8x8xf32> to vector<512x8xf32>
    %c0_147 = arith.constant 0 : index
    %c192 = arith.constant 192 : index
    %99 = vector.load %arg5[%c0_147, %c192] : memref<512x216xf32, #tpu.memory_space<vmem>>, vector<512x8xf32>
    tpu.vector_store %arg5[%c0_147, %c192], %98 {strides = array<i32>} : memref<512x216xf32, #tpu.memory_space<vmem>>, vector<512x8xf32>,
    %c0_148 = arith.constant 0 : index
    %c2_149 = arith.constant 2 : index
    %c2_150 = arith.constant 2 : index
    %c1_151 = arith.constant 1 : index
    %c0_152 = arith.constant 0 : index
    %100 = vector.load %arg1[%c0_148, %c2_149, %c2_150, %c1_151, %c0_152] : memref<1x10x10x10x8xf32, #tpu.memory_space<vmem>>, vector<1x8x8x8x8xf32>
    %101 = vector.shape_cast %100 : vector<1x8x8x8x8xf32> to vector<8x8x8x8xf32>
    %102 = vector.shape_cast %101 : vector<8x8x8x8xf32> to vector<512x8xf32>
    %c0_153 = arith.constant 0 : index
    %c200 = arith.constant 200 : index
    %103 = vector.load %arg5[%c0_153, %c200] : memref<512x216xf32, #tpu.memory_space<vmem>>, vector<512x8xf32>
    tpu.vector_store %arg5[%c0_153, %c200], %102 {strides = array<i32>} : memref<512x216xf32, #tpu.memory_space<vmem>>, vector<512x8xf32>,
    %c0_154 = arith.constant 0 : index
    %c2_155 = arith.constant 2 : index
    %c2_156 = arith.constant 2 : index
    %c2_157 = arith.constant 2 : index
    %c0_158 = arith.constant 0 : index
    %104 = vector.load %arg1[%c0_154, %c2_155, %c2_156, %c2_157, %c0_158] : memref<1x10x10x10x8xf32, #tpu.memory_space<vmem>>, vector<1x8x8x8x8xf32>
    %105 = vector.shape_cast %104 : vector<1x8x8x8x8xf32> to vector<8x8x8x8xf32>
    %106 = vector.shape_cast %105 : vector<8x8x8x8xf32> to vector<512x8xf32>
    %c0_159 = arith.constant 0 : index
    %c208 = arith.constant 208 : index
    %107 = vector.load %arg5[%c0_159, %c208] : memref<512x216xf32, #tpu.memory_space<vmem>>, vector<512x8xf32>
    tpu.vector_store %arg5[%c0_159, %c208], %106 {strides = array<i32>} : memref<512x216xf32, #tpu.memory_space<vmem>>, vector<512x8xf32>,
    %c0_160 = arith.constant 0 : index
    %c0_161 = arith.constant 0 : index
    %108 = vector.load %arg5[%c0_160, %c0_161] : memref<512x216xf32, #tpu.memory_space<vmem>>, vector<512x216xf32>
    %c0_162 = arith.constant 0 : index
    %c0_163 = arith.constant 0 : index
    %109 = vector.load %arg2[%c0_162, %c0_163] : memref<216x128xf32, #tpu.memory_space<vmem>>, vector<216x128xf32>
    %cst = arith.constant dense<0.000000e+00> : vector<512x128xf32>
    %110 = tpu.matmul %108, %109, %cst {dimension_numbers = #tpu.dot_dimension_numbers<[1], [0], [0], [1], [0, 0, 1, 1], [], []>} : vector<512x216xf32>, vector<216x128xf32>, vector<512x128xf32> -> vector<512x128xf32>
    %c0_164 = arith.constant 0 : index
    %c0_165 = arith.constant 0 : index
    %c0_166 = arith.constant 0 : index
    %111 = vector.load %arg3[%c0_164, %c0_165, %c0_166] : memref<1x512x128xf32, #tpu.memory_space<vmem>>, vector<1x512x128xf32>
    %112 = vector.shape_cast %111 : vector<1x512x128xf32> to vector<512x128xf32>
    %113 = vector.shape_cast %110 : vector<512x128xf32> to vector<1x512x128xf32>
    tpu.vector_store %arg3[%c0_164, %c0_165, %c0_166], %113 {strides = array<i32>} : memref<1x512x128xf32, #tpu.memory_space<vmem>>, vector<1x512x128xf32>,
    %c0_i32 = arith.constant 0 : i32
    %114 = arith.cmpi eq, %arg0, %c0_i32 : i32
    %115 = arith.extui %114 : i1 to i32
    %c0_i32_167 = arith.constant 0 : i32
    %116 = arith.cmpi ne, %115, %c0_i32_167 : i32
    scf.if %116 {
      %cst_174 = arith.constant 0.000000e+00 : f32
      %126 = vector.broadcast %cst_174 : f32 to vector<2x128xf32>
      %c0_175 = arith.constant 0 : index
      %c0_176 = arith.constant 0 : index
      %127 = vector.load %arg4[%c0_175, %c0_176] : memref<2x128xf32, #tpu.memory_space<vmem>>, vector<2x128xf32>
      tpu.vector_store %arg4[%c0_175, %c0_176], %126 {strides = array<i32>} : memref<2x128xf32, #tpu.memory_space<vmem>>, vector<2x128xf32>,
    } else {
    }
    %cst_168 = arith.constant dense<0.000000e+00> : vector<128xf32>
    %117 = vector.multi_reduction <add>, %110, %cst_168 [0] : vector<512x128xf32> to vector<128xf32>
    %118 = vector.shape_cast %117 : vector<128xf32> to vector<1x128xf32>
    %119 = arith.mulf %110, %110 : vector<512x128xf32>
    %cst_169 = arith.constant dense<0.000000e+00> : vector<128xf32>
    %120 = vector.multi_reduction <add>, %119, %cst_169 [0] : vector<512x128xf32> to vector<128xf32>
    %121 = vector.shape_cast %120 : vector<128xf32> to vector<1x128xf32>
    %122 = tpu.concatenate %118, %121 in 0 : vector<1x128xf32>, vector<1x128xf32> -> vector<2x128xf32>
    %c0_170 = arith.constant 0 : index
    %c0_171 = arith.constant 0 : index
    %123 = vector.load %arg4[%c0_170, %c0_171] : memref<2x128xf32, #tpu.memory_space<vmem>>, vector<2x128xf32>
    %124 = arith.addf %123, %122 : vector<2x128xf32>
    %c0_172 = arith.constant 0 : index
    %c0_173 = arith.constant 0 : index
    %125 = vector.load %arg4[%c0_172, %c0_173] : memref<2x128xf32, #tpu.memory_space<vmem>>, vector<2x128xf32>
    tpu.vector_store %arg4[%c0_172, %c0_173], %124 {strides = array<i32>} : memref<2x128xf32, #tpu.memory_space<vmem>>, vector<2x128xf32>,
    return
  }
  func.func @transform_0(%arg0: i32) -> (i32, i32, i32, i32, i32) {
    %c0_i32 = arith.constant 0 : i32
    %c0_i32_0 = arith.constant 0 : i32
    %c0_i32_1 = arith.constant 0 : i32
    %c0_i32_2 = arith.constant 0 : i32
    %c0_i32_3 = arith.constant 0 : i32
    return %arg0, %c0_i32, %c0_i32_0, %c0_i32_1, %c0_i32_2 : i32, i32, i32, i32, i32
  }
  func.func @transform_1(%arg0: i32) -> (i32, i32) {
    %c0_i32 = arith.constant 0 : i32
    %c0_i32_0 = arith.constant 0 : i32
    %c0_i32_1 = arith.constant 0 : i32
    return %c0_i32, %c0_i32_0 : i32, i32
  }
  func.func @transform_2(%arg0: i32) -> (i32, i32, i32) {
    %c0_i32 = arith.constant 0 : i32
    %c0_i32_0 = arith.constant 0 : i32
    %c0_i32_1 = arith.constant 0 : i32
    return %arg0, %c0_i32, %c0_i32_0 : i32, i32, i32
  }
  func.func @transform_3(%arg0: i32) -> (i32, i32) {
    %c0_i32 = arith.constant 0 : i32
    %c0_i32_0 = arith.constant 0 : i32
    %c0_i32_1 = arith.constant 0 : i32
    return %c0_i32, %c0_i32_0 : i32, i32
  }
}

</mosaic_0001>

<llo_original>
// kernel: tpu_custom_call.1
$region0: #{tpu_custom_call.1}
  #allocation0 [shape = 'u32[]', space=smem, size = 0x4, offset = 0x4, fixed_abs, tag = 'smem constant byte address 0x4 - core index']
  #allocation1 [shape = 'u32[72,128]{1,0:T(1,128)}', space=vmem, size = 0x9000, scoped, tag = 'internal scratch']
  #allocation2 [shape = 'f32[512,216]{1,0:T(8,128)}', space=vmem, size = 0x80000, scoped, tag = 'scratch operand']
  %s0 = inlined_call_operand.vmem [shape: f32[2,10,10,10,8], index: 0, kind: input, shape index: {}]
  %s1 = inlined_call_operand.vmem [shape: f32[216,128], index: 1, kind: input, shape index: {}]
  %s2 = inlined_call_operand.hbm [shape: f32[2,512,128], index: 2, kind: output, shape index: {0}]
  %s3 = inlined_call_operand.hbm [shape: f32[2,128], index: 3, kind: output, shape index: {1}]
  %4 = xla_tuple %s2, %s3
  %s5 = sld [smem:[#allocation0]]
  $region53: #{tpu_custom_call.1} parent=0
    _
  %s7 = ssub.s32 1, %s5
  %s8 = scalar_select 0, %s7, %s5
  $region1: #{tpu_custom_call.1} parent=0
    #allocation3 [shape = 'u8[524288]{0}', space=vmem, size = 0x80000, scoped, tag = 'output window, operand 0']
    #allocation4 [shape = 's32[2]{0}', space=sflag, size = 0x8, scoped, tag = 'scoped memory for tpu_custom_call.1']
    #allocation5 [shape = 'u8[1024]{0}', space=vmem, size = 0x400, scoped, tag = 'output window, operand 1, single buffered']
    #allocation6 [shape = 's32[1]{0}', space=sflag, size = 0x4, scoped, tag = 'scoped memory for tpu_custom_call.1']
    %9 = vsyncpa [#allocation4], 0
    %s10 = scalar_lea.sflag [#allocation4], 1
    %11 = vsyncpa %s10, 0
    %12 = vsyncpa [#allocation6], 0
    loop: start=0, step=1, limit=4
    $region2: #{tpu_custom_call.1} parent=1 // loop_pre_header
      _
    $region3: #{tpu_custom_call.1} parent=1 // loop_header
      %s14 = sphi 0, %s18
      %p15 = scmp.ge.s32.totalorder %s14, 4
      %s24 = sphi 0, %s26
      %s27 = sphi 0, %s24
      %s28 = sphi 0, %s27
      %s44 = sphi 0, %s28
      %s48 = sphi 0, %s48
      %s50 = sphi 0, %s48
      %s51 = sphi 0, %s50
      %s65 = sphi 0, %s51
      %s71 = sphi 0, %s73
      %s74 = sphi 0, %s71
      %s75 = sphi 0, %s74
      %s91 = sphi 0, %s75
      %s95 = sphi 0, %s95
      %s97 = sphi 0, %s95
      %s98 = sphi 0, %s97
      %s112 = sphi 0, %s98
    $region4: #{tpu_custom_call.1} parent=1 // loop_header_branch
      %17 = sbr.rel (%p15) target = $region8
    $region5: #{tpu_custom_call.1} parent=1 // loop_body
      %s19 = ssub.s32 %s14, 1
      %s20 = ssub.s32 %s14, 2
      %s21 = sadd.s32 %s14, 1
      %s22 = ssub.s32 %s14, %s21
      %p23 = scmp.eq.s32.totalorder %s22, 0
      %s25 = sadd.s32 %s24, 1
      %s26 = scalar_select %p23, %s24, %s25
      %p29 = pneg %p23
      %p30 = scmp.eq.s32.totalorder %s14, 1
      %p31 = por %p29, %p30
      %p32 = scmp.ne.s32.totalorder %s24, %s27
      %p33 = scmp.eq.s32.totalorder %s14, 0
      %p34 = por %p32, %p33
      %p35 = scmp.ne.s32.totalorder %s24, %s27
      %p36 = scmp.eq.s32.totalorder %s19, 1
      %p37 = por %p35, %p36
      %p38 = scmp.ne.s32.totalorder %s27, %s28
      %p39 = scmp.eq.s32.totalorder %s19, 0
      %p40 = por %p38, %p39
      %p41 = scmp.ne.s32.totalorder %s27, %s28
      %p42 = scmp.eq.s32.totalorder %s20, 1
      %p43 = por %p41, %p42
      %p45 = scmp.ne.s32.totalorder %s28, %s44
      %p46 = scmp.eq.s32.totalorder %s20, 0
      %p47 = por %p45, %p46
      %s49 = sadd.s32 %s48, 1
      %p52 = scmp.eq.s32.totalorder %s14, 1
      %p53 = scmp.ne.s32.totalorder %s48, %s50
      %p54 = scmp.eq.s32.totalorder %s14, 0
      %p55 = por %p53, %p54
      %p56 = scmp.ne.s32.totalorder %s48, %s50
      %p57 = scmp.eq.s32.totalorder %s19, 1
      %p58 = por %p56, %p57
      %p59 = scmp.ne.s32.totalorder %s50, %s51
      %p60 = scmp.eq.s32.totalorder %s19, 0
      %p61 = por %p59, %p60
      %p62 = scmp.ne.s32.totalorder %s50, %s51
      %p63 = scmp.eq.s32.totalorder %s20, 1
      %p64 = por %p62, %p63
      %p66 = scmp.ne.s32.totalorder %s51, %s65
      %p67 = scmp.eq.s32.totalorder %s20, 0
      %p68 = por %p66, %p67
      %s69 = ssub.s32 %s14, %s21
      %p70 = scmp.eq.s32.totalorder %s69, 0
      %s72 = sadd.s32 %s71, 1
      %s73 = scalar_select %p70, %s71, %s72
      %p76 = pneg %p70
      %p77 = scmp.eq.s32.totalorder %s14, 1
      %p78 = por %p76, %p77
      %p79 = scmp.ne.s32.totalorder %s71, %s74
      %p80 = scmp.eq.s32.totalorder %s14, 0
      %p81 = por %p79, %p80
      %p82 = scmp.ne.s32.totalorder %s71, %s74
      %p83 = scmp.eq.s32.totalorder %s19, 1
      %p84 = por %p82, %p83
      %p85 = scmp.ne.s32.totalorder %s74, %s75
      %p86 = scmp.eq.s32.totalorder %s19, 0
      %p87 = por %p85, %p86
      %p88 = scmp.ne.s32.totalorder %s74, %s75
      %p89 = scmp.eq.s32.totalorder %s20, 1
      %p90 = por %p88, %p89
      %p92 = scmp.ne.s32.totalorder %s75, %s91
      %p93 = scmp.eq.s32.totalorder %s20, 0
      %p94 = por %p92, %p93
      %s96 = sadd.s32 %s95, 1
      %p99 = scmp.eq.s32.totalorder %s14, 1
      %p100 = scmp.ne.s32.totalorder %s95, %s97
      %p101 = scmp.eq.s32.totalorder %s14, 0
      %p102 = por %p100, %p101
      %p103 = scmp.ne.s32.totalorder %s95, %s97
      %p104 = scmp.eq.s32.totalorder %s19, 1
      %p105 = por %p103, %p104
      %p106 = scmp.ne.s32.totalorder %s97, %s98
      %p107 = scmp.eq.s32.totalorder %s19, 0
      %p108 = por %p106, %p107
      %p109 = scmp.ne.s32.totalorder %s97, %s98
      %p110 = scmp.eq.s32.totalorder %s20, 1
      %p111 = por %p109, %p110
      %p113 = scmp.ne.s32.totalorder %s98, %s112
      %p114 = scmp.eq.s32.totalorder %s20, 0
      %p115 = por %p113, %p114
      %p116 = scmp.le.s32.totalorder 1, %s14
      %p117 = scmp.lt.s32.totalorder %s14, 3
      %p118 = pnand %p116, %p117
      %p119 = pneg %p118
      // Predicated region
      $region9: #{tpu_custom_call.1} parent=5 // pred_check
        _
      $region10: #{tpu_custom_call.1} parent=5 // pred_check_branch
        %121 = sbr.rel (%p118) target = $region12
      $region11: #{tpu_custom_call.1} parent=5 // pred_region
        %s122 = ssub.s32 %s14, 1
        // Predicated region
        $region13: #{tpu_custom_call.1} parent=11 // pred_check
          %p123 = pneg %p61
        $region14: #{tpu_custom_call.1} parent=11 // pred_check_branch
          %125 = sbr.rel (%p123) target = $region16
        $region15: #{tpu_custom_call.1} parent=11 // pred_region
          _
        $region16: #{tpu_custom_call.1} parent=11 // pred_fallthru
          _
      $region12: #{tpu_custom_call.1} parent=5 // pred_fallthru
        _
      %p126 = scmp.lt.s32.totalorder %s14, 2
      // Predicated region
      $region17: #{tpu_custom_call.1} parent=5 // pred_check
        %p127 = pneg %p126
      $region18: #{tpu_custom_call.1} parent=5 // pred_check_branch
        %129 = sbr.rel (%p127) target = $region20
      $region19: #{tpu_custom_call.1} parent=5 // pred_region
        // Predicated region
        $region21: #{tpu_custom_call.1} parent=19 // pred_check
          %p130 = pneg %p34
        $region22: #{tpu_custom_call.1} parent=19 // pred_check_branch
          %132 = sbr.rel (%p130) target = $region24
        $region23: #{tpu_custom_call.1} parent=19 // pred_region
          %p133 = scmp.lt.s32.totalorder %s14, 1
          %s134 = scalar_select %p133, %s14, 1
          %s135 = smul.addr %s134, 200
          %s136 = smul.addr %s135, 8
          %s137 = scalar_lea.vmem %s0, %s136
        $region24: #{tpu_custom_call.1} parent=19 // pred_fallthru
          _
      $region20: #{tpu_custom_call.1} parent=5 // pred_fallthru
        _
      %p138 = scmp.le.s32.totalorder 1, %s14
      %p139 = scmp.lt.s32.totalorder %s14, 3
      %p140 = pnand %p138, %p139
      %p141 = pneg %p140
      // Predicated region
      $region25: #{tpu_custom_call.1} parent=5 // pred_check
        _
      $region26: #{tpu_custom_call.1} parent=5 // pred_check_branch
        %143 = sbr.rel (%p140) target = $region28
      $region27: #{tpu_custom_call.1} parent=5 // pred_region
        %s144 = ssub.s32 %s14, 1
        %p145 = scmp.lt.s32.totalorder %s19, 1
        %s146 = scalar_select %p145, %s19, 1
        %s147 = smul.addr %s146, 200
        %s148 = smul.addr %s147, 8
        %s149 = scalar_lea.vmem %s0, %s148
        %p150 = pneg %p40
        %p151 = pneg %p37
        %p152 = pneg %p61
        %p153 = pneg %p58
        %p154 = pneg %p87
        %p155 = pneg %p84
        %s156 = sand.u32 %s74, 1
        %s157 = scalar_lea.sflag [#allocation4], %s156
        %s158 = sand.u32 %s74, 1
        %s159 = smul.addr %s158, 512
        %s160 = scalar_lea.vmem [#allocation3], %s159
        %p161 = pneg %p108
        %p162 = pneg %p105
        %p163 = scmp.lt.s32.totalorder %s19, 1
        %s164 = scalar_select %p163, %s19, 1
        %s165 = smul.addr %s164, 200
        %s166 = smul.addr %s165, 8
        %s167 = scalar_lea.vmem %s0, %s166
        %v168 = vld [vmem:[%s167] sm:$0xff]
        %v169 = vld [vmem:[%s167 + $0x10] sm:$0xff]
        %v170 = vld [vmem:[%s167 + $0x20] sm:$0xff]
        %v171 = vld [vmem:[%s167 + $0x30] sm:$0xff]
        %v172 = vld [vmem:[%s167 + $0x40] sm:$0xff]
        %v173 = vld [vmem:[%s167 + $0x50] sm:$0xff]
        %v174 = vld [vmem:[%s167 + $0x60] sm:$0xff]
        %v175 = vld [vmem:[%s167 + $0x70] sm:$0xff]
        %v176 = vld [vmem:[%s167 + $0xa0] sm:$0xff]
        %v177 = vld [vmem:[%s167 + $0xb0] sm:$0xff]
        %v178 = vld [vmem:[%s167 + $0xc0] sm:$0xff]
        %v179 = vld [vmem:[%s167 + $0xd0] sm:$0xff]
        %v180 = vld [vmem:[%s167 + $0xe0] sm:$0xff]
        %v181 = vld [vmem:[%s167 + $0xf0] sm:$0xff]
        %v182 = vld [vmem:[%s167 + $0x100] sm:$0xff]
        %v183 = vld [vmem:[%s167 + $0x110] sm:$0xff]
        %v184 = vld [vmem:[%s167 + $0x140] sm:$0xff]
        %v185 = vld [vmem:[%s167 + $0x150] sm:$0xff]
        %v186 = vld [vmem:[%s167 + $0x160] sm:$0xff]
        %v187 = vld [vmem:[%s167 + $0x170] sm:$0xff]
        %v188 = vld [vmem:[%s167 + $0x180] sm:$0xff]
        %v189 = vld [vmem:[%s167 + $0x190] sm:$0xff]
        %v190 = vld [vmem:[%s167 + $0x1a0] sm:$0xff]
        %v191 = vld [vmem:[%s167 + $0x1b0] sm:$0xff]
        %v192 = vld [vmem:[%s167 + $0x1e0] sm:$0xff]
        %v193 = vld [vmem:[%s167 + $0x1f0] sm:$0xff]
        %v194 = vld [vmem:[%s167 + $0x200] sm:$0xff]
        %v195 = vld [vmem:[%s167 + $0x210] sm:$0xff]
        %v196 = vld [vmem:[%s167 + $0x220] sm:$0xff]
        %v197 = vld [vmem:[%s167 + $0x230] sm:$0xff]
        %v198 = vld [vmem:[%s167 + $0x240] sm:$0xff]
        %v199 = vld [vmem:[%s167 + $0x250] sm:$0xff]
        %v200 = vld [vmem:[%s167 + $0x280] sm:$0xff]
        %v201 = vld [vmem:[%s167 + $0x290] sm:$0xff]
        %v202 = vld [vmem:[%s167 + $0x2a0] sm:$0xff]
        %v203 = vld [vmem:[%s167 + $0x2b0] sm:$0xff]
        %v204 = vld [vmem:[%s167 + $0x2c0] sm:$0xff]
        %v205 = vld [vmem:[%s167 + $0x2d0] sm:$0xff]
        %v206 = vld [vmem:[%s167 + $0x2e0] sm:$0xff]
        %v207 = vld [vmem:[%s167 + $0x2f0] sm:$0xff]
        %v208 = vld [vmem:[%s167 + $0x320] sm:$0xff]
        %v209 = vld [vmem:[%s167 + $0x330] sm:$0xff]
        %v210 = vld [vmem:[%s167 + $0x340] sm:$0xff]
        %v211 = vld [vmem:[%s167 + $0x350] sm:$0xff]
        %v212 = vld [vmem:[%s167 + $0x360] sm:$0xff]
        %v213 = vld [vmem:[%s167 + $0x370] sm:$0xff]
        %v214 = vld [vmem:[%s167 + $0x380] sm:$0xff]
        %v215 = vld [vmem:[%s167 + $0x390] sm:$0xff]
        %v216 = vld [vmem:[%s167 + $0x3c0] sm:$0xff]
        %v217 = vld [vmem:[%s167 + $0x3d0] sm:$0xff]
        %v218 = vld [vmem:[%s167 + $0x3e0] sm:$0xff]
        %v219 = vld [vmem:[%s167 + $0x3f0] sm:$0xff]
        %v220 = vld [vmem:[%s167 + $0x400] sm:$0xff]
        %v221 = vld [vmem:[%s167 + $0x410] sm:$0xff]
        %v222 = vld [vmem:[%s167 + $0x420] sm:$0xff]
        %v223 = vld [vmem:[%s167 + $0x430] sm:$0xff]
        %v224 = vld [vmem:[%s167 + $0x460] sm:$0xff]
        %v225 = vld [vmem:[%s167 + $0x470] sm:$0xff]
        %v226 = vld [vmem:[%s167 + $0x480] sm:$0xff]
        %v227 = vld [vmem:[%s167 + $0x490] sm:$0xff]
        %v228 = vld [vmem:[%s167 + $0x4a0] sm:$0xff]
        %v229 = vld [vmem:[%s167 + $0x4b0] sm:$0xff]
        %v230 = vld [vmem:[%s167 + $0x4c0] sm:$0xff]
        %v231 = vld [vmem:[%s167 + $0x4d0] sm:$0xff]
        %vm232 = vcmask 64512
        %233 = vst.msk [vmem:[#allocation2] sm:$0xff] %vm232, %v168
        %234 = vst.msk [vmem:[#allocation2 + $0x10] sm:$0xff] %vm232, %v169
        %235 = vst.msk [vmem:[#allocation2 + $0x20] sm:$0xff] %vm232, %v170
        %236 = vst.msk [vmem:[#allocation2 + $0x30] sm:$0xff] %vm232, %v171
        %237 = vst.msk [vmem:[#allocation2 + $0x40] sm:$0xff] %vm232, %v172
        %238 = vst.msk [vmem:[#allocation2 + $0x50] sm:$0xff] %vm232, %v173
        %239 = vst.msk [vmem:[#allocation2 + $0x60] sm:$0xff] %vm232, %v174
        %240 = vst.msk [vmem:[#allocation2 + $0x70] sm:$0xff] %vm232, %v175
        %241 = vst.msk [vmem:[#allocation2 + $0x80] sm:$0xff] %vm232, %v176
        %242 = vst.msk [vmem:[#allocation2 + $0x90] sm:$0xff] %vm232, %v177
        %243 = vst.msk [vmem:[#allocation2 + $0xa0] sm:$0xff] %vm232, %v178
        %244 = vst.msk [vmem:[#allocation2 + $0xb0] sm:$0xff] %vm232, %v179
        %245 = vst.msk [vmem:[#allocation2 + $0xc0] sm:$0xff] %vm232, %v180
        %246 = vst.msk [vmem:[#allocation2 + $0xd0] sm:$0xff] %vm232, %v181
        %247 = vst.msk [vmem:[#allocation2 + $0xe0] sm:$0xff] %vm232, %v182
        %248 = vst.msk [vmem:[#allocation2 + $0xf0] sm:$0xff] %vm232, %v183
        %249 = vst.msk [vmem:[#allocation2 + $0x100] sm:$0xff] %vm232, %v184
        %250 = vst.msk [vmem:[#allocation2 + $0x110] sm:$0xff] %vm232, %v185
        %251 = vst.msk [vmem:[#allocation2 + $0x120] sm:$0xff] %vm232, %v186
        %252 = vst.msk [vmem:[#allocation2 + $0x130] sm:$0xff] %vm232, %v187
        %253 = vst.msk [vmem:[#allocation2 + $0x140] sm:$0xff] %vm232, %v188
        %254 = vst.msk [vmem:[#allocation2 + $0x150] sm:$0xff] %vm232, %v189
        %255 = vst.msk [vmem:[#allocation2 + $0x160] sm:$0xff] %vm232, %v190
        %256 = vst.msk [vmem:[#allocation2 + $0x170] sm:$0xff] %vm232, %v191
        %257 = vst.msk [vmem:[#allocation2 + $0x180] sm:$0xff] %vm232, %v192
        %258 = vst.msk [vmem:[#allocation2 + $0x190] sm:$0xff] %vm232, %v193
        %259 = vst.msk [vmem:[#allocation2 + $0x1a0] sm:$0xff] %vm232, %v194
        %260 = vst.msk [vmem:[#allocation2 + $0x1b0] sm:$0xff] %vm232, %v195
        %261 = vst.msk [vmem:[#allocation2 + $0x1c0] sm:$0xff] %vm232, %v196
        %262 = vst.msk [vmem:[#allocation2 + $0x1d0] sm:$0xff] %vm232, %v197
        %263 = vst.msk [vmem:[#allocation2 + $0x1e0] sm:$0xff] %vm232, %v198
        %264 = vst.msk [vmem:[#allocation2 + $0x1f0] sm:$0xff] %vm232, %v199
        %265 = vst.msk [vmem:[#allocation2 + $0x200] sm:$0xff] %vm232, %v200
        %266 = vst.msk [vmem:[#allocation2 + $0x210] sm:$0xff] %vm232, %v201
        %267 = vst.msk [vmem:[#allocation2 + $0x220] sm:$0xff] %vm232, %v202
        %268 = vst.msk [vmem:[#allocation2 + $0x230] sm:$0xff] %vm232, %v203
        %269 = vst.msk [vmem:[#allocation2 + $0x240] sm:$0xff] %vm232, %v204
        %270 = vst.msk [vmem:[#allocation2 + $0x250] sm:$0xff] %vm232, %v205
        %271 = vst.msk [vmem:[#allocation2 + $0x260] sm:$0xff] %vm232, %v206
        %272 = vst.msk [vmem:[#allocation2 + $0x270] sm:$0xff] %vm232, %v207
        %273 = vst.msk [vmem:[#allocation2 + $0x280] sm:$0xff] %vm232, %v208
        %274 = vst.msk [vmem:[#allocation2 + $0x290] sm:$0xff] %vm232, %v209
        %275 = vst.msk [vmem:[#allocation2 + $0x2a0] sm:$0xff] %vm232, %v210
        %276 = vst.msk [vmem:[#allocation2 + $0x2b0] sm:$0xff] %vm232, %v211
        %277 = vst.msk [vmem:[#allocation2 + $0x2c0] sm:$0xff] %vm232, %v212
        %278 = vst.msk [vmem:[#allocation2 + $0x2d0] sm:$0xff] %vm232, %v213
        %279 = vst.msk [vmem:[#allocation2 + $0x2e0] sm:$0xff] %vm232, %v214
        %280 = vst.msk [vmem:[#allocation2 + $0x2f0] sm:$0xff] %vm232, %v215
        %281 = vst.msk [vmem:[#allocation2 + $0x300] sm:$0xff] %vm232, %v216
        %282 = vst.msk [vmem:[#allocation2 + $0x310] sm:$0xff] %vm232, %v217
        %283 = vst.msk [vmem:[#allocation2 + $0x320] sm:$0xff] %vm232, %v218
        %284 = vst.msk [vmem:[#allocation2 + $0x330] sm:$0xff] %vm232, %v219
        %285 = vst.msk [vmem:[#allocation2 + $0x340] sm:$0xff] %vm232, %v220
        %286 = vst.msk [vmem:[#allocation2 + $0x350] sm:$0xff] %vm232, %v221
        %287 = vst.msk [vmem:[#allocation2 + $0x360] sm:$0xff] %vm232, %v222
        %288 = vst.msk [vmem:[#allocation2 + $0x370] sm:$0xff] %vm232, %v223
        %289 = vst.msk [vmem:[#allocation2 + $0x380] sm:$0xff] %vm232, %v224
        %290 = vst.msk [vmem:[#allocation2 + $0x390] sm:$0xff] %vm232, %v225
        %291 = vst.msk [vmem:[#allocation2 + $0x3a0] sm:$0xff] %vm232, %v226
        %292 = vst.msk [vmem:[#allocation2 + $0x3b0] sm:$0xff] %vm232, %v227
        %293 = vst.msk [vmem:[#allocation2 + $0x3c0] sm:$0xff] %vm232, %v228
        %294 = vst.msk [vmem:[#allocation2 + $0x3d0] sm:$0xff] %vm232, %v229
        %295 = vst.msk [vmem:[#allocation2 + $0x3e0] sm:$0xff] %vm232, %v230
        %296 = vst.msk [vmem:[#allocation2 + $0x3f0] sm:$0xff] %vm232, %v231
        %v297 = vld [vmem:[%s167 + $0x1] sm:$0xff]
        %v298 = vld [vmem:[%s167 + $0x11] sm:$0xff]
        %v299 = vld [vmem:[%s167 + $0x21] sm:$0xff]
        %v300 = vld [vmem:[%s167 + $0x31] sm:$0xff]
        %v301 = vld [vmem:[%s167 + $0x41] sm:$0xff]
        %v302 = vld [vmem:[%s167 + $0x51] sm:$0xff]
        %v303 = vld [vmem:[%s167 + $0x61] sm:$0xff]
        %v304 = vld [vmem:[%s167 + $0x71] sm:$0xff]
        %v305 = vld [vmem:[%s167 + $0xa1] sm:$0xff]
        %v306 = vld [vmem:[%s167 + $0xb1] sm:$0xff]
        %v307 = vld [vmem:[%s167 + $0xc1] sm:$0xff]
        %v308 = vld [vmem:[%s167 + $0xd1] sm:$0xff]
        %v309 = vld [vmem:[%s167 + $0xe1] sm:$0xff]
        %v310 = vld [vmem:[%s167 + $0xf1] sm:$0xff]
        %v311 = vld [vmem:[%s167 + $0x101] sm:$0xff]
        %v312 = vld [vmem:[%s167 + $0x111] sm:$0xff]
        %v313 = vld [vmem:[%s167 + $0x141] sm:$0xff]
        %v314 = vld [vmem:[%s167 + $0x151] sm:$0xff]
        %v315 = vld [vmem:[%s167 + $0x161] sm:$0xff]
        %v316 = vld [vmem:[%s167 + $0x171] sm:$0xff]
        %v317 = vld [vmem:[%s167 + $0x181] sm:$0xff]
        %v318 = vld [vmem:[%s167 + $0x191] sm:$0xff]
        %v319 = vld [vmem:[%s167 + $0x1a1] sm:$0xff]
        %v320 = vld [vmem:[%s167 + $0x1b1] sm:$0xff]
        %v321 = vld [vmem:[%s167 + $0x1e1] sm:$0xff]
        %v322 = vld [vmem:[%s167 + $0x1f1] sm:$0xff]
        %v323 = vld [vmem:[%s167 + $0x201] sm:$0xff]
        %v324 = vld [vmem:[%s167 + $0x211] sm:$0xff]
        %v325 = vld [vmem:[%s167 + $0x221] sm:$0xff]
        %v326 = vld [vmem:[%s167 + $0x231] sm:$0xff]
        %v327 = vld [vmem:[%s167 + $0x241] sm:$0xff]
        %v328 = vld [vmem:[%s167 + $0x251] sm:$0xff]
        %v329 = vld [vmem:[%s167 + $0x281] sm:$0xff]
        %v330 = vld [vmem:[%s167 + $0x291] sm:$0xff]
        %v331 = vld [vmem:[%s167 + $0x2a1] sm:$0xff]
        %v332 = vld [vmem:[%s167 + $0x2b1] sm:$0xff]
        %v333 = vld [vmem:[%s167 + $0x2c1] sm:$0xff]
        %v334 = vld [vmem:[%s167 + $0x2d1] sm:$0xff]
        %v335 = vld [vmem:[%s167 + $0x2e1] sm:$0xff]
        %v336 = vld [vmem:[%s167 + $0x2f1] sm:$0xff]
        %v337 = vld [vmem:[%s167 + $0x321] sm:$0xff]
        %v338 = vld [vmem:[%s167 + $0x331] sm:$0xff]
        %v339 = vld [vmem:[%s167 + $0x341] sm:$0xff]
        %v340 = vld [vmem:[%s167 + $0x351] sm:$0xff]
        %v341 = vld [vmem:[%s167 + $0x361] sm:$0xff]
        %v342 = vld [vmem:[%s167 + $0x371] sm:$0xff]
        %v343 = vld [vmem:[%s167 + $0x381] sm:$0xff]
        %v344 = vld [vmem:[%s167 + $0x391] sm:$0xff]
        %v345 = vld [vmem:[%s167 + $0x3c1] sm:$0xff]
        %v346 = vld [vmem:[%s167 + $0x3d1] sm:$0xff]
        %v347 = vld [vmem:[%s167 + $0x3e1] sm:$0xff]
        %v348 = vld [vmem:[%s167 + $0x3f1] sm:$0xff]
        %v349 = vld [vmem:[%s167 + $0x401] sm:$0xff]
        %v350 = vld [vmem:[%s167 + $0x411] sm:$0xff]
        %v351 = vld [vmem:[%s167 + $0x421] sm:$0xff]
        %v352 = vld [vmem:[%s167 + $0x431] sm:$0xff]
        %v353 = vld [vmem:[%s167 + $0x461] sm:$0xff]
        %v354 = vld [vmem:[%s167 + $0x471] sm:$0xff]
        %v355 = vld [vmem:[%s167 + $0x481] sm:$0xff]
        %v356 = vld [vmem:[%s167 + $0x491] sm:$0xff]
        %v357 = vld [vmem:[%s167 + $0x4a1] sm:$0xff]
        %v358 = vld [vmem:[%s167 + $0x4b1] sm:$0xff]
        %v359 = vld [vmem:[%s167 + $0x4c1] sm:$0xff]
        %v360 = vld [vmem:[%s167 + $0x4d1] sm:$0xff]
        %425 = vrot.lane.b32.xlu0 %v297, 8
        %v426 = vpop.permute.xlu0 %425
        %427 = vrot.lane.b32.xlu0 %v298, 8
        %v428 = vpop.permute.xlu0 %427
        %429 = vrot.lane.b32.xlu0 %v299, 8
        %v430 = vpop.permute.xlu0 %429
        %431 = vrot.lane.b32.xlu0 %v300, 8
        %v432 = vpop.permute.xlu0 %431
        %433 = vrot.lane.b32.xlu0 %v301, 8
        %v434 = vpop.permute.xlu0 %433
        %435 = vrot.lane.b32.xlu0 %v302, 8
        %v436 = vpop.permute.xlu0 %435
        %437 = vrot.lane.b32.xlu0 %v303, 8
        %v438 = vpop.permute.xlu0 %437
        %439 = vrot.lane.b32.xlu0 %v304, 8
        %v440 = vpop.permute.xlu0 %439
        %441 = vrot.lane.b32.xlu0 %v305, 8
        %v442 = vpop.permute.xlu0 %441
        %443 = vrot.lane.b32.xlu0 %v306, 8
        %v444 = vpop.permute.xlu0 %443
        %445 = vrot.lane.b32.xlu0 %v307, 8
        %v446 = vpop.permute.xlu0 %445
        %447 = vrot.lane.b32.xlu0 %v308, 8
        %v448 = vpop.permute.xlu0 %447
        %449 = vrot.lane.b32.xlu0 %v309, 8
        %v450 = vpop.permute.xlu0 %449
        %451 = vrot.lane.b32.xlu0 %v310, 8
        %v452 = vpop.permute.xlu0 %451
        %453 = vrot.lane.b32.xlu0 %v311, 8
        %v454 = vpop.permute.xlu0 %453
        %455 = vrot.lane.b32.xlu0 %v312, 8
        %v456 = vpop.permute.xlu0 %455
        %457 = vrot.lane.b32.xlu0 %v313, 8
        %v458 = vpop.permute.xlu0 %457
        %459 = vrot.lane.b32.xlu0 %v314, 8
        %v460 = vpop.permute.xlu0 %459
        %461 = vrot.lane.b32.xlu0 %v315, 8
        %v462 = vpop.permute.xlu0 %461
        %463 = vrot.lane.b32.xlu0 %v316, 8
        %v464 = vpop.permute.xlu0 %463
        %465 = vrot.lane.b32.xlu0 %v317, 8
        %v466 = vpop.permute.xlu0 %465
        %467 = vrot.lane.b32.xlu0 %v318, 8
        %v468 = vpop.permute.xlu0 %467
        %469 = vrot.lane.b32.xlu0 %v319, 8
        %v470 = vpop.permute.xlu0 %469
        %471 = vrot.lane.b32.xlu0 %v320, 8
        %v472 = vpop.permute.xlu0 %471
        %473 = vrot.lane.b32.xlu0 %v321, 8
        %v474 = vpop.permute.xlu0 %473
        %475 = vrot.lane.b32.xlu0 %v322, 8
        %v476 = vpop.permute.xlu0 %475
        %477 = vrot.lane.b32.xlu0 %v323, 8
        %v478 = vpop.permute.xlu0 %477
        %479 = vrot.lane.b32.xlu0 %v324, 8
        %v480 = vpop.permute.xlu0 %479
        %481 = vrot.lane.b32.xlu0 %v325, 8
        %v482 = vpop.permute.xlu0 %481
        %483 = vrot.lane.b32.xlu0 %v326, 8
        %v484 = vpop.permute.xlu0 %483
        %485 = vrot.lane.b32.xlu0 %v327, 8
        %v486 = vpop.permute.xlu0 %485
        %487 = vrot.lane.b32.xlu0 %v328, 8
        %v488 = vpop.permute.xlu0 %487
        %489 = vrot.lane.b32.xlu0 %v329, 8
        %v490 = vpop.permute.xlu0 %489
        %491 = vrot.lane.b32.xlu0 %v330, 8
        %v492 = vpop.permute.xlu0 %491
        %493 = vrot.lane.b32.xlu0 %v331, 8
        %v494 = vpop.permute.xlu0 %493
        %495 = vrot.lane.b32.xlu0 %v332, 8
        %v496 = vpop.permute.xlu0 %495
        %497 = vrot.lane.b32.xlu0 %v333, 8
        %v498 = vpop.permute.xlu0 %497
        %499 = vrot.lane.b32.xlu0 %v334, 8
        %v500 = vpop.permute.xlu0 %499
        %501 = vrot.lane.b32.xlu0 %v335, 8
        %v502 = vpop.permute.xlu0 %501
        %503 = vrot.lane.b32.xlu0 %v336, 8
        %v504 = vpop.permute.xlu0 %503
        %505 = vrot.lane.b32.xlu0 %v337, 8
        %v506 = vpop.permute.xlu0 %505
        %507 = vrot.lane.b32.xlu0 %v338, 8
        %v508 = vpop.permute.xlu0 %507
        %509 = vrot.lane.b32.xlu0 %v339, 8
        %v510 = vpop.permute.xlu0 %509
        %511 = vrot.lane.b32.xlu0 %v340, 8
        %v512 = vpop.permute.xlu0 %511
        %513 = vrot.lane.b32.xlu0 %v341, 8
        %v514 = vpop.permute.xlu0 %513
        %515 = vrot.lane.b32.xlu0 %v342, 8
        %v516 = vpop.permute.xlu0 %515
        %517 = vrot.lane.b32.xlu0 %v343, 8
        %v518 = vpop.permute.xlu0 %517
        %519 = vrot.lane.b32.xlu0 %v344, 8
        %v520 = vpop.permute.xlu0 %519
        %521 = vrot.lane.b32.xlu0 %v345, 8
        %v522 = vpop.permute.xlu0 %521
        %523 = vrot.lane.b32.xlu0 %v346, 8
        %v524 = vpop.permute.xlu0 %523
        %525 = vrot.lane.b32.xlu0 %v347, 8
        %v526 = vpop.permute.xlu0 %525
        %527 = vrot.lane.b32.xlu0 %v348, 8
        %v528 = vpop.permute.xlu0 %527
        %529 = vrot.lane.b32.xlu0 %v349, 8
        %v530 = vpop.permute.xlu0 %529
        %531 = vrot.lane.b32.xlu0 %v350, 8
        %v532 = vpop.permute.xlu0 %531
        %533 = vrot.lane.b32.xlu0 %v351, 8
        %v534 = vpop.permute.xlu0 %533
        %535 = vrot.lane.b32.xlu0 %v352, 8
        %v536 = vpop.permute.xlu0 %535
        %537 = vrot.lane.b32.xlu0 %v353, 8
        %v538 = vpop.permute.xlu0 %537
        %539 = vrot.lane.b32.xlu0 %v354, 8
        %v540 = vpop.permute.xlu0 %539
        %541 = vrot.lane.b32.xlu0 %v355, 8
        %v542 = vpop.permute.xlu0 %541
        %543 = vrot.lane.b32.xlu0 %v356, 8
        %v544 = vpop.permute.xlu0 %543
        %545 = vrot.lane.b32.xlu0 %v357, 8
        %v546 = vpop.permute.xlu0 %545
        %547 = vrot.lane.b32.xlu0 %v358, 8
        %v548 = vpop.permute.xlu0 %547
        %549 = vrot.lane.b32.xlu0 %v359, 8
        %v550 = vpop.permute.xlu0 %549
        %551 = vrot.lane.b32.xlu0 %v360, 8
        %v552 = vpop.permute.xlu0 %551
        %vm617 = vcmask 130112
        %618 = vst.msk [vmem:[#allocation2] sm:$0xff] %vm617, %v426
        %619 = vst.msk [vmem:[#allocation2 + $0x10] sm:$0xff] %vm617, %v428
        %620 = vst.msk [vmem:[#allocation2 + $0x20] sm:$0xff] %vm617, %v430
        %621 = vst.msk [vmem:[#allocation2 + $0x30] sm:$0xff] %vm617, %v432
        %622 = vst.msk [vmem:[#allocation2 + $0x40] sm:$0xff] %vm617, %v434
        %623 = vst.msk [vmem:[#allocation2 + $0x50] sm:$0xff] %vm617, %v436
        %624 = vst.msk [vmem:[#allocation2 + $0x60] sm:$0xff] %vm617, %v438
        %625 = vst.msk [vmem:[#allocation2 + $0x70] sm:$0xff] %vm617, %v440
        %626 = vst.msk [vmem:[#allocation2 + $0x80] sm:$0xff] %vm617, %v442
        %627 = vst.msk [vmem:[#allocation2 + $0x90] sm:$0xff] %vm617, %v444
        %628 = vst.msk [vmem:[#allocation2 + $0xa0] sm:$0xff] %vm617, %v446
        %629 = vst.msk [vmem:[#allocation2 + $0xb0] sm:$0xff] %vm617, %v448
        %630 = vst.msk [vmem:[#allocation2 + $0xc0] sm:$0xff] %vm617, %v450
        %631 = vst.msk [vmem:[#allocation2 + $0xd0] sm:$0xff] %vm617, %v452
        %632 = vst.msk [vmem:[#allocation2 + $0xe0] sm:$0xff] %vm617, %v454
        %633 = vst.msk [vmem:[#allocation2 + $0xf0] sm:$0xff] %vm617, %v456
        %634 = vst.msk [vmem:[#allocation2 + $0x100] sm:$0xff] %vm617, %v458
        %635 = vst.msk [vmem:[#allocation2 + $0x110] sm:$0xff] %vm617, %v460
        %636 = vst.msk [vmem:[#allocation2 + $0x120] sm:$0xff] %vm617, %v462
        %637 = vst.msk [vmem:[#allocation2 + $0x130] sm:$0xff] %vm617, %v464
        %638 = vst.msk [vmem:[#allocation2 + $0x140] sm:$0xff] %vm617, %v466
        %639 = vst.msk [vmem:[#allocation2 + $0x150] sm:$0xff] %vm617, %v468
        %640 = vst.msk [vmem:[#allocation2 + $0x160] sm:$0xff] %vm617, %v470
        %641 = vst.msk [vmem:[#allocation2 + $0x170] sm:$0xff] %vm617, %v472
        %642 = vst.msk [vmem:[#allocation2 + $0x180] sm:$0xff] %vm617, %v474
        %643 = vst.msk [vmem:[#allocation2 + $0x190] sm:$0xff] %vm617, %v476
        %644 = vst.msk [vmem:[#allocation2 + $0x1a0] sm:$0xff] %vm617, %v478
        %645 = vst.msk [vmem:[#allocation2 + $0x1b0] sm:$0xff] %vm617, %v480
        %646 = vst.msk [vmem:[#allocation2 + $0x1c0] sm:$0xff] %vm617, %v482
        %647 = vst.msk [vmem:[#allocation2 + $0x1d0] sm:$0xff] %vm617, %v484
        %648 = vst.msk [vmem:[#allocation2 + $0x1e0] sm:$0xff] %vm617, %v486
        %649 = vst.msk [vmem:[#allocation2 + $0x1f0] sm:$0xff] %vm617, %v488
        %650 = vst.msk [vmem:[#allocation2 + $0x200] sm:$0xff] %vm617, %v490
        %651 = vst.msk [vmem:[#allocation2 + $0x210] sm:$0xff] %vm617, %v492
        %652 = vst.msk [vmem:[#allocation2 + $0x220] sm:$0xff] %vm617, %v494
        %653 = vst.msk [vmem:[#allocation2 + $0x230] sm:$0xff] %vm617, %v496
        %654 = vst.msk [vmem:[#allocation2 + $0x240] sm:$0xff] %vm617, %v498
        %655 = vst.msk [vmem:[#allocation2 + $0x250] sm:$0xff] %vm617, %v500
        %656 = vst.msk [vmem:[#allocation2 + $0x260] sm:$0xff] %vm617, %v502
        %657 = vst.msk [vmem:[#allocation2 + $0x270] sm:$0xff] %vm617, %v504
        %658 = vst.msk [vmem:[#allocation2 + $0x280] sm:$0xff] %vm617, %v506
        %659 = vst.msk [vmem:[#allocation2 + $0x290] sm:$0xff] %vm617, %v508
        %660 = vst.msk [vmem:[#allocation2 + $0x2a0] sm:$0xff] %vm617, %v510
        %661 = vst.msk [vmem:[#allocation2 + $0x2b0] sm:$0xff] %vm617, %v512
        %662 = vst.msk [vmem:[#allocation2 + $0x2c0] sm:$0xff] %vm617, %v514
        %663 = vst.msk [vmem:[#allocation2 + $0x2d0] sm:$0xff] %vm617, %v516
        %664 = vst.msk [vmem:[#allocation2 + $0x2e0] sm:$0xff] %vm617, %v518
        %665 = vst.msk [vmem:[#allocation2 + $0x2f0] sm:$0xff] %vm617, %v520
        %666 = vst.msk [vmem:[#allocation2 + $0x300] sm:$0xff] %vm617, %v522
        %667 = vst.msk [vmem:[#allocation2 + $0x310] sm:$0xff] %vm617, %v524
        %668 = vst.msk [vmem:[#allocation2 + $0x320] sm:$0xff] %vm617, %v526
        %669 = vst.msk [vmem:[#allocation2 + $0x330] sm:$0xff] %vm617, %v528
        %670 = vst.msk [vmem:[#allocation2 + $0x340] sm:$0xff] %vm617, %v530
        %671 = vst.msk [vmem:[#allocation2 + $0x350] sm:$0xff] %vm617, %v532
        %672 = vst.msk [vmem:[#allocation2 + $0x360] sm:$0xff] %vm617, %v534
        %673 = vst.msk [vmem:[#allocation2 + $0x370] sm:$0xff] %vm617, %v536
        %674 = vst.msk [vmem:[#allocation2 + $0x380] sm:$0xff] %vm617, %v538
        %675 = vst.msk [vmem:[#allocation2 + $0x390] sm:$0xff] %vm617, %v540
        %676 = vst.msk [vmem:[#allocation2 + $0x3a0] sm:$0xff] %vm617, %v542
        %677 = vst.msk [vmem:[#allocation2 + $0x3b0] sm:$0xff] %vm617, %v544
        %678 = vst.msk [vmem:[#allocation2 + $0x3c0] sm:$0xff] %vm617, %v546
        %679 = vst.msk [vmem:[#allocation2 + $0x3d0] sm:$0xff] %vm617, %v548
        %680 = vst.msk [vmem:[#allocation2 + $0x3e0] sm:$0xff] %vm617, %v550
        %681 = vst.msk [vmem:[#allocation2 + $0x3f0] sm:$0xff] %vm617, %v552
        %v682 = vld [vmem:[%s167 + $0x2] sm:$0xff]
        %v683 = vld [vmem:[%s167 + $0x12] sm:$0xff]
        %v684 = vld [vmem:[%s167 + $0x22] sm:$0xff]
        %v685 = vld [vmem:[%s167 + $0x32] sm:$0xff]
        %v686 = vld [vmem:[%s167 + $0x42] sm:$0xff]
        %v687 = vld [vmem:[%s167 + $0x52] sm:$0xff]
        %v688 = vld [vmem:[%s167 + $0x62] sm:$0xff]
        %v689 = vld [vmem:[%s167 + $0x72] sm:$0xff]
        %v690 = vld [vmem:[%s167 + $0xa2] sm:$0xff]
        %v691 = vld [vmem:[%s167 + $0xb2] sm:$0xff]
        %v692 = vld [vmem:[%s167 + $0xc2] sm:$0xff]
        %v693 = vld [vmem:[%s167 + $0xd2] sm:$0xff]
        %v694 = vld [vmem:[%s167 + $0xe2] sm:$0xff]
        %v695 = vld [vmem:[%s167 + $0xf2] sm:$0xff]
        %v696 = vld [vmem:[%s167 + $0x102] sm:$0xff]
        %v697 = vld [vmem:[%s167 + $0x112] sm:$0xff]
        %v698 = vld [vmem:[%s167 + $0x142] sm:$0xff]
        %v699 = vld [vmem:[%s167 + $0x152] sm:$0xff]
        %v700 = vld [vmem:[%s167 + $0x162] sm:$0xff]
        %v701 = vld [vmem:[%s167 + $0x172] sm:$0xff]
        %v702 = vld [vmem:[%s167 + $0x182] sm:$0xff]
        %v703 = vld [vmem:[%s167 + $0x192] sm:$0xff]
        %v704 = vld [vmem:[%s167 + $0x1a2] sm:$0xff]
        %v705 = vld [vmem:[%s167 + $0x1b2] sm:$0xff]
        %v706 = vld [vmem:[%s167 + $0x1e2] sm:$0xff]
        %v707 = vld [vmem:[%s167 + $0x1f2] sm:$0xff]
        %v708 = vld [vmem:[%s167 + $0x202] sm:$0xff]
        %v709 = vld [vmem:[%s167 + $0x212] sm:$0xff]
        %v710 = vld [vmem:[%s167 + $0x222] sm:$0xff]
        %v711 = vld [vmem:[%s167 + $0x232] sm:$0xff]
        %v712 = vld [vmem:[%s167 + $0x242] sm:$0xff]
        %v713 = vld [vmem:[%s167 + $0x252] sm:$0xff]
        %v714 = vld [vmem:[%s167 + $0x282] sm:$0xff]
        %v715 = vld [vmem:[%s167 + $0x292] sm:$0xff]
        %v716 = vld [vmem:[%s167 + $0x2a2] sm:$0xff]
        %v717 = vld [vmem:[%s167 + $0x2b2] sm:$0xff]
        %v718 = vld [vmem:[%s167 + $0x2c2] sm:$0xff]
        %v719 = vld [vmem:[%s167 + $0x2d2] sm:$0xff]
        %v720 = vld [vmem:[%s167 + $0x2e2] sm:$0xff]
        %v721 = vld [vmem:[%s167 + $0x2f2] sm:$0xff]
        %v722 = vld [vmem:[%s167 + $0x322] sm:$0xff]
        %v723 = vld [vmem:[%s167 + $0x332] sm:$0xff]
        %v724 = vld [vmem:[%s167 + $0x342] sm:$0xff]
        %v725 = vld [vmem:[%s167 + $0x352] sm:$0xff]
        %v726 = vld [vmem:[%s167 + $0x362] sm:$0xff]
        %v727 = vld [vmem:[%s167 + $0x372] sm:$0xff]
        %v728 = vld [vmem:[%s167 + $0x382] sm:$0xff]
        %v729 = vld [vmem:[%s167 + $0x392] sm:$0xff]
        %v730 = vld [vmem:[%s167 + $0x3c2] sm:$0xff]
        %v731 = vld [vmem:[%s167 + $0x3d2] sm:$0xff]
        %v732 = vld [vmem:[%s167 + $0x3e2] sm:$0xff]
        %v733 = vld [vmem:[%s167 + $0x3f2] sm:$0xff]
        %v734 = vld [vmem:[%s167 + $0x402] sm:$0xff]
        %v735 = vld [vmem:[%s167 + $0x412] sm:$0xff]
        %v736 = vld [vmem:[%s167 + $0x422] sm:$0xff]
        %v737 = vld [vmem:[%s167 + $0x432] sm:$0xff]
        %v738 = vld [vmem:[%s167 + $0x462] sm:$0xff]
        %v739 = vld [vmem:[%s167 + $0x472] sm:$0xff]
        %v740 = vld [vmem:[%s167 + $0x482] sm:$0xff]
        %v741 = vld [vmem:[%s167 + $0x492] sm:$0xff]
        %v742 = vld [vmem:[%s167 + $0x4a2] sm:$0xff]
        %v743 = vld [vmem:[%s167 + $0x4b2] sm:$0xff]
        %v744 = vld [vmem:[%s167 + $0x4c2] sm:$0xff]
        %v745 = vld [vmem:[%s167 + $0x4d2] sm:$0xff]
        %810 = vrot.lane.b32.xlu0 %v682, 16
        %v811 = vpop.permute.xlu0 %810
        %812 = vrot.lane.b32.xlu0 %v683, 16
        %v813 = vpop.permute.xlu0 %812
        %814 = vrot.lane.b32.xlu0 %v684, 16
        %v815 = vpop.permute.xlu0 %814
        %816 = vrot.lane.b32.xlu0 %v685, 16
        %v817 = vpop.permute.xlu0 %816
        %818 = vrot.lane.b32.xlu0 %v686, 16
        %v819 = vpop.permute.xlu0 %818
        %820 = vrot.lane.b32.xlu0 %v687, 16
        %v821 = vpop.permute.xlu0 %820
        %822 = vrot.lane.b32.xlu0 %v688, 16
        %v823 = vpop.permute.xlu0 %822
        %824 = vrot.lane.b32.xlu0 %v689, 16
        %v825 = vpop.permute.xlu0 %824
        %826 = vrot.lane.b32.xlu0 %v690, 16
        %v827 = vpop.permute.xlu0 %826
        %828 = vrot.lane.b32.xlu0 %v691, 16
        %v829 = vpop.permute.xlu0 %828
        %830 = vrot.lane.b32.xlu0 %v692, 16
        %v831 = vpop.permute.xlu0 %830
        %832 = vrot.lane.b32.xlu0 %v693, 16
        %v833 = vpop.permute.xlu0 %832
        %834 = vrot.lane.b32.xlu0 %v694, 16
        %v835 = vpop.permute.xlu0 %834
        %836 = vrot.lane.b32.xlu0 %v695, 16
        %v837 = vpop.permute.xlu0 %836
        %838 = vrot.lane.b32.xlu0 %v696, 16
        %v839 = vpop.permute.xlu0 %838
        %840 = vrot.lane.b32.xlu0 %v697, 16
        %v841 = vpop.permute.xlu0 %840
        %842 = vrot.lane.b32.xlu0 %v698, 16
        %v843 = vpop.permute.xlu0 %842
        %844 = vrot.lane.b32.xlu0 %v699, 16
        %v845 = vpop.permute.xlu0 %844
        %846 = vrot.lane.b32.xlu0 %v700, 16
        %v847 = vpop.permute.xlu0 %846
        %848 = vrot.lane.b32.xlu0 %v701, 16
        %v849 = vpop.permute.xlu0 %848
        %850 = vrot.lane.b32.xlu0 %v702, 16
        %v851 = vpop.permute.xlu0 %850
        %852 = vrot.lane.b32.xlu0 %v703, 16
        %v853 = vpop.permute.xlu0 %852
        %854 = vrot.lane.b32.xlu0 %v704, 16
        %v855 = vpop.permute.xlu0 %854
        %856 = vrot.lane.b32.xlu0 %v705, 16
        %v857 = vpop.permute.xlu0 %856
        %858 = vrot.lane.b32.xlu0 %v706, 16
        %v859 = vpop.permute.xlu0 %858
        %860 = vrot.lane.b32.xlu0 %v707, 16
        %v861 = vpop.permute.xlu0 %860
        %862 = vrot.lane.b32.xlu0 %v708, 16
        %v863 = vpop.permute.xlu0 %862
        %864 = vrot.lane.b32.xlu0 %v709, 16
        %v865 = vpop.permute.xlu0 %864
        %866 = vrot.lane.b32.xlu0 %v710, 16
        %v867 = vpop.permute.xlu0 %866
        %868 = vrot.lane.b32.xlu0 %v711, 16
        %v869 = vpop.permute.xlu0 %868
        %870 = vrot.lane.b32.xlu0 %v712, 16
        %v871 = vpop.permute.xlu0 %870
        %872 = vrot.lane.b32.xlu0 %v713, 16
        %v873 = vpop.permute.xlu0 %872
        %874 = vrot.lane.b32.xlu0 %v714, 16
        %v875 = vpop.permute.xlu0 %874
        %876 = vrot.lane.b32.xlu0 %v715, 16
        %v877 = vpop.permute.xlu0 %876
        %878 = vrot.lane.b32.xlu0 %v716, 16
        %v879 = vpop.permute.xlu0 %878
        %880 = vrot.lane.b32.xlu0 %v717, 16
        %v881 = vpop.permute.xlu0 %880
        %882 = vrot.lane.b32.xlu0 %v718, 16
        %v883 = vpop.permute.xlu0 %882
        %884 = vrot.lane.b32.xlu0 %v719, 16
        %v885 = vpop.permute.xlu0 %884
        %886 = vrot.lane.b32.xlu0 %v720, 16
        %v887 = vpop.permute.xlu0 %886
        %888 = vrot.lane.b32.xlu0 %v721, 16
        %v889 = vpop.permute.xlu0 %888
        %890 = vrot.lane.b32.xlu0 %v722, 16
        %v891 = vpop.permute.xlu0 %890
        %892 = vrot.lane.b32.xlu0 %v723, 16
        %v893 = vpop.permute.xlu0 %892
        %894 = vrot.lane.b32.xlu0 %v724, 16
        %v895 = vpop.permute.xlu0 %894
        %896 = vrot.lane.b32.xlu0 %v725, 16
        %v897 = vpop.permute.xlu0 %896
        %898 = vrot.lane.b32.xlu0 %v726, 16
        %v899 = vpop.permute.xlu0 %898
        %900 = vrot.lane.b32.xlu0 %v727, 16
        %v901 = vpop.permute.xlu0 %900
        %902 = vrot.lane.b32.xlu0 %v728, 16
        %v903 = vpop.permute.xlu0 %902
        %904 = vrot.lane.b32.xlu0 %v729, 16
        %v905 = vpop.permute.xlu0 %904
        %906 = vrot.lane.b32.xlu0 %v730, 16
        %v907 = vpop.permute.xlu0 %906
        %908 = vrot.lane.b32.xlu0 %v731, 16
        %v909 = vpop.permute.xlu0 %908
        %910 = vrot.lane.b32.xlu0 %v732, 16
        %v911 = vpop.permute.xlu0 %910
        %912 = vrot.lane.b32.xlu0 %v733, 16
        %v913 = vpop.permute.xlu0 %912
        %914 = vrot.lane.b32.xlu0 %v734, 16
        %v915 = vpop.permute.xlu0 %914
        %916 = vrot.lane.b32.xlu0 %v735, 16
        %v917 = vpop.permute.xlu0 %916
        %918 = vrot.lane.b32.xlu0 %v736, 16
        %v919 = vpop.permute.xlu0 %918
        %920 = vrot.lane.b32.xlu0 %v737, 16
        %v921 = vpop.permute.xlu0 %920
        %922 = vrot.lane.b32.xlu0 %v738, 16
        %v923 = vpop.permute.xlu0 %922
        %924 = vrot.lane.b32.xlu0 %v739, 16
        %v925 = vpop.permute.xlu0 %924
        %926 = vrot.lane.b32.xlu0 %v740, 16
        %v927 = vpop.permute.xlu0 %926
        %928 = vrot.lane.b32.xlu0 %v741, 16
        %v929 = vpop.permute.xlu0 %928
        %930 = vrot.lane.b32.xlu0 %v742, 16
        %v931 = vpop.permute.xlu0 %930
        %932 = vrot.lane.b32.xlu0 %v743, 16
        %v933 = vpop.permute.xlu0 %932
        %934 = vrot.lane.b32.xlu0 %v744, 16
        %v935 = vpop.permute.xlu0 %934
        %936 = vrot.lane.b32.xlu0 %v745, 16
        %v937 = vpop.permute.xlu0 %936
        %vm1002 = vcmask 195712
        %1003 = vst.msk [vmem:[#allocation2] sm:$0xff] %vm1002, %v811
        %1004 = vst.msk [vmem:[#allocation2 + $0x10] sm:$0xff] %vm1002, %v813
        %1005 = vst.msk [vmem:[#allocation2 + $0x20] sm:$0xff] %vm1002, %v815
        %1006 = vst.msk [vmem:[#allocation2 + $0x30] sm:$0xff] %vm1002, %v817
        %1007 = vst.msk [vmem:[#allocation2 + $0x40] sm:$0xff] %vm1002, %v819
        %1008 = vst.msk [vmem:[#allocation2 + $0x50] sm:$0xff] %vm1002, %v821
        %1009 = vst.msk [vmem:[#allocation2 + $0x60] sm:$0xff] %vm1002, %v823
        %1010 = vst.msk [vmem:[#allocation2 + $0x70] sm:$0xff] %vm1002, %v825
        %1011 = vst.msk [vmem:[#allocation2 + $0x80] sm:$0xff] %vm1002, %v827
        %1012 = vst.msk [vmem:[#allocation2 + $0x90] sm:$0xff] %vm1002, %v829
        %1013 = vst.msk [vmem:[#allocation2 + $0xa0] sm:$0xff] %vm1002, %v831
        %1014 = vst.msk [vmem:[#allocation2 + $0xb0] sm:$0xff] %vm1002, %v833
        %1015 = vst.msk [vmem:[#allocation2 + $0xc0] sm:$0xff] %vm1002, %v835
        %1016 = vst.msk [vmem:[#allocation2 + $0xd0] sm:$0xff] %vm1002, %v837
        %1017 = vst.msk [vmem:[#allocation2 + $0xe0] sm:$0xff] %vm1002, %v839
        %1018 = vst.msk [vmem:[#allocation2 + $0xf0] sm:$0xff] %vm1002, %v841
        %1019 = vst.msk [vmem:[#allocation2 + $0x100] sm:$0xff] %vm1002, %v843
        %1020 = vst.msk [vmem:[#allocation2 + $0x110] sm:$0xff] %vm1002, %v845
        %1021 = vst.msk [vmem:[#allocation2 + $0x120] sm:$0xff] %vm1002, %v847
        %1022 = vst.msk [vmem:[#allocation2 + $0x130] sm:$0xff] %vm1002, %v849
        %1023 = vst.msk [vmem:[#allocation2 + $0x140] sm:$0xff] %vm1002, %v851
        %1024 = vst.msk [vmem:[#allocation2 + $0x150] sm:$0xff] %vm1002, %v853
        %1025 = vst.msk [vmem:[#allocation2 + $0x160] sm:$0xff] %vm1002, %v855
        %1026 = vst.msk [vmem:[#allocation2 + $0x170] sm:$0xff] %vm1002, %v857
        %1027 = vst.msk [vmem:[#allocation2 + $0x180] sm:$0xff] %vm1002, %v859
        %1028 = vst.msk [vmem:[#allocation2 + $0x190] sm:$0xff] %vm1002, %v861
        %1029 = vst.msk [vmem:[#allocation2 + $0x1a0] sm:$0xff] %vm1002, %v863
        %1030 = vst.msk [vmem:[#allocation2 + $0x1b0] sm:$0xff] %vm1002, %v865
        %1031 = vst.msk [vmem:[#allocation2 + $0x1c0] sm:$0xff] %vm1002, %v867
        %1032 = vst.msk [vmem:[#allocation2 + $0x1d0] sm:$0xff] %vm1002, %v869
        %1033 = vst.msk [vmem:[#allocation2 + $0x1e0] sm:$0xff] %vm1002, %v871
        %1034 = vst.msk [vmem:[#allocation2 + $0x1f0] sm:$0xff] %vm1002, %v873
        %1035 = vst.msk [vmem:[#allocation2 + $0x200] sm:$0xff] %vm1002, %v875
        %1036 = vst.msk [vmem:[#allocation2 + $0x210] sm:$0xff] %vm1002, %v877
        %1037 = vst.msk [vmem:[#allocation2 + $0x220] sm:$0xff] %vm1002, %v879
        %1038 = vst.msk [vmem:[#allocation2 + $0x230] sm:$0xff] %vm1002, %v881
        %1039 = vst.msk [vmem:[#allocation2 + $0x240] sm:$0xff] %vm1002, %v883
        %1040 = vst.msk [vmem:[#allocation2 + $0x250] sm:$0xff] %vm1002, %v885
        %1041 = vst.msk [vmem:[#allocation2 + $0x260] sm:$0xff] %vm1002, %v887
        %1042 = vst.msk [vmem:[#allocation2 + $0x270] sm:$0xff] %vm1002, %v889
        %1043 = vst.msk [vmem:[#allocation2 + $0x280] sm:$0xff] %vm1002, %v891
        %1044 = vst.msk [vmem:[#allocation2 + $0x290] sm:$0xff] %vm1002, %v893
        %1045 = vst.msk [vmem:[#allocation2 + $0x2a0] sm:$0xff] %vm1002, %v895
        %1046 = vst.msk [vmem:[#allocation2 + $0x2b0] sm:$0xff] %vm1002, %v897
        %1047 = vst.msk [vmem:[#allocation2 + $0x2c0] sm:$0xff] %vm1002, %v899
        %1048 = vst.msk [vmem:[#allocation2 + $0x2d0] sm:$0xff] %vm1002, %v901
        %1049 = vst.msk [vmem:[#allocation2 + $0x2e0] sm:$0xff] %vm1002, %v903
        %1050 = vst.msk [vmem:[#allocation2 + $0x2f0] sm:$0xff] %vm1002, %v905
        %1051 = vst.msk [vmem:[#allocation2 + $0x300] sm:$0xff] %vm1002, %v907
        %1052 = vst.msk [vmem:[#allocation2 + $0x310] sm:$0xff] %vm1002, %v909
        %1053 = vst.msk [vmem:[#allocation2 + $0x320] sm:$0xff] %vm1002, %v911
        %1054 = vst.msk [vmem:[#allocation2 + $0x330] sm:$0xff] %vm1002, %v913
        %1055 = vst.msk [vmem:[#allocation2 + $0x340] sm:$0xff] %vm1002, %v915
        %1056 = vst.msk [vmem:[#allocation2 + $0x350] sm:$0xff] %vm1002, %v917
        %1057 = vst.msk [vmem:[#allocation2 + $0x360] sm:$0xff] %vm1002, %v919
        %1058 = vst.msk [vmem:[#allocation2 + $0x370] sm:$0xff] %vm1002, %v921
        %1059 = vst.msk [vmem:[#allocation2 + $0x380] sm:$0xff] %vm1002, %v923
        %1060 = vst.msk [vmem:[#allocation2 + $0x390] sm:$0xff] %vm1002, %v925
        %1061 = vst.msk [vmem:[#allocation2 + $0x3a0] sm:$0xff] %vm1002, %v927
        %1062 = vst.msk [vmem:[#allocation2 + $0x3b0] sm:$0xff] %vm1002, %v929
        %1063 = vst.msk [vmem:[#allocation2 + $0x3c0] sm:$0xff] %vm1002, %v931
        %1064 = vst.msk [vmem:[#allocation2 + $0x3d0] sm:$0xff] %vm1002, %v933
        %1065 = vst.msk [vmem:[#allocation2 + $0x3e0] sm:$0xff] %vm1002, %v935
        %1066 = vst.msk [vmem:[#allocation2 + $0x3f0] sm:$0xff] %vm1002, %v937
        %s1067 = scalar_lea.vmem %s167, 16
        %v1068 = vld [vmem:[%s1067] sm:$0xff]
        %v1069 = vld [vmem:[%s1067 + $0x10] sm:$0xff]
        %v1070 = vld [vmem:[%s1067 + $0x20] sm:$0xff]
        %v1071 = vld [vmem:[%s1067 + $0x30] sm:$0xff]
        %v1072 = vld [vmem:[%s1067 + $0x40] sm:$0xff]
        %v1073 = vld [vmem:[%s1067 + $0x50] sm:$0xff]
        %v1074 = vld [vmem:[%s1067 + $0x60] sm:$0xff]
        %v1075 = vld [vmem:[%s1067 + $0x70] sm:$0xff]
        %v1076 = vld [vmem:[%s1067 + $0xa0] sm:$0xff]
        %v1077 = vld [vmem:[%s1067 + $0xb0] sm:$0xff]
        %v1078 = vld [vmem:[%s1067 + $0xc0] sm:$0xff]
        %v1079 = vld [vmem:[%s1067 + $0xd0] sm:$0xff]
        %v1080 = vld [vmem:[%s1067 + $0xe0] sm:$0xff]
        %v1081 = vld [vmem:[%s1067 + $0xf0] sm:$0xff]
        %v1082 = vld [vmem:[%s1067 + $0x100] sm:$0xff]
        %v1083 = vld [vmem:[%s1067 + $0x110] sm:$0xff]
        %v1084 = vld [vmem:[%s1067 + $0x140] sm:$0xff]
        %v1085 = vld [vmem:[%s1067 + $0x150] sm:$0xff]
        %v1086 = vld [vmem:[%s1067 + $0x160] sm:$0xff]
        %v1087 = vld [vmem:[%s1067 + $0x170] sm:$0xff]
        %v1088 = vld [vmem:[%s1067 + $0x180] sm:$0xff]
        %v1089 = vld [vmem:[%s1067 + $0x190] sm:$0xff]
        %v1090 = vld [vmem:[%s1067 + $0x1a0] sm:$0xff]
        %v1091 = vld [vmem:[%s1067 + $0x1b0] sm:$0xff]
        %v1092 = vld [vmem:[%s1067 + $0x1e0] sm:$0xff]
        %v1093 = vld [vmem:[%s1067 + $0x1f0] sm:$0xff]
        %v1094 = vld [vmem:[%s1067 + $0x200] sm:$0xff]
        %v1095 = vld [vmem:[%s1067 + $0x210] sm:$0xff]
        %v1096 = vld [vmem:[%s1067 + $0x220] sm:$0xff]
        %v1097 = vld [vmem:[%s1067 + $0x230] sm:$0xff]
        %v1098 = vld [vmem:[%s1067 + $0x240] sm:$0xff]
        %v1099 = vld [vmem:[%s1067 + $0x250] sm:$0xff]
        %v1100 = vld [vmem:[%s1067 + $0x280] sm:$0xff]
        %v1101 = vld [vmem:[%s1067 + $0x290] sm:$0xff]
        %v1102 = vld [vmem:[%s1067 + $0x2a0] sm:$0xff]
        %v1103 = vld [vmem:[%s1067 + $0x2b0] sm:$0xff]
        %v1104 = vld [vmem:[%s1067 + $0x2c0] sm:$0xff]
        %v1105 = vld [vmem:[%s1067 + $0x2d0] sm:$0xff]
        %v1106 = vld [vmem:[%s1067 + $0x2e0] sm:$0xff]
        %v1107 = vld [vmem:[%s1067 + $0x2f0] sm:$0xff]
        %v1108 = vld [vmem:[%s1067 + $0x320] sm:$0xff]
        %v1109 = vld [vmem:[%s1067 + $0x330] sm:$0xff]
        %v1110 = vld [vmem:[%s1067 + $0x340] sm:$0xff]
        %v1111 = vld [vmem:[%s1067 + $0x350] sm:$0xff]
        %v1112 = vld [vmem:[%s1067 + $0x360] sm:$0xff]
        %v1113 = vld [vmem:[%s1067 + $0x370] sm:$0xff]
        %v1114 = vld [vmem:[%s1067 + $0x380] sm:$0xff]
        %v1115 = vld [vmem:[%s1067 + $0x390] sm:$0xff]
        %v1116 = vld [vmem:[%s1067 + $0x3c0] sm:$0xff]
        %v1117 = vld [vmem:[%s1067 + $0x3d0] sm:$0xff]
        %v1118 = vld [vmem:[%s1067 + $0x3e0] sm:$0xff]
        %v1119 = vld [vmem:[%s1067 + $0x3f0] sm:$0xff]
        %v1120 = vld [vmem:[%s1067 + $0x400] sm:$0xff]
        %v1121 = vld [vmem:[%s1067 + $0x410] sm:$0xff]
        %v1122 = vld [vmem:[%s1067 + $0x420] sm:$0xff]
        %v1123 = vld [vmem:[%s1067 + $0x430] sm:$0xff]
        %v1124 = vld [vmem:[%s1067 + $0x460] sm:$0xff]
        %v1125 = vld [vmem:[%s1067 + $0x470] sm:$0xff]
        %v1126 = vld [vmem:[%s1067 + $0x480] sm:$0xff]
        %v1127 = vld [vmem:[%s1067 + $0x490] sm:$0xff]
        %v1128 = vld [vmem:[%s1067 + $0x4a0] sm:$0xff]
        %v1129 = vld [vmem:[%s1067 + $0x4b0] sm:$0xff]
        %v1130 = vld [vmem:[%s1067 + $0x4c0] sm:$0xff]
        %v1131 = vld [vmem:[%s1067 + $0x4d0] sm:$0xff]
        %1196 = vrot.lane.b32.xlu0 %v1068, 24
        %v1197 = vpop.permute.xlu0 %1196
        %1198 = vrot.lane.b32.xlu0 %v1069, 24
        %v1199 = vpop.permute.xlu0 %1198
        %1200 = vrot.lane.b32.xlu0 %v1070, 24
        %v1201 = vpop.permute.xlu0 %1200
        %1202 = vrot.lane.b32.xlu0 %v1071, 24
        %v1203 = vpop.permute.xlu0 %1202
        %1204 = vrot.lane.b32.xlu0 %v1072, 24
        %v1205 = vpop.permute.xlu0 %1204
        %1206 = vrot.lane.b32.xlu0 %v1073, 24
        %v1207 = vpop.permute.xlu0 %1206
        %1208 = vrot.lane.b32.xlu0 %v1074, 24
        %v1209 = vpop.permute.xlu0 %1208
        %1210 = vrot.lane.b32.xlu0 %v1075, 24
        %v1211 = vpop.permute.xlu0 %1210
        %1212 = vrot.lane.b32.xlu0 %v1076, 24
        %v1213 = vpop.permute.xlu0 %1212
        %1214 = vrot.lane.b32.xlu0 %v1077, 24
        %v1215 = vpop.permute.xlu0 %1214
        %1216 = vrot.lane.b32.xlu0 %v1078, 24
        %v1217 = vpop.permute.xlu0 %1216
        %1218 = vrot.lane.b32.xlu0 %v1079, 24
        %v1219 = vpop.permute.xlu0 %1218
        %1220 = vrot.lane.b32.xlu0 %v1080, 24
        %v1221 = vpop.permute.xlu0 %1220
        %1222 = vrot.lane.b32.xlu0 %v1081, 24
        %v1223 = vpop.permute.xlu0 %1222
        %1224 = vrot.lane.b32.xlu0 %v1082, 24
        %v1225 = vpop.permute.xlu0 %1224
        %1226 = vrot.lane.b32.xlu0 %v1083, 24
        %v1227 = vpop.permute.xlu0 %1226
        %1228 = vrot.lane.b32.xlu0 %v1084, 24
        %v1229 = vpop.permute.xlu0 %1228
        %1230 = vrot.lane.b32.xlu0 %v1085, 24
        %v1231 = vpop.permute.xlu0 %1230
        %1232 = vrot.lane.b32.xlu0 %v1086, 24
        %v1233 = vpop.permute.xlu0 %1232
        %1234 = vrot.lane.b32.xlu0 %v1087, 24
        %v1235 = vpop.permute.xlu0 %1234
        %1236 = vrot.lane.b32.xlu0 %v1088, 24
        %v1237 = vpop.permute.xlu0 %1236
        %1238 = vrot.lane.b32.xlu0 %v1089, 24
        %v1239 = vpop.permute.xlu0 %1238
        %1240 = vrot.lane.b32.xlu0 %v1090, 24
        %v1241 = vpop.permute.xlu0 %1240
        %1242 = vrot.lane.b32.xlu0 %v1091, 24
        %v1243 = vpop.permute.xlu0 %1242
        %1244 = vrot.lane.b32.xlu0 %v1092, 24
        %v1245 = vpop.permute.xlu0 %1244
        %1246 = vrot.lane.b32.xlu0 %v1093, 24
        %v1247 = vpop.permute.xlu0 %1246
        %1248 = vrot.lane.b32.xlu0 %v1094, 24
        %v1249 = vpop.permute.xlu0 %1248
        %1250 = vrot.lane.b32.xlu0 %v1095, 24
        %v1251 = vpop.permute.xlu0 %1250
        %1252 = vrot.lane.b32.xlu0 %v1096, 24
        %v1253 = vpop.permute.xlu0 %1252
        %1254 = vrot.lane.b32.xlu0 %v1097, 24
        %v1255 = vpop.permute.xlu0 %1254
        %1256 = vrot.lane.b32.xlu0 %v1098, 24
        %v1257 = vpop.permute.xlu0 %1256
        %1258 = vrot.lane.b32.xlu0 %v1099, 24
        %v1259 = vpop.permute.xlu0 %1258
        %1260 = vrot.lane.b32.xlu0 %v1100, 24
        %v1261 = vpop.permute.xlu0 %1260
        %1262 = vrot.lane.b32.xlu0 %v1101, 24
        %v1263 = vpop.permute.xlu0 %1262
        %1264 = vrot.lane.b32.xlu0 %v1102, 24
        %v1265 = vpop.permute.xlu0 %1264
        %1266 = vrot.lane.b32.xlu0 %v1103, 24
        %v1267 = vpop.permute.xlu0 %1266
        %1268 = vrot.lane.b32.xlu0 %v1104, 24
        %v1269 = vpop.permute.xlu0 %1268
        %1270 = vrot.lane.b32.xlu0 %v1105, 24
        %v1271 = vpop.permute.xlu0 %1270
        %1272 = vrot.lane.b32.xlu0 %v1106, 24
        %v1273 = vpop.permute.xlu0 %1272
        %1274 = vrot.lane.b32.xlu0 %v1107, 24
        %v1275 = vpop.permute.xlu0 %1274
        %1276 = vrot.lane.b32.xlu0 %v1108, 24
        %v1277 = vpop.permute.xlu0 %1276
        %1278 = vrot.lane.b32.xlu0 %v1109, 24
        %v1279 = vpop.permute.xlu0 %1278
        %1280 = vrot.lane.b32.xlu0 %v1110, 24
        %v1281 = vpop.permute.xlu0 %1280
        %1282 = vrot.lane.b32.xlu0 %v1111, 24
        %v1283 = vpop.permute.xlu0 %1282
        %1284 = vrot.lane.b32.xlu0 %v1112, 24
        %v1285 = vpop.permute.xlu0 %1284
        %1286 = vrot.lane.b32.xlu0 %v1113, 24
        %v1287 = vpop.permute.xlu0 %1286
        %1288 = vrot.lane.b32.xlu0 %v1114, 24
        %v1289 = vpop.permute.xlu0 %1288
        %1290 = vrot.lane.b32.xlu0 %v1115, 24
        %v1291 = vpop.permute.xlu0 %1290
        %1292 = vrot.lane.b32.xlu0 %v1116, 24
        %v1293 = vpop.permute.xlu0 %1292
        %1294 = vrot.lane.b32.xlu0 %v1117, 24
        %v1295 = vpop.permute.xlu0 %1294
        %1296 = vrot.lane.b32.xlu0 %v1118, 24
        %v1297 = vpop.permute.xlu0 %1296
        %1298 = vrot.lane.b32.xlu0 %v1119, 24
        %v1299 = vpop.permute.xlu0 %1298
        %1300 = vrot.lane.b32.xlu0 %v1120, 24
        %v1301 = vpop.permute.xlu0 %1300
        %1302 = vrot.lane.b32.xlu0 %v1121, 24
        %v1303 = vpop.permute.xlu0 %1302
        %1304 = vrot.lane.b32.xlu0 %v1122, 24
        %v1305 = vpop.permute.xlu0 %1304
        %1306 = vrot.lane.b32.xlu0 %v1123, 24
        %v1307 = vpop.permute.xlu0 %1306
        %1308 = vrot.lane.b32.xlu0 %v1124, 24
        %v1309 = vpop.permute.xlu0 %1308
        %1310 = vrot.lane.b32.xlu0 %v1125, 24
        %v1311 = vpop.permute.xlu0 %1310
        %1312 = vrot.lane.b32.xlu0 %v1126, 24
        %v1313 = vpop.permute.xlu0 %1312
        %1314 = vrot.lane.b32.xlu0 %v1127, 24
        %v1315 = vpop.permute.xlu0 %1314
        %1316 = vrot.lane.b32.xlu0 %v1128, 24
        %v1317 = vpop.permute.xlu0 %1316
        %1318 = vrot.lane.b32.xlu0 %v1129, 24
        %v1319 = vpop.permute.xlu0 %1318
        %1320 = vrot.lane.b32.xlu0 %v1130, 24
        %v1321 = vpop.permute.xlu0 %1320
        %1322 = vrot.lane.b32.xlu0 %v1131, 24
        %v1323 = vpop.permute.xlu0 %1322
        %vm1388 = vcmask 261312
        %1389 = vst.msk [vmem:[#allocation2] sm:$0xff] %vm1388, %v1197
        %1390 = vst.msk [vmem:[#allocation2 + $0x10] sm:$0xff] %vm1388, %v1199
        %1391 = vst.msk [vmem:[#allocation2 + $0x20] sm:$0xff] %vm1388, %v1201
        %1392 = vst.msk [vmem:[#allocation2 + $0x30] sm:$0xff] %vm1388, %v1203
        %1393 = vst.msk [vmem:[#allocation2 + $0x40] sm:$0xff] %vm1388, %v1205
        %1394 = vst.msk [vmem:[#allocation2 + $0x50] sm:$0xff] %vm1388, %v1207
        %1395 = vst.msk [vmem:[#allocation2 + $0x60] sm:$0xff] %vm1388, %v1209
        %1396 = vst.msk [vmem:[#allocation2 + $0x70] sm:$0xff] %vm1388, %v1211
        %1397 = vst.msk [vmem:[#allocation2 + $0x80] sm:$0xff] %vm1388, %v1213
        %1398 = vst.msk [vmem:[#allocation2 + $0x90] sm:$0xff] %vm1388, %v1215
        %1399 = vst.msk [vmem:[#allocation2 + $0xa0] sm:$0xff] %vm1388, %v1217
        %1400 = vst.msk [vmem:[#allocation2 + $0xb0] sm:$0xff] %vm1388, %v1219
        %1401 = vst.msk [vmem:[#allocation2 + $0xc0] sm:$0xff] %vm1388, %v1221
        %1402 = vst.msk [vmem:[#allocation2 + $0xd0] sm:$0xff] %vm1388, %v1223
        %1403 = vst.msk [vmem:[#allocation2 + $0xe0] sm:$0xff] %vm1388, %v1225
        %1404 = vst.msk [vmem:[#allocation2 + $0xf0] sm:$0xff] %vm1388, %v1227
        %1405 = vst.msk [vmem:[#allocation2 + $0x100] sm:$0xff] %vm1388, %v1229
        %1406 = vst.msk [vmem:[#allocation2 + $0x110] sm:$0xff] %vm1388, %v1231
        %1407 = vst.msk [vmem:[#allocation2 + $0x120] sm:$0xff] %vm1388, %v1233
        %1408 = vst.msk [vmem:[#allocation2 + $0x130] sm:$0xff] %vm1388, %v1235
        %1409 = vst.msk [vmem:[#allocation2 + $0x140] sm:$0xff] %vm1388, %v1237
        %1410 = vst.msk [vmem:[#allocation2 + $0x150] sm:$0xff] %vm1388, %v1239
        %1411 = vst.msk [vmem:[#allocation2 + $0x160] sm:$0xff] %vm1388, %v1241
        %1412 = vst.msk [vmem:[#allocation2 + $0x170] sm:$0xff] %vm1388, %v1243
        %1413 = vst.msk [vmem:[#allocation2 + $0x180] sm:$0xff] %vm1388, %v1245
        %1414 = vst.msk [vmem:[#allocation2 + $0x190] sm:$0xff] %vm1388, %v1247
        %1415 = vst.msk [vmem:[#allocation2 + $0x1a0] sm:$0xff] %vm1388, %v1249
        %1416 = vst.msk [vmem:[#allocation2 + $0x1b0] sm:$0xff] %vm1388, %v1251
        %1417 = vst.msk [vmem:[#allocation2 + $0x1c0] sm:$0xff] %vm1388, %v1253
        %1418 = vst.msk [vmem:[#allocation2 + $0x1d0] sm:$0xff] %vm1388, %v1255
        %1419 = vst.msk [vmem:[#allocation2 + $0x1e0] sm:$0xff] %vm1388, %v1257
        %1420 = vst.msk [vmem:[#allocation2 + $0x1f0] sm:$0xff] %vm1388, %v1259
        %1421 = vst.msk [vmem:[#allocation2 + $0x200] sm:$0xff] %vm1388, %v1261
        %1422 = vst.msk [vmem:[#allocation2 + $0x210] sm:$0xff] %vm1388, %v1263
        %1423 = vst.msk [vmem:[#allocation2 + $0x220] sm:$0xff] %vm1388, %v1265
        %1424 = vst.msk [vmem:[#allocation2 + $0x230] sm:$0xff] %vm1388, %v1267
        %1425 = vst.msk [vmem:[#allocation2 + $0x240] sm:$0xff] %vm1388, %v1269
        %1426 = vst.msk [vmem:[#allocation2 + $0x250] sm:$0xff] %vm1388, %v1271
        %1427 = vst.msk [vmem:[#allocation2 + $0x260] sm:$0xff] %vm1388, %v1273
        %1428 = vst.msk [vmem:[#allocation2 + $0x270] sm:$0xff] %vm1388, %v1275
        %1429 = vst.msk [vmem:[#allocation2 + $0x280] sm:$0xff] %vm1388, %v1277
        %1430 = vst.msk [vmem:[#allocation2 + $0x290] sm:$0xff] %vm1388, %v1279
        %1431 = vst.msk [vmem:[#allocation2 + $0x2a0] sm:$0xff] %vm1388, %v1281
        %1432 = vst.msk [vmem:[#allocation2 + $0x2b0] sm:$0xff] %vm1388, %v1283
        %1433 = vst.msk [vmem:[#allocation2 + $0x2c0] sm:$0xff] %vm1388, %v1285
        %1434 = vst.msk [vmem:[#allocation2 + $0x2d0] sm:$0xff] %vm1388, %v1287
        %1435 = vst.msk [vmem:[#allocation2 + $0x2e0] sm:$0xff] %vm1388, %v1289
        %1436 = vst.msk [vmem:[#allocation2 + $0x2f0] sm:$0xff] %vm1388, %v1291
        %1437 = vst.msk [vmem:[#allocation2 + $0x300] sm:$0xff] %vm1388, %v1293
        %1438 = vst.msk [vmem:[#allocation2 + $0x310] sm:$0xff] %vm1388, %v1295
        %1439 = vst.msk [vmem:[#allocation2 + $0x320] sm:$0xff] %vm1388, %v1297
        %1440 = vst.msk [vmem:[#allocation2 + $0x330] sm:$0xff] %vm1388, %v1299
        %1441 = vst.msk [vmem:[#allocation2 + $0x340] sm:$0xff] %vm1388, %v1301
        %1442 = vst.msk [vmem:[#allocation2 + $0x350] sm:$0xff] %vm1388, %v1303
        %1443 = vst.msk [vmem:[#allocation2 + $0x360] sm:$0xff] %vm1388, %v1305
        %1444 = vst.msk [vmem:[#allocation2 + $0x370] sm:$0xff] %vm1388, %v1307
        %1445 = vst.msk [vmem:[#allocation2 + $0x380] sm:$0xff] %vm1388, %v1309
        %1446 = vst.msk [vmem:[#allocation2 + $0x390] sm:$0xff] %vm1388, %v1311
        %1447 = vst.msk [vmem:[#allocation2 + $0x3a0] sm:$0xff] %vm1388, %v1313
        %1448 = vst.msk [vmem:[#allocation2 + $0x3b0] sm:$0xff] %vm1388, %v1315
        %1449 = vst.msk [vmem:[#allocation2 + $0x3c0] sm:$0xff] %vm1388, %v1317
        %1450 = vst.msk [vmem:[#allocation2 + $0x3d0] sm:$0xff] %vm1388, %v1319
        %1451 = vst.msk [vmem:[#allocation2 + $0x3e0] sm:$0xff] %vm1388, %v1321
        %1452 = vst.msk [vmem:[#allocation2 + $0x3f0] sm:$0xff] %vm1388, %v1323
        %v1453 = vld [vmem:[%s1067 + $0x1] sm:$0xff]
        %v1454 = vld [vmem:[%s1067 + $0x11] sm:$0xff]
        %v1455 = vld [vmem:[%s1067 + $0x21] sm:$0xff]
        %v1456 = vld [vmem:[%s1067 + $0x31] sm:$0xff]
        %v1457 = vld [vmem:[%s1067 + $0x41] sm:$0xff]
        %v1458 = vld [vmem:[%s1067 + $0x51] sm:$0xff]
        %v1459 = vld [vmem:[%s1067 + $0x61] sm:$0xff]
        %v1460 = vld [vmem:[%s1067 + $0x71] sm:$0xff]
        %v1461 = vld [vmem:[%s1067 + $0xa1] sm:$0xff]
        %v1462 = vld [vmem:[%s1067 + $0xb1] sm:$0xff]
        %v1463 = vld [vmem:[%s1067 + $0xc1] sm:$0xff]
        %v1464 = vld [vmem:[%s1067 + $0xd1] sm:$0xff]
        %v1465 = vld [vmem:[%s1067 + $0xe1] sm:$0xff]
        %v1466 = vld [vmem:[%s1067 + $0xf1] sm:$0xff]
        %v1467 = vld [vmem:[%s1067 + $0x101] sm:$0xff]
        %v1468 = vld [vmem:[%s1067 + $0x111] sm:$0xff]
        %v1469 = vld [vmem:[%s1067 + $0x141] sm:$0xff]
        %v1470 = vld [vmem:[%s1067 + $0x151] sm:$0xff]
        %v1471 = vld [vmem:[%s1067 + $0x161] sm:$0xff]
        %v1472 = vld [vmem:[%s1067 + $0x171] sm:$0xff]
        %v1473 = vld [vmem:[%s1067 + $0x181] sm:$0xff]
        %v1474 = vld [vmem:[%s1067 + $0x191] sm:$0xff]
        %v1475 = vld [vmem:[%s1067 + $0x1a1] sm:$0xff]
        %v1476 = vld [vmem:[%s1067 + $0x1b1] sm:$0xff]
        %v1477 = vld [vmem:[%s1067 + $0x1e1] sm:$0xff]
        %v1478 = vld [vmem:[%s1067 + $0x1f1] sm:$0xff]
        %v1479 = vld [vmem:[%s1067 + $0x201] sm:$0xff]
        %v1480 = vld [vmem:[%s1067 + $0x211] sm:$0xff]
        %v1481 = vld [vmem:[%s1067 + $0x221] sm:$0xff]
        %v1482 = vld [vmem:[%s1067 + $0x231] sm:$0xff]
        %v1483 = vld [vmem:[%s1067 + $0x241] sm:$0xff]
        %v1484 = vld [vmem:[%s1067 + $0x251] sm:$0xff]
        %v1485 = vld [vmem:[%s1067 + $0x281] sm:$0xff]
        %v1486 = vld [vmem:[%s1067 + $0x291] sm:$0xff]
        %v1487 = vld [vmem:[%s1067 + $0x2a1] sm:$0xff]
        %v1488 = vld [vmem:[%s1067 + $0x2b1] sm:$0xff]
        %v1489 = vld [vmem:[%s1067 + $0x2c1] sm:$0xff]
        %v1490 = vld [vmem:[%s1067 + $0x2d1] sm:$0xff]
        %v1491 = vld [vmem:[%s1067 + $0x2e1] sm:$0xff]
        %v1492 = vld [vmem:[%s1067 + $0x2f1] sm:$0xff]
        %v1493 = vld [vmem:[%s1067 + $0x321] sm:$0xff]
        %v1494 = vld [vmem:[%s1067 + $0x331] sm:$0xff]
        %v1495 = vld [vmem:[%s1067 + $0x341] sm:$0xff]
        %v1496 = vld [vmem:[%s1067 + $0x351] sm:$0xff]
        %v1497 = vld [vmem:[%s1067 + $0x361] sm:$0xff]
        %v1498 = vld [vmem:[%s1067 + $0x371] sm:$0xff]
        %v1499 = vld [vmem:[%s1067 + $0x381] sm:$0xff]
        %v1500 = vld [vmem:[%s1067 + $0x391] sm:$0xff]
        %v1501 = vld [vmem:[%s1067 + $0x3c1] sm:$0xff]
        %v1502 = vld [vmem:[%s1067 + $0x3d1] sm:$0xff]
        %v1503 = vld [vmem:[%s1067 + $0x3e1] sm:$0xff]
        %v1504 = vld [vmem:[%s1067 + $0x3f1] sm:$0xff]
        %v1505 = vld [vmem:[%s1067 + $0x401] sm:$0xff]
        %v1506 = vld [vmem:[%s1067 + $0x411] sm:$0xff]
        %v1507 = vld [vmem:[%s1067 + $0x421] sm:$0xff]
        %v1508 = vld [vmem:[%s1067 + $0x431] sm:$0xff]
        %v1509 = vld [vmem:[%s1067 + $0x461] sm:$0xff]
        %v1510 = vld [vmem:[%s1067 + $0x471] sm:$0xff]
        %v1511 = vld [vmem:[%s1067 + $0x481] sm:$0xff]
        %v1512 = vld [vmem:[%s1067 + $0x491] sm:$0xff]
        %v1513 = vld [vmem:[%s1067 + $0x4a1] sm:$0xff]
        %v1514 = vld [vmem:[%s1067 + $0x4b1] sm:$0xff]
        %v1515 = vld [vmem:[%s1067 + $0x4c1] sm:$0xff]
        %v1516 = vld [vmem:[%s1067 + $0x4d1] sm:$0xff]
        %1581 = vrot.lane.b32.xlu0 %v1453, 32
        %v1582 = vpop.permute.xlu0 %1581
        %1583 = vrot.lane.b32.xlu0 %v1454, 32
        %v1584 = vpop.permute.xlu0 %1583
        %1585 = vrot.lane.b32.xlu0 %v1455, 32
        %v1586 = vpop.permute.xlu0 %1585
        %1587 = vrot.lane.b32.xlu0 %v1456, 32
        %v1588 = vpop.permute.xlu0 %1587
        %1589 = vrot.lane.b32.xlu0 %v1457, 32
        %v1590 = vpop.permute.xlu0 %1589
        %1591 = vrot.lane.b32.xlu0 %v1458, 32
        %v1592 = vpop.permute.xlu0 %1591
        %1593 = vrot.lane.b32.xlu0 %v1459, 32
        %v1594 = vpop.permute.xlu0 %1593
        %1595 = vrot.lane.b32.xlu0 %v1460, 32
        %v1596 = vpop.permute.xlu0 %1595
        %1597 = vrot.lane.b32.xlu0 %v1461, 32
        %v1598 = vpop.permute.xlu0 %1597
        %1599 = vrot.lane.b32.xlu0 %v1462, 32
        %v1600 = vpop.permute.xlu0 %1599
        %1601 = vrot.lane.b32.xlu0 %v1463, 32
        %v1602 = vpop.permute.xlu0 %1601
        %1603 = vrot.lane.b32.xlu0 %v1464, 32
        %v1604 = vpop.permute.xlu0 %1603
        %1605 = vrot.lane.b32.xlu0 %v1465, 32
        %v1606 = vpop.permute.xlu0 %1605
        %1607 = vrot.lane.b32.xlu0 %v1466, 32
        %v1608 = vpop.permute.xlu0 %1607
        %1609 = vrot.lane.b32.xlu0 %v1467, 32
        %v1610 = vpop.permute.xlu0 %1609
        %1611 = vrot.lane.b32.xlu0 %v1468, 32
        %v1612 = vpop.permute.xlu0 %1611
        %1613 = vrot.lane.b32.xlu0 %v1469, 32
        %v1614 = vpop.permute.xlu0 %1613
        %1615 = vrot.lane.b32.xlu0 %v1470, 32
        %v1616 = vpop.permute.xlu0 %1615
        %1617 = vrot.lane.b32.xlu0 %v1471, 32
        %v1618 = vpop.permute.xlu0 %1617
        %1619 = vrot.lane.b32.xlu0 %v1472, 32
        %v1620 = vpop.permute.xlu0 %1619
        %1621 = vrot.lane.b32.xlu0 %v1473, 32
        %v1622 = vpop.permute.xlu0 %1621
        %1623 = vrot.lane.b32.xlu0 %v1474, 32
        %v1624 = vpop.permute.xlu0 %1623
        %1625 = vrot.lane.b32.xlu0 %v1475, 32
        %v1626 = vpop.permute.xlu0 %1625
        %1627 = vrot.lane.b32.xlu0 %v1476, 32
        %v1628 = vpop.permute.xlu0 %1627
        %1629 = vrot.lane.b32.xlu0 %v1477, 32
        %v1630 = vpop.permute.xlu0 %1629
        %1631 = vrot.lane.b32.xlu0 %v1478, 32
        %v1632 = vpop.permute.xlu0 %1631
        %1633 = vrot.lane.b32.xlu0 %v1479, 32
        %v1634 = vpop.permute.xlu0 %1633
        %1635 = vrot.lane.b32.xlu0 %v1480, 32
        %v1636 = vpop.permute.xlu0 %1635
        %1637 = vrot.lane.b32.xlu0 %v1481, 32
        %v1638 = vpop.permute.xlu0 %1637
        %1639 = vrot.lane.b32.xlu0 %v1482, 32
        %v1640 = vpop.permute.xlu0 %1639
        %1641 = vrot.lane.b32.xlu0 %v1483, 32
        %v1642 = vpop.permute.xlu0 %1641
        %1643 = vrot.lane.b32.xlu0 %v1484, 32
        %v1644 = vpop.permute.xlu0 %1643
        %1645 = vrot.lane.b32.xlu0 %v1485, 32
        %v1646 = vpop.permute.xlu0 %1645
        %1647 = vrot.lane.b32.xlu0 %v1486, 32
        %v1648 = vpop.permute.xlu0 %1647
        %1649 = vrot.lane.b32.xlu0 %v1487, 32
        %v1650 = vpop.permute.xlu0 %1649
        %1651 = vrot.lane.b32.xlu0 %v1488, 32
        %v1652 = vpop.permute.xlu0 %1651
        %1653 = vrot.lane.b32.xlu0 %v1489, 32
        %v1654 = vpop.permute.xlu0 %1653
        %1655 = vrot.lane.b32.xlu0 %v1490, 32
        %v1656 = vpop.permute.xlu0 %1655
        %1657 = vrot.lane.b32.xlu0 %v1491, 32
        %v1658 = vpop.permute.xlu0 %1657
        %1659 = vrot.lane.b32.xlu0 %v1492, 32
        %v1660 = vpop.permute.xlu0 %1659
        %1661 = vrot.lane.b32.xlu0 %v1493, 32
        %v1662 = vpop.permute.xlu0 %1661
        %1663 = vrot.lane.b32.xlu0 %v1494, 32
        %v1664 = vpop.permute.xlu0 %1663
        %1665 = vrot.lane.b32.xlu0 %v1495, 32
        %v1666 = vpop.permute.xlu0 %1665
        %1667 = vrot.lane.b32.xlu0 %v1496, 32
        %v1668 = vpop.permute.xlu0 %1667
        %1669 = vrot.lane.b32.xlu0 %v1497, 32
        %v1670 = vpop.permute.xlu0 %1669
        %1671 = vrot.lane.b32.xlu0 %v1498, 32
        %v1672 = vpop.permute.xlu0 %1671
        %1673 = vrot.lane.b32.xlu0 %v1499, 32
        %v1674 = vpop.permute.xlu0 %1673
        %1675 = vrot.lane.b32.xlu0 %v1500, 32
        %v1676 = vpop.permute.xlu0 %1675
        %1677 = vrot.lane.b32.xlu0 %v1501, 32
        %v1678 = vpop.permute.xlu0 %1677
        %1679 = vrot.lane.b32.xlu0 %v1502, 32
        %v1680 = vpop.permute.xlu0 %1679
        %1681 = vrot.lane.b32.xlu0 %v1503, 32
        %v1682 = vpop.permute.xlu0 %1681
        %1683 = vrot.lane.b32.xlu0 %v1504, 32
        %v1684 = vpop.permute.xlu0 %1683
        %1685 = vrot.lane.b32.xlu0 %v1505, 32
        %v1686 = vpop.permute.xlu0 %1685
        %1687 = vrot.lane.b32.xlu0 %v1506, 32
        %v1688 = vpop.permute.xlu0 %1687
        %1689 = vrot.lane.b32.xlu0 %v1507, 32
        %v1690 = vpop.permute.xlu0 %1689
        %1691 = vrot.lane.b32.xlu0 %v1508, 32
        %v1692 = vpop.permute.xlu0 %1691
        %1693 = vrot.lane.b32.xlu0 %v1509, 32
        %v1694 = vpop.permute.xlu0 %1693
        %1695 = vrot.lane.b32.xlu0 %v1510, 32
        %v1696 = vpop.permute.xlu0 %1695
        %1697 = vrot.lane.b32.xlu0 %v1511, 32
        %v1698 = vpop.permute.xlu0 %1697
        %1699 = vrot.lane.b32.xlu0 %v1512, 32
        %v1700 = vpop.permute.xlu0 %1699
        %1701 = vrot.lane.b32.xlu0 %v1513, 32
        %v1702 = vpop.permute.xlu0 %1701
        %1703 = vrot.lane.b32.xlu0 %v1514, 32
        %v1704 = vpop.permute.xlu0 %1703
        %1705 = vrot.lane.b32.xlu0 %v1515, 32
        %v1706 = vpop.permute.xlu0 %1705
        %1707 = vrot.lane.b32.xlu0 %v1516, 32
        %v1708 = vpop.permute.xlu0 %1707
        %vm1773 = vcmask 326912
        %1774 = vst.msk [vmem:[#allocation2] sm:$0xff] %vm1773, %v1582
        %1775 = vst.msk [vmem:[#allocation2 + $0x10] sm:$0xff] %vm1773, %v1584
        %1776 = vst.msk [vmem:[#allocation2 + $0x20] sm:$0xff] %vm1773, %v1586
        %1777 = vst.msk [vmem:[#allocation2 + $0x30] sm:$0xff] %vm1773, %v1588
        %1778 = vst.msk [vmem:[#allocation2 + $0x40] sm:$0xff] %vm1773, %v1590
        %1779 = vst.msk [vmem:[#allocation2 + $0x50] sm:$0xff] %vm1773, %v1592
        %1780 = vst.msk [vmem:[#allocation2 + $0x60] sm:$0xff] %vm1773, %v1594
        %1781 = vst.msk [vmem:[#allocation2 + $0x70] sm:$0xff] %vm1773, %v1596
        %1782 = vst.msk [vmem:[#allocation2 + $0x80] sm:$0xff] %vm1773, %v1598
        %1783 = vst.msk [vmem:[#allocation2 + $0x90] sm:$0xff] %vm1773, %v1600
        %1784 = vst.msk [vmem:[#allocation2 + $0xa0] sm:$0xff] %vm1773, %v1602
        %1785 = vst.msk [vmem:[#allocation2 + $0xb0] sm:$0xff] %vm1773, %v1604
        %1786 = vst.msk [vmem:[#allocation2 + $0xc0] sm:$0xff] %vm1773, %v1606
        %1787 = vst.msk [vmem:[#allocation2 + $0xd0] sm:$0xff] %vm1773, %v1608
        %1788 = vst.msk [vmem:[#allocation2 + $0xe0] sm:$0xff] %vm1773, %v1610
        %1789 = vst.msk [vmem:[#allocation2 + $0xf0] sm:$0xff] %vm1773, %v1612
        %1790 = vst.msk [vmem:[#allocation2 + $0x100] sm:$0xff] %vm1773, %v1614
        %1791 = vst.msk [vmem:[#allocation2 + $0x110] sm:$0xff] %vm1773, %v1616
        %1792 = vst.msk [vmem:[#allocation2 + $0x120] sm:$0xff] %vm1773, %v1618
        %1793 = vst.msk [vmem:[#allocation2 + $0x130] sm:$0xff] %vm1773, %v1620
        %1794 = vst.msk [vmem:[#allocation2 + $0x140] sm:$0xff] %vm1773, %v1622
        %1795 = vst.msk [vmem:[#allocation2 + $0x150] sm:$0xff] %vm1773, %v1624
        %1796 = vst.msk [vmem:[#allocation2 + $0x160] sm:$0xff] %vm1773, %v1626
        %1797 = vst.msk [vmem:[#allocation2 + $0x170] sm:$0xff] %vm1773, %v1628
        %1798 = vst.msk [vmem:[#allocation2 + $0x180] sm:$0xff] %vm1773, %v1630
        %1799 = vst.msk [vmem:[#allocation2 + $0x190] sm:$0xff] %vm1773, %v1632
        %1800 = vst.msk [vmem:[#allocation2 + $0x1a0] sm:$0xff] %vm1773, %v1634
        %1801 = vst.msk [vmem:[#allocation2 + $0x1b0] sm:$0xff] %vm1773, %v1636
        %1802 = vst.msk [vmem:[#allocation2 + $0x1c0] sm:$0xff] %vm1773, %v1638
        %1803 = vst.msk [vmem:[#allocation2 + $0x1d0] sm:$0xff] %vm1773, %v1640
        %1804 = vst.msk [vmem:[#allocation2 + $0x1e0] sm:$0xff] %vm1773, %v1642
        %1805 = vst.msk [vmem:[#allocation2 + $0x1f0] sm:$0xff] %vm1773, %v1644
        %1806 = vst.msk [vmem:[#allocation2 + $0x200] sm:$0xff] %vm1773, %v1646
        %1807 = vst.msk [vmem:[#allocation2 + $0x210] sm:$0xff] %vm1773, %v1648
        %1808 = vst.msk [vmem:[#allocation2 + $0x220] sm:$0xff] %vm1773, %v1650
        %1809 = vst.msk [vmem:[#allocation2 + $0x230] sm:$0xff] %vm1773, %v1652
        %1810 = vst.msk [vmem:[#allocation2 + $0x240] sm:$0xff] %vm1773, %v1654
        %1811 = vst.msk [vmem:[#allocation2 + $0x250] sm:$0xff] %vm1773, %v1656
        %1812 = vst.msk [vmem:[#allocation2 + $0x260] sm:$0xff] %vm1773, %v1658
        %1813 = vst.msk [vmem:[#allocation2 + $0x270] sm:$0xff] %vm1773, %v1660
        %1814 = vst.msk [vmem:[#allocation2 + $0x280] sm:$0xff] %vm1773, %v1662
        %1815 = vst.msk [vmem:[#allocation2 + $0x290] sm:$0xff] %vm1773, %v1664
        %1816 = vst.msk [vmem:[#allocation2 + $0x2a0] sm:$0xff] %vm1773, %v1666
        %1817 = vst.msk [vmem:[#allocation2 + $0x2b0] sm:$0xff] %vm1773, %v1668
        %1818 = vst.msk [vmem:[#allocation2 + $0x2c0] sm:$0xff] %vm1773, %v1670
        %1819 = vst.msk [vmem:[#allocation2 + $0x2d0] sm:$0xff] %vm1773, %v1672
        %1820 = vst.msk [vmem:[#allocation2 + $0x2e0] sm:$0xff] %vm1773, %v1674
        %1821 = vst.msk [vmem:[#allocation2 + $0x2f0] sm:$0xff] %vm1773, %v1676
        %1822 = vst.msk [vmem:[#allocation2 + $0x300] sm:$0xff] %vm1773, %v1678
        %1823 = vst.msk [vmem:[#allocation2 + $0x310] sm:$0xff] %vm1773, %v1680
        %1824 = vst.msk [vmem:[#allocation2 + $0x320] sm:$0xff] %vm1773, %v1682
        %1825 = vst.msk [vmem:[#allocation2 + $0x330] sm:$0xff] %vm1773, %v1684
        %1826 = vst.msk [vmem:[#allocation2 + $0x340] sm:$0xff] %vm1773, %v1686
        %1827 = vst.msk [vmem:[#allocation2 + $0x350] sm:$0xff] %vm1773, %v1688
        %1828 = vst.msk [vmem:[#allocation2 + $0x360] sm:$0xff] %vm1773, %v1690
        %1829 = vst.msk [vmem:[#allocation2 + $0x370] sm:$0xff] %vm1773, %v1692
        %1830 = vst.msk [vmem:[#allocation2 + $0x380] sm:$0xff] %vm1773, %v1694
        %1831 = vst.msk [vmem:[#allocation2 + $0x390] sm:$0xff] %vm1773, %v1696
        %1832 = vst.msk [vmem:[#allocation2 + $0x3a0] sm:$0xff] %vm1773, %v1698
        %1833 = vst.msk [vmem:[#allocation2 + $0x3b0] sm:$0xff] %vm1773, %v1700
        %1834 = vst.msk [vmem:[#allocation2 + $0x3c0] sm:$0xff] %vm1773, %v1702
        %1835 = vst.msk [vmem:[#allocation2 + $0x3d0] sm:$0xff] %vm1773, %v1704
        %1836 = vst.msk [vmem:[#allocation2 + $0x3e0] sm:$0xff] %vm1773, %v1706
        %1837 = vst.msk [vmem:[#allocation2 + $0x3f0] sm:$0xff] %vm1773, %v1708
        %v1838 = vld [vmem:[%s1067 + $0x2] sm:$0xff]
        %v1839 = vld [vmem:[%s1067 + $0x12] sm:$0xff]
        %v1840 = vld [vmem:[%s1067 + $0x22] sm:$0xff]
        %v1841 = vld [vmem:[%s1067 + $0x32] sm:$0xff]
        %v1842 = vld [vmem:[%s1067 + $0x42] sm:$0xff]
        %v1843 = vld [vmem:[%s1067 + $0x52] sm:$0xff]
        %v1844 = vld [vmem:[%s1067 + $0x62] sm:$0xff]
        %v1845 = vld [vmem:[%s1067 + $0x72] sm:$0xff]
        %v1846 = vld [vmem:[%s1067 + $0xa2] sm:$0xff]
        %v1847 = vld [vmem:[%s1067 + $0xb2] sm:$0xff]
        %v1848 = vld [vmem:[%s1067 + $0xc2] sm:$0xff]
        %v1849 = vld [vmem:[%s1067 + $0xd2] sm:$0xff]
        %v1850 = vld [vmem:[%s1067 + $0xe2] sm:$0xff]
        %v1851 = vld [vmem:[%s1067 + $0xf2] sm:$0xff]
        %v1852 = vld [vmem:[%s1067 + $0x102] sm:$0xff]
        %v1853 = vld [vmem:[%s1067 + $0x112] sm:$0xff]
        %v1854 = vld [vmem:[%s1067 + $0x142] sm:$0xff]
        %v1855 = vld [vmem:[%s1067 + $0x152] sm:$0xff]
        %v1856 = vld [vmem:[%s1067 + $0x162] sm:$0xff]
        %v1857 = vld [vmem:[%s1067 + $0x172] sm:$0xff]
        %v1858 = vld [vmem:[%s1067 + $0x182] sm:$0xff]
        %v1859 = vld [vmem:[%s1067 + $0x192] sm:$0xff]
        %v1860 = vld [vmem:[%s1067 + $0x1a2] sm:$0xff]
        %v1861 = vld [vmem:[%s1067 + $0x1b2] sm:$0xff]
        %v1862 = vld [vmem:[%s1067 + $0x1e2] sm:$0xff]
        %v1863 = vld [vmem:[%s1067 + $0x1f2] sm:$0xff]
        %v1864 = vld [vmem:[%s1067 + $0x202] sm:$0xff]
        %v1865 = vld [vmem:[%s1067 + $0x212] sm:$0xff]
        %v1866 = vld [vmem:[%s1067 + $0x222] sm:$0xff]
        %v1867 = vld [vmem:[%s1067 + $0x232] sm:$0xff]
        %v1868 = vld [vmem:[%s1067 + $0x242] sm:$0xff]
        %v1869 = vld [vmem:[%s1067 + $0x252] sm:$0xff]
        %v1870 = vld [vmem:[%s1067 + $0x282] sm:$0xff]
        %v1871 = vld [vmem:[%s1067 + $0x292] sm:$0xff]
        %v1872 = vld [vmem:[%s1067 + $0x2a2] sm:$0xff]
        %v1873 = vld [vmem:[%s1067 + $0x2b2] sm:$0xff]
        %v1874 = vld [vmem:[%s1067 + $0x2c2] sm:$0xff]
        %v1875 = vld [vmem:[%s1067 + $0x2d2] sm:$0xff]
        %v1876 = vld [vmem:[%s1067 + $0x2e2] sm:$0xff]
        %v1877 = vld [vmem:[%s1067 + $0x2f2] sm:$0xff]
        %v1878 = vld [vmem:[%s1067 + $0x322] sm:$0xff]
        %v1879 = vld [vmem:[%s1067 + $0x332] sm:$0xff]
        %v1880 = vld [vmem:[%s1067 + $0x342] sm:$0xff]
        %v1881 = vld [vmem:[%s1067 + $0x352] sm:$0xff]
        %v1882 = vld [vmem:[%s1067 + $0x362] sm:$0xff]
        %v1883 = vld [vmem:[%s1067 + $0x372] sm:$0xff]
        %v1884 = vld [vmem:[%s1067 + $0x382] sm:$0xff]
        %v1885 = vld [vmem:[%s1067 + $0x392] sm:$0xff]
        %v1886 = vld [vmem:[%s1067 + $0x3c2] sm:$0xff]
        %v1887 = vld [vmem:[%s1067 + $0x3d2] sm:$0xff]
        %v1888 = vld [vmem:[%s1067 + $0x3e2] sm:$0xff]
        %v1889 = vld [vmem:[%s1067 + $0x3f2] sm:$0xff]
        %v1890 = vld [vmem:[%s1067 + $0x402] sm:$0xff]
        %v1891 = vld [vmem:[%s1067 + $0x412] sm:$0xff]
        %v1892 = vld [vmem:[%s1067 + $0x422] sm:$0xff]
        %v1893 = vld [vmem:[%s1067 + $0x432] sm:$0xff]
        %v1894 = vld [vmem:[%s1067 + $0x462] sm:$0xff]
        %v1895 = vld [vmem:[%s1067 + $0x472] sm:$0xff]
        %v1896 = vld [vmem:[%s1067 + $0x482] sm:$0xff]
        %v1897 = vld [vmem:[%s1067 + $0x492] sm:$0xff]
        %v1898 = vld [vmem:[%s1067 + $0x4a2] sm:$0xff]
        %v1899 = vld [vmem:[%s1067 + $0x4b2] sm:$0xff]
        %v1900 = vld [vmem:[%s1067 + $0x4c2] sm:$0xff]
        %v1901 = vld [vmem:[%s1067 + $0x4d2] sm:$0xff]
        %1966 = vrot.lane.b32.xlu0 %v1838, 40
        %v1967 = vpop.permute.xlu0 %1966
        %1968 = vrot.lane.b32.xlu0 %v1839, 40
        %v1969 = vpop.permute.xlu0 %1968
        %1970 = vrot.lane.b32.xlu0 %v1840, 40
        %v1971 = vpop.permute.xlu0 %1970
        %1972 = vrot.lane.b32.xlu0 %v1841, 40
        %v1973 = vpop.permute.xlu0 %1972
        %1974 = vrot.lane.b32.xlu0 %v1842, 40
        %v1975 = vpop.permute.xlu0 %1974
        %1976 = vrot.lane.b32.xlu0 %v1843, 40
        %v1977 = vpop.permute.xlu0 %1976
        %1978 = vrot.lane.b32.xlu0 %v1844, 40
        %v1979 = vpop.permute.xlu0 %1978
        %1980 = vrot.lane.b32.xlu0 %v1845, 40
        %v1981 = vpop.permute.xlu0 %1980
        %1982 = vrot.lane.b32.xlu0 %v1846, 40
        %v1983 = vpop.permute.xlu0 %1982
        %1984 = vrot.lane.b32.xlu0 %v1847, 40
        %v1985 = vpop.permute.xlu0 %1984
        %1986 = vrot.lane.b32.xlu0 %v1848, 40
        %v1987 = vpop.permute.xlu0 %1986
        %1988 = vrot.lane.b32.xlu0 %v1849, 40
        %v1989 = vpop.permute.xlu0 %1988
        %1990 = vrot.lane.b32.xlu0 %v1850, 40
        %v1991 = vpop.permute.xlu0 %1990
        %1992 = vrot.lane.b32.xlu0 %v1851, 40
        %v1993 = vpop.permute.xlu0 %1992
        %1994 = vrot.lane.b32.xlu0 %v1852, 40
        %v1995 = vpop.permute.xlu0 %1994
        %1996 = vrot.lane.b32.xlu0 %v1853, 40
        %v1997 = vpop.permute.xlu0 %1996
        %1998 = vrot.lane.b32.xlu0 %v1854, 40
        %v1999 = vpop.permute.xlu0 %1998
        %2000 = vrot.lane.b32.xlu0 %v1855, 40
        %v2001 = vpop.permute.xlu0 %2000
        %2002 = vrot.lane.b32.xlu0 %v1856, 40
        %v2003 = vpop.permute.xlu0 %2002
        %2004 = vrot.lane.b32.xlu0 %v1857, 40
        %v2005 = vpop.permute.xlu0 %2004
        %2006 = vrot.lane.b32.xlu0 %v1858, 40
        %v2007 = vpop.permute.xlu0 %2006
        %2008 = vrot.lane.b32.xlu0 %v1859, 40
        %v2009 = vpop.permute.xlu0 %2008
        %2010 = vrot.lane.b32.xlu0 %v1860, 40
        %v2011 = vpop.permute.xlu0 %2010
        %2012 = vrot.lane.b32.xlu0 %v1861, 40
        %v2013 = vpop.permute.xlu0 %2012
        %2014 = vrot.lane.b32.xlu0 %v1862, 40
        %v2015 = vpop.permute.xlu0 %2014
        %2016 = vrot.lane.b32.xlu0 %v1863, 40
        %v2017 = vpop.permute.xlu0 %2016
        %2018 = vrot.lane.b32.xlu0 %v1864, 40
        %v2019 = vpop.permute.xlu0 %2018
        %2020 = vrot.lane.b32.xlu0 %v1865, 40
        %v2021 = vpop.permute.xlu0 %2020
        %2022 = vrot.lane.b32.xlu0 %v1866, 40
        %v2023 = vpop.permute.xlu0 %2022
        %2024 = vrot.lane.b32.xlu0 %v1867, 40
        %v2025 = vpop.permute.xlu0 %2024
        %2026 = vrot.lane.b32.xlu0 %v1868, 40
        %v2027 = vpop.permute.xlu0 %2026
        %2028 = vrot.lane.b32.xlu0 %v1869, 40
        %v2029 = vpop.permute.xlu0 %2028
        %2030 = vrot.lane.b32.xlu0 %v1870, 40
        %v2031 = vpop.permute.xlu0 %2030
        %2032 = vrot.lane.b32.xlu0 %v1871, 40
        %v2033 = vpop.permute.xlu0 %2032
        %2034 = vrot.lane.b32.xlu0 %v1872, 40
        %v2035 = vpop.permute.xlu0 %2034
        %2036 = vrot.lane.b32.xlu0 %v1873, 40
        %v2037 = vpop.permute.xlu0 %2036
        %2038 = vrot.lane.b32.xlu0 %v1874, 40
        %v2039 = vpop.permute.xlu0 %2038
        %2040 = vrot.lane.b32.xlu0 %v1875, 40
        %v2041 = vpop.permute.xlu0 %2040
        %2042 = vrot.lane.b32.xlu0 %v1876, 40
        %v2043 = vpop.permute.xlu0 %2042
        %2044 = vrot.lane.b32.xlu0 %v1877, 40
        %v2045 = vpop.permute.xlu0 %2044
        %2046 = vrot.lane.b32.xlu0 %v1878, 40
        %v2047 = vpop.permute.xlu0 %2046
        %2048 = vrot.lane.b32.xlu0 %v1879, 40
        %v2049 = vpop.permute.xlu0 %2048
        %2050 = vrot.lane.b32.xlu0 %v1880, 40
        %v2051 = vpop.permute.xlu0 %2050
        %2052 = vrot.lane.b32.xlu0 %v1881, 40
        %v2053 = vpop.permute.xlu0 %2052
        %2054 = vrot.lane.b32.xlu0 %v1882, 40
        %v2055 = vpop.permute.xlu0 %2054
        %2056 = vrot.lane.b32.xlu0 %v1883, 40
        %v2057 = vpop.permute.xlu0 %2056
        %2058 = vrot.lane.b32.xlu0 %v1884, 40
        %v2059 = vpop.permute.xlu0 %2058
        %2060 = vrot.lane.b32.xlu0 %v1885, 40
        %v2061 = vpop.permute.xlu0 %2060
        %2062 = vrot.lane.b32.xlu0 %v1886, 40
        %v2063 = vpop.permute.xlu0 %2062
        %2064 = vrot.lane.b32.xlu0 %v1887, 40
        %v2065 = vpop.permute.xlu0 %2064
        %2066 = vrot.lane.b32.xlu0 %v1888, 40
        %v2067 = vpop.permute.xlu0 %2066
        %2068 = vrot.lane.b32.xlu0 %v1889, 40
        %v2069 = vpop.permute.xlu0 %2068
        %2070 = vrot.lane.b32.xlu0 %v1890, 40
        %v2071 = vpop.permute.xlu0 %2070
        %2072 = vrot.lane.b32.xlu0 %v1891, 40
        %v2073 = vpop.permute.xlu0 %2072
        %2074 = vrot.lane.b32.xlu0 %v1892, 40
        %v2075 = vpop.permute.xlu0 %2074
        %2076 = vrot.lane.b32.xlu0 %v1893, 40
        %v2077 = vpop.permute.xlu0 %2076
        %2078 = vrot.lane.b32.xlu0 %v1894, 40
        %v2079 = vpop.permute.xlu0 %2078
        %2080 = vrot.lane.b32.xlu0 %v1895, 40
        %v2081 = vpop.permute.xlu0 %2080
        %2082 = vrot.lane.b32.xlu0 %v1896, 40
        %v2083 = vpop.permute.xlu0 %2082
        %2084 = vrot.lane.b32.xlu0 %v1897, 40
        %v2085 = vpop.permute.xlu0 %2084
        %2086 = vrot.lane.b32.xlu0 %v1898, 40
        %v2087 = vpop.permute.xlu0 %2086
        %2088 = vrot.lane.b32.xlu0 %v1899, 40
        %v2089 = vpop.permute.xlu0 %2088
        %2090 = vrot.lane.b32.xlu0 %v1900, 40
        %v2091 = vpop.permute.xlu0 %2090
        %2092 = vrot.lane.b32.xlu0 %v1901, 40
        %v2093 = vpop.permute.xlu0 %2092
        %vm2158 = vcmask 392512
        %2159 = vst.msk [vmem:[#allocation2] sm:$0xff] %vm2158, %v1967
        %2160 = vst.msk [vmem:[#allocation2 + $0x10] sm:$0xff] %vm2158, %v1969
        %2161 = vst.msk [vmem:[#allocation2 + $0x20] sm:$0xff] %vm2158, %v1971
        %2162 = vst.msk [vmem:[#allocation2 + $0x30] sm:$0xff] %vm2158, %v1973
        %2163 = vst.msk [vmem:[#allocation2 + $0x40] sm:$0xff] %vm2158, %v1975
        %2164 = vst.msk [vmem:[#allocation2 + $0x50] sm:$0xff] %vm2158, %v1977
        %2165 = vst.msk [vmem:[#allocation2 + $0x60] sm:$0xff] %vm2158, %v1979
        %2166 = vst.msk [vmem:[#allocation2 + $0x70] sm:$0xff] %vm2158, %v1981
        %2167 = vst.msk [vmem:[#allocation2 + $0x80] sm:$0xff] %vm2158, %v1983
        %2168 = vst.msk [vmem:[#allocation2 + $0x90] sm:$0xff] %vm2158, %v1985
        %2169 = vst.msk [vmem:[#allocation2 + $0xa0] sm:$0xff] %vm2158, %v1987
        %2170 = vst.msk [vmem:[#allocation2 + $0xb0] sm:$0xff] %vm2158, %v1989
        %2171 = vst.msk [vmem:[#allocation2 + $0xc0] sm:$0xff] %vm2158, %v1991
        %2172 = vst.msk [vmem:[#allocation2 + $0xd0] sm:$0xff] %vm2158, %v1993
        %2173 = vst.msk [vmem:[#allocation2 + $0xe0] sm:$0xff] %vm2158, %v1995
        %2174 = vst.msk [vmem:[#allocation2 + $0xf0] sm:$0xff] %vm2158, %v1997
        %2175 = vst.msk [vmem:[#allocation2 + $0x100] sm:$0xff] %vm2158, %v1999
        %2176 = vst.msk [vmem:[#allocation2 + $0x110] sm:$0xff] %vm2158, %v2001
        %2177 = vst.msk [vmem:[#allocation2 + $0x120] sm:$0xff] %vm2158, %v2003
        %2178 = vst.msk [vmem:[#allocation2 + $0x130] sm:$0xff] %vm2158, %v2005
        %2179 = vst.msk [vmem:[#allocation2 + $0x140] sm:$0xff] %vm2158, %v2007
        %2180 = vst.msk [vmem:[#allocation2 + $0x150] sm:$0xff] %vm2158, %v2009
        %2181 = vst.msk [vmem:[#allocation2 + $0x160] sm:$0xff] %vm2158, %v2011
        %2182 = vst.msk [vmem:[#allocation2 + $0x170] sm:$0xff] %vm2158, %v2013
        %2183 = vst.msk [vmem:[#allocation2 + $0x180] sm:$0xff] %vm2158, %v2015
        %2184 = vst.msk [vmem:[#allocation2 + $0x190] sm:$0xff] %vm2158, %v2017
        %2185 = vst.msk [vmem:[#allocation2 + $0x1a0] sm:$0xff] %vm2158, %v2019
        %2186 = vst.msk [vmem:[#allocation2 + $0x1b0] sm:$0xff] %vm2158, %v2021
        %2187 = vst.msk [vmem:[#allocation2 + $0x1c0] sm:$0xff] %vm2158, %v2023
        %2188 = vst.msk [vmem:[#allocation2 + $0x1d0] sm:$0xff] %vm2158, %v2025
        %2189 = vst.msk [vmem:[#allocation2 + $0x1e0] sm:$0xff] %vm2158, %v2027
        %2190 = vst.msk [vmem:[#allocation2 + $0x1f0] sm:$0xff] %vm2158, %v2029
        %2191 = vst.msk [vmem:[#allocation2 + $0x200] sm:$0xff] %vm2158, %v2031
        %2192 = vst.msk [vmem:[#allocation2 + $0x210] sm:$0xff] %vm2158, %v2033
        %2193 = vst.msk [vmem:[#allocation2 + $0x220] sm:$0xff] %vm2158, %v2035
        %2194 = vst.msk [vmem:[#allocation2 + $0x230] sm:$0xff] %vm2158, %v2037
        %2195 = vst.msk [vmem:[#allocation2 + $0x240] sm:$0xff] %vm2158, %v2039
        %2196 = vst.msk [vmem:[#allocation2 + $0x250] sm:$0xff] %vm2158, %v2041
        %2197 = vst.msk [vmem:[#allocation2 + $0x260] sm:$0xff] %vm2158, %v2043
        %2198 = vst.msk [vmem:[#allocation2 + $0x270] sm:$0xff] %vm2158, %v2045
        %2199 = vst.msk [vmem:[#allocation2 + $0x280] sm:$0xff] %vm2158, %v2047
        %2200 = vst.msk [vmem:[#allocation2 + $0x290] sm:$0xff] %vm2158, %v2049
        %2201 = vst.msk [vmem:[#allocation2 + $0x2a0] sm:$0xff] %vm2158, %v2051
        %2202 = vst.msk [vmem:[#allocation2 + $0x2b0] sm:$0xff] %vm2158, %v2053
        %2203 = vst.msk [vmem:[#allocation2 + $0x2c0] sm:$0xff] %vm2158, %v2055
        %2204 = vst.msk [vmem:[#allocation2 + $0x2d0] sm:$0xff] %vm2158, %v2057
        %2205 = vst.msk [vmem:[#allocation2 + $0x2e0] sm:$0xff] %vm2158, %v2059
        %2206 = vst.msk [vmem:[#allocation2 + $0x2f0] sm:$0xff] %vm2158, %v2061
        %2207 = vst.msk [vmem:[#allocation2 + $0x300] sm:$0xff] %vm2158, %v2063
        %2208 = vst.msk [vmem:[#allocation2 + $0x310] sm:$0xff] %vm2158, %v2065
        %2209 = vst.msk [vmem:[#allocation2 + $0x320] sm:$0xff] %vm2158, %v2067
        %2210 = vst.msk [vmem:[#allocation2 + $0x330] sm:$0xff] %vm2158, %v2069
        %2211 = vst.msk [vmem:[#allocation2 + $0x340] sm:$0xff] %vm2158, %v2071
        %2212 = vst.msk [vmem:[#allocation2 + $0x350] sm:$0xff] %vm2158, %v2073
        %2213 = vst.msk [vmem:[#allocation2 + $0x360] sm:$0xff] %vm2158, %v2075
        %2214 = vst.msk [vmem:[#allocation2 + $0x370] sm:$0xff] %vm2158, %v2077
        %2215 = vst.msk [vmem:[#allocation2 + $0x380] sm:$0xff] %vm2158, %v2079
        %2216 = vst.msk [vmem:[#allocation2 + $0x390] sm:$0xff] %vm2158, %v2081
        %2217 = vst.msk [vmem:[#allocation2 + $0x3a0] sm:$0xff] %vm2158, %v2083
        %2218 = vst.msk [vmem:[#allocation2 + $0x3b0] sm:$0xff] %vm2158, %v2085
        %2219 = vst.msk [vmem:[#allocation2 + $0x3c0] sm:$0xff] %vm2158, %v2087
        %2220 = vst.msk [vmem:[#allocation2 + $0x3d0] sm:$0xff] %vm2158, %v2089
        %2221 = vst.msk [vmem:[#allocation2 + $0x3e0] sm:$0xff] %vm2158, %v2091
        %2222 = vst.msk [vmem:[#allocation2 + $0x3f0] sm:$0xff] %vm2158, %v2093
        %s2223 = scalar_lea.vmem %s167, 32
        %v2224 = vld [vmem:[%s2223] sm:$0xff]
        %v2225 = vld [vmem:[%s2223 + $0x10] sm:$0xff]
        %v2226 = vld [vmem:[%s2223 + $0x20] sm:$0xff]
        %v2227 = vld [vmem:[%s2223 + $0x30] sm:$0xff]
        %v2228 = vld [vmem:[%s2223 + $0x40] sm:$0xff]
        %v2229 = vld [vmem:[%s2223 + $0x50] sm:$0xff]
        %v2230 = vld [vmem:[%s2223 + $0x60] sm:$0xff]
        %v2231 = vld [vmem:[%s2223 + $0x70] sm:$0xff]
        %v2232 = vld [vmem:[%s2223 + $0xa0] sm:$0xff]
        %v2233 = vld [vmem:[%s2223 + $0xb0] sm:$0xff]
        %v2234 = vld [vmem:[%s2223 + $0xc0] sm:$0xff]
        %v2235 = vld [vmem:[%s2223 + $0xd0] sm:$0xff]
        %v2236 = vld [vmem:[%s2223 + $0xe0] sm:$0xff]
        %v2237 = vld [vmem:[%s2223 + $0xf0] sm:$0xff]
        %v2238 = vld [vmem:[%s2223 + $0x100] sm:$0xff]
        %v2239 = vld [vmem:[%s2223 + $0x110] sm:$0xff]
        %v2240 = vld [vmem:[%s2223 + $0x140] sm:$0xff]
        %v2241 = vld [vmem:[%s2223 + $0x150] sm:$0xff]
        %v2242 = vld [vmem:[%s2223 + $0x160] sm:$0xff]
        %v2243 = vld [vmem:[%s2223 + $0x170] sm:$0xff]
        %v2244 = vld [vmem:[%s2223 + $0x180] sm:$0xff]
        %v2245 = vld [vmem:[%s2223 + $0x190] sm:$0xff]
        %v2246 = vld [vmem:[%s2223 + $0x1a0] sm:$0xff]
        %v2247 = vld [vmem:[%s2223 + $0x1b0] sm:$0xff]
        %v2248 = vld [vmem:[%s2223 + $0x1e0] sm:$0xff]
        %v2249 = vld [vmem:[%s2223 + $0x1f0] sm:$0xff]
        %v2250 = vld [vmem:[%s2223 + $0x200] sm:$0xff]
        %v2251 = vld [vmem:[%s2223 + $0x210] sm:$0xff]
        %v2252 = vld [vmem:[%s2223 + $0x220] sm:$0xff]
        %v2253 = vld [vmem:[%s2223 + $0x230] sm:$0xff]
        %v2254 = vld [vmem:[%s2223 + $0x240] sm:$0xff]
        %v2255 = vld [vmem:[%s2223 + $0x250] sm:$0xff]
        %v2256 = vld [vmem:[%s2223 + $0x280] sm:$0xff]
        %v2257 = vld [vmem:[%s2223 + $0x290] sm:$0xff]
        %v2258 = vld [vmem:[%s2223 + $0x2a0] sm:$0xff]
        %v2259 = vld [vmem:[%s2223 + $0x2b0] sm:$0xff]
        %v2260 = vld [vmem:[%s2223 + $0x2c0] sm:$0xff]
        %v2261 = vld [vmem:[%s2223 + $0x2d0] sm:$0xff]
        %v2262 = vld [vmem:[%s2223 + $0x2e0] sm:$0xff]
        %v2263 = vld [vmem:[%s2223 + $0x2f0] sm:$0xff]
        %v2264 = vld [vmem:[%s2223 + $0x320] sm:$0xff]
        %v2265 = vld [vmem:[%s2223 + $0x330] sm:$0xff]
        %v2266 = vld [vmem:[%s2223 + $0x340] sm:$0xff]
        %v2267 = vld [vmem:[%s2223 + $0x350] sm:$0xff]
        %v2268 = vld [vmem:[%s2223 + $0x360] sm:$0xff]
        %v2269 = vld [vmem:[%s2223 + $0x370] sm:$0xff]
        %v2270 = vld [vmem:[%s2223 + $0x380] sm:$0xff]
        %v2271 = vld [vmem:[%s2223 + $0x390] sm:$0xff]
        %v2272 = vld [vmem:[%s2223 + $0x3c0] sm:$0xff]
        %v2273 = vld [vmem:[%s2223 + $0x3d0] sm:$0xff]
        %v2274 = vld [vmem:[%s2223 + $0x3e0] sm:$0xff]
        %v2275 = vld [vmem:[%s2223 + $0x3f0] sm:$0xff]
        %v2276 = vld [vmem:[%s2223 + $0x400] sm:$0xff]
        %v2277 = vld [vmem:[%s2223 + $0x410] sm:$0xff]
        %v2278 = vld [vmem:[%s2223 + $0x420] sm:$0xff]
        %v2279 = vld [vmem:[%s2223 + $0x430] sm:$0xff]
        %v2280 = vld [vmem:[%s2223 + $0x460] sm:$0xff]
        %v2281 = vld [vmem:[%s2223 + $0x470] sm:$0xff]
        %v2282 = vld [vmem:[%s2223 + $0x480] sm:$0xff]
        %v2283 = vld [vmem:[%s2223 + $0x490] sm:$0xff]
        %v2284 = vld [vmem:[%s2223 + $0x4a0] sm:$0xff]
        %v2285 = vld [vmem:[%s2223 + $0x4b0] sm:$0xff]
        %v2286 = vld [vmem:[%s2223 + $0x4c0] sm:$0xff]
        %v2287 = vld [vmem:[%s2223 + $0x4d0] sm:$0xff]
        %2352 = vrot.lane.b32.xlu0 %v2224, 48
        %v2353 = vpop.permute.xlu0 %2352
        %2354 = vrot.lane.b32.xlu0 %v2225, 48
        %v2355 = vpop.permute.xlu0 %2354
        %2356 = vrot.lane.b32.xlu0 %v2226, 48
        %v2357 = vpop.permute.xlu0 %2356
        %2358 = vrot.lane.b32.xlu0 %v2227, 48
        %v2359 = vpop.permute.xlu0 %2358
        %2360 = vrot.lane.b32.xlu0 %v2228, 48
        %v2361 = vpop.permute.xlu0 %2360
        %2362 = vrot.lane.b32.xlu0 %v2229, 48
        %v2363 = vpop.permute.xlu0 %2362
        %2364 = vrot.lane.b32.xlu0 %v2230, 48
        %v2365 = vpop.permute.xlu0 %2364
        %2366 = vrot.lane.b32.xlu0 %v2231, 48
        %v2367 = vpop.permute.xlu0 %2366
        %2368 = vrot.lane.b32.xlu0 %v2232, 48
        %v2369 = vpop.permute.xlu0 %2368
        %2370 = vrot.lane.b32.xlu0 %v2233, 48
        %v2371 = vpop.permute.xlu0 %2370
        %2372 = vrot.lane.b32.xlu0 %v2234, 48
        %v2373 = vpop.permute.xlu0 %2372
        %2374 = vrot.lane.b32.xlu0 %v2235, 48
        %v2375 = vpop.permute.xlu0 %2374
        %2376 = vrot.lane.b32.xlu0 %v2236, 48
        %v2377 = vpop.permute.xlu0 %2376
        %2378 = vrot.lane.b32.xlu0 %v2237, 48
        %v2379 = vpop.permute.xlu0 %2378
        %2380 = vrot.lane.b32.xlu0 %v2238, 48
        %v2381 = vpop.permute.xlu0 %2380
        %2382 = vrot.lane.b32.xlu0 %v2239, 48
        %v2383 = vpop.permute.xlu0 %2382
        %2384 = vrot.lane.b32.xlu0 %v2240, 48
        %v2385 = vpop.permute.xlu0 %2384
        %2386 = vrot.lane.b32.xlu0 %v2241, 48
        %v2387 = vpop.permute.xlu0 %2386
        %2388 = vrot.lane.b32.xlu0 %v2242, 48
        %v2389 = vpop.permute.xlu0 %2388
        %2390 = vrot.lane.b32.xlu0 %v2243, 48
        %v2391 = vpop.permute.xlu0 %2390
        %2392 = vrot.lane.b32.xlu0 %v2244, 48
        %v2393 = vpop.permute.xlu0 %2392
        %2394 = vrot.lane.b32.xlu0 %v2245, 48
        %v2395 = vpop.permute.xlu0 %2394
        %2396 = vrot.lane.b32.xlu0 %v2246, 48
        %v2397 = vpop.permute.xlu0 %2396
        %2398 = vrot.lane.b32.xlu0 %v2247, 48
        %v2399 = vpop.permute.xlu0 %2398
        %2400 = vrot.lane.b32.xlu0 %v2248, 48
        %v2401 = vpop.permute.xlu0 %2400
        %2402 = vrot.lane.b32.xlu0 %v2249, 48
        %v2403 = vpop.permute.xlu0 %2402
        %2404 = vrot.lane.b32.xlu0 %v2250, 48
        %v2405 = vpop.permute.xlu0 %2404
        %2406 = vrot.lane.b32.xlu0 %v2251, 48
        %v2407 = vpop.permute.xlu0 %2406
        %2408 = vrot.lane.b32.xlu0 %v2252, 48
        %v2409 = vpop.permute.xlu0 %2408
        %2410 = vrot.lane.b32.xlu0 %v2253, 48
        %v2411 = vpop.permute.xlu0 %2410
        %2412 = vrot.lane.b32.xlu0 %v2254, 48
        %v2413 = vpop.permute.xlu0 %2412
        %2414 = vrot.lane.b32.xlu0 %v2255, 48
        %v2415 = vpop.permute.xlu0 %2414
        %2416 = vrot.lane.b32.xlu0 %v2256, 48
        %v2417 = vpop.permute.xlu0 %2416
        %2418 = vrot.lane.b32.xlu0 %v2257, 48
        %v2419 = vpop.permute.xlu0 %2418
        %2420 = vrot.lane.b32.xlu0 %v2258, 48
        %v2421 = vpop.permute.xlu0 %2420
        %2422 = vrot.lane.b32.xlu0 %v2259, 48
        %v2423 = vpop.permute.xlu0 %2422
        %2424 = vrot.lane.b32.xlu0 %v2260, 48
        %v2425 = vpop.permute.xlu0 %2424
        %2426 = vrot.lane.b32.xlu0 %v2261, 48
        %v2427 = vpop.permute.xlu0 %2426
        %2428 = vrot.lane.b32.xlu0 %v2262, 48
        %v2429 = vpop.permute.xlu0 %2428
        %2430 = vrot.lane.b32.xlu0 %v2263, 48
        %v2431 = vpop.permute.xlu0 %2430
        %2432 = vrot.lane.b32.xlu0 %v2264, 48
        %v2433 = vpop.permute.xlu0 %2432
        %2434 = vrot.lane.b32.xlu0 %v2265, 48
        %v2435 = vpop.permute.xlu0 %2434
        %2436 = vrot.lane.b32.xlu0 %v2266, 48
        %v2437 = vpop.permute.xlu0 %2436
        %2438 = vrot.lane.b32.xlu0 %v2267, 48
        %v2439 = vpop.permute.xlu0 %2438
        %2440 = vrot.lane.b32.xlu0 %v2268, 48
        %v2441 = vpop.permute.xlu0 %2440
        %2442 = vrot.lane.b32.xlu0 %v2269, 48
        %v2443 = vpop.permute.xlu0 %2442
        %2444 = vrot.lane.b32.xlu0 %v2270, 48
        %v2445 = vpop.permute.xlu0 %2444
        %2446 = vrot.lane.b32.xlu0 %v2271, 48
        %v2447 = vpop.permute.xlu0 %2446
        %2448 = vrot.lane.b32.xlu0 %v2272, 48
        %v2449 = vpop.permute.xlu0 %2448
        %2450 = vrot.lane.b32.xlu0 %v2273, 48
        %v2451 = vpop.permute.xlu0 %2450
        %2452 = vrot.lane.b32.xlu0 %v2274, 48
        %v2453 = vpop.permute.xlu0 %2452
        %2454 = vrot.lane.b32.xlu0 %v2275, 48
        %v2455 = vpop.permute.xlu0 %2454
        %2456 = vrot.lane.b32.xlu0 %v2276, 48
        %v2457 = vpop.permute.xlu0 %2456
        %2458 = vrot.lane.b32.xlu0 %v2277, 48
        %v2459 = vpop.permute.xlu0 %2458
        %2460 = vrot.lane.b32.xlu0 %v2278, 48
        %v2461 = vpop.permute.xlu0 %2460
        %2462 = vrot.lane.b32.xlu0 %v2279, 48
        %v2463 = vpop.permute.xlu0 %2462
        %2464 = vrot.lane.b32.xlu0 %v2280, 48
        %v2465 = vpop.permute.xlu0 %2464
        %2466 = vrot.lane.b32.xlu0 %v2281, 48
        %v2467 = vpop.permute.xlu0 %2466
        %2468 = vrot.lane.b32.xlu0 %v2282, 48
        %v2469 = vpop.permute.xlu0 %2468
        %2470 = vrot.lane.b32.xlu0 %v2283, 48
        %v2471 = vpop.permute.xlu0 %2470
        %2472 = vrot.lane.b32.xlu0 %v2284, 48
        %v2473 = vpop.permute.xlu0 %2472
        %2474 = vrot.lane.b32.xlu0 %v2285, 48
        %v2475 = vpop.permute.xlu0 %2474
        %2476 = vrot.lane.b32.xlu0 %v2286, 48
        %v2477 = vpop.permute.xlu0 %2476
        %2478 = vrot.lane.b32.xlu0 %v2287, 48
        %v2479 = vpop.permute.xlu0 %2478
        %vm2544 = vcmask 458112
        %2545 = vst.msk [vmem:[#allocation2] sm:$0xff] %vm2544, %v2353
        %2546 = vst.msk [vmem:[#allocation2 + $0x10] sm:$0xff] %vm2544, %v2355
        %2547 = vst.msk [vmem:[#allocation2 + $0x20] sm:$0xff] %vm2544, %v2357
        %2548 = vst.msk [vmem:[#allocation2 + $0x30] sm:$0xff] %vm2544, %v2359
        %2549 = vst.msk [vmem:[#allocation2 + $0x40] sm:$0xff] %vm2544, %v2361
        %2550 = vst.msk [vmem:[#allocation2 + $0x50] sm:$0xff] %vm2544, %v2363
        %2551 = vst.msk [vmem:[#allocation2 + $0x60] sm:$0xff] %vm2544, %v2365
        %2552 = vst.msk [vmem:[#allocation2 + $0x70] sm:$0xff] %vm2544, %v2367
        %2553 = vst.msk [vmem:[#allocation2 + $0x80] sm:$0xff] %vm2544, %v2369
        %2554 = vst.msk [vmem:[#allocation2 + $0x90] sm:$0xff] %vm2544, %v2371
        %2555 = vst.msk [vmem:[#allocation2 + $0xa0] sm:$0xff] %vm2544, %v2373
        %2556 = vst.msk [vmem:[#allocation2 + $0xb0] sm:$0xff] %vm2544, %v2375
        %2557 = vst.msk [vmem:[#allocation2 + $0xc0] sm:$0xff] %vm2544, %v2377
        %2558 = vst.msk [vmem:[#allocation2 + $0xd0] sm:$0xff] %vm2544, %v2379
        %2559 = vst.msk [vmem:[#allocation2 + $0xe0] sm:$0xff] %vm2544, %v2381
        %2560 = vst.msk [vmem:[#allocation2 + $0xf0] sm:$0xff] %vm2544, %v2383
        %2561 = vst.msk [vmem:[#allocation2 + $0x100] sm:$0xff] %vm2544, %v2385
        %2562 = vst.msk [vmem:[#allocation2 + $0x110] sm:$0xff] %vm2544, %v2387
        %2563 = vst.msk [vmem:[#allocation2 + $0x120] sm:$0xff] %vm2544, %v2389
        %2564 = vst.msk [vmem:[#allocation2 + $0x130] sm:$0xff] %vm2544, %v2391
        %2565 = vst.msk [vmem:[#allocation2 + $0x140] sm:$0xff] %vm2544, %v2393
        %2566 = vst.msk [vmem:[#allocation2 + $0x150] sm:$0xff] %vm2544, %v2395
        %2567 = vst.msk [vmem:[#allocation2 + $0x160] sm:$0xff] %vm2544, %v2397
        %2568 = vst.msk [vmem:[#allocation2 + $0x170] sm:$0xff] %vm2544, %v2399
        %2569 = vst.msk [vmem:[#allocation2 + $0x180] sm:$0xff] %vm2544, %v2401
        %2570 = vst.msk [vmem:[#allocation2 + $0x190] sm:$0xff] %vm2544, %v2403
        %2571 = vst.msk [vmem:[#allocation2 + $0x1a0] sm:$0xff] %vm2544, %v2405
        %2572 = vst.msk [vmem:[#allocation2 + $0x1b0] sm:$0xff] %vm2544, %v2407
        %2573 = vst.msk [vmem:[#allocation2 + $0x1c0] sm:$0xff] %vm2544, %v2409
        %2574 = vst.msk [vmem:[#allocation2 + $0x1d0] sm:$0xff] %vm2544, %v2411
        %2575 = vst.msk [vmem:[#allocation2 + $0x1e0] sm:$0xff] %vm2544, %v2413
        %2576 = vst.msk [vmem:[#allocation2 + $0x1f0] sm:$0xff] %vm2544, %v2415
        %2577 = vst.msk [vmem:[#allocation2 + $0x200] sm:$0xff] %vm2544, %v2417
        %2578 = vst.msk [vmem:[#allocation2 + $0x210] sm:$0xff] %vm2544, %v2419
        %2579 = vst.msk [vmem:[#allocation2 + $0x220] sm:$0xff] %vm2544, %v2421
        %2580 = vst.msk [vmem:[#allocation2 + $0x230] sm:$0xff] %vm2544, %v2423
        %2581 = vst.msk [vmem:[#allocation2 + $0x240] sm:$0xff] %vm2544, %v2425
        %2582 = vst.msk [vmem:[#allocation2 + $0x250] sm:$0xff] %vm2544, %v2427
        %2583 = vst.msk [vmem:[#allocation2 + $0x260] sm:$0xff] %vm2544, %v2429
        %2584 = vst.msk [vmem:[#allocation2 + $0x270] sm:$0xff] %vm2544, %v2431
        %2585 = vst.msk [vmem:[#allocation2 + $0x280] sm:$0xff] %vm2544, %v2433
        %2586 = vst.msk [vmem:[#allocation2 + $0x290] sm:$0xff] %vm2544, %v2435
        %2587 = vst.msk [vmem:[#allocation2 + $0x2a0] sm:$0xff] %vm2544, %v2437
        %2588 = vst.msk [vmem:[#allocation2 + $0x2b0] sm:$0xff] %vm2544, %v2439
        %2589 = vst.msk [vmem:[#allocation2 + $0x2c0] sm:$0xff] %vm2544, %v2441
        %2590 = vst.msk [vmem:[#allocation2 + $0x2d0] sm:$0xff] %vm2544, %v2443
        %2591 = vst.msk [vmem:[#allocation2 + $0x2e0] sm:$0xff] %vm2544, %v2445
        %2592 = vst.msk [vmem:[#allocation2 + $0x2f0] sm:$0xff] %vm2544, %v2447
        %2593 = vst.msk [vmem:[#allocation2 + $0x300] sm:$0xff] %vm2544, %v2449
        %2594 = vst.msk [vmem:[#allocation2 + $0x310] sm:$0xff] %vm2544, %v2451
        %2595 = vst.msk [vmem:[#allocation2 + $0x320] sm:$0xff] %vm2544, %v2453
        %2596 = vst.msk [vmem:[#allocation2 + $0x330] sm:$0xff] %vm2544, %v2455
        %2597 = vst.msk [vmem:[#allocation2 + $0x340] sm:$0xff] %vm2544, %v2457
        %2598 = vst.msk [vmem:[#allocation2 + $0x350] sm:$0xff] %vm2544, %v2459
        %2599 = vst.msk [vmem:[#allocation2 + $0x360] sm:$0xff] %vm2544, %v2461
        %2600 = vst.msk [vmem:[#allocation2 + $0x370] sm:$0xff] %vm2544, %v2463
        %2601 = vst.msk [vmem:[#allocation2 + $0x380] sm:$0xff] %vm2544, %v2465
        %2602 = vst.msk [vmem:[#allocation2 + $0x390] sm:$0xff] %vm2544, %v2467
        %2603 = vst.msk [vmem:[#allocation2 + $0x3a0] sm:$0xff] %vm2544, %v2469
        %2604 = vst.msk [vmem:[#allocation2 + $0x3b0] sm:$0xff] %vm2544, %v2471
        %2605 = vst.msk [vmem:[#allocation2 + $0x3c0] sm:$0xff] %vm2544, %v2473
        %2606 = vst.msk [vmem:[#allocation2 + $0x3d0] sm:$0xff] %vm2544, %v2475
        %2607 = vst.msk [vmem:[#allocation2 + $0x3e0] sm:$0xff] %vm2544, %v2477
        %2608 = vst.msk [vmem:[#allocation2 + $0x3f0] sm:$0xff] %vm2544, %v2479
        %v2609 = vld [vmem:[%s2223 + $0x1] sm:$0xff]
        %v2610 = vld [vmem:[%s2223 + $0x11] sm:$0xff]
        %v2611 = vld [vmem:[%s2223 + $0x21] sm:$0xff]
        %v2612 = vld [vmem:[%s2223 + $0x31] sm:$0xff]
        %v2613 = vld [vmem:[%s2223 + $0x41] sm:$0xff]
        %v2614 = vld [vmem:[%s2223 + $0x51] sm:$0xff]
        %v2615 = vld [vmem:[%s2223 + $0x61] sm:$0xff]
        %v2616 = vld [vmem:[%s2223 + $0x71] sm:$0xff]
        %v2617 = vld [vmem:[%s2223 + $0xa1] sm:$0xff]
        %v2618 = vld [vmem:[%s2223 + $0xb1] sm:$0xff]
        %v2619 = vld [vmem:[%s2223 + $0xc1] sm:$0xff]
        %v2620 = vld [vmem:[%s2223 + $0xd1] sm:$0xff]
        %v2621 = vld [vmem:[%s2223 + $0xe1] sm:$0xff]
        %v2622 = vld [vmem:[%s2223 + $0xf1] sm:$0xff]
        %v2623 = vld [vmem:[%s2223 + $0x101] sm:$0xff]
        %v2624 = vld [vmem:[%s2223 + $0x111] sm:$0xff]
        %v2625 = vld [vmem:[%s2223 + $0x141] sm:$0xff]
        %v2626 = vld [vmem:[%s2223 + $0x151] sm:$0xff]
        %v2627 = vld [vmem:[%s2223 + $0x161] sm:$0xff]
        %v2628 = vld [vmem:[%s2223 + $0x171] sm:$0xff]
        %v2629 = vld [vmem:[%s2223 + $0x181] sm:$0xff]
        %v2630 = vld [vmem:[%s2223 + $0x191] sm:$0xff]
        %v2631 = vld [vmem:[%s2223 + $0x1a1] sm:$0xff]
        %v2632 = vld [vmem:[%s2223 + $0x1b1] sm:$0xff]
        %v2633 = vld [vmem:[%s2223 + $0x1e1] sm:$0xff]
        %v2634 = vld [vmem:[%s2223 + $0x1f1] sm:$0xff]
        %v2635 = vld [vmem:[%s2223 + $0x201] sm:$0xff]
        %v2636 = vld [vmem:[%s2223 + $0x211] sm:$0xff]
        %v2637 = vld [vmem:[%s2223 + $0x221] sm:$0xff]
        %v2638 = vld [vmem:[%s2223 + $0x231] sm:$0xff]
        %v2639 = vld [vmem:[%s2223 + $0x241] sm:$0xff]
        %v2640 = vld [vmem:[%s2223 + $0x251] sm:$0xff]
        %v2641 = vld [vmem:[%s2223 + $0x281] sm:$0xff]
        %v2642 = vld [vmem:[%s2223 + $0x291] sm:$0xff]
        %v2643 = vld [vmem:[%s2223 + $0x2a1] sm:$0xff]
        %v2644 = vld [vmem:[%s2223 + $0x2b1] sm:$0xff]
        %v2645 = vld [vmem:[%s2223 + $0x2c1] sm:$0xff]
        %v2646 = vld [vmem:[%s2223 + $0x2d1] sm:$0xff]
        %v2647 = vld [vmem:[%s2223 + $0x2e1] sm:$0xff]
        %v2648 = vld [vmem:[%s2223 + $0x2f1] sm:$0xff]
        %v2649 = vld [vmem:[%s2223 + $0x321] sm:$0xff]
        %v2650 = vld [vmem:[%s2223 + $0x331] sm:$0xff]
        %v2651 = vld [vmem:[%s2223 + $0x341] sm:$0xff]
        %v2652 = vld [vmem:[%s2223 + $0x351] sm:$0xff]
        %v2653 = vld [vmem:[%s2223 + $0x361] sm:$0xff]
        %v2654 = vld [vmem:[%s2223 + $0x371] sm:$0xff]
        %v2655 = vld [vmem:[%s2223 + $0x381] sm:$0xff]
        %v2656 = vld [vmem:[%s2223 + $0x391] sm:$0xff]
        %v2657 = vld [vmem:[%s2223 + $0x3c1] sm:$0xff]
        %v2658 = vld [vmem:[%s2223 + $0x3d1] sm:$0xff]
        %v2659 = vld [vmem:[%s2223 + $0x3e1] sm:$0xff]
        %v2660 = vld [vmem:[%s2223 + $0x3f1] sm:$0xff]
        %v2661 = vld [vmem:[%s2223 + $0x401] sm:$0xff]
        %v2662 = vld [vmem:[%s2223 + $0x411] sm:$0xff]
        %v2663 = vld [vmem:[%s2223 + $0x421] sm:$0xff]
        %v2664 = vld [vmem:[%s2223 + $0x431] sm:$0xff]
        %v2665 = vld [vmem:[%s2223 + $0x461] sm:$0xff]
        %v2666 = vld [vmem:[%s2223 + $0x471] sm:$0xff]
        %v2667 = vld [vmem:[%s2223 + $0x481] sm:$0xff]
        %v2668 = vld [vmem:[%s2223 + $0x491] sm:$0xff]
        %v2669 = vld [vmem:[%s2223 + $0x4a1] sm:$0xff]
        %v2670 = vld [vmem:[%s2223 + $0x4b1] sm:$0xff]
        %v2671 = vld [vmem:[%s2223 + $0x4c1] sm:$0xff]
        %v2672 = vld [vmem:[%s2223 + $0x4d1] sm:$0xff]
        %2737 = vrot.lane.b32.xlu0 %v2609, 56
        %v2738 = vpop.permute.xlu0 %2737
        %2739 = vrot.lane.b32.xlu0 %v2610, 56
        %v2740 = vpop.permute.xlu0 %2739
        %2741 = vrot.lane.b32.xlu0 %v2611, 56
        %v2742 = vpop.permute.xlu0 %2741
        %2743 = vrot.lane.b32.xlu0 %v2612, 56
        %v2744 = vpop.permute.xlu0 %2743
        %2745 = vrot.lane.b32.xlu0 %v2613, 56
        %v2746 = vpop.permute.xlu0 %2745
        %2747 = vrot.lane.b32.xlu0 %v2614, 56
        %v2748 = vpop.permute.xlu0 %2747
        %2749 = vrot.lane.b32.xlu0 %v2615, 56
        %v2750 = vpop.permute.xlu0 %2749
        %2751 = vrot.lane.b32.xlu0 %v2616, 56
        %v2752 = vpop.permute.xlu0 %2751
        %2753 = vrot.lane.b32.xlu0 %v2617, 56
        %v2754 = vpop.permute.xlu0 %2753
        %2755 = vrot.lane.b32.xlu0 %v2618, 56
        %v2756 = vpop.permute.xlu0 %2755
        %2757 = vrot.lane.b32.xlu0 %v2619, 56
        %v2758 = vpop.permute.xlu0 %2757
        %2759 = vrot.lane.b32.xlu0 %v2620, 56
        %v2760 = vpop.permute.xlu0 %2759
        %2761 = vrot.lane.b32.xlu0 %v2621, 56
        %v2762 = vpop.permute.xlu0 %2761
        %2763 = vrot.lane.b32.xlu0 %v2622, 56
        %v2764 = vpop.permute.xlu0 %2763
        %2765 = vrot.lane.b32.xlu0 %v2623, 56
        %v2766 = vpop.permute.xlu0 %2765
        %2767 = vrot.lane.b32.xlu0 %v2624, 56
        %v2768 = vpop.permute.xlu0 %2767
        %2769 = vrot.lane.b32.xlu0 %v2625, 56
        %v2770 = vpop.permute.xlu0 %2769
        %2771 = vrot.lane.b32.xlu0 %v2626, 56
        %v2772 = vpop.permute.xlu0 %2771
        %2773 = vrot.lane.b32.xlu0 %v2627, 56
        %v2774 = vpop.permute.xlu0 %2773
        %2775 = vrot.lane.b32.xlu0 %v2628, 56
        %v2776 = vpop.permute.xlu0 %2775
        %2777 = vrot.lane.b32.xlu0 %v2629, 56
        %v2778 = vpop.permute.xlu0 %2777
        %2779 = vrot.lane.b32.xlu0 %v2630, 56
        %v2780 = vpop.permute.xlu0 %2779
        %2781 = vrot.lane.b32.xlu0 %v2631, 56
        %v2782 = vpop.permute.xlu0 %2781
        %2783 = vrot.lane.b32.xlu0 %v2632, 56
        %v2784 = vpop.permute.xlu0 %2783
        %2785 = vrot.lane.b32.xlu0 %v2633, 56
        %v2786 = vpop.permute.xlu0 %2785
        %2787 = vrot.lane.b32.xlu0 %v2634, 56
        %v2788 = vpop.permute.xlu0 %2787
        %2789 = vrot.lane.b32.xlu0 %v2635, 56
        %v2790 = vpop.permute.xlu0 %2789
        %2791 = vrot.lane.b32.xlu0 %v2636, 56
        %v2792 = vpop.permute.xlu0 %2791
        %2793 = vrot.lane.b32.xlu0 %v2637, 56
        %v2794 = vpop.permute.xlu0 %2793
        %2795 = vrot.lane.b32.xlu0 %v2638, 56
        %v2796 = vpop.permute.xlu0 %2795
        %2797 = vrot.lane.b32.xlu0 %v2639, 56
        %v2798 = vpop.permute.xlu0 %2797
        %2799 = vrot.lane.b32.xlu0 %v2640, 56
        %v2800 = vpop.permute.xlu0 %2799
        %2801 = vrot.lane.b32.xlu0 %v2641, 56
        %v2802 = vpop.permute.xlu0 %2801
        %2803 = vrot.lane.b32.xlu0 %v2642, 56
        %v2804 = vpop.permute.xlu0 %2803
        %2805 = vrot.lane.b32.xlu0 %v2643, 56
        %v2806 = vpop.permute.xlu0 %2805
        %2807 = vrot.lane.b32.xlu0 %v2644, 56
        %v2808 = vpop.permute.xlu0 %2807
        %2809 = vrot.lane.b32.xlu0 %v2645, 56
        %v2810 = vpop.permute.xlu0 %2809
        %2811 = vrot.lane.b32.xlu0 %v2646, 56
        %v2812 = vpop.permute.xlu0 %2811
        %2813 = vrot.lane.b32.xlu0 %v2647, 56
        %v2814 = vpop.permute.xlu0 %2813
        %2815 = vrot.lane.b32.xlu0 %v2648, 56
        %v2816 = vpop.permute.xlu0 %2815
        %2817 = vrot.lane.b32.xlu0 %v2649, 56
        %v2818 = vpop.permute.xlu0 %2817
        %2819 = vrot.lane.b32.xlu0 %v2650, 56
        %v2820 = vpop.permute.xlu0 %2819
        %2821 = vrot.lane.b32.xlu0 %v2651, 56
        %v2822 = vpop.permute.xlu0 %2821
        %2823 = vrot.lane.b32.xlu0 %v2652, 56
        %v2824 = vpop.permute.xlu0 %2823
        %2825 = vrot.lane.b32.xlu0 %v2653, 56
        %v2826 = vpop.permute.xlu0 %2825
        %2827 = vrot.lane.b32.xlu0 %v2654, 56
        %v2828 = vpop.permute.xlu0 %2827
        %2829 = vrot.lane.b32.xlu0 %v2655, 56
        %v2830 = vpop.permute.xlu0 %2829
        %2831 = vrot.lane.b32.xlu0 %v2656, 56
        %v2832 = vpop.permute.xlu0 %2831
        %2833 = vrot.lane.b32.xlu0 %v2657, 56
        %v2834 = vpop.permute.xlu0 %2833
        %2835 = vrot.lane.b32.xlu0 %v2658, 56
        %v2836 = vpop.permute.xlu0 %2835
        %2837 = vrot.lane.b32.xlu0 %v2659, 56
        %v2838 = vpop.permute.xlu0 %2837
        %2839 = vrot.lane.b32.xlu0 %v2660, 56
        %v2840 = vpop.permute.xlu0 %2839
        %2841 = vrot.lane.b32.xlu0 %v2661, 56
        %v2842 = vpop.permute.xlu0 %2841
        %2843 = vrot.lane.b32.xlu0 %v2662, 56
        %v2844 = vpop.permute.xlu0 %2843
        %2845 = vrot.lane.b32.xlu0 %v2663, 56
        %v2846 = vpop.permute.xlu0 %2845
        %2847 = vrot.lane.b32.xlu0 %v2664, 56
        %v2848 = vpop.permute.xlu0 %2847
        %2849 = vrot.lane.b32.xlu0 %v2665, 56
        %v2850 = vpop.permute.xlu0 %2849
        %2851 = vrot.lane.b32.xlu0 %v2666, 56
        %v2852 = vpop.permute.xlu0 %2851
        %2853 = vrot.lane.b32.xlu0 %v2667, 56
        %v2854 = vpop.permute.xlu0 %2853
        %2855 = vrot.lane.b32.xlu0 %v2668, 56
        %v2856 = vpop.permute.xlu0 %2855
        %2857 = vrot.lane.b32.xlu0 %v2669, 56
        %v2858 = vpop.permute.xlu0 %2857
        %2859 = vrot.lane.b32.xlu0 %v2670, 56
        %v2860 = vpop.permute.xlu0 %2859
        %2861 = vrot.lane.b32.xlu0 %v2671, 56
        %v2862 = vpop.permute.xlu0 %2861
        %2863 = vrot.lane.b32.xlu0 %v2672, 56
        %v2864 = vpop.permute.xlu0 %2863
        %vm2929 = vcmask 523712
        %2930 = vst.msk [vmem:[#allocation2] sm:$0xff] %vm2929, %v2738
        %2931 = vst.msk [vmem:[#allocation2 + $0x10] sm:$0xff] %vm2929, %v2740
        %2932 = vst.msk [vmem:[#allocation2 + $0x20] sm:$0xff] %vm2929, %v2742
        %2933 = vst.msk [vmem:[#allocation2 + $0x30] sm:$0xff] %vm2929, %v2744
        %2934 = vst.msk [vmem:[#allocation2 + $0x40] sm:$0xff] %vm2929, %v2746
        %2935 = vst.msk [vmem:[#allocation2 + $0x50] sm:$0xff] %vm2929, %v2748
        %2936 = vst.msk [vmem:[#allocation2 + $0x60] sm:$0xff] %vm2929, %v2750
        %2937 = vst.msk [vmem:[#allocation2 + $0x70] sm:$0xff] %vm2929, %v2752
        %2938 = vst.msk [vmem:[#allocation2 + $0x80] sm:$0xff] %vm2929, %v2754
        %2939 = vst.msk [vmem:[#allocation2 + $0x90] sm:$0xff] %vm2929, %v2756
        %2940 = vst.msk [vmem:[#allocation2 + $0xa0] sm:$0xff] %vm2929, %v2758
        %2941 = vst.msk [vmem:[#allocation2 + $0xb0] sm:$0xff] %vm2929, %v2760
        %2942 = vst.msk [vmem:[#allocation2 + $0xc0] sm:$0xff] %vm2929, %v2762
        %2943 = vst.msk [vmem:[#allocation2 + $0xd0] sm:$0xff] %vm2929, %v2764
        %2944 = vst.msk [vmem:[#allocation2 + $0xe0] sm:$0xff] %vm2929, %v2766
        %2945 = vst.msk [vmem:[#allocation2 + $0xf0] sm:$0xff] %vm2929, %v2768
        %2946 = vst.msk [vmem:[#allocation2 + $0x100] sm:$0xff] %vm2929, %v2770
        %2947 = vst.msk [vmem:[#allocation2 + $0x110] sm:$0xff] %vm2929, %v2772
        %2948 = vst.msk [vmem:[#allocation2 + $0x120] sm:$0xff] %vm2929, %v2774
        %2949 = vst.msk [vmem:[#allocation2 + $0x130] sm:$0xff] %vm2929, %v2776
        %2950 = vst.msk [vmem:[#allocation2 + $0x140] sm:$0xff] %vm2929, %v2778
        %2951 = vst.msk [vmem:[#allocation2 + $0x150] sm:$0xff] %vm2929, %v2780
        %2952 = vst.msk [vmem:[#allocation2 + $0x160] sm:$0xff] %vm2929, %v2782
        %2953 = vst.msk [vmem:[#allocation2 + $0x170] sm:$0xff] %vm2929, %v2784
        %2954 = vst.msk [vmem:[#allocation2 + $0x180] sm:$0xff] %vm2929, %v2786
        %2955 = vst.msk [vmem:[#allocation2 + $0x190] sm:$0xff] %vm2929, %v2788
        %2956 = vst.msk [vmem:[#allocation2 + $0x1a0] sm:$0xff] %vm2929, %v2790
        %2957 = vst.msk [vmem:[#allocation2 + $0x1b0] sm:$0xff] %vm2929, %v2792
        %2958 = vst.msk [vmem:[#allocation2 + $0x1c0] sm:$0xff] %vm2929, %v2794
        %2959 = vst.msk [vmem:[#allocation2 + $0x1d0] sm:$0xff] %vm2929, %v2796
        %2960 = vst.msk [vmem:[#allocation2 + $0x1e0] sm:$0xff] %vm2929, %v2798
        %2961 = vst.msk [vmem:[#allocation2 + $0x1f0] sm:$0xff] %vm2929, %v2800
        %2962 = vst.msk [vmem:[#allocation2 + $0x200] sm:$0xff] %vm2929, %v2802
        %2963 = vst.msk [vmem:[#allocation2 + $0x210] sm:$0xff] %vm2929, %v2804
        %2964 = vst.msk [vmem:[#allocation2 + $0x220] sm:$0xff] %vm2929, %v2806
        %2965 = vst.msk [vmem:[#allocation2 + $0x230] sm:$0xff] %vm2929, %v2808
        %2966 = vst.msk [vmem:[#allocation2 + $0x240] sm:$0xff] %vm2929, %v2810
        %2967 = vst.msk [vmem:[#allocation2 + $0x250] sm:$0xff] %vm2929, %v2812
        %2968 = vst.msk [vmem:[#allocation2 + $0x260] sm:$0xff] %vm2929, %v2814
        %2969 = vst.msk [vmem:[#allocation2 + $0x270] sm:$0xff] %vm2929, %v2816
        %2970 = vst.msk [vmem:[#allocation2 + $0x280] sm:$0xff] %vm2929, %v2818
        %2971 = vst.msk [vmem:[#allocation2 + $0x290] sm:$0xff] %vm2929, %v2820
        %2972 = vst.msk [vmem:[#allocation2 + $0x2a0] sm:$0xff] %vm2929, %v2822
        %2973 = vst.msk [vmem:[#allocation2 + $0x2b0] sm:$0xff] %vm2929, %v2824
        %2974 = vst.msk [vmem:[#allocation2 + $0x2c0] sm:$0xff] %vm2929, %v2826
        %2975 = vst.msk [vmem:[#allocation2 + $0x2d0] sm:$0xff] %vm2929, %v2828
        %2976 = vst.msk [vmem:[#allocation2 + $0x2e0] sm:$0xff] %vm2929, %v2830
        %2977 = vst.msk [vmem:[#allocation2 + $0x2f0] sm:$0xff] %vm2929, %v2832
        %2978 = vst.msk [vmem:[#allocation2 + $0x300] sm:$0xff] %vm2929, %v2834
        %2979 = vst.msk [vmem:[#allocation2 + $0x310] sm:$0xff] %vm2929, %v2836
        %2980 = vst.msk [vmem:[#allocation2 + $0x320] sm:$0xff] %vm2929, %v2838
        %2981 = vst.msk [vmem:[#allocation2 + $0x330] sm:$0xff] %vm2929, %v2840
        %2982 = vst.msk [vmem:[#allocation2 + $0x340] sm:$0xff] %vm2929, %v2842
        %2983 = vst.msk [vmem:[#allocation2 + $0x350] sm:$0xff] %vm2929, %v2844
        %2984 = vst.msk [vmem:[#allocation2 + $0x360] sm:$0xff] %vm2929, %v2846
        %2985 = vst.msk [vmem:[#allocation2 + $0x370] sm:$0xff] %vm2929, %v2848
        %2986 = vst.msk [vmem:[#allocation2 + $0x380] sm:$0xff] %vm2929, %v2850
        %2987 = vst.msk [vmem:[#allocation2 + $0x390] sm:$0xff] %vm2929, %v2852
        %2988 = vst.msk [vmem:[#allocation2 + $0x3a0] sm:$0xff] %vm2929, %v2854
        %2989 = vst.msk [vmem:[#allocation2 + $0x3b0] sm:$0xff] %vm2929, %v2856
        %2990 = vst.msk [vmem:[#allocation2 + $0x3c0] sm:$0xff] %vm2929, %v2858
        %2991 = vst.msk [vmem:[#allocation2 + $0x3d0] sm:$0xff] %vm2929, %v2860
        %2992 = vst.msk [vmem:[#allocation2 + $0x3e0] sm:$0xff] %vm2929, %v2862
        %2993 = vst.msk [vmem:[#allocation2 + $0x3f0] sm:$0xff] %vm2929, %v2864
        %v2994 = vld [vmem:[%s2223 + $0x2] sm:$0xff]
        %v2995 = vld [vmem:[%s2223 + $0x12] sm:$0xff]
        %v2996 = vld [vmem:[%s2223 + $0x22] sm:$0xff]
        %v2997 = vld [vmem:[%s2223 + $0x32] sm:$0xff]
        %v2998 = vld [vmem:[%s2223 + $0x42] sm:$0xff]
        %v2999 = vld [vmem:[%s2223 + $0x52] sm:$0xff]
        %v3000 = vld [vmem:[%s2223 + $0x62] sm:$0xff]
        %v3001 = vld [vmem:[%s2223 + $0x72] sm:$0xff]
        %v3002 = vld [vmem:[%s2223 + $0xa2] sm:$0xff]
        %v3003 = vld [vmem:[%s2223 + $0xb2] sm:$0xff]
        %v3004 = vld [vmem:[%s2223 + $0xc2] sm:$0xff]
        %v3005 = vld [vmem:[%s2223 + $0xd2] sm:$0xff]
        %v3006 = vld [vmem:[%s2223 + $0xe2] sm:$0xff]
        %v3007 = vld [vmem:[%s2223 + $0xf2] sm:$0xff]
        %v3008 = vld [vmem:[%s2223 + $0x102] sm:$0xff]
        %v3009 = vld [vmem:[%s2223 + $0x112] sm:$0xff]
        %v3010 = vld [vmem:[%s2223 + $0x142] sm:$0xff]
        %v3011 = vld [vmem:[%s2223 + $0x152] sm:$0xff]
        %v3012 = vld [vmem:[%s2223 + $0x162] sm:$0xff]
        %v3013 = vld [vmem:[%s2223 + $0x172] sm:$0xff]
        %v3014 = vld [vmem:[%s2223 + $0x182] sm:$0xff]
        %v3015 = vld [vmem:[%s2223 + $0x192] sm:$0xff]
        %v3016 = vld [vmem:[%s2223 + $0x1a2] sm:$0xff]
        %v3017 = vld [vmem:[%s2223 + $0x1b2] sm:$0xff]
        %v3018 = vld [vmem:[%s2223 + $0x1e2] sm:$0xff]
        %v3019 = vld [vmem:[%s2223 + $0x1f2] sm:$0xff]
        %v3020 = vld [vmem:[%s2223 + $0x202] sm:$0xff]
        %v3021 = vld [vmem:[%s2223 + $0x212] sm:$0xff]
        %v3022 = vld [vmem:[%s2223 + $0x222] sm:$0xff]
        %v3023 = vld [vmem:[%s2223 + $0x232] sm:$0xff]
        %v3024 = vld [vmem:[%s2223 + $0x242] sm:$0xff]
        %v3025 = vld [vmem:[%s2223 + $0x252] sm:$0xff]
        %v3026 = vld [vmem:[%s2223 + $0x282] sm:$0xff]
        %v3027 = vld [vmem:[%s2223 + $0x292] sm:$0xff]
        %v3028 = vld [vmem:[%s2223 + $0x2a2] sm:$0xff]
        %v3029 = vld [vmem:[%s2223 + $0x2b2] sm:$0xff]
        %v3030 = vld [vmem:[%s2223 + $0x2c2] sm:$0xff]
        %v3031 = vld [vmem:[%s2223 + $0x2d2] sm:$0xff]
        %v3032 = vld [vmem:[%s2223 + $0x2e2] sm:$0xff]
        %v3033 = vld [vmem:[%s2223 + $0x2f2] sm:$0xff]
        %v3034 = vld [vmem:[%s2223 + $0x322] sm:$0xff]
        %v3035 = vld [vmem:[%s2223 + $0x332] sm:$0xff]
        %v3036 = vld [vmem:[%s2223 + $0x342] sm:$0xff]
        %v3037 = vld [vmem:[%s2223 + $0x352] sm:$0xff]
        %v3038 = vld [vmem:[%s2223 + $0x362] sm:$0xff]
        %v3039 = vld [vmem:[%s2223 + $0x372] sm:$0xff]
        %v3040 = vld [vmem:[%s2223 + $0x382] sm:$0xff]
        %v3041 = vld [vmem:[%s2223 + $0x392] sm:$0xff]
        %v3042 = vld [vmem:[%s2223 + $0x3c2] sm:$0xff]
        %v3043 = vld [vmem:[%s2223 + $0x3d2] sm:$0xff]
        %v3044 = vld [vmem:[%s2223 + $0x3e2] sm:$0xff]
        %v3045 = vld [vmem:[%s2223 + $0x3f2] sm:$0xff]
        %v3046 = vld [vmem:[%s2223 + $0x402] sm:$0xff]
        %v3047 = vld [vmem:[%s2223 + $0x412] sm:$0xff]
        %v3048 = vld [vmem:[%s2223 + $0x422] sm:$0xff]
        %v3049 = vld [vmem:[%s2223 + $0x432] sm:$0xff]
        %v3050 = vld [vmem:[%s2223 + $0x462] sm:$0xff]
        %v3051 = vld [vmem:[%s2223 + $0x472] sm:$0xff]
        %v3052 = vld [vmem:[%s2223 + $0x482] sm:$0xff]
        %v3053 = vld [vmem:[%s2223 + $0x492] sm:$0xff]
        %v3054 = vld [vmem:[%s2223 + $0x4a2] sm:$0xff]
        %v3055 = vld [vmem:[%s2223 + $0x4b2] sm:$0xff]
        %v3056 = vld [vmem:[%s2223 + $0x4c2] sm:$0xff]
        %v3057 = vld [vmem:[%s2223 + $0x4d2] sm:$0xff]
        %3122 = vrot.lane.b32.xlu0 %v2994, 64
        %v3123 = vpop.permute.xlu0 %3122
        %3124 = vrot.lane.b32.xlu0 %v2995, 64
        %v3125 = vpop.permute.xlu0 %3124
        %3126 = vrot.lane.b32.xlu0 %v2996, 64
        %v3127 = vpop.permute.xlu0 %3126
        %3128 = vrot.lane.b32.xlu0 %v2997, 64
        %v3129 = vpop.permute.xlu0 %3128
        %3130 = vrot.lane.b32.xlu0 %v2998, 64
        %v3131 = vpop.permute.xlu0 %3130
        %3132 = vrot.lane.b32.xlu0 %v2999, 64
        %v3133 = vpop.permute.xlu0 %3132
        %3134 = vrot.lane.b32.xlu0 %v3000, 64
        %v3135 = vpop.permute.xlu0 %3134
        %3136 = vrot.lane.b32.xlu0 %v3001, 64
        %v3137 = vpop.permute.xlu0 %3136
        %3138 = vrot.lane.b32.xlu0 %v3002, 64
        %v3139 = vpop.permute.xlu0 %3138
        %3140 = vrot.lane.b32.xlu0 %v3003, 64
        %v3141 = vpop.permute.xlu0 %3140
        %3142 = vrot.lane.b32.xlu0 %v3004, 64
        %v3143 = vpop.permute.xlu0 %3142
        %3144 = vrot.lane.b32.xlu0 %v3005, 64
        %v3145 = vpop.permute.xlu0 %3144
        %3146 = vrot.lane.b32.xlu0 %v3006, 64
        %v3147 = vpop.permute.xlu0 %3146
        %3148 = vrot.lane.b32.xlu0 %v3007, 64
        %v3149 = vpop.permute.xlu0 %3148
        %3150 = vrot.lane.b32.xlu0 %v3008, 64
        %v3151 = vpop.permute.xlu0 %3150
        %3152 = vrot.lane.b32.xlu0 %v3009, 64
        %v3153 = vpop.permute.xlu0 %3152
        %3154 = vrot.lane.b32.xlu0 %v3010, 64
        %v3155 = vpop.permute.xlu0 %3154
        %3156 = vrot.lane.b32.xlu0 %v3011, 64
        %v3157 = vpop.permute.xlu0 %3156
        %3158 = vrot.lane.b32.xlu0 %v3012, 64
        %v3159 = vpop.permute.xlu0 %3158
        %3160 = vrot.lane.b32.xlu0 %v3013, 64
        %v3161 = vpop.permute.xlu0 %3160
        %3162 = vrot.lane.b32.xlu0 %v3014, 64
        %v3163 = vpop.permute.xlu0 %3162
        %3164 = vrot.lane.b32.xlu0 %v3015, 64
        %v3165 = vpop.permute.xlu0 %3164
        %3166 = vrot.lane.b32.xlu0 %v3016, 64
        %v3167 = vpop.permute.xlu0 %3166
        %3168 = vrot.lane.b32.xlu0 %v3017, 64
        %v3169 = vpop.permute.xlu0 %3168
        %3170 = vrot.lane.b32.xlu0 %v3018, 64
        %v3171 = vpop.permute.xlu0 %3170
        %3172 = vrot.lane.b32.xlu0 %v3019, 64
        %v3173 = vpop.permute.xlu0 %3172
        %3174 = vrot.lane.b32.xlu0 %v3020, 64
        %v3175 = vpop.permute.xlu0 %3174
        %3176 = vrot.lane.b32.xlu0 %v3021, 64
        %v3177 = vpop.permute.xlu0 %3176
        %3178 = vrot.lane.b32.xlu0 %v3022, 64
        %v3179 = vpop.permute.xlu0 %3178
        %3180 = vrot.lane.b32.xlu0 %v3023, 64
        %v3181 = vpop.permute.xlu0 %3180
        %3182 = vrot.lane.b32.xlu0 %v3024, 64
        %v3183 = vpop.permute.xlu0 %3182
        %3184 = vrot.lane.b32.xlu0 %v3025, 64
        %v3185 = vpop.permute.xlu0 %3184
        %3186 = vrot.lane.b32.xlu0 %v3026, 64
        %v3187 = vpop.permute.xlu0 %3186
        %3188 = vrot.lane.b32.xlu0 %v3027, 64
        %v3189 = vpop.permute.xlu0 %3188
        %3190 = vrot.lane.b32.xlu0 %v3028, 64
        %v3191 = vpop.permute.xlu0 %3190
        %3192 = vrot.lane.b32.xlu0 %v3029, 64
        %v3193 = vpop.permute.xlu0 %3192
        %3194 = vrot.lane.b32.xlu0 %v3030, 64
        %v3195 = vpop.permute.xlu0 %3194
        %3196 = vrot.lane.b32.xlu0 %v3031, 64
        %v3197 = vpop.permute.xlu0 %3196
        %3198 = vrot.lane.b32.xlu0 %v3032, 64
        %v3199 = vpop.permute.xlu0 %3198
        %3200 = vrot.lane.b32.xlu0 %v3033, 64
        %v3201 = vpop.permute.xlu0 %3200
        %3202 = vrot.lane.b32.xlu0 %v3034, 64
        %v3203 = vpop.permute.xlu0 %3202
        %3204 = vrot.lane.b32.xlu0 %v3035, 64
        %v3205 = vpop.permute.xlu0 %3204
        %3206 = vrot.lane.b32.xlu0 %v3036, 64
        %v3207 = vpop.permute.xlu0 %3206
        %3208 = vrot.lane.b32.xlu0 %v3037, 64
        %v3209 = vpop.permute.xlu0 %3208
        %3210 = vrot.lane.b32.xlu0 %v3038, 64
        %v3211 = vpop.permute.xlu0 %3210
        %3212 = vrot.lane.b32.xlu0 %v3039, 64
        %v3213 = vpop.permute.xlu0 %3212
        %3214 = vrot.lane.b32.xlu0 %v3040, 64
        %v3215 = vpop.permute.xlu0 %3214
        %3216 = vrot.lane.b32.xlu0 %v3041, 64
        %v3217 = vpop.permute.xlu0 %3216
        %3218 = vrot.lane.b32.xlu0 %v3042, 64
        %v3219 = vpop.permute.xlu0 %3218
        %3220 = vrot.lane.b32.xlu0 %v3043, 64
        %v3221 = vpop.permute.xlu0 %3220
        %3222 = vrot.lane.b32.xlu0 %v3044, 64
        %v3223 = vpop.permute.xlu0 %3222
        %3224 = vrot.lane.b32.xlu0 %v3045, 64
        %v3225 = vpop.permute.xlu0 %3224
        %3226 = vrot.lane.b32.xlu0 %v3046, 64
        %v3227 = vpop.permute.xlu0 %3226
        %3228 = vrot.lane.b32.xlu0 %v3047, 64
        %v3229 = vpop.permute.xlu0 %3228
        %3230 = vrot.lane.b32.xlu0 %v3048, 64
        %v3231 = vpop.permute.xlu0 %3230
        %3232 = vrot.lane.b32.xlu0 %v3049, 64
        %v3233 = vpop.permute.xlu0 %3232
        %3234 = vrot.lane.b32.xlu0 %v3050, 64
        %v3235 = vpop.permute.xlu0 %3234
        %3236 = vrot.lane.b32.xlu0 %v3051, 64
        %v3237 = vpop.permute.xlu0 %3236
        %3238 = vrot.lane.b32.xlu0 %v3052, 64
        %v3239 = vpop.permute.xlu0 %3238
        %3240 = vrot.lane.b32.xlu0 %v3053, 64
        %v3241 = vpop.permute.xlu0 %3240
        %3242 = vrot.lane.b32.xlu0 %v3054, 64
        %v3243 = vpop.permute.xlu0 %3242
        %3244 = vrot.lane.b32.xlu0 %v3055, 64
        %v3245 = vpop.permute.xlu0 %3244
        %3246 = vrot.lane.b32.xlu0 %v3056, 64
        %v3247 = vpop.permute.xlu0 %3246
        %3248 = vrot.lane.b32.xlu0 %v3057, 64
        %v3249 = vpop.permute.xlu0 %3248
        %vm3314 = vcmask 589312
        %3315 = vst.msk [vmem:[#allocation2] sm:$0xff] %vm3314, %v3123
        %3316 = vst.msk [vmem:[#allocation2 + $0x10] sm:$0xff] %vm3314, %v3125
        %3317 = vst.msk [vmem:[#allocation2 + $0x20] sm:$0xff] %vm3314, %v3127
        %3318 = vst.msk [vmem:[#allocation2 + $0x30] sm:$0xff] %vm3314, %v3129
        %3319 = vst.msk [vmem:[#allocation2 + $0x40] sm:$0xff] %vm3314, %v3131
        %3320 = vst.msk [vmem:[#allocation2 + $0x50] sm:$0xff] %vm3314, %v3133
        %3321 = vst.msk [vmem:[#allocation2 + $0x60] sm:$0xff] %vm3314, %v3135
        %3322 = vst.msk [vmem:[#allocation2 + $0x70] sm:$0xff] %vm3314, %v3137
        %3323 = vst.msk [vmem:[#allocation2 + $0x80] sm:$0xff] %vm3314, %v3139
        %3324 = vst.msk [vmem:[#allocation2 + $0x90] sm:$0xff] %vm3314, %v3141
        %3325 = vst.msk [vmem:[#allocation2 + $0xa0] sm:$0xff] %vm3314, %v3143
        %3326 = vst.msk [vmem:[#allocation2 + $0xb0] sm:$0xff] %vm3314, %v3145
        %3327 = vst.msk [vmem:[#allocation2 + $0xc0] sm:$0xff] %vm3314, %v3147
        %3328 = vst.msk [vmem:[#allocation2 + $0xd0] sm:$0xff] %vm3314, %v3149
        %3329 = vst.msk [vmem:[#allocation2 + $0xe0] sm:$0xff] %vm3314, %v3151
        %3330 = vst.msk [vmem:[#allocation2 + $0xf0] sm:$0xff] %vm3314, %v3153
        %3331 = vst.msk [vmem:[#allocation2 + $0x100] sm:$0xff] %vm3314, %v3155
        %3332 = vst.msk [vmem:[#allocation2 + $0x110] sm:$0xff] %vm3314, %v3157
        %3333 = vst.msk [vmem:[#allocation2 + $0x120] sm:$0xff] %vm3314, %v3159
        %3334 = vst.msk [vmem:[#allocation2 + $0x130] sm:$0xff] %vm3314, %v3161
        %3335 = vst.msk [vmem:[#allocation2 + $0x140] sm:$0xff] %vm3314, %v3163
        %3336 = vst.msk [vmem:[#allocation2 + $0x150] sm:$0xff] %vm3314, %v3165
        %3337 = vst.msk [vmem:[#allocation2 + $0x160] sm:$0xff] %vm3314, %v3167
        %3338 = vst.msk [vmem:[#allocation2 + $0x170] sm:$0xff] %vm3314, %v3169
        %3339 = vst.msk [vmem:[#allocation2 + $0x180] sm:$0xff] %vm3314, %v3171
        %3340 = vst.msk [vmem:[#allocation2 + $0x190] sm:$0xff] %vm3314, %v3173
        %3341 = vst.msk [vmem:[#allocation2 + $0x1a0] sm:$0xff] %vm3314, %v3175
        %3342 = vst.msk [vmem:[#allocation2 + $0x1b0] sm:$0xff] %vm3314, %v3177
        %3343 = vst.msk [vmem:[#allocation2 + $0x1c0] sm:$0xff] %vm3314, %v3179
        %3344 = vst.msk [vmem:[#allocation2 + $0x1d0] sm:$0xff] %vm3314, %v3181
        %3345 = vst.msk [vmem:[#allocation2 + $0x1e0] sm:$0xff] %vm3314, %v3183
        %3346 = vst.msk [vmem:[#allocation2 + $0x1f0] sm:$0xff] %vm3314, %v3185
        %3347 = vst.msk [vmem:[#allocation2 + $0x200] sm:$0xff] %vm3314, %v3187
        %3348 = vst.msk [vmem:[#allocation2 + $0x210] sm:$0xff] %vm3314, %v3189
        %3349 = vst.msk [vmem:[#allocation2 + $0x220] sm:$0xff] %vm3314, %v3191
        %3350 = vst.msk [vmem:[#allocation2 + $0x230] sm:$0xff] %vm3314, %v3193
        %3351 = vst.msk [vmem:[#allocation2 + $0x240] sm:$0xff] %vm3314, %v3195
        %3352 = vst.msk [vmem:[#allocation2 + $0x250] sm:$0xff] %vm3314, %v3197
        %3353 = vst.msk [vmem:[#allocation2 + $0x260] sm:$0xff] %vm3314, %v3199
        %3354 = vst.msk [vmem:[#allocation2 + $0x270] sm:$0xff] %vm3314, %v3201
        %3355 = vst.msk [vmem:[#allocation2 + $0x280] sm:$0xff] %vm3314, %v3203
        %3356 = vst.msk [vmem:[#allocation2 + $0x290] sm:$0xff] %vm3314, %v3205
        %3357 = vst.msk [vmem:[#allocation2 + $0x2a0] sm:$0xff] %vm3314, %v3207
        %3358 = vst.msk [vmem:[#allocation2 + $0x2b0] sm:$0xff] %vm3314, %v3209
        %3359 = vst.msk [vmem:[#allocation2 + $0x2c0] sm:$0xff] %vm3314, %v3211
        %3360 = vst.msk [vmem:[#allocation2 + $0x2d0] sm:$0xff] %vm3314, %v3213
        %3361 = vst.msk [vmem:[#allocation2 + $0x2e0] sm:$0xff] %vm3314, %v3215
        %3362 = vst.msk [vmem:[#allocation2 + $0x2f0] sm:$0xff] %vm3314, %v3217
        %3363 = vst.msk [vmem:[#allocation2 + $0x300] sm:$0xff] %vm3314, %v3219
        %3364 = vst.msk [vmem:[#allocation2 + $0x310] sm:$0xff] %vm3314, %v3221
        %3365 = vst.msk [vmem:[#allocation2 + $0x320] sm:$0xff] %vm3314, %v3223
        %3366 = vst.msk [vmem:[#allocation2 + $0x330] sm:$0xff] %vm3314, %v3225
        %3367 = vst.msk [vmem:[#allocation2 + $0x340] sm:$0xff] %vm3314, %v3227
        %3368 = vst.msk [vmem:[#allocation2 + $0x350] sm:$0xff] %vm3314, %v3229
        %3369 = vst.msk [vmem:[#allocation2 + $0x360] sm:$0xff] %vm3314, %v3231
        %3370 = vst.msk [vmem:[#allocation2 + $0x370] sm:$0xff] %vm3314, %v3233
        %3371 = vst.msk [vmem:[#allocation2 + $0x380] sm:$0xff] %vm3314, %v3235
        %3372 = vst.msk [vmem:[#allocation2 + $0x390] sm:$0xff] %vm3314, %v3237
        %3373 = vst.msk [vmem:[#allocation2 + $0x3a0] sm:$0xff] %vm3314, %v3239
        %3374 = vst.msk [vmem:[#allocation2 + $0x3b0] sm:$0xff] %vm3314, %v3241
        %3375 = vst.msk [vmem:[#allocation2 + $0x3c0] sm:$0xff] %vm3314, %v3243
        %3376 = vst.msk [vmem:[#allocation2 + $0x3d0] sm:$0xff] %vm3314, %v3245
        %3377 = vst.msk [vmem:[#allocation2 + $0x3e0] sm:$0xff] %vm3314, %v3247
        %3378 = vst.msk [vmem:[#allocation2 + $0x3f0] sm:$0xff] %vm3314, %v3249
        %s3379 = scalar_lea.vmem %s167, 160
        %v3380 = vld [vmem:[%s3379] sm:$0xff]
        %v3381 = vld [vmem:[%s3379 + $0x10] sm:$0xff]
        %v3382 = vld [vmem:[%s3379 + $0x20] sm:$0xff]
        %v3383 = vld [vmem:[%s3379 + $0x30] sm:$0xff]
        %v3384 = vld [vmem:[%s3379 + $0x40] sm:$0xff]
        %v3385 = vld [vmem:[%s3379 + $0x50] sm:$0xff]
        %v3386 = vld [vmem:[%s3379 + $0x60] sm:$0xff]
        %v3387 = vld [vmem:[%s3379 + $0x70] sm:$0xff]
        %v3388 = vld [vmem:[%s3379 + $0xa0] sm:$0xff]
        %v3389 = vld [vmem:[%s3379 + $0xb0] sm:$0xff]
        %v3390 = vld [vmem:[%s3379 + $0xc0] sm:$0xff]
        %v3391 = vld [vmem:[%s3379 + $0xd0] sm:$0xff]
        %v3392 = vld [vmem:[%s3379 + $0xe0] sm:$0xff]
        %v3393 = vld [vmem:[%s3379 + $0xf0] sm:$0xff]
        %v3394 = vld [vmem:[%s3379 + $0x100] sm:$0xff]
        %v3395 = vld [vmem:[%s3379 + $0x110] sm:$0xff]
        %v3396 = vld [vmem:[%s3379 + $0x140] sm:$0xff]
        %v3397 = vld [vmem:[%s3379 + $0x150] sm:$0xff]
        %v3398 = vld [vmem:[%s3379 + $0x160] sm:$0xff]
        %v3399 = vld [vmem:[%s3379 + $0x170] sm:$0xff]
        %v3400 = vld [vmem:[%s3379 + $0x180] sm:$0xff]
        %v3401 = vld [vmem:[%s3379 + $0x190] sm:$0xff]
        %v3402 = vld [vmem:[%s3379 + $0x1a0] sm:$0xff]
        %v3403 = vld [vmem:[%s3379 + $0x1b0] sm:$0xff]
        %v3404 = vld [vmem:[%s3379 + $0x1e0] sm:$0xff]
        %v3405 = vld [vmem:[%s3379 + $0x1f0] sm:$0xff]
        %v3406 = vld [vmem:[%s3379 + $0x200] sm:$0xff]
        %v3407 = vld [vmem:[%s3379 + $0x210] sm:$0xff]
        %v3408 = vld [vmem:[%s3379 + $0x220] sm:$0xff]
        %v3409 = vld [vmem:[%s3379 + $0x230] sm:$0xff]
        %v3410 = vld [vmem:[%s3379 + $0x240] sm:$0xff]
        %v3411 = vld [vmem:[%s3379 + $0x250] sm:$0xff]
        %v3412 = vld [vmem:[%s3379 + $0x280] sm:$0xff]
        %v3413 = vld [vmem:[%s3379 + $0x290] sm:$0xff]
        %v3414 = vld [vmem:[%s3379 + $0x2a0] sm:$0xff]
        %v3415 = vld [vmem:[%s3379 + $0x2b0] sm:$0xff]
        %v3416 = vld [vmem:[%s3379 + $0x2c0] sm:$0xff]
        %v3417 = vld [vmem:[%s3379 + $0x2d0] sm:$0xff]
        %v3418 = vld [vmem:[%s3379 + $0x2e0] sm:$0xff]
        %v3419 = vld [vmem:[%s3379 + $0x2f0] sm:$0xff]
        %v3420 = vld [vmem:[%s3379 + $0x320] sm:$0xff]
        %v3421 = vld [vmem:[%s3379 + $0x330] sm:$0xff]
        %v3422 = vld [vmem:[%s3379 + $0x340] sm:$0xff]
        %v3423 = vld [vmem:[%s3379 + $0x350] sm:$0xff]
        %v3424 = vld [vmem:[%s3379 + $0x360] sm:$0xff]
        %v3425 = vld [vmem:[%s3379 + $0x370] sm:$0xff]
        %v3426 = vld [vmem:[%s3379 + $0x380] sm:$0xff]
        %v3427 = vld [vmem:[%s3379 + $0x390] sm:$0xff]
        %v3428 = vld [vmem:[%s3379 + $0x3c0] sm:$0xff]
        %v3429 = vld [vmem:[%s3379 + $0x3d0] sm:$0xff]
        %v3430 = vld [vmem:[%s3379 + $0x3e0] sm:$0xff]
        %v3431 = vld [vmem:[%s3379 + $0x3f0] sm:$0xff]
        %v3432 = vld [vmem:[%s3379 + $0x400] sm:$0xff]
        %v3433 = vld [vmem:[%s3379 + $0x410] sm:$0xff]
        %v3434 = vld [vmem:[%s3379 + $0x420] sm:$0xff]
        %v3435 = vld [vmem:[%s3379 + $0x430] sm:$0xff]
        %v3436 = vld [vmem:[%s3379 + $0x460] sm:$0xff]
        %v3437 = vld [vmem:[%s3379 + $0x470] sm:$0xff]
        %v3438 = vld [vmem:[%s3379 + $0x480] sm:$0xff]
        %v3439 = vld [vmem:[%s3379 + $0x490] sm:$0xff]
        %v3440 = vld [vmem:[%s3379 + $0x4a0] sm:$0xff]
        %v3441 = vld [vmem:[%s3379 + $0x4b0] sm:$0xff]
        %v3442 = vld [vmem:[%s3379 + $0x4c0] sm:$0xff]
        %v3443 = vld [vmem:[%s3379 + $0x4d0] sm:$0xff]
        %3508 = vrot.lane.b32.xlu0 %v3380, 72
        %v3509 = vpop.permute.xlu0 %3508
        %3510 = vrot.lane.b32.xlu0 %v3381, 72
        %v3511 = vpop.permute.xlu0 %3510
        %3512 = vrot.lane.b32.xlu0 %v3382, 72
        %v3513 = vpop.permute.xlu0 %3512
        %3514 = vrot.lane.b32.xlu0 %v3383, 72
        %v3515 = vpop.permute.xlu0 %3514
        %3516 = vrot.lane.b32.xlu0 %v3384, 72
        %v3517 = vpop.permute.xlu0 %3516
        %3518 = vrot.lane.b32.xlu0 %v3385, 72
        %v3519 = vpop.permute.xlu0 %3518
        %3520 = vrot.lane.b32.xlu0 %v3386, 72
        %v3521 = vpop.permute.xlu0 %3520
        %3522 = vrot.lane.b32.xlu0 %v3387, 72
        %v3523 = vpop.permute.xlu0 %3522
        %3524 = vrot.lane.b32.xlu0 %v3388, 72
        %v3525 = vpop.permute.xlu0 %3524
        %3526 = vrot.lane.b32.xlu0 %v3389, 72
        %v3527 = vpop.permute.xlu0 %3526
        %3528 = vrot.lane.b32.xlu0 %v3390, 72
        %v3529 = vpop.permute.xlu0 %3528
        %3530 = vrot.lane.b32.xlu0 %v3391, 72
        %v3531 = vpop.permute.xlu0 %3530
        %3532 = vrot.lane.b32.xlu0 %v3392, 72
        %v3533 = vpop.permute.xlu0 %3532
        %3534 = vrot.lane.b32.xlu0 %v3393, 72
        %v3535 = vpop.permute.xlu0 %3534
        %3536 = vrot.lane.b32.xlu0 %v3394, 72
        %v3537 = vpop.permute.xlu0 %3536
        %3538 = vrot.lane.b32.xlu0 %v3395, 72
        %v3539 = vpop.permute.xlu0 %3538
        %3540 = vrot.lane.b32.xlu0 %v3396, 72
        %v3541 = vpop.permute.xlu0 %3540
        %3542 = vrot.lane.b32.xlu0 %v3397, 72
        %v3543 = vpop.permute.xlu0 %3542
        %3544 = vrot.lane.b32.xlu0 %v3398, 72
        %v3545 = vpop.permute.xlu0 %3544
        %3546 = vrot.lane.b32.xlu0 %v3399, 72
        %v3547 = vpop.permute.xlu0 %3546
        %3548 = vrot.lane.b32.xlu0 %v3400, 72
        %v3549 = vpop.permute.xlu0 %3548
        %3550 = vrot.lane.b32.xlu0 %v3401, 72
        %v3551 = vpop.permute.xlu0 %3550
        %3552 = vrot.lane.b32.xlu0 %v3402, 72
        %v3553 = vpop.permute.xlu0 %3552
        %3554 = vrot.lane.b32.xlu0 %v3403, 72
        %v3555 = vpop.permute.xlu0 %3554
        %3556 = vrot.lane.b32.xlu0 %v3404, 72
        %v3557 = vpop.permute.xlu0 %3556
        %3558 = vrot.lane.b32.xlu0 %v3405, 72
        %v3559 = vpop.permute.xlu0 %3558
        %3560 = vrot.lane.b32.xlu0 %v3406, 72
        %v3561 = vpop.permute.xlu0 %3560
        %3562 = vrot.lane.b32.xlu0 %v3407, 72
        %v3563 = vpop.permute.xlu0 %3562
        %3564 = vrot.lane.b32.xlu0 %v3408, 72
        %v3565 = vpop.permute.xlu0 %3564
        %3566 = vrot.lane.b32.xlu0 %v3409, 72
        %v3567 = vpop.permute.xlu0 %3566
        %3568 = vrot.lane.b32.xlu0 %v3410, 72
        %v3569 = vpop.permute.xlu0 %3568
        %3570 = vrot.lane.b32.xlu0 %v3411, 72
        %v3571 = vpop.permute.xlu0 %3570
        %3572 = vrot.lane.b32.xlu0 %v3412, 72
        %v3573 = vpop.permute.xlu0 %3572
        %3574 = vrot.lane.b32.xlu0 %v3413, 72
        %v3575 = vpop.permute.xlu0 %3574
        %3576 = vrot.lane.b32.xlu0 %v3414, 72
        %v3577 = vpop.permute.xlu0 %3576
        %3578 = vrot.lane.b32.xlu0 %v3415, 72
        %v3579 = vpop.permute.xlu0 %3578
        %3580 = vrot.lane.b32.xlu0 %v3416, 72
        %v3581 = vpop.permute.xlu0 %3580
        %3582 = vrot.lane.b32.xlu0 %v3417, 72
        %v3583 = vpop.permute.xlu0 %3582
        %3584 = vrot.lane.b32.xlu0 %v3418, 72
        %v3585 = vpop.permute.xlu0 %3584
        %3586 = vrot.lane.b32.xlu0 %v3419, 72
        %v3587 = vpop.permute.xlu0 %3586
        %3588 = vrot.lane.b32.xlu0 %v3420, 72
        %v3589 = vpop.permute.xlu0 %3588
        %3590 = vrot.lane.b32.xlu0 %v3421, 72
        %v3591 = vpop.permute.xlu0 %3590
        %3592 = vrot.lane.b32.xlu0 %v3422, 72
        %v3593 = vpop.permute.xlu0 %3592
        %3594 = vrot.lane.b32.xlu0 %v3423, 72
        %v3595 = vpop.permute.xlu0 %3594
        %3596 = vrot.lane.b32.xlu0 %v3424, 72
        %v3597 = vpop.permute.xlu0 %3596
        %3598 = vrot.lane.b32.xlu0 %v3425, 72
        %v3599 = vpop.permute.xlu0 %3598
        %3600 = vrot.lane.b32.xlu0 %v3426, 72
        %v3601 = vpop.permute.xlu0 %3600
        %3602 = vrot.lane.b32.xlu0 %v3427, 72
        %v3603 = vpop.permute.xlu0 %3602
        %3604 = vrot.lane.b32.xlu0 %v3428, 72
        %v3605 = vpop.permute.xlu0 %3604
        %3606 = vrot.lane.b32.xlu0 %v3429, 72
        %v3607 = vpop.permute.xlu0 %3606
        %3608 = vrot.lane.b32.xlu0 %v3430, 72
        %v3609 = vpop.permute.xlu0 %3608
        %3610 = vrot.lane.b32.xlu0 %v3431, 72
        %v3611 = vpop.permute.xlu0 %3610
        %3612 = vrot.lane.b32.xlu0 %v3432, 72
        %v3613 = vpop.permute.xlu0 %3612
        %3614 = vrot.lane.b32.xlu0 %v3433, 72
        %v3615 = vpop.permute.xlu0 %3614
        %3616 = vrot.lane.b32.xlu0 %v3434, 72
        %v3617 = vpop.permute.xlu0 %3616
        %3618 = vrot.lane.b32.xlu0 %v3435, 72
        %v3619 = vpop.permute.xlu0 %3618
        %3620 = vrot.lane.b32.xlu0 %v3436, 72
        %v3621 = vpop.permute.xlu0 %3620
        %3622 = vrot.lane.b32.xlu0 %v3437, 72
        %v3623 = vpop.permute.xlu0 %3622
        %3624 = vrot.lane.b32.xlu0 %v3438, 72
        %v3625 = vpop.permute.xlu0 %3624
        %3626 = vrot.lane.b32.xlu0 %v3439, 72
        %v3627 = vpop.permute.xlu0 %3626
        %3628 = vrot.lane.b32.xlu0 %v3440, 72
        %v3629 = vpop.permute.xlu0 %3628
        %3630 = vrot.lane.b32.xlu0 %v3441, 72
        %v3631 = vpop.permute.xlu0 %3630
        %3632 = vrot.lane.b32.xlu0 %v3442, 72
        %v3633 = vpop.permute.xlu0 %3632
        %3634 = vrot.lane.b32.xlu0 %v3443, 72
        %v3635 = vpop.permute.xlu0 %3634
        %vm3700 = vcmask 654912
        %3701 = vst.msk [vmem:[#allocation2] sm:$0xff] %vm3700, %v3509
        %3702 = vst.msk [vmem:[#allocation2 + $0x10] sm:$0xff] %vm3700, %v3511
        %3703 = vst.msk [vmem:[#allocation2 + $0x20] sm:$0xff] %vm3700, %v3513
        %3704 = vst.msk [vmem:[#allocation2 + $0x30] sm:$0xff] %vm3700, %v3515
        %3705 = vst.msk [vmem:[#allocation2 + $0x40] sm:$0xff] %vm3700, %v3517
        %3706 = vst.msk [vmem:[#allocation2 + $0x50] sm:$0xff] %vm3700, %v3519
        %3707 = vst.msk [vmem:[#allocation2 + $0x60] sm:$0xff] %vm3700, %v3521
        %3708 = vst.msk [vmem:[#allocation2 + $0x70] sm:$0xff] %vm3700, %v3523
        %3709 = vst.msk [vmem:[#allocation2 + $0x80] sm:$0xff] %vm3700, %v3525
        %3710 = vst.msk [vmem:[#allocation2 + $0x90] sm:$0xff] %vm3700, %v3527
        %3711 = vst.msk [vmem:[#allocation2 + $0xa0] sm:$0xff] %vm3700, %v3529
        %3712 = vst.msk [vmem:[#allocation2 + $0xb0] sm:$0xff] %vm3700, %v3531
        %3713 = vst.msk [vmem:[#allocation2 + $0xc0] sm:$0xff] %vm3700, %v3533
        %3714 = vst.msk [vmem:[#allocation2 + $0xd0] sm:$0xff] %vm3700, %v3535
        %3715 = vst.msk [vmem:[#allocation2 + $0xe0] sm:$0xff] %vm3700, %v3537
        %3716 = vst.msk [vmem:[#allocation2 + $0xf0] sm:$0xff] %vm3700, %v3539
        %3717 = vst.msk [vmem:[#allocation2 + $0x100] sm:$0xff] %vm3700, %v3541
        %3718 = vst.msk [vmem:[#allocation2 + $0x110] sm:$0xff] %vm3700, %v3543
        %3719 = vst.msk [vmem:[#allocation2 + $0x120] sm:$0xff] %vm3700, %v3545
        %3720 = vst.msk [vmem:[#allocation2 + $0x130] sm:$0xff] %vm3700, %v3547
        %3721 = vst.msk [vmem:[#allocation2 + $0x140] sm:$0xff] %vm3700, %v3549
        %3722 = vst.msk [vmem:[#allocation2 + $0x150] sm:$0xff] %vm3700, %v3551
        %3723 = vst.msk [vmem:[#allocation2 + $0x160] sm:$0xff] %vm3700, %v3553
        %3724 = vst.msk [vmem:[#allocation2 + $0x170] sm:$0xff] %vm3700, %v3555
        %3725 = vst.msk [vmem:[#allocation2 + $0x180] sm:$0xff] %vm3700, %v3557
        %3726 = vst.msk [vmem:[#allocation2 + $0x190] sm:$0xff] %vm3700, %v3559
        %3727 = vst.msk [vmem:[#allocation2 + $0x1a0] sm:$0xff] %vm3700, %v3561
        %3728 = vst.msk [vmem:[#allocation2 + $0x1b0] sm:$0xff] %vm3700, %v3563
        %3729 = vst.msk [vmem:[#allocation2 + $0x1c0] sm:$0xff] %vm3700, %v3565
        %3730 = vst.msk [vmem:[#allocation2 + $0x1d0] sm:$0xff] %vm3700, %v3567
        %3731 = vst.msk [vmem:[#allocation2 + $0x1e0] sm:$0xff] %vm3700, %v3569
        %3732 = vst.msk [vmem:[#allocation2 + $0x1f0] sm:$0xff] %vm3700, %v3571
        %3733 = vst.msk [vmem:[#allocation2 + $0x200] sm:$0xff] %vm3700, %v3573
        %3734 = vst.msk [vmem:[#allocation2 + $0x210] sm:$0xff] %vm3700, %v3575
        %3735 = vst.msk [vmem:[#allocation2 + $0x220] sm:$0xff] %vm3700, %v3577
        %3736 = vst.msk [vmem:[#allocation2 + $0x230] sm:$0xff] %vm3700, %v3579
        %3737 = vst.msk [vmem:[#allocation2 + $0x240] sm:$0xff] %vm3700, %v3581
        %3738 = vst.msk [vmem:[#allocation2 + $0x250] sm:$0xff] %vm3700, %v3583
        %3739 = vst.msk [vmem:[#allocation2 + $0x260] sm:$0xff] %vm3700, %v3585
        %3740 = vst.msk [vmem:[#allocation2 + $0x270] sm:$0xff] %vm3700, %v3587
        %3741 = vst.msk [vmem:[#allocation2 + $0x280] sm:$0xff] %vm3700, %v3589
        %3742 = vst.msk [vmem:[#allocation2 + $0x290] sm:$0xff] %vm3700, %v3591
        %3743 = vst.msk [vmem:[#allocation2 + $0x2a0] sm:$0xff] %vm3700, %v3593
        %3744 = vst.msk [vmem:[#allocation2 + $0x2b0] sm:$0xff] %vm3700, %v3595
        %3745 = vst.msk [vmem:[#allocation2 + $0x2c0] sm:$0xff] %vm3700, %v3597
        %3746 = vst.msk [vmem:[#allocation2 + $0x2d0] sm:$0xff] %vm3700, %v3599
        %3747 = vst.msk [vmem:[#allocation2 + $0x2e0] sm:$0xff] %vm3700, %v3601
        %3748 = vst.msk [vmem:[#allocation2 + $0x2f0] sm:$0xff] %vm3700, %v3603
        %3749 = vst.msk [vmem:[#allocation2 + $0x300] sm:$0xff] %vm3700, %v3605
        %3750 = vst.msk [vmem:[#allocation2 + $0x310] sm:$0xff] %vm3700, %v3607
        %3751 = vst.msk [vmem:[#allocation2 + $0x320] sm:$0xff] %vm3700, %v3609
        %3752 = vst.msk [vmem:[#allocation2 + $0x330] sm:$0xff] %vm3700, %v3611
        %3753 = vst.msk [vmem:[#allocation2 + $0x340] sm:$0xff] %vm3700, %v3613
        %3754 = vst.msk [vmem:[#allocation2 + $0x350] sm:$0xff] %vm3700, %v3615
        %3755 = vst.msk [vmem:[#allocation2 + $0x360] sm:$0xff] %vm3700, %v3617
        %3756 = vst.msk [vmem:[#allocation2 + $0x370] sm:$0xff] %vm3700, %v3619
        %3757 = vst.msk [vmem:[#allocation2 + $0x380] sm:$0xff] %vm3700, %v3621
        %3758 = vst.msk [vmem:[#allocation2 + $0x390] sm:$0xff] %vm3700, %v3623
        %3759 = vst.msk [vmem:[#allocation2 + $0x3a0] sm:$0xff] %vm3700, %v3625
        %3760 = vst.msk [vmem:[#allocation2 + $0x3b0] sm:$0xff] %vm3700, %v3627
        %3761 = vst.msk [vmem:[#allocation2 + $0x3c0] sm:$0xff] %vm3700, %v3629
        %3762 = vst.msk [vmem:[#allocation2 + $0x3d0] sm:$0xff] %vm3700, %v3631
        %3763 = vst.msk [vmem:[#allocation2 + $0x3e0] sm:$0xff] %vm3700, %v3633
        %3764 = vst.msk [vmem:[#allocation2 + $0x3f0] sm:$0xff] %vm3700, %v3635
        %v3765 = vld [vmem:[%s3379 + $0x1] sm:$0xff]
        %v3766 = vld [vmem:[%s3379 + $0x11] sm:$0xff]
        %v3767 = vld [vmem:[%s3379 + $0x21] sm:$0xff]
        %v3768 = vld [vmem:[%s3379 + $0x31] sm:$0xff]
        %v3769 = vld [vmem:[%s3379 + $0x41] sm:$0xff]
        %v3770 = vld [vmem:[%s3379 + $0x51] sm:$0xff]
        %v3771 = vld [vmem:[%s3379 + $0x61] sm:$0xff]
        %v3772 = vld [vmem:[%s3379 + $0x71] sm:$0xff]
        %v3773 = vld [vmem:[%s3379 + $0xa1] sm:$0xff]
        %v3774 = vld [vmem:[%s3379 + $0xb1] sm:$0xff]
        %v3775 = vld [vmem:[%s3379 + $0xc1] sm:$0xff]
        %v3776 = vld [vmem:[%s3379 + $0xd1] sm:$0xff]
        %v3777 = vld [vmem:[%s3379 + $0xe1] sm:$0xff]
        %v3778 = vld [vmem:[%s3379 + $0xf1] sm:$0xff]
        %v3779 = vld [vmem:[%s3379 + $0x101] sm:$0xff]
        %v3780 = vld [vmem:[%s3379 + $0x111] sm:$0xff]
        %v3781 = vld [vmem:[%s3379 + $0x141] sm:$0xff]
        %v3782 = vld [vmem:[%s3379 + $0x151] sm:$0xff]
        %v3783 = vld [vmem:[%s3379 + $0x161] sm:$0xff]
        %v3784 = vld [vmem:[%s3379 + $0x171] sm:$0xff]
        %v3785 = vld [vmem:[%s3379 + $0x181] sm:$0xff]
        %v3786 = vld [vmem:[%s3379 + $0x191] sm:$0xff]
        %v3787 = vld [vmem:[%s3379 + $0x1a1] sm:$0xff]
        %v3788 = vld [vmem:[%s3379 + $0x1b1] sm:$0xff]
        %v3789 = vld [vmem:[%s3379 + $0x1e1] sm:$0xff]
        %v3790 = vld [vmem:[%s3379 + $0x1f1] sm:$0xff]
        %v3791 = vld [vmem:[%s3379 + $0x201] sm:$0xff]
        %v3792 = vld [vmem:[%s3379 + $0x211] sm:$0xff]
        %v3793 = vld [vmem:[%s3379 + $0x221] sm:$0xff]
        %v3794 = vld [vmem:[%s3379 + $0x231] sm:$0xff]
        %v3795 = vld [vmem:[%s3379 + $0x241] sm:$0xff]
        %v3796 = vld [vmem:[%s3379 + $0x251] sm:$0xff]
        %v3797 = vld [vmem:[%s3379 + $0x281] sm:$0xff]
        %v3798 = vld [vmem:[%s3379 + $0x291] sm:$0xff]
        %v3799 = vld [vmem:[%s3379 + $0x2a1] sm:$0xff]
        %v3800 = vld [vmem:[%s3379 + $0x2b1] sm:$0xff]
        %v3801 = vld [vmem:[%s3379 + $0x2c1] sm:$0xff]
        %v3802 = vld [vmem:[%s3379 + $0x2d1] sm:$0xff]
        %v3803 = vld [vmem:[%s3379 + $0x2e1] sm:$0xff]
        %v3804 = vld [vmem:[%s3379 + $0x2f1] sm:$0xff]
        %v3805 = vld [vmem:[%s3379 + $0x321] sm:$0xff]
        %v3806 = vld [vmem:[%s3379 + $0x331] sm:$0xff]
        %v3807 = vld [vmem:[%s3379 + $0x341] sm:$0xff]
        %v3808 = vld [vmem:[%s3379 + $0x351] sm:$0xff]
        %v3809 = vld [vmem:[%s3379 + $0x361] sm:$0xff]
        %v3810 = vld [vmem:[%s3379 + $0x371] sm:$0xff]
        %v3811 = vld [vmem:[%s3379 + $0x381] sm:$0xff]
        %v3812 = vld [vmem:[%s3379 + $0x391] sm:$0xff]
        %v3813 = vld [vmem:[%s3379 + $0x3c1] sm:$0xff]
        %v3814 = vld [vmem:[%s3379 + $0x3d1] sm:$0xff]
        %v3815 = vld [vmem:[%s3379 + $0x3e1] sm:$0xff]
        %v3816 = vld [vmem:[%s3379 + $0x3f1] sm:$0xff]
        %v3817 = vld [vmem:[%s3379 + $0x401] sm:$0xff]
        %v3818 = vld [vmem:[%s3379 + $0x411] sm:$0xff]
        %v3819 = vld [vmem:[%s3379 + $0x421] sm:$0xff]
        %v3820 = vld [vmem:[%s3379 + $0x431] sm:$0xff]
        %v3821 = vld [vmem:[%s3379 + $0x461] sm:$0xff]
        %v3822 = vld [vmem:[%s3379 + $0x471] sm:$0xff]
        %v3823 = vld [vmem:[%s3379 + $0x481] sm:$0xff]
        %v3824 = vld [vmem:[%s3379 + $0x491] sm:$0xff]
        %v3825 = vld [vmem:[%s3379 + $0x4a1] sm:$0xff]
        %v3826 = vld [vmem:[%s3379 + $0x4b1] sm:$0xff]
        %v3827 = vld [vmem:[%s3379 + $0x4c1] sm:$0xff]
        %v3828 = vld [vmem:[%s3379 + $0x4d1] sm:$0xff]
        %3893 = vrot.lane.b32.xlu0 %v3765, 80
        %v3894 = vpop.permute.xlu0 %3893
        %3895 = vrot.lane.b32.xlu0 %v3766, 80
        %v3896 = vpop.permute.xlu0 %3895
        %3897 = vrot.lane.b32.xlu0 %v3767, 80
        %v3898 = vpop.permute.xlu0 %3897
        %3899 = vrot.lane.b32.xlu0 %v3768, 80
        %v3900 = vpop.permute.xlu0 %3899
        %3901 = vrot.lane.b32.xlu0 %v3769, 80
        %v3902 = vpop.permute.xlu0 %3901
        %3903 = vrot.lane.b32.xlu0 %v3770, 80
        %v3904 = vpop.permute.xlu0 %3903
        %3905 = vrot.lane.b32.xlu0 %v3771, 80
        %v3906 = vpop.permute.xlu0 %3905
        %3907 = vrot.lane.b32.xlu0 %v3772, 80
        %v3908 = vpop.permute.xlu0 %3907
        %3909 = vrot.lane.b32.xlu0 %v3773, 80
        %v3910 = vpop.permute.xlu0 %3909
        %3911 = vrot.lane.b32.xlu0 %v3774, 80
        %v3912 = vpop.permute.xlu0 %3911
        %3913 = vrot.lane.b32.xlu0 %v3775, 80
        %v3914 = vpop.permute.xlu0 %3913
        %3915 = vrot.lane.b32.xlu0 %v3776, 80
        %v3916 = vpop.permute.xlu0 %3915
        %3917 = vrot.lane.b32.xlu0 %v3777, 80
        %v3918 = vpop.permute.xlu0 %3917
        %3919 = vrot.lane.b32.xlu0 %v3778, 80
        %v3920 = vpop.permute.xlu0 %3919
        %3921 = vrot.lane.b32.xlu0 %v3779, 80
        %v3922 = vpop.permute.xlu0 %3921
        %3923 = vrot.lane.b32.xlu0 %v3780, 80
        %v3924 = vpop.permute.xlu0 %3923
        %3925 = vrot.lane.b32.xlu0 %v3781, 80
        %v3926 = vpop.permute.xlu0 %3925
        %3927 = vrot.lane.b32.xlu0 %v3782, 80
        %v3928 = vpop.permute.xlu0 %3927
        %3929 = vrot.lane.b32.xlu0 %v3783, 80
        %v3930 = vpop.permute.xlu0 %3929
        %3931 = vrot.lane.b32.xlu0 %v3784, 80
        %v3932 = vpop.permute.xlu0 %3931
        %3933 = vrot.lane.b32.xlu0 %v3785, 80
        %v3934 = vpop.permute.xlu0 %3933
        %3935 = vrot.lane.b32.xlu0 %v3786, 80
        %v3936 = vpop.permute.xlu0 %3935
        %3937 = vrot.lane.b32.xlu0 %v3787, 80
        %v3938 = vpop.permute.xlu0 %3937
        %3939 = vrot.lane.b32.xlu0 %v3788, 80
        %v3940 = vpop.permute.xlu0 %3939
        %3941 = vrot.lane.b32.xlu0 %v3789, 80
        %v3942 = vpop.permute.xlu0 %3941
        %3943 = vrot.lane.b32.xlu0 %v3790, 80
        %v3944 = vpop.permute.xlu0 %3943
        %3945 = vrot.lane.b32.xlu0 %v3791, 80
        %v3946 = vpop.permute.xlu0 %3945
        %3947 = vrot.lane.b32.xlu0 %v3792, 80
        %v3948 = vpop.permute.xlu0 %3947
        %3949 = vrot.lane.b32.xlu0 %v3793, 80
        %v3950 = vpop.permute.xlu0 %3949
        %3951 = vrot.lane.b32.xlu0 %v3794, 80
        %v3952 = vpop.permute.xlu0 %3951
        %3953 = vrot.lane.b32.xlu0 %v3795, 80
        %v3954 = vpop.permute.xlu0 %3953
        %3955 = vrot.lane.b32.xlu0 %v3796, 80
        %v3956 = vpop.permute.xlu0 %3955
        %3957 = vrot.lane.b32.xlu0 %v3797, 80
        %v3958 = vpop.permute.xlu0 %3957
        %3959 = vrot.lane.b32.xlu0 %v3798, 80
        %v3960 = vpop.permute.xlu0 %3959
        %3961 = vrot.lane.b32.xlu0 %v3799, 80
        %v3962 = vpop.permute.xlu0 %3961
        %3963 = vrot.lane.b32.xlu0 %v3800, 80
        %v3964 = vpop.permute.xlu0 %3963
        %3965 = vrot.lane.b32.xlu0 %v3801, 80
        %v3966 = vpop.permute.xlu0 %3965
        %3967 = vrot.lane.b32.xlu0 %v3802, 80
        %v3968 = vpop.permute.xlu0 %3967
        %3969 = vrot.lane.b32.xlu0 %v3803, 80
        %v3970 = vpop.permute.xlu0 %3969
        %3971 = vrot.lane.b32.xlu0 %v3804, 80
        %v3972 = vpop.permute.xlu0 %3971
        %3973 = vrot.lane.b32.xlu0 %v3805, 80
        %v3974 = vpop.permute.xlu0 %3973
        %3975 = vrot.lane.b32.xlu0 %v3806, 80
        %v3976 = vpop.permute.xlu0 %3975
        %3977 = vrot.lane.b32.xlu0 %v3807, 80
        %v3978 = vpop.permute.xlu0 %3977
        %3979 = vrot.lane.b32.xlu0 %v3808, 80
        %v3980 = vpop.permute.xlu0 %3979
        %3981 = vrot.lane.b32.xlu0 %v3809, 80
        %v3982 = vpop.permute.xlu0 %3981
        %3983 = vrot.lane.b32.xlu0 %v3810, 80
        %v3984 = vpop.permute.xlu0 %3983
        %3985 = vrot.lane.b32.xlu0 %v3811, 80
        %v3986 = vpop.permute.xlu0 %3985
        %3987 = vrot.lane.b32.xlu0 %v3812, 80
        %v3988 = vpop.permute.xlu0 %3987
        %3989 = vrot.lane.b32.xlu0 %v3813, 80
        %v3990 = vpop.permute.xlu0 %3989
        %3991 = vrot.lane.b32.xlu0 %v3814, 80
        %v3992 = vpop.permute.xlu0 %3991
        %3993 = vrot.lane.b32.xlu0 %v3815, 80
        %v3994 = vpop.permute.xlu0 %3993
        %3995 = vrot.lane.b32.xlu0 %v3816, 80
        %v3996 = vpop.permute.xlu0 %3995
        %3997 = vrot.lane.b32.xlu0 %v3817, 80
        %v3998 = vpop.permute.xlu0 %3997
        %3999 = vrot.lane.b32.xlu0 %v3818, 80
        %v4000 = vpop.permute.xlu0 %3999
        %4001 = vrot.lane.b32.xlu0 %v3819, 80
        %v4002 = vpop.permute.xlu0 %4001
        %4003 = vrot.lane.b32.xlu0 %v3820, 80
        %v4004 = vpop.permute.xlu0 %4003
        %4005 = vrot.lane.b32.xlu0 %v3821, 80
        %v4006 = vpop.permute.xlu0 %4005
        %4007 = vrot.lane.b32.xlu0 %v3822, 80
        %v4008 = vpop.permute.xlu0 %4007
        %4009 = vrot.lane.b32.xlu0 %v3823, 80
        %v4010 = vpop.permute.xlu0 %4009
        %4011 = vrot.lane.b32.xlu0 %v3824, 80
        %v4012 = vpop.permute.xlu0 %4011
        %4013 = vrot.lane.b32.xlu0 %v3825, 80
        %v4014 = vpop.permute.xlu0 %4013
        %4015 = vrot.lane.b32.xlu0 %v3826, 80
        %v4016 = vpop.permute.xlu0 %4015
        %4017 = vrot.lane.b32.xlu0 %v3827, 80
        %v4018 = vpop.permute.xlu0 %4017
        %4019 = vrot.lane.b32.xlu0 %v3828, 80
        %v4020 = vpop.permute.xlu0 %4019
        %vm4085 = vcmask 720512
        %4086 = vst.msk [vmem:[#allocation2] sm:$0xff] %vm4085, %v3894
        %4087 = vst.msk [vmem:[#allocation2 + $0x10] sm:$0xff] %vm4085, %v3896
        %4088 = vst.msk [vmem:[#allocation2 + $0x20] sm:$0xff] %vm4085, %v3898
        %4089 = vst.msk [vmem:[#allocation2 + $0x30] sm:$0xff] %vm4085, %v3900
        %4090 = vst.msk [vmem:[#allocation2 + $0x40] sm:$0xff] %vm4085, %v3902
        %4091 = vst.msk [vmem:[#allocation2 + $0x50] sm:$0xff] %vm4085, %v3904
        %4092 = vst.msk [vmem:[#allocation2 + $0x60] sm:$0xff] %vm4085, %v3906
        %4093 = vst.msk [vmem:[#allocation2 + $0x70] sm:$0xff] %vm4085, %v3908
        %4094 = vst.msk [vmem:[#allocation2 + $0x80] sm:$0xff] %vm4085, %v3910
        %4095 = vst.msk [vmem:[#allocation2 + $0x90] sm:$0xff] %vm4085, %v3912
        %4096 = vst.msk [vmem:[#allocation2 + $0xa0] sm:$0xff] %vm4085, %v3914
        %4097 = vst.msk [vmem:[#allocation2 + $0xb0] sm:$0xff] %vm4085, %v3916
        %4098 = vst.msk [vmem:[#allocation2 + $0xc0] sm:$0xff] %vm4085, %v3918
        %4099 = vst.msk [vmem:[#allocation2 + $0xd0] sm:$0xff] %vm4085, %v3920
        %4100 = vst.msk [vmem:[#allocation2 + $0xe0] sm:$0xff] %vm4085, %v3922
        %4101 = vst.msk [vmem:[#allocation2 + $0xf0] sm:$0xff] %vm4085, %v3924
        %4102 = vst.msk [vmem:[#allocation2 + $0x100] sm:$0xff] %vm4085, %v3926
        %4103 = vst.msk [vmem:[#allocation2 + $0x110] sm:$0xff] %vm4085, %v3928
        %4104 = vst.msk [vmem:[#allocation2 + $0x120] sm:$0xff] %vm4085, %v3930
        %4105 = vst.msk [vmem:[#allocation2 + $0x130] sm:$0xff] %vm4085, %v3932
        %4106 = vst.msk [vmem:[#allocation2 + $0x140] sm:$0xff] %vm4085, %v3934
        %4107 = vst.msk [vmem:[#allocation2 + $0x150] sm:$0xff] %vm4085, %v3936
        %4108 = vst.msk [vmem:[#allocation2 + $0x160] sm:$0xff] %vm4085, %v3938
        %4109 = vst.msk [vmem:[#allocation2 + $0x170] sm:$0xff] %vm4085, %v3940
        %4110 = vst.msk [vmem:[#allocation2 + $0x180] sm:$0xff] %vm4085, %v3942
        %4111 = vst.msk [vmem:[#allocation2 + $0x190] sm:$0xff] %vm4085, %v3944
        %4112 = vst.msk [vmem:[#allocation2 + $0x1a0] sm:$0xff] %vm4085, %v3946
        %4113 = vst.msk [vmem:[#allocation2 + $0x1b0] sm:$0xff] %vm4085, %v3948
        %4114 = vst.msk [vmem:[#allocation2 + $0x1c0] sm:$0xff] %vm4085, %v3950
        %4115 = vst.msk [vmem:[#allocation2 + $0x1d0] sm:$0xff] %vm4085, %v3952
        %4116 = vst.msk [vmem:[#allocation2 + $0x1e0] sm:$0xff] %vm4085, %v3954
        %4117 = vst.msk [vmem:[#allocation2 + $0x1f0] sm:$0xff] %vm4085, %v3956
        %4118 = vst.msk [vmem:[#allocation2 + $0x200] sm:$0xff] %vm4085, %v3958
        %4119 = vst.msk [vmem:[#allocation2 + $0x210] sm:$0xff] %vm4085, %v3960
        %4120 = vst.msk [vmem:[#allocation2 + $0x220] sm:$0xff] %vm4085, %v3962
        %4121 = vst.msk [vmem:[#allocation2 + $0x230] sm:$0xff] %vm4085, %v3964
        %4122 = vst.msk [vmem:[#allocation2 + $0x240] sm:$0xff] %vm4085, %v3966
        %4123 = vst.msk [vmem:[#allocation2 + $0x250] sm:$0xff] %vm4085, %v3968
        %4124 = vst.msk [vmem:[#allocation2 + $0x260] sm:$0xff] %vm4085, %v3970
        %4125 = vst.msk [vmem:[#allocation2 + $0x270] sm:$0xff] %vm4085, %v3972
        %4126 = vst.msk [vmem:[#allocation2 + $0x280] sm:$0xff] %vm4085, %v3974
        %4127 = vst.msk [vmem:[#allocation2 + $0x290] sm:$0xff] %vm4085, %v3976
        %4128 = vst.msk [vmem:[#allocation2 + $0x2a0] sm:$0xff] %vm4085, %v3978
        %4129 = vst.msk [vmem:[#allocation2 + $0x2b0] sm:$0xff] %vm4085, %v3980
        %4130 = vst.msk [vmem:[#allocation2 + $0x2c0] sm:$0xff] %vm4085, %v3982
        %4131 = vst.msk [vmem:[#allocation2 + $0x2d0] sm:$0xff] %vm4085, %v3984
        %4132 = vst.msk [vmem:[#allocation2 + $0x2e0] sm:$0xff] %vm4085, %v3986
        %4133 = vst.msk [vmem:[#allocation2 + $0x2f0] sm:$0xff] %vm4085, %v3988
        %4134 = vst.msk [vmem:[#allocation2 + $0x300] sm:$0xff] %vm4085, %v3990
        %4135 = vst.msk [vmem:[#allocation2 + $0x310] sm:$0xff] %vm4085, %v3992
        %4136 = vst.msk [vmem:[#allocation2 + $0x320] sm:$0xff] %vm4085, %v3994
        %4137 = vst.msk [vmem:[#allocation2 + $0x330] sm:$0xff] %vm4085, %v3996
        %4138 = vst.msk [vmem:[#allocation2 + $0x340] sm:$0xff] %vm4085, %v3998
        %4139 = vst.msk [vmem:[#allocation2 + $0x350] sm:$0xff] %vm4085, %v4000
        %4140 = vst.msk [vmem:[#allocation2 + $0x360] sm:$0xff] %vm4085, %v4002
        %4141 = vst.msk [vmem:[#allocation2 + $0x370] sm:$0xff] %vm4085, %v4004
        %4142 = vst.msk [vmem:[#allocation2 + $0x380] sm:$0xff] %vm4085, %v4006
        %4143 = vst.msk [vmem:[#allocation2 + $0x390] sm:$0xff] %vm4085, %v4008
        %4144 = vst.msk [vmem:[#allocation2 + $0x3a0] sm:$0xff] %vm4085, %v4010
        %4145 = vst.msk [vmem:[#allocation2 + $0x3b0] sm:$0xff] %vm4085, %v4012
        %4146 = vst.msk [vmem:[#allocation2 + $0x3c0] sm:$0xff] %vm4085, %v4014
        %4147 = vst.msk [vmem:[#allocation2 + $0x3d0] sm:$0xff] %vm4085, %v4016
        %4148 = vst.msk [vmem:[#allocation2 + $0x3e0] sm:$0xff] %vm4085, %v4018
        %4149 = vst.msk [vmem:[#allocation2 + $0x3f0] sm:$0xff] %vm4085, %v4020
        %v4150 = vld [vmem:[%s3379 + $0x2] sm:$0xff]
        %v4151 = vld [vmem:[%s3379 + $0x12] sm:$0xff]
        %v4152 = vld [vmem:[%s3379 + $0x22] sm:$0xff]
        %v4153 = vld [vmem:[%s3379 + $0x32] sm:$0xff]
        %v4154 = vld [vmem:[%s3379 + $0x42] sm:$0xff]
        %v4155 = vld [vmem:[%s3379 + $0x52] sm:$0xff]
        %v4156 = vld [vmem:[%s3379 + $0x62] sm:$0xff]
        %v4157 = vld [vmem:[%s3379 + $0x72] sm:$0xff]
        %v4158 = vld [vmem:[%s3379 + $0xa2] sm:$0xff]
        %v4159 = vld [vmem:[%s3379 + $0xb2] sm:$0xff]
        %v4160 = vld [vmem:[%s3379 + $0xc2] sm:$0xff]
        %v4161 = vld [vmem:[%s3379 + $0xd2] sm:$0xff]
        %v4162 = vld [vmem:[%s3379 + $0xe2] sm:$0xff]
        %v4163 = vld [vmem:[%s3379 + $0xf2] sm:$0xff]
        %v4164 = vld [vmem:[%s3379 + $0x102] sm:$0xff]
        %v4165 = vld [vmem:[%s3379 + $0x112] sm:$0xff]
        %v4166 = vld [vmem:[%s3379 + $0x142] sm:$0xff]
        %v4167 = vld [vmem:[%s3379 + $0x152] sm:$0xff]
        %v4168 = vld [vmem:[%s3379 + $0x162] sm:$0xff]
        %v4169 = vld [vmem:[%s3379 + $0x172] sm:$0xff]
        %v4170 = vld [vmem:[%s3379 + $0x182] sm:$0xff]
        %v4171 = vld [vmem:[%s3379 + $0x192] sm:$0xff]
        %v4172 = vld [vmem:[%s3379 + $0x1a2] sm:$0xff]
        %v4173 = vld [vmem:[%s3379 + $0x1b2] sm:$0xff]
        %v4174 = vld [vmem:[%s3379 + $0x1e2] sm:$0xff]
        %v4175 = vld [vmem:[%s3379 + $0x1f2] sm:$0xff]
        %v4176 = vld [vmem:[%s3379 + $0x202] sm:$0xff]
        %v4177 = vld [vmem:[%s3379 + $0x212] sm:$0xff]
        %v4178 = vld [vmem:[%s3379 + $0x222] sm:$0xff]
        %v4179 = vld [vmem:[%s3379 + $0x232] sm:$0xff]
        %v4180 = vld [vmem:[%s3379 + $0x242] sm:$0xff]
        %v4181 = vld [vmem:[%s3379 + $0x252] sm:$0xff]
        %v4182 = vld [vmem:[%s3379 + $0x282] sm:$0xff]
        %v4183 = vld [vmem:[%s3379 + $0x292] sm:$0xff]
        %v4184 = vld [vmem:[%s3379 + $0x2a2] sm:$0xff]
        %v4185 = vld [vmem:[%s3379 + $0x2b2] sm:$0xff]
        %v4186 = vld [vmem:[%s3379 + $0x2c2] sm:$0xff]
        %v4187 = vld [vmem:[%s3379 + $0x2d2] sm:$0xff]
        %v4188 = vld [vmem:[%s3379 + $0x2e2] sm:$0xff]
        %v4189 = vld [vmem:[%s3379 + $0x2f2] sm:$0xff]
        %v4190 = vld [vmem:[%s3379 + $0x322] sm:$0xff]
        %v4191 = vld [vmem:[%s3379 + $0x332] sm:$0xff]
        %v4192 = vld [vmem:[%s3379 + $0x342] sm:$0xff]
        %v4193 = vld [vmem:[%s3379 + $0x352] sm:$0xff]
        %v4194 = vld [vmem:[%s3379 + $0x362] sm:$0xff]
        %v4195 = vld [vmem:[%s3379 + $0x372] sm:$0xff]
        %v4196 = vld [vmem:[%s3379 + $0x382] sm:$0xff]
        %v4197 = vld [vmem:[%s3379 + $0x392] sm:$0xff]
        %v4198 = vld [vmem:[%s3379 + $0x3c2] sm:$0xff]
        %v4199 = vld [vmem:[%s3379 + $0x3d2] sm:$0xff]
        %v4200 = vld [vmem:[%s3379 + $0x3e2] sm:$0xff]
        %v4201 = vld [vmem:[%s3379 + $0x3f2] sm:$0xff]
        %v4202 = vld [vmem:[%s3379 + $0x402] sm:$0xff]
        %v4203 = vld [vmem:[%s3379 + $0x412] sm:$0xff]
        %v4204 = vld [vmem:[%s3379 + $0x422] sm:$0xff]
        %v4205 = vld [vmem:[%s3379 + $0x432] sm:$0xff]
        %v4206 = vld [vmem:[%s3379 + $0x462] sm:$0xff]
        %v4207 = vld [vmem:[%s3379 + $0x472] sm:$0xff]
        %v4208 = vld [vmem:[%s3379 + $0x482] sm:$0xff]
        %v4209 = vld [vmem:[%s3379 + $0x492] sm:$0xff]
        %v4210 = vld [vmem:[%s3379 + $0x4a2] sm:$0xff]
        %v4211 = vld [vmem:[%s3379 + $0x4b2] sm:$0xff]
        %v4212 = vld [vmem:[%s3379 + $0x4c2] sm:$0xff]
        %v4213 = vld [vmem:[%s3379 + $0x4d2] sm:$0xff]
        %4278 = vrot.lane.b32.xlu0 %v4150, 88
        %v4279 = vpop.permute.xlu0 %4278
        %4280 = vrot.lane.b32.xlu0 %v4151, 88
        %v4281 = vpop.permute.xlu0 %4280
        %4282 = vrot.lane.b32.xlu0 %v4152, 88
        %v4283 = vpop.permute.xlu0 %4282
        %4284 = vrot.lane.b32.xlu0 %v4153, 88
        %v4285 = vpop.permute.xlu0 %4284
        %4286 = vrot.lane.b32.xlu0 %v4154, 88
        %v4287 = vpop.permute.xlu0 %4286
        %4288 = vrot.lane.b32.xlu0 %v4155, 88
        %v4289 = vpop.permute.xlu0 %4288
        %4290 = vrot.lane.b32.xlu0 %v4156, 88
        %v4291 = vpop.permute.xlu0 %4290
        %4292 = vrot.lane.b32.xlu0 %v4157, 88
        %v4293 = vpop.permute.xlu0 %4292
        %4294 = vrot.lane.b32.xlu0 %v4158, 88
        %v4295 = vpop.permute.xlu0 %4294
        %4296 = vrot.lane.b32.xlu0 %v4159, 88
        %v4297 = vpop.permute.xlu0 %4296
        %4298 = vrot.lane.b32.xlu0 %v4160, 88
        %v4299 = vpop.permute.xlu0 %4298
        %4300 = vrot.lane.b32.xlu0 %v4161, 88
        %v4301 = vpop.permute.xlu0 %4300
        %4302 = vrot.lane.b32.xlu0 %v4162, 88
        %v4303 = vpop.permute.xlu0 %4302
        %4304 = vrot.lane.b32.xlu0 %v4163, 88
        %v4305 = vpop.permute.xlu0 %4304
        %4306 = vrot.lane.b32.xlu0 %v4164, 88
        %v4307 = vpop.permute.xlu0 %4306
        %4308 = vrot.lane.b32.xlu0 %v4165, 88
        %v4309 = vpop.permute.xlu0 %4308
        %4310 = vrot.lane.b32.xlu0 %v4166, 88
        %v4311 = vpop.permute.xlu0 %4310
        %4312 = vrot.lane.b32.xlu0 %v4167, 88
        %v4313 = vpop.permute.xlu0 %4312
        %4314 = vrot.lane.b32.xlu0 %v4168, 88
        %v4315 = vpop.permute.xlu0 %4314
        %4316 = vrot.lane.b32.xlu0 %v4169, 88
        %v4317 = vpop.permute.xlu0 %4316
        %4318 = vrot.lane.b32.xlu0 %v4170, 88
        %v4319 = vpop.permute.xlu0 %4318
        %4320 = vrot.lane.b32.xlu0 %v4171, 88
        %v4321 = vpop.permute.xlu0 %4320
        %4322 = vrot.lane.b32.xlu0 %v4172, 88
        %v4323 = vpop.permute.xlu0 %4322
        %4324 = vrot.lane.b32.xlu0 %v4173, 88
        %v4325 = vpop.permute.xlu0 %4324
        %4326 = vrot.lane.b32.xlu0 %v4174, 88
        %v4327 = vpop.permute.xlu0 %4326
        %4328 = vrot.lane.b32.xlu0 %v4175, 88
        %v4329 = vpop.permute.xlu0 %4328
        %4330 = vrot.lane.b32.xlu0 %v4176, 88
        %v4331 = vpop.permute.xlu0 %4330
        %4332 = vrot.lane.b32.xlu0 %v4177, 88
        %v4333 = vpop.permute.xlu0 %4332
        %4334 = vrot.lane.b32.xlu0 %v4178, 88
        %v4335 = vpop.permute.xlu0 %4334
        %4336 = vrot.lane.b32.xlu0 %v4179, 88
        %v4337 = vpop.permute.xlu0 %4336
        %4338 = vrot.lane.b32.xlu0 %v4180, 88
        %v4339 = vpop.permute.xlu0 %4338
        %4340 = vrot.lane.b32.xlu0 %v4181, 88
        %v4341 = vpop.permute.xlu0 %4340
        %4342 = vrot.lane.b32.xlu0 %v4182, 88
        %v4343 = vpop.permute.xlu0 %4342
        %4344 = vrot.lane.b32.xlu0 %v4183, 88
        %v4345 = vpop.permute.xlu0 %4344
        %4346 = vrot.lane.b32.xlu0 %v4184, 88
        %v4347 = vpop.permute.xlu0 %4346
        %4348 = vrot.lane.b32.xlu0 %v4185, 88
        %v4349 = vpop.permute.xlu0 %4348
        %4350 = vrot.lane.b32.xlu0 %v4186, 88
        %v4351 = vpop.permute.xlu0 %4350
        %4352 = vrot.lane.b32.xlu0 %v4187, 88
        %v4353 = vpop.permute.xlu0 %4352
        %4354 = vrot.lane.b32.xlu0 %v4188, 88
        %v4355 = vpop.permute.xlu0 %4354
        %4356 = vrot.lane.b32.xlu0 %v4189, 88
        %v4357 = vpop.permute.xlu0 %4356
        %4358 = vrot.lane.b32.xlu0 %v4190, 88
        %v4359 = vpop.permute.xlu0 %4358
        %4360 = vrot.lane.b32.xlu0 %v4191, 88
        %v4361 = vpop.permute.xlu0 %4360
        %4362 = vrot.lane.b32.xlu0 %v4192, 88
        %v4363 = vpop.permute.xlu0 %4362
        %4364 = vrot.lane.b32.xlu0 %v4193, 88
        %v4365 = vpop.permute.xlu0 %4364
        %4366 = vrot.lane.b32.xlu0 %v4194, 88
        %v4367 = vpop.permute.xlu0 %4366
        %4368 = vrot.lane.b32.xlu0 %v4195, 88
        %v4369 = vpop.permute.xlu0 %4368
        %4370 = vrot.lane.b32.xlu0 %v4196, 88
        %v4371 = vpop.permute.xlu0 %4370
        %4372 = vrot.lane.b32.xlu0 %v4197, 88
        %v4373 = vpop.permute.xlu0 %4372
        %4374 = vrot.lane.b32.xlu0 %v4198, 88
        %v4375 = vpop.permute.xlu0 %4374
        %4376 = vrot.lane.b32.xlu0 %v4199, 88
        %v4377 = vpop.permute.xlu0 %4376
        %4378 = vrot.lane.b32.xlu0 %v4200, 88
        %v4379 = vpop.permute.xlu0 %4378
        %4380 = vrot.lane.b32.xlu0 %v4201, 88
        %v4381 = vpop.permute.xlu0 %4380
        %4382 = vrot.lane.b32.xlu0 %v4202, 88
        %v4383 = vpop.permute.xlu0 %4382
        %4384 = vrot.lane.b32.xlu0 %v4203, 88
        %v4385 = vpop.permute.xlu0 %4384
        %4386 = vrot.lane.b32.xlu0 %v4204, 88
        %v4387 = vpop.permute.xlu0 %4386
        %4388 = vrot.lane.b32.xlu0 %v4205, 88
        %v4389 = vpop.permute.xlu0 %4388
        %4390 = vrot.lane.b32.xlu0 %v4206, 88
        %v4391 = vpop.permute.xlu0 %4390
        %4392 = vrot.lane.b32.xlu0 %v4207, 88
        %v4393 = vpop.permute.xlu0 %4392
        %4394 = vrot.lane.b32.xlu0 %v4208, 88
        %v4395 = vpop.permute.xlu0 %4394
        %4396 = vrot.lane.b32.xlu0 %v4209, 88
        %v4397 = vpop.permute.xlu0 %4396
        %4398 = vrot.lane.b32.xlu0 %v4210, 88
        %v4399 = vpop.permute.xlu0 %4398
        %4400 = vrot.lane.b32.xlu0 %v4211, 88
        %v4401 = vpop.permute.xlu0 %4400
        %4402 = vrot.lane.b32.xlu0 %v4212, 88
        %v4403 = vpop.permute.xlu0 %4402
        %4404 = vrot.lane.b32.xlu0 %v4213, 88
        %v4405 = vpop.permute.xlu0 %4404
        %vm4470 = vcmask 786112
        %4471 = vst.msk [vmem:[#allocation2] sm:$0xff] %vm4470, %v4279
        %4472 = vst.msk [vmem:[#allocation2 + $0x10] sm:$0xff] %vm4470, %v4281
        %4473 = vst.msk [vmem:[#allocation2 + $0x20] sm:$0xff] %vm4470, %v4283
        %4474 = vst.msk [vmem:[#allocation2 + $0x30] sm:$0xff] %vm4470, %v4285
        %4475 = vst.msk [vmem:[#allocation2 + $0x40] sm:$0xff] %vm4470, %v4287
        %4476 = vst.msk [vmem:[#allocation2 + $0x50] sm:$0xff] %vm4470, %v4289
        %4477 = vst.msk [vmem:[#allocation2 + $0x60] sm:$0xff] %vm4470, %v4291
        %4478 = vst.msk [vmem:[#allocation2 + $0x70] sm:$0xff] %vm4470, %v4293
        %4479 = vst.msk [vmem:[#allocation2 + $0x80] sm:$0xff] %vm4470, %v4295
        %4480 = vst.msk [vmem:[#allocation2 + $0x90] sm:$0xff] %vm4470, %v4297
        %4481 = vst.msk [vmem:[#allocation2 + $0xa0] sm:$0xff] %vm4470, %v4299
        %4482 = vst.msk [vmem:[#allocation2 + $0xb0] sm:$0xff] %vm4470, %v4301
        %4483 = vst.msk [vmem:[#allocation2 + $0xc0] sm:$0xff] %vm4470, %v4303
        %4484 = vst.msk [vmem:[#allocation2 + $0xd0] sm:$0xff] %vm4470, %v4305
        %4485 = vst.msk [vmem:[#allocation2 + $0xe0] sm:$0xff] %vm4470, %v4307
        %4486 = vst.msk [vmem:[#allocation2 + $0xf0] sm:$0xff] %vm4470, %v4309
        %4487 = vst.msk [vmem:[#allocation2 + $0x100] sm:$0xff] %vm4470, %v4311
        %4488 = vst.msk [vmem:[#allocation2 + $0x110] sm:$0xff] %vm4470, %v4313
        %4489 = vst.msk [vmem:[#allocation2 + $0x120] sm:$0xff] %vm4470, %v4315
        %4490 = vst.msk [vmem:[#allocation2 + $0x130] sm:$0xff] %vm4470, %v4317
        %4491 = vst.msk [vmem:[#allocation2 + $0x140] sm:$0xff] %vm4470, %v4319
        %4492 = vst.msk [vmem:[#allocation2 + $0x150] sm:$0xff] %vm4470, %v4321
        %4493 = vst.msk [vmem:[#allocation2 + $0x160] sm:$0xff] %vm4470, %v4323
        %4494 = vst.msk [vmem:[#allocation2 + $0x170] sm:$0xff] %vm4470, %v4325
        %4495 = vst.msk [vmem:[#allocation2 + $0x180] sm:$0xff] %vm4470, %v4327
        %4496 = vst.msk [vmem:[#allocation2 + $0x190] sm:$0xff] %vm4470, %v4329
        %4497 = vst.msk [vmem:[#allocation2 + $0x1a0] sm:$0xff] %vm4470, %v4331
        %4498 = vst.msk [vmem:[#allocation2 + $0x1b0] sm:$0xff] %vm4470, %v4333
        %4499 = vst.msk [vmem:[#allocation2 + $0x1c0] sm:$0xff] %vm4470, %v4335
        %4500 = vst.msk [vmem:[#allocation2 + $0x1d0] sm:$0xff] %vm4470, %v4337
        %4501 = vst.msk [vmem:[#allocation2 + $0x1e0] sm:$0xff] %vm4470, %v4339
        %4502 = vst.msk [vmem:[#allocation2 + $0x1f0] sm:$0xff] %vm4470, %v4341
        %4503 = vst.msk [vmem:[#allocation2 + $0x200] sm:$0xff] %vm4470, %v4343
        %4504 = vst.msk [vmem:[#allocation2 + $0x210] sm:$0xff] %vm4470, %v4345
        %4505 = vst.msk [vmem:[#allocation2 + $0x220] sm:$0xff] %vm4470, %v4347
        %4506 = vst.msk [vmem:[#allocation2 + $0x230] sm:$0xff] %vm4470, %v4349
        %4507 = vst.msk [vmem:[#allocation2 + $0x240] sm:$0xff] %vm4470, %v4351
        %4508 = vst.msk [vmem:[#allocation2 + $0x250] sm:$0xff] %vm4470, %v4353
        %4509 = vst.msk [vmem:[#allocation2 + $0x260] sm:$0xff] %vm4470, %v4355
        %4510 = vst.msk [vmem:[#allocation2 + $0x270] sm:$0xff] %vm4470, %v4357
        %4511 = vst.msk [vmem:[#allocation2 + $0x280] sm:$0xff] %vm4470, %v4359
        %4512 = vst.msk [vmem:[#allocation2 + $0x290] sm:$0xff] %vm4470, %v4361
        %4513 = vst.msk [vmem:[#allocation2 + $0x2a0] sm:$0xff] %vm4470, %v4363
        %4514 = vst.msk [vmem:[#allocation2 + $0x2b0] sm:$0xff] %vm4470, %v4365
        %4515 = vst.msk [vmem:[#allocation2 + $0x2c0] sm:$0xff] %vm4470, %v4367
        %4516 = vst.msk [vmem:[#allocation2 + $0x2d0] sm:$0xff] %vm4470, %v4369
        %4517 = vst.msk [vmem:[#allocation2 + $0x2e0] sm:$0xff] %vm4470, %v4371
        %4518 = vst.msk [vmem:[#allocation2 + $0x2f0] sm:$0xff] %vm4470, %v4373
        %4519 = vst.msk [vmem:[#allocation2 + $0x300] sm:$0xff] %vm4470, %v4375
        %4520 = vst.msk [vmem:[#allocation2 + $0x310] sm:$0xff] %vm4470, %v4377
        %4521 = vst.msk [vmem:[#allocation2 + $0x320] sm:$0xff] %vm4470, %v4379
        %4522 = vst.msk [vmem:[#allocation2 + $0x330] sm:$0xff] %vm4470, %v4381
        %4523 = vst.msk [vmem:[#allocation2 + $0x340] sm:$0xff] %vm4470, %v4383
        %4524 = vst.msk [vmem:[#allocation2 + $0x350] sm:$0xff] %vm4470, %v4385
        %4525 = vst.msk [vmem:[#allocation2 + $0x360] sm:$0xff] %vm4470, %v4387
        %4526 = vst.msk [vmem:[#allocation2 + $0x370] sm:$0xff] %vm4470, %v4389
        %4527 = vst.msk [vmem:[#allocation2 + $0x380] sm:$0xff] %vm4470, %v4391
        %4528 = vst.msk [vmem:[#allocation2 + $0x390] sm:$0xff] %vm4470, %v4393
        %4529 = vst.msk [vmem:[#allocation2 + $0x3a0] sm:$0xff] %vm4470, %v4395
        %4530 = vst.msk [vmem:[#allocation2 + $0x3b0] sm:$0xff] %vm4470, %v4397
        %4531 = vst.msk [vmem:[#allocation2 + $0x3c0] sm:$0xff] %vm4470, %v4399
        %4532 = vst.msk [vmem:[#allocation2 + $0x3d0] sm:$0xff] %vm4470, %v4401
        %4533 = vst.msk [vmem:[#allocation2 + $0x3e0] sm:$0xff] %vm4470, %v4403
        %4534 = vst.msk [vmem:[#allocation2 + $0x3f0] sm:$0xff] %vm4470, %v4405
        %s4535 = scalar_lea.vmem %s167, 176
        %v4536 = vld [vmem:[%s4535] sm:$0xff]
        %v4537 = vld [vmem:[%s4535 + $0x10] sm:$0xff]
        %v4538 = vld [vmem:[%s4535 + $0x20] sm:$0xff]
        %v4539 = vld [vmem:[%s4535 + $0x30] sm:$0xff]
        %v4540 = vld [vmem:[%s4535 + $0x40] sm:$0xff]
        %v4541 = vld [vmem:[%s4535 + $0x50] sm:$0xff]
        %v4542 = vld [vmem:[%s4535 + $0x60] sm:$0xff]
        %v4543 = vld [vmem:[%s4535 + $0x70] sm:$0xff]
        %v4544 = vld [vmem:[%s4535 + $0xa0] sm:$0xff]
        %v4545 = vld [vmem:[%s4535 + $0xb0] sm:$0xff]
        %v4546 = vld [vmem:[%s4535 + $0xc0] sm:$0xff]
        %v4547 = vld [vmem:[%s4535 + $0xd0] sm:$0xff]
        %v4548 = vld [vmem:[%s4535 + $0xe0] sm:$0xff]
        %v4549 = vld [vmem:[%s4535 + $0xf0] sm:$0xff]
        %v4550 = vld [vmem:[%s4535 + $0x100] sm:$0xff]
        %v4551 = vld [vmem:[%s4535 + $0x110] sm:$0xff]
        %v4552 = vld [vmem:[%s4535 + $0x140] sm:$0xff]
        %v4553 = vld [vmem:[%s4535 + $0x150] sm:$0xff]
        %v4554 = vld [vmem:[%s4535 + $0x160] sm:$0xff]
        %v4555 = vld [vmem:[%s4535 + $0x170] sm:$0xff]
        %v4556 = vld [vmem:[%s4535 + $0x180] sm:$0xff]
        %v4557 = vld [vmem:[%s4535 + $0x190] sm:$0xff]
        %v4558 = vld [vmem:[%s4535 + $0x1a0] sm:$0xff]
        %v4559 = vld [vmem:[%s4535 + $0x1b0] sm:$0xff]
        %v4560 = vld [vmem:[%s4535 + $0x1e0] sm:$0xff]
        %v4561 = vld [vmem:[%s4535 + $0x1f0] sm:$0xff]
        %v4562 = vld [vmem:[%s4535 + $0x200] sm:$0xff]
        %v4563 = vld [vmem:[%s4535 + $0x210] sm:$0xff]
        %v4564 = vld [vmem:[%s4535 + $0x220] sm:$0xff]
        %v4565 = vld [vmem:[%s4535 + $0x230] sm:$0xff]
        %v4566 = vld [vmem:[%s4535 + $0x240] sm:$0xff]
        %v4567 = vld [vmem:[%s4535 + $0x250] sm:$0xff]
        %v4568 = vld [vmem:[%s4535 + $0x280] sm:$0xff]
        %v4569 = vld [vmem:[%s4535 + $0x290] sm:$0xff]
        %v4570 = vld [vmem:[%s4535 + $0x2a0] sm:$0xff]
        %v4571 = vld [vmem:[%s4535 + $0x2b0] sm:$0xff]
        %v4572 = vld [vmem:[%s4535 + $0x2c0] sm:$0xff]
        %v4573 = vld [vmem:[%s4535 + $0x2d0] sm:$0xff]
        %v4574 = vld [vmem:[%s4535 + $0x2e0] sm:$0xff]
        %v4575 = vld [vmem:[%s4535 + $0x2f0] sm:$0xff]
        %v4576 = vld [vmem:[%s4535 + $0x320] sm:$0xff]
        %v4577 = vld [vmem:[%s4535 + $0x330] sm:$0xff]
        %v4578 = vld [vmem:[%s4535 + $0x340] sm:$0xff]
        %v4579 = vld [vmem:[%s4535 + $0x350] sm:$0xff]
        %v4580 = vld [vmem:[%s4535 + $0x360] sm:$0xff]
        %v4581 = vld [vmem:[%s4535 + $0x370] sm:$0xff]
        %v4582 = vld [vmem:[%s4535 + $0x380] sm:$0xff]
        %v4583 = vld [vmem:[%s4535 + $0x390] sm:$0xff]
        %v4584 = vld [vmem:[%s4535 + $0x3c0] sm:$0xff]
        %v4585 = vld [vmem:[%s4535 + $0x3d0] sm:$0xff]
        %v4586 = vld [vmem:[%s4535 + $0x3e0] sm:$0xff]
        %v4587 = vld [vmem:[%s4535 + $0x3f0] sm:$0xff]
        %v4588 = vld [vmem:[%s4535 + $0x400] sm:$0xff]
        %v4589 = vld [vmem:[%s4535 + $0x410] sm:$0xff]
        %v4590 = vld [vmem:[%s4535 + $0x420] sm:$0xff]
        %v4591 = vld [vmem:[%s4535 + $0x430] sm:$0xff]
        %v4592 = vld [vmem:[%s4535 + $0x460] sm:$0xff]
        %v4593 = vld [vmem:[%s4535 + $0x470] sm:$0xff]
        %v4594 = vld [vmem:[%s4535 + $0x480] sm:$0xff]
        %v4595 = vld [vmem:[%s4535 + $0x490] sm:$0xff]
        %v4596 = vld [vmem:[%s4535 + $0x4a0] sm:$0xff]
        %v4597 = vld [vmem:[%s4535 + $0x4b0] sm:$0xff]
        %v4598 = vld [vmem:[%s4535 + $0x4c0] sm:$0xff]
        %v4599 = vld [vmem:[%s4535 + $0x4d0] sm:$0xff]
        %4664 = vrot.lane.b32.xlu0 %v4536, 96
        %v4665 = vpop.permute.xlu0 %4664
        %4666 = vrot.lane.b32.xlu0 %v4537, 96
        %v4667 = vpop.permute.xlu0 %4666
        %4668 = vrot.lane.b32.xlu0 %v4538, 96
        %v4669 = vpop.permute.xlu0 %4668
        %4670 = vrot.lane.b32.xlu0 %v4539, 96
        %v4671 = vpop.permute.xlu0 %4670
        %4672 = vrot.lane.b32.xlu0 %v4540, 96
        %v4673 = vpop.permute.xlu0 %4672
        %4674 = vrot.lane.b32.xlu0 %v4541, 96
        %v4675 = vpop.permute.xlu0 %4674
        %4676 = vrot.lane.b32.xlu0 %v4542, 96
        %v4677 = vpop.permute.xlu0 %4676
        %4678 = vrot.lane.b32.xlu0 %v4543, 96
        %v4679 = vpop.permute.xlu0 %4678
        %4680 = vrot.lane.b32.xlu0 %v4544, 96
        %v4681 = vpop.permute.xlu0 %4680
        %4682 = vrot.lane.b32.xlu0 %v4545, 96
        %v4683 = vpop.permute.xlu0 %4682
        %4684 = vrot.lane.b32.xlu0 %v4546, 96
        %v4685 = vpop.permute.xlu0 %4684
        %4686 = vrot.lane.b32.xlu0 %v4547, 96
        %v4687 = vpop.permute.xlu0 %4686
        %4688 = vrot.lane.b32.xlu0 %v4548, 96
        %v4689 = vpop.permute.xlu0 %4688
        %4690 = vrot.lane.b32.xlu0 %v4549, 96
        %v4691 = vpop.permute.xlu0 %4690
        %4692 = vrot.lane.b32.xlu0 %v4550, 96
        %v4693 = vpop.permute.xlu0 %4692
        %4694 = vrot.lane.b32.xlu0 %v4551, 96
        %v4695 = vpop.permute.xlu0 %4694
        %4696 = vrot.lane.b32.xlu0 %v4552, 96
        %v4697 = vpop.permute.xlu0 %4696
        %4698 = vrot.lane.b32.xlu0 %v4553, 96
        %v4699 = vpop.permute.xlu0 %4698
        %4700 = vrot.lane.b32.xlu0 %v4554, 96
        %v4701 = vpop.permute.xlu0 %4700
        %4702 = vrot.lane.b32.xlu0 %v4555, 96
        %v4703 = vpop.permute.xlu0 %4702
        %4704 = vrot.lane.b32.xlu0 %v4556, 96
        %v4705 = vpop.permute.xlu0 %4704
        %4706 = vrot.lane.b32.xlu0 %v4557, 96
        %v4707 = vpop.permute.xlu0 %4706
        %4708 = vrot.lane.b32.xlu0 %v4558, 96
        %v4709 = vpop.permute.xlu0 %4708
        %4710 = vrot.lane.b32.xlu0 %v4559, 96
        %v4711 = vpop.permute.xlu0 %4710
        %4712 = vrot.lane.b32.xlu0 %v4560, 96
        %v4713 = vpop.permute.xlu0 %4712
        %4714 = vrot.lane.b32.xlu0 %v4561, 96
        %v4715 = vpop.permute.xlu0 %4714
        %4716 = vrot.lane.b32.xlu0 %v4562, 96
        %v4717 = vpop.permute.xlu0 %4716
        %4718 = vrot.lane.b32.xlu0 %v4563, 96
        %v4719 = vpop.permute.xlu0 %4718
        %4720 = vrot.lane.b32.xlu0 %v4564, 96
        %v4721 = vpop.permute.xlu0 %4720
        %4722 = vrot.lane.b32.xlu0 %v4565, 96
        %v4723 = vpop.permute.xlu0 %4722
        %4724 = vrot.lane.b32.xlu0 %v4566, 96
        %v4725 = vpop.permute.xlu0 %4724
        %4726 = vrot.lane.b32.xlu0 %v4567, 96
        %v4727 = vpop.permute.xlu0 %4726
        %4728 = vrot.lane.b32.xlu0 %v4568, 96
        %v4729 = vpop.permute.xlu0 %4728
        %4730 = vrot.lane.b32.xlu0 %v4569, 96
        %v4731 = vpop.permute.xlu0 %4730
        %4732 = vrot.lane.b32.xlu0 %v4570, 96
        %v4733 = vpop.permute.xlu0 %4732
        %4734 = vrot.lane.b32.xlu0 %v4571, 96
        %v4735 = vpop.permute.xlu0 %4734
        %4736 = vrot.lane.b32.xlu0 %v4572, 96
        %v4737 = vpop.permute.xlu0 %4736
        %4738 = vrot.lane.b32.xlu0 %v4573, 96
        %v4739 = vpop.permute.xlu0 %4738
        %4740 = vrot.lane.b32.xlu0 %v4574, 96
        %v4741 = vpop.permute.xlu0 %4740
        %4742 = vrot.lane.b32.xlu0 %v4575, 96
        %v4743 = vpop.permute.xlu0 %4742
        %4744 = vrot.lane.b32.xlu0 %v4576, 96
        %v4745 = vpop.permute.xlu0 %4744
        %4746 = vrot.lane.b32.xlu0 %v4577, 96
        %v4747 = vpop.permute.xlu0 %4746
        %4748 = vrot.lane.b32.xlu0 %v4578, 96
        %v4749 = vpop.permute.xlu0 %4748
        %4750 = vrot.lane.b32.xlu0 %v4579, 96
        %v4751 = vpop.permute.xlu0 %4750
        %4752 = vrot.lane.b32.xlu0 %v4580, 96
        %v4753 = vpop.permute.xlu0 %4752
        %4754 = vrot.lane.b32.xlu0 %v4581, 96
        %v4755 = vpop.permute.xlu0 %4754
        %4756 = vrot.lane.b32.xlu0 %v4582, 96
        %v4757 = vpop.permute.xlu0 %4756
        %4758 = vrot.lane.b32.xlu0 %v4583, 96
        %v4759 = vpop.permute.xlu0 %4758
        %4760 = vrot.lane.b32.xlu0 %v4584, 96
        %v4761 = vpop.permute.xlu0 %4760
        %4762 = vrot.lane.b32.xlu0 %v4585, 96
        %v4763 = vpop.permute.xlu0 %4762
        %4764 = vrot.lane.b32.xlu0 %v4586, 96
        %v4765 = vpop.permute.xlu0 %4764
        %4766 = vrot.lane.b32.xlu0 %v4587, 96
        %v4767 = vpop.permute.xlu0 %4766
        %4768 = vrot.lane.b32.xlu0 %v4588, 96
        %v4769 = vpop.permute.xlu0 %4768
        %4770 = vrot.lane.b32.xlu0 %v4589, 96
        %v4771 = vpop.permute.xlu0 %4770
        %4772 = vrot.lane.b32.xlu0 %v4590, 96
        %v4773 = vpop.permute.xlu0 %4772
        %4774 = vrot.lane.b32.xlu0 %v4591, 96
        %v4775 = vpop.permute.xlu0 %4774
        %4776 = vrot.lane.b32.xlu0 %v4592, 96
        %v4777 = vpop.permute.xlu0 %4776
        %4778 = vrot.lane.b32.xlu0 %v4593, 96
        %v4779 = vpop.permute.xlu0 %4778
        %4780 = vrot.lane.b32.xlu0 %v4594, 96
        %v4781 = vpop.permute.xlu0 %4780
        %4782 = vrot.lane.b32.xlu0 %v4595, 96
        %v4783 = vpop.permute.xlu0 %4782
        %4784 = vrot.lane.b32.xlu0 %v4596, 96
        %v4785 = vpop.permute.xlu0 %4784
        %4786 = vrot.lane.b32.xlu0 %v4597, 96
        %v4787 = vpop.permute.xlu0 %4786
        %4788 = vrot.lane.b32.xlu0 %v4598, 96
        %v4789 = vpop.permute.xlu0 %4788
        %4790 = vrot.lane.b32.xlu0 %v4599, 96
        %v4791 = vpop.permute.xlu0 %4790
        %vm4856 = vcmask 851712
        %4857 = vst.msk [vmem:[#allocation2] sm:$0xff] %vm4856, %v4665
        %4858 = vst.msk [vmem:[#allocation2 + $0x10] sm:$0xff] %vm4856, %v4667
        %4859 = vst.msk [vmem:[#allocation2 + $0x20] sm:$0xff] %vm4856, %v4669
        %4860 = vst.msk [vmem:[#allocation2 + $0x30] sm:$0xff] %vm4856, %v4671
        %4861 = vst.msk [vmem:[#allocation2 + $0x40] sm:$0xff] %vm4856, %v4673
        %4862 = vst.msk [vmem:[#allocation2 + $0x50] sm:$0xff] %vm4856, %v4675
        %4863 = vst.msk [vmem:[#allocation2 + $0x60] sm:$0xff] %vm4856, %v4677
        %4864 = vst.msk [vmem:[#allocation2 + $0x70] sm:$0xff] %vm4856, %v4679
        %4865 = vst.msk [vmem:[#allocation2 + $0x80] sm:$0xff] %vm4856, %v4681
        %4866 = vst.msk [vmem:[#allocation2 + $0x90] sm:$0xff] %vm4856, %v4683
        %4867 = vst.msk [vmem:[#allocation2 + $0xa0] sm:$0xff] %vm4856, %v4685
        %4868 = vst.msk [vmem:[#allocation2 + $0xb0] sm:$0xff] %vm4856, %v4687
        %4869 = vst.msk [vmem:[#allocation2 + $0xc0] sm:$0xff] %vm4856, %v4689
        %4870 = vst.msk [vmem:[#allocation2 + $0xd0] sm:$0xff] %vm4856, %v4691
        %4871 = vst.msk [vmem:[#allocation2 + $0xe0] sm:$0xff] %vm4856, %v4693
        %4872 = vst.msk [vmem:[#allocation2 + $0xf0] sm:$0xff] %vm4856, %v4695
        %4873 = vst.msk [vmem:[#allocation2 + $0x100] sm:$0xff] %vm4856, %v4697
        %4874 = vst.msk [vmem:[#allocation2 + $0x110] sm:$0xff] %vm4856, %v4699
        %4875 = vst.msk [vmem:[#allocation2 + $0x120] sm:$0xff] %vm4856, %v4701
        %4876 = vst.msk [vmem:[#allocation2 + $0x130] sm:$0xff] %vm4856, %v4703
        %4877 = vst.msk [vmem:[#allocation2 + $0x140] sm:$0xff] %vm4856, %v4705
        %4878 = vst.msk [vmem:[#allocation2 + $0x150] sm:$0xff] %vm4856, %v4707
        %4879 = vst.msk [vmem:[#allocation2 + $0x160] sm:$0xff] %vm4856, %v4709
        %4880 = vst.msk [vmem:[#allocation2 + $0x170] sm:$0xff] %vm4856, %v4711
        %4881 = vst.msk [vmem:[#allocation2 + $0x180] sm:$0xff] %vm4856, %v4713
        %4882 = vst.msk [vmem:[#allocation2 + $0x190] sm:$0xff] %vm4856, %v4715
        %4883 = vst.msk [vmem:[#allocation2 + $0x1a0] sm:$0xff] %vm4856, %v4717
        %4884 = vst.msk [vmem:[#allocation2 + $0x1b0] sm:$0xff] %vm4856, %v4719
        %4885 = vst.msk [vmem:[#allocation2 + $0x1c0] sm:$0xff] %vm4856, %v4721
        %4886 = vst.msk [vmem:[#allocation2 + $0x1d0] sm:$0xff] %vm4856, %v4723
        %4887 = vst.msk [vmem:[#allocation2 + $0x1e0] sm:$0xff] %vm4856, %v4725
        %4888 = vst.msk [vmem:[#allocation2 + $0x1f0] sm:$0xff] %vm4856, %v4727
        %4889 = vst.msk [vmem:[#allocation2 + $0x200] sm:$0xff] %vm4856, %v4729
        %4890 = vst.msk [vmem:[#allocation2 + $0x210] sm:$0xff] %vm4856, %v4731
        %4891 = vst.msk [vmem:[#allocation2 + $0x220] sm:$0xff] %vm4856, %v4733
        %4892 = vst.msk [vmem:[#allocation2 + $0x230] sm:$0xff] %vm4856, %v4735
        %4893 = vst.msk [vmem:[#allocation2 + $0x240] sm:$0xff] %vm4856, %v4737
        %4894 = vst.msk [vmem:[#allocation2 + $0x250] sm:$0xff] %vm4856, %v4739
        %4895 = vst.msk [vmem:[#allocation2 + $0x260] sm:$0xff] %vm4856, %v4741
        %4896 = vst.msk [vmem:[#allocation2 + $0x270] sm:$0xff] %vm4856, %v4743
        %4897 = vst.msk [vmem:[#allocation2 + $0x280] sm:$0xff] %vm4856, %v4745
        %4898 = vst.msk [vmem:[#allocation2 + $0x290] sm:$0xff] %vm4856, %v4747
        %4899 = vst.msk [vmem:[#allocation2 + $0x2a0] sm:$0xff] %vm4856, %v4749
        %4900 = vst.msk [vmem:[#allocation2 + $0x2b0] sm:$0xff] %vm4856, %v4751
        %4901 = vst.msk [vmem:[#allocation2 + $0x2c0] sm:$0xff] %vm4856, %v4753
        %4902 = vst.msk [vmem:[#allocation2 + $0x2d0] sm:$0xff] %vm4856, %v4755
        %4903 = vst.msk [vmem:[#allocation2 + $0x2e0] sm:$0xff] %vm4856, %v4757
        %4904 = vst.msk [vmem:[#allocation2 + $0x2f0] sm:$0xff] %vm4856, %v4759
        %4905 = vst.msk [vmem:[#allocation2 + $0x300] sm:$0xff] %vm4856, %v4761
        %4906 = vst.msk [vmem:[#allocation2 + $0x310] sm:$0xff] %vm4856, %v4763
        %4907 = vst.msk [vmem:[#allocation2 + $0x320] sm:$0xff] %vm4856, %v4765
        %4908 = vst.msk [vmem:[#allocation2 + $0x330] sm:$0xff] %vm4856, %v4767
        %4909 = vst.msk [vmem:[#allocation2 + $0x340] sm:$0xff] %vm4856, %v4769
        %4910 = vst.msk [vmem:[#allocation2 + $0x350] sm:$0xff] %vm4856, %v4771
        %4911 = vst.msk [vmem:[#allocation2 + $0x360] sm:$0xff] %vm4856, %v4773
        %4912 = vst.msk [vmem:[#allocation2 + $0x370] sm:$0xff] %vm4856, %v4775
        %4913 = vst.msk [vmem:[#allocation2 + $0x380] sm:$0xff] %vm4856, %v4777
        %4914 = vst.msk [vmem:[#allocation2 + $0x390] sm:$0xff] %vm4856, %v4779
        %4915 = vst.msk [vmem:[#allocation2 + $0x3a0] sm:$0xff] %vm4856, %v4781
        %4916 = vst.msk [vmem:[#allocation2 + $0x3b0] sm:$0xff] %vm4856, %v4783
        %4917 = vst.msk [vmem:[#allocation2 + $0x3c0] sm:$0xff] %vm4856, %v4785
        %4918 = vst.msk [vmem:[#allocation2 + $0x3d0] sm:$0xff] %vm4856, %v4787
        %4919 = vst.msk [vmem:[#allocation2 + $0x3e0] sm:$0xff] %vm4856, %v4789
        %4920 = vst.msk [vmem:[#allocation2 + $0x3f0] sm:$0xff] %vm4856, %v4791
        %v4921 = vld [vmem:[%s4535 + $0x1] sm:$0xff]
        %v4922 = vld [vmem:[%s4535 + $0x11] sm:$0xff]
        %v4923 = vld [vmem:[%s4535 + $0x21] sm:$0xff]
        %v4924 = vld [vmem:[%s4535 + $0x31] sm:$0xff]
        %v4925 = vld [vmem:[%s4535 + $0x41] sm:$0xff]
        %v4926 = vld [vmem:[%s4535 + $0x51] sm:$0xff]
        %v4927 = vld [vmem:[%s4535 + $0x61] sm:$0xff]
        %v4928 = vld [vmem:[%s4535 + $0x71] sm:$0xff]
        %v4929 = vld [vmem:[%s4535 + $0xa1] sm:$0xff]
        %v4930 = vld [vmem:[%s4535 + $0xb1] sm:$0xff]
        %v4931 = vld [vmem:[%s4535 + $0xc1] sm:$0xff]
        %v4932 = vld [vmem:[%s4535 + $0xd1] sm:$0xff]
        %v4933 = vld [vmem:[%s4535 + $0xe1] sm:$0xff]
        %v4934 = vld [vmem:[%s4535 + $0xf1] sm:$0xff]
        %v4935 = vld [vmem:[%s4535 + $0x101] sm:$0xff]
        %v4936 = vld [vmem:[%s4535 + $0x111] sm:$0xff]
        %v4937 = vld [vmem:[%s4535 + $0x141] sm:$0xff]
        %v4938 = vld [vmem:[%s4535 + $0x151] sm:$0xff]
        %v4939 = vld [vmem:[%s4535 + $0x161] sm:$0xff]
        %v4940 = vld [vmem:[%s4535 + $0x171] sm:$0xff]
        %v4941 = vld [vmem:[%s4535 + $0x181] sm:$0xff]
        %v4942 = vld [vmem:[%s4535 + $0x191] sm:$0xff]
        %v4943 = vld [vmem:[%s4535 + $0x1a1] sm:$0xff]
        %v4944 = vld [vmem:[%s4535 + $0x1b1] sm:$0xff]
        %v4945 = vld [vmem:[%s4535 + $0x1e1] sm:$0xff]
        %v4946 = vld [vmem:[%s4535 + $0x1f1] sm:$0xff]
        %v4947 = vld [vmem:[%s4535 + $0x201] sm:$0xff]
        %v4948 = vld [vmem:[%s4535 + $0x211] sm:$0xff]
        %v4949 = vld [vmem:[%s4535 + $0x221] sm:$0xff]
        %v4950 = vld [vmem:[%s4535 + $0x231] sm:$0xff]
        %v4951 = vld [vmem:[%s4535 + $0x241] sm:$0xff]
        %v4952 = vld [vmem:[%s4535 + $0x251] sm:$0xff]
        %v4953 = vld [vmem:[%s4535 + $0x281] sm:$0xff]
        %v4954 = vld [vmem:[%s4535 + $0x291] sm:$0xff]
        %v4955 = vld [vmem:[%s4535 + $0x2a1] sm:$0xff]
        %v4956 = vld [vmem:[%s4535 + $0x2b1] sm:$0xff]
        %v4957 = vld [vmem:[%s4535 + $0x2c1] sm:$0xff]
        %v4958 = vld [vmem:[%s4535 + $0x2d1] sm:$0xff]
        %v4959 = vld [vmem:[%s4535 + $0x2e1] sm:$0xff]
        %v4960 = vld [vmem:[%s4535 + $0x2f1] sm:$0xff]
        %v4961 = vld [vmem:[%s4535 + $0x321] sm:$0xff]
        %v4962 = vld [vmem:[%s4535 + $0x331] sm:$0xff]
        %v4963 = vld [vmem:[%s4535 + $0x341] sm:$0xff]
        %v4964 = vld [vmem:[%s4535 + $0x351] sm:$0xff]
        %v4965 = vld [vmem:[%s4535 + $0x361] sm:$0xff]
        %v4966 = vld [vmem:[%s4535 + $0x371] sm:$0xff]
        %v4967 = vld [vmem:[%s4535 + $0x381] sm:$0xff]
        %v4968 = vld [vmem:[%s4535 + $0x391] sm:$0xff]
        %v4969 = vld [vmem:[%s4535 + $0x3c1] sm:$0xff]
        %v4970 = vld [vmem:[%s4535 + $0x3d1] sm:$0xff]
        %v4971 = vld [vmem:[%s4535 + $0x3e1] sm:$0xff]
        %v4972 = vld [vmem:[%s4535 + $0x3f1] sm:$0xff]
        %v4973 = vld [vmem:[%s4535 + $0x401] sm:$0xff]
        %v4974 = vld [vmem:[%s4535 + $0x411] sm:$0xff]
        %v4975 = vld [vmem:[%s4535 + $0x421] sm:$0xff]
        %v4976 = vld [vmem:[%s4535 + $0x431] sm:$0xff]
        %v4977 = vld [vmem:[%s4535 + $0x461] sm:$0xff]
        %v4978 = vld [vmem:[%s4535 + $0x471] sm:$0xff]
        %v4979 = vld [vmem:[%s4535 + $0x481] sm:$0xff]
        %v4980 = vld [vmem:[%s4535 + $0x491] sm:$0xff]
        %v4981 = vld [vmem:[%s4535 + $0x4a1] sm:$0xff]
        %v4982 = vld [vmem:[%s4535 + $0x4b1] sm:$0xff]
        %v4983 = vld [vmem:[%s4535 + $0x4c1] sm:$0xff]
        %v4984 = vld [vmem:[%s4535 + $0x4d1] sm:$0xff]
        %5049 = vrot.lane.b32.xlu0 %v4921, 104
        %v5050 = vpop.permute.xlu0 %5049
        %5051 = vrot.lane.b32.xlu0 %v4922, 104
        %v5052 = vpop.permute.xlu0 %5051
        %5053 = vrot.lane.b32.xlu0 %v4923, 104
        %v5054 = vpop.permute.xlu0 %5053
        %5055 = vrot.lane.b32.xlu0 %v4924, 104
        %v5056 = vpop.permute.xlu0 %5055
        %5057 = vrot.lane.b32.xlu0 %v4925, 104
        %v5058 = vpop.permute.xlu0 %5057
        %5059 = vrot.lane.b32.xlu0 %v4926, 104
        %v5060 = vpop.permute.xlu0 %5059
        %5061 = vrot.lane.b32.xlu0 %v4927, 104
        %v5062 = vpop.permute.xlu0 %5061
        %5063 = vrot.lane.b32.xlu0 %v4928, 104
        %v5064 = vpop.permute.xlu0 %5063
        %5065 = vrot.lane.b32.xlu0 %v4929, 104
        %v5066 = vpop.permute.xlu0 %5065
        %5067 = vrot.lane.b32.xlu0 %v4930, 104
        %v5068 = vpop.permute.xlu0 %5067
        %5069 = vrot.lane.b32.xlu0 %v4931, 104
        %v5070 = vpop.permute.xlu0 %5069
        %5071 = vrot.lane.b32.xlu0 %v4932, 104
        %v5072 = vpop.permute.xlu0 %5071
        %5073 = vrot.lane.b32.xlu0 %v4933, 104
        %v5074 = vpop.permute.xlu0 %5073
        %5075 = vrot.lane.b32.xlu0 %v4934, 104
        %v5076 = vpop.permute.xlu0 %5075
        %5077 = vrot.lane.b32.xlu0 %v4935, 104
        %v5078 = vpop.permute.xlu0 %5077
        %5079 = vrot.lane.b32.xlu0 %v4936, 104
        %v5080 = vpop.permute.xlu0 %5079
        %5081 = vrot.lane.b32.xlu0 %v4937, 104
        %v5082 = vpop.permute.xlu0 %5081
        %5083 = vrot.lane.b32.xlu0 %v4938, 104
        %v5084 = vpop.permute.xlu0 %5083
        %5085 = vrot.lane.b32.xlu0 %v4939, 104
        %v5086 = vpop.permute.xlu0 %5085
        %5087 = vrot.lane.b32.xlu0 %v4940, 104
        %v5088 = vpop.permute.xlu0 %5087
        %5089 = vrot.lane.b32.xlu0 %v4941, 104
        %v5090 = vpop.permute.xlu0 %5089
        %5091 = vrot.lane.b32.xlu0 %v4942, 104
        %v5092 = vpop.permute.xlu0 %5091
        %5093 = vrot.lane.b32.xlu0 %v4943, 104
        %v5094 = vpop.permute.xlu0 %5093
        %5095 = vrot.lane.b32.xlu0 %v4944, 104
        %v5096 = vpop.permute.xlu0 %5095
        %5097 = vrot.lane.b32.xlu0 %v4945, 104
        %v5098 = vpop.permute.xlu0 %5097
        %5099 = vrot.lane.b32.xlu0 %v4946, 104
        %v5100 = vpop.permute.xlu0 %5099
        %5101 = vrot.lane.b32.xlu0 %v4947, 104
        %v5102 = vpop.permute.xlu0 %5101
        %5103 = vrot.lane.b32.xlu0 %v4948, 104
        %v5104 = vpop.permute.xlu0 %5103
        %5105 = vrot.lane.b32.xlu0 %v4949, 104
        %v5106 = vpop.permute.xlu0 %5105
        %5107 = vrot.lane.b32.xlu0 %v4950, 104
        %v5108 = vpop.permute.xlu0 %5107
        %5109 = vrot.lane.b32.xlu0 %v4951, 104
        %v5110 = vpop.permute.xlu0 %5109
        %5111 = vrot.lane.b32.xlu0 %v4952, 104
        %v5112 = vpop.permute.xlu0 %5111
        %5113 = vrot.lane.b32.xlu0 %v4953, 104
        %v5114 = vpop.permute.xlu0 %5113
        %5115 = vrot.lane.b32.xlu0 %v4954, 104
        %v5116 = vpop.permute.xlu0 %5115
        %5117 = vrot.lane.b32.xlu0 %v4955, 104
        %v5118 = vpop.permute.xlu0 %5117
        %5119 = vrot.lane.b32.xlu0 %v4956, 104
        %v5120 = vpop.permute.xlu0 %5119
        %5121 = vrot.lane.b32.xlu0 %v4957, 104
        %v5122 = vpop.permute.xlu0 %5121
        %5123 = vrot.lane.b32.xlu0 %v4958, 104
        %v5124 = vpop.permute.xlu0 %5123
        %5125 = vrot.lane.b32.xlu0 %v4959, 104
        %v5126 = vpop.permute.xlu0 %5125
        %5127 = vrot.lane.b32.xlu0 %v4960, 104
        %v5128 = vpop.permute.xlu0 %5127
        %5129 = vrot.lane.b32.xlu0 %v4961, 104
        %v5130 = vpop.permute.xlu0 %5129
        %5131 = vrot.lane.b32.xlu0 %v4962, 104
        %v5132 = vpop.permute.xlu0 %5131
        %5133 = vrot.lane.b32.xlu0 %v4963, 104
        %v5134 = vpop.permute.xlu0 %5133
        %5135 = vrot.lane.b32.xlu0 %v4964, 104
        %v5136 = vpop.permute.xlu0 %5135
        %5137 = vrot.lane.b32.xlu0 %v4965, 104
        %v5138 = vpop.permute.xlu0 %5137
        %5139 = vrot.lane.b32.xlu0 %v4966, 104
        %v5140 = vpop.permute.xlu0 %5139
        %5141 = vrot.lane.b32.xlu0 %v4967, 104
        %v5142 = vpop.permute.xlu0 %5141
        %5143 = vrot.lane.b32.xlu0 %v4968, 104
        %v5144 = vpop.permute.xlu0 %5143
        %5145 = vrot.lane.b32.xlu0 %v4969, 104
        %v5146 = vpop.permute.xlu0 %5145
        %5147 = vrot.lane.b32.xlu0 %v4970, 104
        %v5148 = vpop.permute.xlu0 %5147
        %5149 = vrot.lane.b32.xlu0 %v4971, 104
        %v5150 = vpop.permute.xlu0 %5149
        %5151 = vrot.lane.b32.xlu0 %v4972, 104
        %v5152 = vpop.permute.xlu0 %5151
        %5153 = vrot.lane.b32.xlu0 %v4973, 104
        %v5154 = vpop.permute.xlu0 %5153
        %5155 = vrot.lane.b32.xlu0 %v4974, 104
        %v5156 = vpop.permute.xlu0 %5155
        %5157 = vrot.lane.b32.xlu0 %v4975, 104
        %v5158 = vpop.permute.xlu0 %5157
        %5159 = vrot.lane.b32.xlu0 %v4976, 104
        %v5160 = vpop.permute.xlu0 %5159
        %5161 = vrot.lane.b32.xlu0 %v4977, 104
        %v5162 = vpop.permute.xlu0 %5161
        %5163 = vrot.lane.b32.xlu0 %v4978, 104
        %v5164 = vpop.permute.xlu0 %5163
        %5165 = vrot.lane.b32.xlu0 %v4979, 104
        %v5166 = vpop.permute.xlu0 %5165
        %5167 = vrot.lane.b32.xlu0 %v4980, 104
        %v5168 = vpop.permute.xlu0 %5167
        %5169 = vrot.lane.b32.xlu0 %v4981, 104
        %v5170 = vpop.permute.xlu0 %5169
        %5171 = vrot.lane.b32.xlu0 %v4982, 104
        %v5172 = vpop.permute.xlu0 %5171
        %5173 = vrot.lane.b32.xlu0 %v4983, 104
        %v5174 = vpop.permute.xlu0 %5173
        %5175 = vrot.lane.b32.xlu0 %v4984, 104
        %v5176 = vpop.permute.xlu0 %5175
        %vm5241 = vcmask 917312
        %5242 = vst.msk [vmem:[#allocation2] sm:$0xff] %vm5241, %v5050
        %5243 = vst.msk [vmem:[#allocation2 + $0x10] sm:$0xff] %vm5241, %v5052
        %5244 = vst.msk [vmem:[#allocation2 + $0x20] sm:$0xff] %vm5241, %v5054
        %5245 = vst.msk [vmem:[#allocation2 + $0x30] sm:$0xff] %vm5241, %v5056
        %5246 = vst.msk [vmem:[#allocation2 + $0x40] sm:$0xff] %vm5241, %v5058
        %5247 = vst.msk [vmem:[#allocation2 + $0x50] sm:$0xff] %vm5241, %v5060
        %5248 = vst.msk [vmem:[#allocation2 + $0x60] sm:$0xff] %vm5241, %v5062
        %5249 = vst.msk [vmem:[#allocation2 + $0x70] sm:$0xff] %vm5241, %v5064
        %5250 = vst.msk [vmem:[#allocation2 + $0x80] sm:$0xff] %vm5241, %v5066
        %5251 = vst.msk [vmem:[#allocation2 + $0x90] sm:$0xff] %vm5241, %v5068
        %5252 = vst.msk [vmem:[#allocation2 + $0xa0] sm:$0xff] %vm5241, %v5070
        %5253 = vst.msk [vmem:[#allocation2 + $0xb0] sm:$0xff] %vm5241, %v5072
        %5254 = vst.msk [vmem:[#allocation2 + $0xc0] sm:$0xff] %vm5241, %v5074
        %5255 = vst.msk [vmem:[#allocation2 + $0xd0] sm:$0xff] %vm5241, %v5076
        %5256 = vst.msk [vmem:[#allocation2 + $0xe0] sm:$0xff] %vm5241, %v5078
        %5257 = vst.msk [vmem:[#allocation2 + $0xf0] sm:$0xff] %vm5241, %v5080
        %5258 = vst.msk [vmem:[#allocation2 + $0x100] sm:$0xff] %vm5241, %v5082
        %5259 = vst.msk [vmem:[#allocation2 + $0x110] sm:$0xff] %vm5241, %v5084
        %5260 = vst.msk [vmem:[#allocation2 + $0x120] sm:$0xff] %vm5241, %v5086
        %5261 = vst.msk [vmem:[#allocation2 + $0x130] sm:$0xff] %vm5241, %v5088
        %5262 = vst.msk [vmem:[#allocation2 + $0x140] sm:$0xff] %vm5241, %v5090
        %5263 = vst.msk [vmem:[#allocation2 + $0x150] sm:$0xff] %vm5241, %v5092
        %5264 = vst.msk [vmem:[#allocation2 + $0x160] sm:$0xff] %vm5241, %v5094
        %5265 = vst.msk [vmem:[#allocation2 + $0x170] sm:$0xff] %vm5241, %v5096
        %5266 = vst.msk [vmem:[#allocation2 + $0x180] sm:$0xff] %vm5241, %v5098
        %5267 = vst.msk [vmem:[#allocation2 + $0x190] sm:$0xff] %vm5241, %v5100
        %5268 = vst.msk [vmem:[#allocation2 + $0x1a0] sm:$0xff] %vm5241, %v5102
        %5269 = vst.msk [vmem:[#allocation2 + $0x1b0] sm:$0xff] %vm5241, %v5104
        %5270 = vst.msk [vmem:[#allocation2 + $0x1c0] sm:$0xff] %vm5241, %v5106
        %5271 = vst.msk [vmem:[#allocation2 + $0x1d0] sm:$0xff] %vm5241, %v5108
        %5272 = vst.msk [vmem:[#allocation2 + $0x1e0] sm:$0xff] %vm5241, %v5110
        %5273 = vst.msk [vmem:[#allocation2 + $0x1f0] sm:$0xff] %vm5241, %v5112
        %5274 = vst.msk [vmem:[#allocation2 + $0x200] sm:$0xff] %vm5241, %v5114
        %5275 = vst.msk [vmem:[#allocation2 + $0x210] sm:$0xff] %vm5241, %v5116
        %5276 = vst.msk [vmem:[#allocation2 + $0x220] sm:$0xff] %vm5241, %v5118
        %5277 = vst.msk [vmem:[#allocation2 + $0x230] sm:$0xff] %vm5241, %v5120
        %5278 = vst.msk [vmem:[#allocation2 + $0x240] sm:$0xff] %vm5241, %v5122
        %5279 = vst.msk [vmem:[#allocation2 + $0x250] sm:$0xff] %vm5241, %v5124
        %5280 = vst.msk [vmem:[#allocation2 + $0x260] sm:$0xff] %vm5241, %v5126
        %5281 = vst.msk [vmem:[#allocation2 + $0x270] sm:$0xff] %vm5241, %v5128
        %5282 = vst.msk [vmem:[#allocation2 + $0x280] sm:$0xff] %vm5241, %v5130
        %5283 = vst.msk [vmem:[#allocation2 + $0x290] sm:$0xff] %vm5241, %v5132
        %5284 = vst.msk [vmem:[#allocation2 + $0x2a0] sm:$0xff] %vm5241, %v5134
        %5285 = vst.msk [vmem:[#allocation2 + $0x2b0] sm:$0xff] %vm5241, %v5136
        %5286 = vst.msk [vmem:[#allocation2 + $0x2c0] sm:$0xff] %vm5241, %v5138
        %5287 = vst.msk [vmem:[#allocation2 + $0x2d0] sm:$0xff] %vm5241, %v5140
        %5288 = vst.msk [vmem:[#allocation2 + $0x2e0] sm:$0xff] %vm5241, %v5142
        %5289 = vst.msk [vmem:[#allocation2 + $0x2f0] sm:$0xff] %vm5241, %v5144
        %5290 = vst.msk [vmem:[#allocation2 + $0x300] sm:$0xff] %vm5241, %v5146
        %5291 = vst.msk [vmem:[#allocation2 + $0x310] sm:$0xff] %vm5241, %v5148
        %5292 = vst.msk [vmem:[#allocation2 + $0x320] sm:$0xff] %vm5241, %v5150
        %5293 = vst.msk [vmem:[#allocation2 + $0x330] sm:$0xff] %vm5241, %v5152
        %5294 = vst.msk [vmem:[#allocation2 + $0x340] sm:$0xff] %vm5241, %v5154
        %5295 = vst.msk [vmem:[#allocation2 + $0x350] sm:$0xff] %vm5241, %v5156
        %5296 = vst.msk [vmem:[#allocation2 + $0x360] sm:$0xff] %vm5241, %v5158
        %5297 = vst.msk [vmem:[#allocation2 + $0x370] sm:$0xff] %vm5241, %v5160
        %5298 = vst.msk [vmem:[#allocation2 + $0x380] sm:$0xff] %vm5241, %v5162
        %5299 = vst.msk [vmem:[#allocation2 + $0x390] sm:$0xff] %vm5241, %v5164
        %5300 = vst.msk [vmem:[#allocation2 + $0x3a0] sm:$0xff] %vm5241, %v5166
        %5301 = vst.msk [vmem:[#allocation2 + $0x3b0] sm:$0xff] %vm5241, %v5168
        %5302 = vst.msk [vmem:[#allocation2 + $0x3c0] sm:$0xff] %vm5241, %v5170
        %5303 = vst.msk [vmem:[#allocation2 + $0x3d0] sm:$0xff] %vm5241, %v5172
        %5304 = vst.msk [vmem:[#allocation2 + $0x3e0] sm:$0xff] %vm5241, %v5174
        %5305 = vst.msk [vmem:[#allocation2 + $0x3f0] sm:$0xff] %vm5241, %v5176
        %v5306 = vld [vmem:[%s4535 + $0x2] sm:$0xff]
        %v5307 = vld [vmem:[%s4535 + $0x12] sm:$0xff]
        %v5308 = vld [vmem:[%s4535 + $0x22] sm:$0xff]
        %v5309 = vld [vmem:[%s4535 + $0x32] sm:$0xff]
        %v5310 = vld [vmem:[%s4535 + $0x42] sm:$0xff]
        %v5311 = vld [vmem:[%s4535 + $0x52] sm:$0xff]
        %v5312 = vld [vmem:[%s4535 + $0x62] sm:$0xff]
        %v5313 = vld [vmem:[%s4535 + $0x72] sm:$0xff]
        %v5314 = vld [vmem:[%s4535 + $0xa2] sm:$0xff]
        %v5315 = vld [vmem:[%s4535 + $0xb2] sm:$0xff]
        %v5316 = vld [vmem:[%s4535 + $0xc2] sm:$0xff]
        %v5317 = vld [vmem:[%s4535 + $0xd2] sm:$0xff]
        %v5318 = vld [vmem:[%s4535 + $0xe2] sm:$0xff]
        %v5319 = vld [vmem:[%s4535 + $0xf2] sm:$0xff]
        %v5320 = vld [vmem:[%s4535 + $0x102] sm:$0xff]
        %v5321 = vld [vmem:[%s4535 + $0x112] sm:$0xff]
        %v5322 = vld [vmem:[%s4535 + $0x142] sm:$0xff]
        %v5323 = vld [vmem:[%s4535 + $0x152] sm:$0xff]
        %v5324 = vld [vmem:[%s4535 + $0x162] sm:$0xff]
        %v5325 = vld [vmem:[%s4535 + $0x172] sm:$0xff]
        %v5326 = vld [vmem:[%s4535 + $0x182] sm:$0xff]
        %v5327 = vld [vmem:[%s4535 + $0x192] sm:$0xff]
        %v5328 = vld [vmem:[%s4535 + $0x1a2] sm:$0xff]
        %v5329 = vld [vmem:[%s4535 + $0x1b2] sm:$0xff]
        %v5330 = vld [vmem:[%s4535 + $0x1e2] sm:$0xff]
        %v5331 = vld [vmem:[%s4535 + $0x1f2] sm:$0xff]
        %v5332 = vld [vmem:[%s4535 + $0x202] sm:$0xff]
        %v5333 = vld [vmem:[%s4535 + $0x212] sm:$0xff]
        %v5334 = vld [vmem:[%s4535 + $0x222] sm:$0xff]
        %v5335 = vld [vmem:[%s4535 + $0x232] sm:$0xff]
        %v5336 = vld [vmem:[%s4535 + $0x242] sm:$0xff]
        %v5337 = vld [vmem:[%s4535 + $0x252] sm:$0xff]
        %v5338 = vld [vmem:[%s4535 + $0x282] sm:$0xff]
        %v5339 = vld [vmem:[%s4535 + $0x292] sm:$0xff]
        %v5340 = vld [vmem:[%s4535 + $0x2a2] sm:$0xff]
        %v5341 = vld [vmem:[%s4535 + $0x2b2] sm:$0xff]
        %v5342 = vld [vmem:[%s4535 + $0x2c2] sm:$0xff]
        %v5343 = vld [vmem:[%s4535 + $0x2d2] sm:$0xff]
        %v5344 = vld [vmem:[%s4535 + $0x2e2] sm:$0xff]
        %v5345 = vld [vmem:[%s4535 + $0x2f2] sm:$0xff]
        %v5346 = vld [vmem:[%s4535 + $0x322] sm:$0xff]
        %v5347 = vld [vmem:[%s4535 + $0x332] sm:$0xff]
        %v5348 = vld [vmem:[%s4535 + $0x342] sm:$0xff]
        %v5349 = vld [vmem:[%s4535 + $0x352] sm:$0xff]
        %v5350 = vld [vmem:[%s4535 + $0x362] sm:$0xff]
        %v5351 = vld [vmem:[%s4535 + $0x372] sm:$0xff]
        %v5352 = vld [vmem:[%s4535 + $0x382] sm:$0xff]
        %v5353 = vld [vmem:[%s4535 + $0x392] sm:$0xff]
        %v5354 = vld [vmem:[%s4535 + $0x3c2] sm:$0xff]
        %v5355 = vld [vmem:[%s4535 + $0x3d2] sm:$0xff]
        %v5356 = vld [vmem:[%s4535 + $0x3e2] sm:$0xff]
        %v5357 = vld [vmem:[%s4535 + $0x3f2] sm:$0xff]
        %v5358 = vld [vmem:[%s4535 + $0x402] sm:$0xff]
        %v5359 = vld [vmem:[%s4535 + $0x412] sm:$0xff]
        %v5360 = vld [vmem:[%s4535 + $0x422] sm:$0xff]
        %v5361 = vld [vmem:[%s4535 + $0x432] sm:$0xff]
        %v5362 = vld [vmem:[%s4535 + $0x462] sm:$0xff]
        %v5363 = vld [vmem:[%s4535 + $0x472] sm:$0xff]
        %v5364 = vld [vmem:[%s4535 + $0x482] sm:$0xff]
        %v5365 = vld [vmem:[%s4535 + $0x492] sm:$0xff]
        %v5366 = vld [vmem:[%s4535 + $0x4a2] sm:$0xff]
        %v5367 = vld [vmem:[%s4535 + $0x4b2] sm:$0xff]
        %v5368 = vld [vmem:[%s4535 + $0x4c2] sm:$0xff]
        %v5369 = vld [vmem:[%s4535 + $0x4d2] sm:$0xff]
        %5434 = vrot.lane.b32.xlu0 %v5306, 112
        %v5435 = vpop.permute.xlu0 %5434
        %5436 = vrot.lane.b32.xlu0 %v5307, 112
        %v5437 = vpop.permute.xlu0 %5436
        %5438 = vrot.lane.b32.xlu0 %v5308, 112
        %v5439 = vpop.permute.xlu0 %5438
        %5440 = vrot.lane.b32.xlu0 %v5309, 112
        %v5441 = vpop.permute.xlu0 %5440
        %5442 = vrot.lane.b32.xlu0 %v5310, 112
        %v5443 = vpop.permute.xlu0 %5442
        %5444 = vrot.lane.b32.xlu0 %v5311, 112
        %v5445 = vpop.permute.xlu0 %5444
        %5446 = vrot.lane.b32.xlu0 %v5312, 112
        %v5447 = vpop.permute.xlu0 %5446
        %5448 = vrot.lane.b32.xlu0 %v5313, 112
        %v5449 = vpop.permute.xlu0 %5448
        %5450 = vrot.lane.b32.xlu0 %v5314, 112
        %v5451 = vpop.permute.xlu0 %5450
        %5452 = vrot.lane.b32.xlu0 %v5315, 112
        %v5453 = vpop.permute.xlu0 %5452
        %5454 = vrot.lane.b32.xlu0 %v5316, 112
        %v5455 = vpop.permute.xlu0 %5454
        %5456 = vrot.lane.b32.xlu0 %v5317, 112
        %v5457 = vpop.permute.xlu0 %5456
        %5458 = vrot.lane.b32.xlu0 %v5318, 112
        %v5459 = vpop.permute.xlu0 %5458
        %5460 = vrot.lane.b32.xlu0 %v5319, 112
        %v5461 = vpop.permute.xlu0 %5460
        %5462 = vrot.lane.b32.xlu0 %v5320, 112
        %v5463 = vpop.permute.xlu0 %5462
        %5464 = vrot.lane.b32.xlu0 %v5321, 112
        %v5465 = vpop.permute.xlu0 %5464
        %5466 = vrot.lane.b32.xlu0 %v5322, 112
        %v5467 = vpop.permute.xlu0 %5466
        %5468 = vrot.lane.b32.xlu0 %v5323, 112
        %v5469 = vpop.permute.xlu0 %5468
        %5470 = vrot.lane.b32.xlu0 %v5324, 112
        %v5471 = vpop.permute.xlu0 %5470
        %5472 = vrot.lane.b32.xlu0 %v5325, 112
        %v5473 = vpop.permute.xlu0 %5472
        %5474 = vrot.lane.b32.xlu0 %v5326, 112
        %v5475 = vpop.permute.xlu0 %5474
        %5476 = vrot.lane.b32.xlu0 %v5327, 112
        %v5477 = vpop.permute.xlu0 %5476
        %5478 = vrot.lane.b32.xlu0 %v5328, 112
        %v5479 = vpop.permute.xlu0 %5478
        %5480 = vrot.lane.b32.xlu0 %v5329, 112
        %v5481 = vpop.permute.xlu0 %5480
        %5482 = vrot.lane.b32.xlu0 %v5330, 112
        %v5483 = vpop.permute.xlu0 %5482
        %5484 = vrot.lane.b32.xlu0 %v5331, 112
        %v5485 = vpop.permute.xlu0 %5484
        %5486 = vrot.lane.b32.xlu0 %v5332, 112
        %v5487 = vpop.permute.xlu0 %5486
        %5488 = vrot.lane.b32.xlu0 %v5333, 112
        %v5489 = vpop.permute.xlu0 %5488
        %5490 = vrot.lane.b32.xlu0 %v5334, 112
        %v5491 = vpop.permute.xlu0 %5490
        %5492 = vrot.lane.b32.xlu0 %v5335, 112
        %v5493 = vpop.permute.xlu0 %5492
        %5494 = vrot.lane.b32.xlu0 %v5336, 112
        %v5495 = vpop.permute.xlu0 %5494
        %5496 = vrot.lane.b32.xlu0 %v5337, 112
        %v5497 = vpop.permute.xlu0 %5496
        %5498 = vrot.lane.b32.xlu0 %v5338, 112
        %v5499 = vpop.permute.xlu0 %5498
        %5500 = vrot.lane.b32.xlu0 %v5339, 112
        %v5501 = vpop.permute.xlu0 %5500
        %5502 = vrot.lane.b32.xlu0 %v5340, 112
        %v5503 = vpop.permute.xlu0 %5502
        %5504 = vrot.lane.b32.xlu0 %v5341, 112
        %v5505 = vpop.permute.xlu0 %5504
        %5506 = vrot.lane.b32.xlu0 %v5342, 112
        %v5507 = vpop.permute.xlu0 %5506
        %5508 = vrot.lane.b32.xlu0 %v5343, 112
        %v5509 = vpop.permute.xlu0 %5508
        %5510 = vrot.lane.b32.xlu0 %v5344, 112
        %v5511 = vpop.permute.xlu0 %5510
        %5512 = vrot.lane.b32.xlu0 %v5345, 112
        %v5513 = vpop.permute.xlu0 %5512
        %5514 = vrot.lane.b32.xlu0 %v5346, 112
        %v5515 = vpop.permute.xlu0 %5514
        %5516 = vrot.lane.b32.xlu0 %v5347, 112
        %v5517 = vpop.permute.xlu0 %5516
        %5518 = vrot.lane.b32.xlu0 %v5348, 112
        %v5519 = vpop.permute.xlu0 %5518
        %5520 = vrot.lane.b32.xlu0 %v5349, 112
        %v5521 = vpop.permute.xlu0 %5520
        %5522 = vrot.lane.b32.xlu0 %v5350, 112
        %v5523 = vpop.permute.xlu0 %5522
        %5524 = vrot.lane.b32.xlu0 %v5351, 112
        %v5525 = vpop.permute.xlu0 %5524
        %5526 = vrot.lane.b32.xlu0 %v5352, 112
        %v5527 = vpop.permute.xlu0 %5526
        %5528 = vrot.lane.b32.xlu0 %v5353, 112
        %v5529 = vpop.permute.xlu0 %5528
        %5530 = vrot.lane.b32.xlu0 %v5354, 112
        %v5531 = vpop.permute.xlu0 %5530
        %5532 = vrot.lane.b32.xlu0 %v5355, 112
        %v5533 = vpop.permute.xlu0 %5532
        %5534 = vrot.lane.b32.xlu0 %v5356, 112
        %v5535 = vpop.permute.xlu0 %5534
        %5536 = vrot.lane.b32.xlu0 %v5357, 112
        %v5537 = vpop.permute.xlu0 %5536
        %5538 = vrot.lane.b32.xlu0 %v5358, 112
        %v5539 = vpop.permute.xlu0 %5538
        %5540 = vrot.lane.b32.xlu0 %v5359, 112
        %v5541 = vpop.permute.xlu0 %5540
        %5542 = vrot.lane.b32.xlu0 %v5360, 112
        %v5543 = vpop.permute.xlu0 %5542
        %5544 = vrot.lane.b32.xlu0 %v5361, 112
        %v5545 = vpop.permute.xlu0 %5544
        %5546 = vrot.lane.b32.xlu0 %v5362, 112
        %v5547 = vpop.permute.xlu0 %5546
        %5548 = vrot.lane.b32.xlu0 %v5363, 112
        %v5549 = vpop.permute.xlu0 %5548
        %5550 = vrot.lane.b32.xlu0 %v5364, 112
        %v5551 = vpop.permute.xlu0 %5550
        %5552 = vrot.lane.b32.xlu0 %v5365, 112
        %v5553 = vpop.permute.xlu0 %5552
        %5554 = vrot.lane.b32.xlu0 %v5366, 112
        %v5555 = vpop.permute.xlu0 %5554
        %5556 = vrot.lane.b32.xlu0 %v5367, 112
        %v5557 = vpop.permute.xlu0 %5556
        %5558 = vrot.lane.b32.xlu0 %v5368, 112
        %v5559 = vpop.permute.xlu0 %5558
        %5560 = vrot.lane.b32.xlu0 %v5369, 112
        %v5561 = vpop.permute.xlu0 %5560
        %vm5626 = vcmask 982912
        %5627 = vst.msk [vmem:[#allocation2] sm:$0xff] %vm5626, %v5435
        %5628 = vst.msk [vmem:[#allocation2 + $0x10] sm:$0xff] %vm5626, %v5437
        %5629 = vst.msk [vmem:[#allocation2 + $0x20] sm:$0xff] %vm5626, %v5439
        %5630 = vst.msk [vmem:[#allocation2 + $0x30] sm:$0xff] %vm5626, %v5441
        %5631 = vst.msk [vmem:[#allocation2 + $0x40] sm:$0xff] %vm5626, %v5443
        %5632 = vst.msk [vmem:[#allocation2 + $0x50] sm:$0xff] %vm5626, %v5445
        %5633 = vst.msk [vmem:[#allocation2 + $0x60] sm:$0xff] %vm5626, %v5447
        %5634 = vst.msk [vmem:[#allocation2 + $0x70] sm:$0xff] %vm5626, %v5449
        %5635 = vst.msk [vmem:[#allocation2 + $0x80] sm:$0xff] %vm5626, %v5451
        %5636 = vst.msk [vmem:[#allocation2 + $0x90] sm:$0xff] %vm5626, %v5453
        %5637 = vst.msk [vmem:[#allocation2 + $0xa0] sm:$0xff] %vm5626, %v5455
        %5638 = vst.msk [vmem:[#allocation2 + $0xb0] sm:$0xff] %vm5626, %v5457
        %5639 = vst.msk [vmem:[#allocation2 + $0xc0] sm:$0xff] %vm5626, %v5459
        %5640 = vst.msk [vmem:[#allocation2 + $0xd0] sm:$0xff] %vm5626, %v5461
        %5641 = vst.msk [vmem:[#allocation2 + $0xe0] sm:$0xff] %vm5626, %v5463
        %5642 = vst.msk [vmem:[#allocation2 + $0xf0] sm:$0xff] %vm5626, %v5465
        %5643 = vst.msk [vmem:[#allocation2 + $0x100] sm:$0xff] %vm5626, %v5467
        %5644 = vst.msk [vmem:[#allocation2 + $0x110] sm:$0xff] %vm5626, %v5469
        %5645 = vst.msk [vmem:[#allocation2 + $0x120] sm:$0xff] %vm5626, %v5471
        %5646 = vst.msk [vmem:[#allocation2 + $0x130] sm:$0xff] %vm5626, %v5473
        %5647 = vst.msk [vmem:[#allocation2 + $0x140] sm:$0xff] %vm5626, %v5475
        %5648 = vst.msk [vmem:[#allocation2 + $0x150] sm:$0xff] %vm5626, %v5477
        %5649 = vst.msk [vmem:[#allocation2 + $0x160] sm:$0xff] %vm5626, %v5479
        %5650 = vst.msk [vmem:[#allocation2 + $0x170] sm:$0xff] %vm5626, %v5481
        %5651 = vst.msk [vmem:[#allocation2 + $0x180] sm:$0xff] %vm5626, %v5483
        %5652 = vst.msk [vmem:[#allocation2 + $0x190] sm:$0xff] %vm5626, %v5485
        %5653 = vst.msk [vmem:[#allocation2 + $0x1a0] sm:$0xff] %vm5626, %v5487
        %5654 = vst.msk [vmem:[#allocation2 + $0x1b0] sm:$0xff] %vm5626, %v5489
        %5655 = vst.msk [vmem:[#allocation2 + $0x1c0] sm:$0xff] %vm5626, %v5491
        %5656 = vst.msk [vmem:[#allocation2 + $0x1d0] sm:$0xff] %vm5626, %v5493
        %5657 = vst.msk [vmem:[#allocation2 + $0x1e0] sm:$0xff] %vm5626, %v5495
        %5658 = vst.msk [vmem:[#allocation2 + $0x1f0] sm:$0xff] %vm5626, %v5497
        %5659 = vst.msk [vmem:[#allocation2 + $0x200] sm:$0xff] %vm5626, %v5499
        %5660 = vst.msk [vmem:[#allocation2 + $0x210] sm:$0xff] %vm5626, %v5501
        %5661 = vst.msk [vmem:[#allocation2 + $0x220] sm:$0xff] %vm5626, %v5503
        %5662 = vst.msk [vmem:[#allocation2 + $0x230] sm:$0xff] %vm5626, %v5505
        %5663 = vst.msk [vmem:[#allocation2 + $0x240] sm:$0xff] %vm5626, %v5507
        %5664 = vst.msk [vmem:[#allocation2 + $0x250] sm:$0xff] %vm5626, %v5509
        %5665 = vst.msk [vmem:[#allocation2 + $0x260] sm:$0xff] %vm5626, %v5511
        %5666 = vst.msk [vmem:[#allocation2 + $0x270] sm:$0xff] %vm5626, %v5513
        %5667 = vst.msk [vmem:[#allocation2 + $0x280] sm:$0xff] %vm5626, %v5515
        %5668 = vst.msk [vmem:[#allocation2 + $0x290] sm:$0xff] %vm5626, %v5517
        %5669 = vst.msk [vmem:[#allocation2 + $0x2a0] sm:$0xff] %vm5626, %v5519
        %5670 = vst.msk [vmem:[#allocation2 + $0x2b0] sm:$0xff] %vm5626, %v5521
        %5671 = vst.msk [vmem:[#allocation2 + $0x2c0] sm:$0xff] %vm5626, %v5523
        %5672 = vst.msk [vmem:[#allocation2 + $0x2d0] sm:$0xff] %vm5626, %v5525
        %5673 = vst.msk [vmem:[#allocation2 + $0x2e0] sm:$0xff] %vm5626, %v5527
        %5674 = vst.msk [vmem:[#allocation2 + $0x2f0] sm:$0xff] %vm5626, %v5529
        %5675 = vst.msk [vmem:[#allocation2 + $0x300] sm:$0xff] %vm5626, %v5531
        %5676 = vst.msk [vmem:[#allocation2 + $0x310] sm:$0xff] %vm5626, %v5533
        %5677 = vst.msk [vmem:[#allocation2 + $0x320] sm:$0xff] %vm5626, %v5535
        %5678 = vst.msk [vmem:[#allocation2 + $0x330] sm:$0xff] %vm5626, %v5537
        %5679 = vst.msk [vmem:[#allocation2 + $0x340] sm:$0xff] %vm5626, %v5539
        %5680 = vst.msk [vmem:[#allocation2 + $0x350] sm:$0xff] %vm5626, %v5541
        %5681 = vst.msk [vmem:[#allocation2 + $0x360] sm:$0xff] %vm5626, %v5543
        %5682 = vst.msk [vmem:[#allocation2 + $0x370] sm:$0xff] %vm5626, %v5545
        %5683 = vst.msk [vmem:[#allocation2 + $0x380] sm:$0xff] %vm5626, %v5547
        %5684 = vst.msk [vmem:[#allocation2 + $0x390] sm:$0xff] %vm5626, %v5549
        %5685 = vst.msk [vmem:[#allocation2 + $0x3a0] sm:$0xff] %vm5626, %v5551
        %5686 = vst.msk [vmem:[#allocation2 + $0x3b0] sm:$0xff] %vm5626, %v5553
        %5687 = vst.msk [vmem:[#allocation2 + $0x3c0] sm:$0xff] %vm5626, %v5555
        %5688 = vst.msk [vmem:[#allocation2 + $0x3d0] sm:$0xff] %vm5626, %v5557
        %5689 = vst.msk [vmem:[#allocation2 + $0x3e0] sm:$0xff] %vm5626, %v5559
        %5690 = vst.msk [vmem:[#allocation2 + $0x3f0] sm:$0xff] %vm5626, %v5561
        %s5691 = scalar_lea.vmem %s167, 192
        %v5692 = vld [vmem:[%s5691] sm:$0xff]
        %v5693 = vld [vmem:[%s5691 + $0x10] sm:$0xff]
        %v5694 = vld [vmem:[%s5691 + $0x20] sm:$0xff]
        %v5695 = vld [vmem:[%s5691 + $0x30] sm:$0xff]
        %v5696 = vld [vmem:[%s5691 + $0x40] sm:$0xff]
        %v5697 = vld [vmem:[%s5691 + $0x50] sm:$0xff]
        %v5698 = vld [vmem:[%s5691 + $0x60] sm:$0xff]
        %v5699 = vld [vmem:[%s5691 + $0x70] sm:$0xff]
        %v5700 = vld [vmem:[%s5691 + $0xa0] sm:$0xff]
        %v5701 = vld [vmem:[%s5691 + $0xb0] sm:$0xff]
        %v5702 = vld [vmem:[%s5691 + $0xc0] sm:$0xff]
        %v5703 = vld [vmem:[%s5691 + $0xd0] sm:$0xff]
        %v5704 = vld [vmem:[%s5691 + $0xe0] sm:$0xff]
        %v5705 = vld [vmem:[%s5691 + $0xf0] sm:$0xff]
        %v5706 = vld [vmem:[%s5691 + $0x100] sm:$0xff]
        %v5707 = vld [vmem:[%s5691 + $0x110] sm:$0xff]
        %v5708 = vld [vmem:[%s5691 + $0x140] sm:$0xff]
        %v5709 = vld [vmem:[%s5691 + $0x150] sm:$0xff]
        %v5710 = vld [vmem:[%s5691 + $0x160] sm:$0xff]
        %v5711 = vld [vmem:[%s5691 + $0x170] sm:$0xff]
        %v5712 = vld [vmem:[%s5691 + $0x180] sm:$0xff]
        %v5713 = vld [vmem:[%s5691 + $0x190] sm:$0xff]
        %v5714 = vld [vmem:[%s5691 + $0x1a0] sm:$0xff]
        %v5715 = vld [vmem:[%s5691 + $0x1b0] sm:$0xff]
        %v5716 = vld [vmem:[%s5691 + $0x1e0] sm:$0xff]
        %v5717 = vld [vmem:[%s5691 + $0x1f0] sm:$0xff]
        %v5718 = vld [vmem:[%s5691 + $0x200] sm:$0xff]
        %v5719 = vld [vmem:[%s5691 + $0x210] sm:$0xff]
        %v5720 = vld [vmem:[%s5691 + $0x220] sm:$0xff]
        %v5721 = vld [vmem:[%s5691 + $0x230] sm:$0xff]
        %v5722 = vld [vmem:[%s5691 + $0x240] sm:$0xff]
        %v5723 = vld [vmem:[%s5691 + $0x250] sm:$0xff]
        %v5724 = vld [vmem:[%s5691 + $0x280] sm:$0xff]
        %v5725 = vld [vmem:[%s5691 + $0x290] sm:$0xff]
        %v5726 = vld [vmem:[%s5691 + $0x2a0] sm:$0xff]
        %v5727 = vld [vmem:[%s5691 + $0x2b0] sm:$0xff]
        %v5728 = vld [vmem:[%s5691 + $0x2c0] sm:$0xff]
        %v5729 = vld [vmem:[%s5691 + $0x2d0] sm:$0xff]
        %v5730 = vld [vmem:[%s5691 + $0x2e0] sm:$0xff]
        %v5731 = vld [vmem:[%s5691 + $0x2f0] sm:$0xff]
        %v5732 = vld [vmem:[%s5691 + $0x320] sm:$0xff]
        %v5733 = vld [vmem:[%s5691 + $0x330] sm:$0xff]
        %v5734 = vld [vmem:[%s5691 + $0x340] sm:$0xff]
        %v5735 = vld [vmem:[%s5691 + $0x350] sm:$0xff]
        %v5736 = vld [vmem:[%s5691 + $0x360] sm:$0xff]
        %v5737 = vld [vmem:[%s5691 + $0x370] sm:$0xff]
        %v5738 = vld [vmem:[%s5691 + $0x380] sm:$0xff]
        %v5739 = vld [vmem:[%s5691 + $0x390] sm:$0xff]
        %v5740 = vld [vmem:[%s5691 + $0x3c0] sm:$0xff]
        %v5741 = vld [vmem:[%s5691 + $0x3d0] sm:$0xff]
        %v5742 = vld [vmem:[%s5691 + $0x3e0] sm:$0xff]
        %v5743 = vld [vmem:[%s5691 + $0x3f0] sm:$0xff]
        %v5744 = vld [vmem:[%s5691 + $0x400] sm:$0xff]
        %v5745 = vld [vmem:[%s5691 + $0x410] sm:$0xff]
        %v5746 = vld [vmem:[%s5691 + $0x420] sm:$0xff]
        %v5747 = vld [vmem:[%s5691 + $0x430] sm:$0xff]
        %v5748 = vld [vmem:[%s5691 + $0x460] sm:$0xff]
        %v5749 = vld [vmem:[%s5691 + $0x470] sm:$0xff]
        %v5750 = vld [vmem:[%s5691 + $0x480] sm:$0xff]
        %v5751 = vld [vmem:[%s5691 + $0x490] sm:$0xff]
        %v5752 = vld [vmem:[%s5691 + $0x4a0] sm:$0xff]
        %v5753 = vld [vmem:[%s5691 + $0x4b0] sm:$0xff]
        %v5754 = vld [vmem:[%s5691 + $0x4c0] sm:$0xff]
        %v5755 = vld [vmem:[%s5691 + $0x4d0] sm:$0xff]
        %5820 = vrot.lane.b32.xlu0 %v5692, 120
        %v5821 = vpop.permute.xlu0 %5820
        %5822 = vrot.lane.b32.xlu0 %v5693, 120
        %v5823 = vpop.permute.xlu0 %5822
        %5824 = vrot.lane.b32.xlu0 %v5694, 120
        %v5825 = vpop.permute.xlu0 %5824
        %5826 = vrot.lane.b32.xlu0 %v5695, 120
        %v5827 = vpop.permute.xlu0 %5826
        %5828 = vrot.lane.b32.xlu0 %v5696, 120
        %v5829 = vpop.permute.xlu0 %5828
        %5830 = vrot.lane.b32.xlu0 %v5697, 120
        %v5831 = vpop.permute.xlu0 %5830
        %5832 = vrot.lane.b32.xlu0 %v5698, 120
        %v5833 = vpop.permute.xlu0 %5832
        %5834 = vrot.lane.b32.xlu0 %v5699, 120
        %v5835 = vpop.permute.xlu0 %5834
        %5836 = vrot.lane.b32.xlu0 %v5700, 120
        %v5837 = vpop.permute.xlu0 %5836
        %5838 = vrot.lane.b32.xlu0 %v5701, 120
        %v5839 = vpop.permute.xlu0 %5838
        %5840 = vrot.lane.b32.xlu0 %v5702, 120
        %v5841 = vpop.permute.xlu0 %5840
        %5842 = vrot.lane.b32.xlu0 %v5703, 120
        %v5843 = vpop.permute.xlu0 %5842
        %5844 = vrot.lane.b32.xlu0 %v5704, 120
        %v5845 = vpop.permute.xlu0 %5844
        %5846 = vrot.lane.b32.xlu0 %v5705, 120
        %v5847 = vpop.permute.xlu0 %5846
        %5848 = vrot.lane.b32.xlu0 %v5706, 120
        %v5849 = vpop.permute.xlu0 %5848
        %5850 = vrot.lane.b32.xlu0 %v5707, 120
        %v5851 = vpop.permute.xlu0 %5850
        %5852 = vrot.lane.b32.xlu0 %v5708, 120
        %v5853 = vpop.permute.xlu0 %5852
        %5854 = vrot.lane.b32.xlu0 %v5709, 120
        %v5855 = vpop.permute.xlu0 %5854
        %5856 = vrot.lane.b32.xlu0 %v5710, 120
        %v5857 = vpop.permute.xlu0 %5856
        %5858 = vrot.lane.b32.xlu0 %v5711, 120
        %v5859 = vpop.permute.xlu0 %5858
        %5860 = vrot.lane.b32.xlu0 %v5712, 120
        %v5861 = vpop.permute.xlu0 %5860
        %5862 = vrot.lane.b32.xlu0 %v5713, 120
        %v5863 = vpop.permute.xlu0 %5862
        %5864 = vrot.lane.b32.xlu0 %v5714, 120
        %v5865 = vpop.permute.xlu0 %5864
        %5866 = vrot.lane.b32.xlu0 %v5715, 120
        %v5867 = vpop.permute.xlu0 %5866
        %5868 = vrot.lane.b32.xlu0 %v5716, 120
        %v5869 = vpop.permute.xlu0 %5868
        %5870 = vrot.lane.b32.xlu0 %v5717, 120
        %v5871 = vpop.permute.xlu0 %5870
        %5872 = vrot.lane.b32.xlu0 %v5718, 120
        %v5873 = vpop.permute.xlu0 %5872
        %5874 = vrot.lane.b32.xlu0 %v5719, 120
        %v5875 = vpop.permute.xlu0 %5874
        %5876 = vrot.lane.b32.xlu0 %v5720, 120
        %v5877 = vpop.permute.xlu0 %5876
        %5878 = vrot.lane.b32.xlu0 %v5721, 120
        %v5879 = vpop.permute.xlu0 %5878
        %5880 = vrot.lane.b32.xlu0 %v5722, 120
        %v5881 = vpop.permute.xlu0 %5880
        %5882 = vrot.lane.b32.xlu0 %v5723, 120
        %v5883 = vpop.permute.xlu0 %5882
        %5884 = vrot.lane.b32.xlu0 %v5724, 120
        %v5885 = vpop.permute.xlu0 %5884
        %5886 = vrot.lane.b32.xlu0 %v5725, 120
        %v5887 = vpop.permute.xlu0 %5886
        %5888 = vrot.lane.b32.xlu0 %v5726, 120
        %v5889 = vpop.permute.xlu0 %5888
        %5890 = vrot.lane.b32.xlu0 %v5727, 120
        %v5891 = vpop.permute.xlu0 %5890
        %5892 = vrot.lane.b32.xlu0 %v5728, 120
        %v5893 = vpop.permute.xlu0 %5892
        %5894 = vrot.lane.b32.xlu0 %v5729, 120
        %v5895 = vpop.permute.xlu0 %5894
        %5896 = vrot.lane.b32.xlu0 %v5730, 120
        %v5897 = vpop.permute.xlu0 %5896
        %5898 = vrot.lane.b32.xlu0 %v5731, 120
        %v5899 = vpop.permute.xlu0 %5898
        %5900 = vrot.lane.b32.xlu0 %v5732, 120
        %v5901 = vpop.permute.xlu0 %5900
        %5902 = vrot.lane.b32.xlu0 %v5733, 120
        %v5903 = vpop.permute.xlu0 %5902
        %5904 = vrot.lane.b32.xlu0 %v5734, 120
        %v5905 = vpop.permute.xlu0 %5904
        %5906 = vrot.lane.b32.xlu0 %v5735, 120
        %v5907 = vpop.permute.xlu0 %5906
        %5908 = vrot.lane.b32.xlu0 %v5736, 120
        %v5909 = vpop.permute.xlu0 %5908
        %5910 = vrot.lane.b32.xlu0 %v5737, 120
        %v5911 = vpop.permute.xlu0 %5910
        %5912 = vrot.lane.b32.xlu0 %v5738, 120
        %v5913 = vpop.permute.xlu0 %5912
        %5914 = vrot.lane.b32.xlu0 %v5739, 120
        %v5915 = vpop.permute.xlu0 %5914
        %5916 = vrot.lane.b32.xlu0 %v5740, 120
        %v5917 = vpop.permute.xlu0 %5916
        %5918 = vrot.lane.b32.xlu0 %v5741, 120
        %v5919 = vpop.permute.xlu0 %5918
        %5920 = vrot.lane.b32.xlu0 %v5742, 120
        %v5921 = vpop.permute.xlu0 %5920
        %5922 = vrot.lane.b32.xlu0 %v5743, 120
        %v5923 = vpop.permute.xlu0 %5922
        %5924 = vrot.lane.b32.xlu0 %v5744, 120
        %v5925 = vpop.permute.xlu0 %5924
        %5926 = vrot.lane.b32.xlu0 %v5745, 120
        %v5927 = vpop.permute.xlu0 %5926
        %5928 = vrot.lane.b32.xlu0 %v5746, 120
        %v5929 = vpop.permute.xlu0 %5928
        %5930 = vrot.lane.b32.xlu0 %v5747, 120
        %v5931 = vpop.permute.xlu0 %5930
        %5932 = vrot.lane.b32.xlu0 %v5748, 120
        %v5933 = vpop.permute.xlu0 %5932
        %5934 = vrot.lane.b32.xlu0 %v5749, 120
        %v5935 = vpop.permute.xlu0 %5934
        %5936 = vrot.lane.b32.xlu0 %v5750, 120
        %v5937 = vpop.permute.xlu0 %5936
        %5938 = vrot.lane.b32.xlu0 %v5751, 120
        %v5939 = vpop.permute.xlu0 %5938
        %5940 = vrot.lane.b32.xlu0 %v5752, 120
        %v5941 = vpop.permute.xlu0 %5940
        %5942 = vrot.lane.b32.xlu0 %v5753, 120
        %v5943 = vpop.permute.xlu0 %5942
        %5944 = vrot.lane.b32.xlu0 %v5754, 120
        %v5945 = vpop.permute.xlu0 %5944
        %5946 = vrot.lane.b32.xlu0 %v5755, 120
        %v5947 = vpop.permute.xlu0 %5946
        %vm6012 = vcmask 1048512
        %6013 = vst.msk [vmem:[#allocation2] sm:$0xff] %vm6012, %v5821
        %6014 = vst.msk [vmem:[#allocation2 + $0x10] sm:$0xff] %vm6012, %v5823
        %6015 = vst.msk [vmem:[#allocation2 + $0x20] sm:$0xff] %vm6012, %v5825
        %6016 = vst.msk [vmem:[#allocation2 + $0x30] sm:$0xff] %vm6012, %v5827
        %6017 = vst.msk [vmem:[#allocation2 + $0x40] sm:$0xff] %vm6012, %v5829
        %6018 = vst.msk [vmem:[#allocation2 + $0x50] sm:$0xff] %vm6012, %v5831
        %6019 = vst.msk [vmem:[#allocation2 + $0x60] sm:$0xff] %vm6012, %v5833
        %6020 = vst.msk [vmem:[#allocation2 + $0x70] sm:$0xff] %vm6012, %v5835
        %6021 = vst.msk [vmem:[#allocation2 + $0x80] sm:$0xff] %vm6012, %v5837
        %6022 = vst.msk [vmem:[#allocation2 + $0x90] sm:$0xff] %vm6012, %v5839
        %6023 = vst.msk [vmem:[#allocation2 + $0xa0] sm:$0xff] %vm6012, %v5841
        %6024 = vst.msk [vmem:[#allocation2 + $0xb0] sm:$0xff] %vm6012, %v5843
        %6025 = vst.msk [vmem:[#allocation2 + $0xc0] sm:$0xff] %vm6012, %v5845
        %6026 = vst.msk [vmem:[#allocation2 + $0xd0] sm:$0xff] %vm6012, %v5847
        %6027 = vst.msk [vmem:[#allocation2 + $0xe0] sm:$0xff] %vm6012, %v5849
        %6028 = vst.msk [vmem:[#allocation2 + $0xf0] sm:$0xff] %vm6012, %v5851
        %6029 = vst.msk [vmem:[#allocation2 + $0x100] sm:$0xff] %vm6012, %v5853
        %6030 = vst.msk [vmem:[#allocation2 + $0x110] sm:$0xff] %vm6012, %v5855
        %6031 = vst.msk [vmem:[#allocation2 + $0x120] sm:$0xff] %vm6012, %v5857
        %6032 = vst.msk [vmem:[#allocation2 + $0x130] sm:$0xff] %vm6012, %v5859
        %6033 = vst.msk [vmem:[#allocation2 + $0x140] sm:$0xff] %vm6012, %v5861
        %6034 = vst.msk [vmem:[#allocation2 + $0x150] sm:$0xff] %vm6012, %v5863
        %6035 = vst.msk [vmem:[#allocation2 + $0x160] sm:$0xff] %vm6012, %v5865
        %6036 = vst.msk [vmem:[#allocation2 + $0x170] sm:$0xff] %vm6012, %v5867
        %6037 = vst.msk [vmem:[#allocation2 + $0x180] sm:$0xff] %vm6012, %v5869
        %6038 = vst.msk [vmem:[#allocation2 + $0x190] sm:$0xff] %vm6012, %v5871
        %6039 = vst.msk [vmem:[#allocation2 + $0x1a0] sm:$0xff] %vm6012, %v5873
        %6040 = vst.msk [vmem:[#allocation2 + $0x1b0] sm:$0xff] %vm6012, %v5875
        %6041 = vst.msk [vmem:[#allocation2 + $0x1c0] sm:$0xff] %vm6012, %v5877
        %6042 = vst.msk [vmem:[#allocation2 + $0x1d0] sm:$0xff] %vm6012, %v5879
        %6043 = vst.msk [vmem:[#allocation2 + $0x1e0] sm:$0xff] %vm6012, %v5881
        %6044 = vst.msk [vmem:[#allocation2 + $0x1f0] sm:$0xff] %vm6012, %v5883
        %6045 = vst.msk [vmem:[#allocation2 + $0x200] sm:$0xff] %vm6012, %v5885
        %6046 = vst.msk [vmem:[#allocation2 + $0x210] sm:$0xff] %vm6012, %v5887
        %6047 = vst.msk [vmem:[#allocation2 + $0x220] sm:$0xff] %vm6012, %v5889
        %6048 = vst.msk [vmem:[#allocation2 + $0x230] sm:$0xff] %vm6012, %v5891
        %6049 = vst.msk [vmem:[#allocation2 + $0x240] sm:$0xff] %vm6012, %v5893
        %6050 = vst.msk [vmem:[#allocation2 + $0x250] sm:$0xff] %vm6012, %v5895
        %6051 = vst.msk [vmem:[#allocation2 + $0x260] sm:$0xff] %vm6012, %v5897
        %6052 = vst.msk [vmem:[#allocation2 + $0x270] sm:$0xff] %vm6012, %v5899
        %6053 = vst.msk [vmem:[#allocation2 + $0x280] sm:$0xff] %vm6012, %v5901
        %6054 = vst.msk [vmem:[#allocation2 + $0x290] sm:$0xff] %vm6012, %v5903
        %6055 = vst.msk [vmem:[#allocation2 + $0x2a0] sm:$0xff] %vm6012, %v5905
        %6056 = vst.msk [vmem:[#allocation2 + $0x2b0] sm:$0xff] %vm6012, %v5907
        %6057 = vst.msk [vmem:[#allocation2 + $0x2c0] sm:$0xff] %vm6012, %v5909
        %6058 = vst.msk [vmem:[#allocation2 + $0x2d0] sm:$0xff] %vm6012, %v5911
        %6059 = vst.msk [vmem:[#allocation2 + $0x2e0] sm:$0xff] %vm6012, %v5913
        %6060 = vst.msk [vmem:[#allocation2 + $0x2f0] sm:$0xff] %vm6012, %v5915
        %6061 = vst.msk [vmem:[#allocation2 + $0x300] sm:$0xff] %vm6012, %v5917
        %6062 = vst.msk [vmem:[#allocation2 + $0x310] sm:$0xff] %vm6012, %v5919
        %6063 = vst.msk [vmem:[#allocation2 + $0x320] sm:$0xff] %vm6012, %v5921
        %6064 = vst.msk [vmem:[#allocation2 + $0x330] sm:$0xff] %vm6012, %v5923
        %6065 = vst.msk [vmem:[#allocation2 + $0x340] sm:$0xff] %vm6012, %v5925
        %6066 = vst.msk [vmem:[#allocation2 + $0x350] sm:$0xff] %vm6012, %v5927
        %6067 = vst.msk [vmem:[#allocation2 + $0x360] sm:$0xff] %vm6012, %v5929
        %6068 = vst.msk [vmem:[#allocation2 + $0x370] sm:$0xff] %vm6012, %v5931
        %6069 = vst.msk [vmem:[#allocation2 + $0x380] sm:$0xff] %vm6012, %v5933
        %6070 = vst.msk [vmem:[#allocation2 + $0x390] sm:$0xff] %vm6012, %v5935
        %6071 = vst.msk [vmem:[#allocation2 + $0x3a0] sm:$0xff] %vm6012, %v5937
        %6072 = vst.msk [vmem:[#allocation2 + $0x3b0] sm:$0xff] %vm6012, %v5939
        %6073 = vst.msk [vmem:[#allocation2 + $0x3c0] sm:$0xff] %vm6012, %v5941
        %6074 = vst.msk [vmem:[#allocation2 + $0x3d0] sm:$0xff] %vm6012, %v5943
        %6075 = vst.msk [vmem:[#allocation2 + $0x3e0] sm:$0xff] %vm6012, %v5945
        %6076 = vst.msk [vmem:[#allocation2 + $0x3f0] sm:$0xff] %vm6012, %v5947
        %v6077 = vld [vmem:[%s5691 + $0x1] sm:$0xff]
        %v6078 = vld [vmem:[%s5691 + $0x11] sm:$0xff]
        %v6079 = vld [vmem:[%s5691 + $0x21] sm:$0xff]
        %v6080 = vld [vmem:[%s5691 + $0x31] sm:$0xff]
        %v6081 = vld [vmem:[%s5691 + $0x41] sm:$0xff]
        %v6082 = vld [vmem:[%s5691 + $0x51] sm:$0xff]
        %v6083 = vld [vmem:[%s5691 + $0x61] sm:$0xff]
        %v6084 = vld [vmem:[%s5691 + $0x71] sm:$0xff]
        %v6085 = vld [vmem:[%s5691 + $0xa1] sm:$0xff]
        %v6086 = vld [vmem:[%s5691 + $0xb1] sm:$0xff]
        %v6087 = vld [vmem:[%s5691 + $0xc1] sm:$0xff]
        %v6088 = vld [vmem:[%s5691 + $0xd1] sm:$0xff]
        %v6089 = vld [vmem:[%s5691 + $0xe1] sm:$0xff]
        %v6090 = vld [vmem:[%s5691 + $0xf1] sm:$0xff]
        %v6091 = vld [vmem:[%s5691 + $0x101] sm:$0xff]
        %v6092 = vld [vmem:[%s5691 + $0x111] sm:$0xff]
        %v6093 = vld [vmem:[%s5691 + $0x141] sm:$0xff]
        %v6094 = vld [vmem:[%s5691 + $0x151] sm:$0xff]
        %v6095 = vld [vmem:[%s5691 + $0x161] sm:$0xff]
        %v6096 = vld [vmem:[%s5691 + $0x171] sm:$0xff]
        %v6097 = vld [vmem:[%s5691 + $0x181] sm:$0xff]
        %v6098 = vld [vmem:[%s5691 + $0x191] sm:$0xff]
        %v6099 = vld [vmem:[%s5691 + $0x1a1] sm:$0xff]
        %v6100 = vld [vmem:[%s5691 + $0x1b1] sm:$0xff]
        %v6101 = vld [vmem:[%s5691 + $0x1e1] sm:$0xff]
        %v6102 = vld [vmem:[%s5691 + $0x1f1] sm:$0xff]
        %v6103 = vld [vmem:[%s5691 + $0x201] sm:$0xff]
        %v6104 = vld [vmem:[%s5691 + $0x211] sm:$0xff]
        %v6105 = vld [vmem:[%s5691 + $0x221] sm:$0xff]
        %v6106 = vld [vmem:[%s5691 + $0x231] sm:$0xff]
        %v6107 = vld [vmem:[%s5691 + $0x241] sm:$0xff]
        %v6108 = vld [vmem:[%s5691 + $0x251] sm:$0xff]
        %v6109 = vld [vmem:[%s5691 + $0x281] sm:$0xff]
        %v6110 = vld [vmem:[%s5691 + $0x291] sm:$0xff]
        %v6111 = vld [vmem:[%s5691 + $0x2a1] sm:$0xff]
        %v6112 = vld [vmem:[%s5691 + $0x2b1] sm:$0xff]
        %v6113 = vld [vmem:[%s5691 + $0x2c1] sm:$0xff]
        %v6114 = vld [vmem:[%s5691 + $0x2d1] sm:$0xff]
        %v6115 = vld [vmem:[%s5691 + $0x2e1] sm:$0xff]
        %v6116 = vld [vmem:[%s5691 + $0x2f1] sm:$0xff]
        %v6117 = vld [vmem:[%s5691 + $0x321] sm:$0xff]
        %v6118 = vld [vmem:[%s5691 + $0x331] sm:$0xff]
        %v6119 = vld [vmem:[%s5691 + $0x341] sm:$0xff]
        %v6120 = vld [vmem:[%s5691 + $0x351] sm:$0xff]
        %v6121 = vld [vmem:[%s5691 + $0x361] sm:$0xff]
        %v6122 = vld [vmem:[%s5691 + $0x371] sm:$0xff]
        %v6123 = vld [vmem:[%s5691 + $0x381] sm:$0xff]
        %v6124 = vld [vmem:[%s5691 + $0x391] sm:$0xff]
        %v6125 = vld [vmem:[%s5691 + $0x3c1] sm:$0xff]
        %v6126 = vld [vmem:[%s5691 + $0x3d1] sm:$0xff]
        %v6127 = vld [vmem:[%s5691 + $0x3e1] sm:$0xff]
        %v6128 = vld [vmem:[%s5691 + $0x3f1] sm:$0xff]
        %v6129 = vld [vmem:[%s5691 + $0x401] sm:$0xff]
        %v6130 = vld [vmem:[%s5691 + $0x411] sm:$0xff]
        %v6131 = vld [vmem:[%s5691 + $0x421] sm:$0xff]
        %v6132 = vld [vmem:[%s5691 + $0x431] sm:$0xff]
        %v6133 = vld [vmem:[%s5691 + $0x461] sm:$0xff]
        %v6134 = vld [vmem:[%s5691 + $0x471] sm:$0xff]
        %v6135 = vld [vmem:[%s5691 + $0x481] sm:$0xff]
        %v6136 = vld [vmem:[%s5691 + $0x491] sm:$0xff]
        %v6137 = vld [vmem:[%s5691 + $0x4a1] sm:$0xff]
        %v6138 = vld [vmem:[%s5691 + $0x4b1] sm:$0xff]
        %v6139 = vld [vmem:[%s5691 + $0x4c1] sm:$0xff]
        %v6140 = vld [vmem:[%s5691 + $0x4d1] sm:$0xff]
        %6141 = vst.msk [vmem:[#allocation2 + $0x8] sm:$0xff] %vm232, %v6077
        %6142 = vst.msk [vmem:[#allocation2 + $0x18] sm:$0xff] %vm232, %v6078
        %6143 = vst.msk [vmem:[#allocation2 + $0x28] sm:$0xff] %vm232, %v6079
        %6144 = vst.msk [vmem:[#allocation2 + $0x38] sm:$0xff] %vm232, %v6080
        %6145 = vst.msk [vmem:[#allocation2 + $0x48] sm:$0xff] %vm232, %v6081
        %6146 = vst.msk [vmem:[#allocation2 + $0x58] sm:$0xff] %vm232, %v6082
        %6147 = vst.msk [vmem:[#allocation2 + $0x68] sm:$0xff] %vm232, %v6083
        %6148 = vst.msk [vmem:[#allocation2 + $0x78] sm:$0xff] %vm232, %v6084
        %6149 = vst.msk [vmem:[#allocation2 + $0x88] sm:$0xff] %vm232, %v6085
        %6150 = vst.msk [vmem:[#allocation2 + $0x98] sm:$0xff] %vm232, %v6086
        %6151 = vst.msk [vmem:[#allocation2 + $0xa8] sm:$0xff] %vm232, %v6087
        %6152 = vst.msk [vmem:[#allocation2 + $0xb8] sm:$0xff] %vm232, %v6088
        %6153 = vst.msk [vmem:[#allocation2 + $0xc8] sm:$0xff] %vm232, %v6089
        %6154 = vst.msk [vmem:[#allocation2 + $0xd8] sm:$0xff] %vm232, %v6090
        %6155 = vst.msk [vmem:[#allocation2 + $0xe8] sm:$0xff] %vm232, %v6091
        %6156 = vst.msk [vmem:[#allocation2 + $0xf8] sm:$0xff] %vm232, %v6092
        %6157 = vst.msk [vmem:[#allocation2 + $0x108] sm:$0xff] %vm232, %v6093
        %6158 = vst.msk [vmem:[#allocation2 + $0x118] sm:$0xff] %vm232, %v6094
        %6159 = vst.msk [vmem:[#allocation2 + $0x128] sm:$0xff] %vm232, %v6095
        %6160 = vst.msk [vmem:[#allocation2 + $0x138] sm:$0xff] %vm232, %v6096
        %6161 = vst.msk [vmem:[#allocation2 + $0x148] sm:$0xff] %vm232, %v6097
        %6162 = vst.msk [vmem:[#allocation2 + $0x158] sm:$0xff] %vm232, %v6098
        %6163 = vst.msk [vmem:[#allocation2 + $0x168] sm:$0xff] %vm232, %v6099
        %6164 = vst.msk [vmem:[#allocation2 + $0x178] sm:$0xff] %vm232, %v6100
        %6165 = vst.msk [vmem:[#allocation2 + $0x188] sm:$0xff] %vm232, %v6101
        %6166 = vst.msk [vmem:[#allocation2 + $0x198] sm:$0xff] %vm232, %v6102
        %6167 = vst.msk [vmem:[#allocation2 + $0x1a8] sm:$0xff] %vm232, %v6103
        %6168 = vst.msk [vmem:[#allocation2 + $0x1b8] sm:$0xff] %vm232, %v6104
        %6169 = vst.msk [vmem:[#allocation2 + $0x1c8] sm:$0xff] %vm232, %v6105
        %6170 = vst.msk [vmem:[#allocation2 + $0x1d8] sm:$0xff] %vm232, %v6106
        %6171 = vst.msk [vmem:[#allocation2 + $0x1e8] sm:$0xff] %vm232, %v6107
        %6172 = vst.msk [vmem:[#allocation2 + $0x1f8] sm:$0xff] %vm232, %v6108
        %6173 = vst.msk [vmem:[#allocation2 + $0x208] sm:$0xff] %vm232, %v6109
        %6174 = vst.msk [vmem:[#allocation2 + $0x218] sm:$0xff] %vm232, %v6110
        %6175 = vst.msk [vmem:[#allocation2 + $0x228] sm:$0xff] %vm232, %v6111
        %6176 = vst.msk [vmem:[#allocation2 + $0x238] sm:$0xff] %vm232, %v6112
        %6177 = vst.msk [vmem:[#allocation2 + $0x248] sm:$0xff] %vm232, %v6113
        %6178 = vst.msk [vmem:[#allocation2 + $0x258] sm:$0xff] %vm232, %v6114
        %6179 = vst.msk [vmem:[#allocation2 + $0x268] sm:$0xff] %vm232, %v6115
        %6180 = vst.msk [vmem:[#allocation2 + $0x278] sm:$0xff] %vm232, %v6116
        %6181 = vst.msk [vmem:[#allocation2 + $0x288] sm:$0xff] %vm232, %v6117
        %6182 = vst.msk [vmem:[#allocation2 + $0x298] sm:$0xff] %vm232, %v6118
        %6183 = vst.msk [vmem:[#allocation2 + $0x2a8] sm:$0xff] %vm232, %v6119
        %6184 = vst.msk [vmem:[#allocation2 + $0x2b8] sm:$0xff] %vm232, %v6120
        %6185 = vst.msk [vmem:[#allocation2 + $0x2c8] sm:$0xff] %vm232, %v6121
        %6186 = vst.msk [vmem:[#allocation2 + $0x2d8] sm:$0xff] %vm232, %v6122
        %6187 = vst.msk [vmem:[#allocation2 + $0x2e8] sm:$0xff] %vm232, %v6123
        %6188 = vst.msk [vmem:[#allocation2 + $0x2f8] sm:$0xff] %vm232, %v6124
        %6189 = vst.msk [vmem:[#allocation2 + $0x308] sm:$0xff] %vm232, %v6125
        %6190 = vst.msk [vmem:[#allocation2 + $0x318] sm:$0xff] %vm232, %v6126
        %6191 = vst.msk [vmem:[#allocation2 + $0x328] sm:$0xff] %vm232, %v6127
        %6192 = vst.msk [vmem:[#allocation2 + $0x338] sm:$0xff] %vm232, %v6128
        %6193 = vst.msk [vmem:[#allocation2 + $0x348] sm:$0xff] %vm232, %v6129
        %6194 = vst.msk [vmem:[#allocation2 + $0x358] sm:$0xff] %vm232, %v6130
        %6195 = vst.msk [vmem:[#allocation2 + $0x368] sm:$0xff] %vm232, %v6131
        %6196 = vst.msk [vmem:[#allocation2 + $0x378] sm:$0xff] %vm232, %v6132
        %6197 = vst.msk [vmem:[#allocation2 + $0x388] sm:$0xff] %vm232, %v6133
        %6198 = vst.msk [vmem:[#allocation2 + $0x398] sm:$0xff] %vm232, %v6134
        %6199 = vst.msk [vmem:[#allocation2 + $0x3a8] sm:$0xff] %vm232, %v6135
        %6200 = vst.msk [vmem:[#allocation2 + $0x3b8] sm:$0xff] %vm232, %v6136
        %6201 = vst.msk [vmem:[#allocation2 + $0x3c8] sm:$0xff] %vm232, %v6137
        %6202 = vst.msk [vmem:[#allocation2 + $0x3d8] sm:$0xff] %vm232, %v6138
        %6203 = vst.msk [vmem:[#allocation2 + $0x3e8] sm:$0xff] %vm232, %v6139
        %6204 = vst.msk [vmem:[#allocation2 + $0x3f8] sm:$0xff] %vm232, %v6140
        %v6205 = vld [vmem:[%s5691 + $0x2] sm:$0xff]
        %v6206 = vld [vmem:[%s5691 + $0x12] sm:$0xff]
        %v6207 = vld [vmem:[%s5691 + $0x22] sm:$0xff]
        %v6208 = vld [vmem:[%s5691 + $0x32] sm:$0xff]
        %v6209 = vld [vmem:[%s5691 + $0x42] sm:$0xff]
        %v6210 = vld [vmem:[%s5691 + $0x52] sm:$0xff]
        %v6211 = vld [vmem:[%s5691 + $0x62] sm:$0xff]
        %v6212 = vld [vmem:[%s5691 + $0x72] sm:$0xff]
        %v6213 = vld [vmem:[%s5691 + $0xa2] sm:$0xff]
        %v6214 = vld [vmem:[%s5691 + $0xb2] sm:$0xff]
        %v6215 = vld [vmem:[%s5691 + $0xc2] sm:$0xff]
        %v6216 = vld [vmem:[%s5691 + $0xd2] sm:$0xff]
        %v6217 = vld [vmem:[%s5691 + $0xe2] sm:$0xff]
        %v6218 = vld [vmem:[%s5691 + $0xf2] sm:$0xff]
        %v6219 = vld [vmem:[%s5691 + $0x102] sm:$0xff]
        %v6220 = vld [vmem:[%s5691 + $0x112] sm:$0xff]
        %v6221 = vld [vmem:[%s5691 + $0x142] sm:$0xff]
        %v6222 = vld [vmem:[%s5691 + $0x152] sm:$0xff]
        %v6223 = vld [vmem:[%s5691 + $0x162] sm:$0xff]
        %v6224 = vld [vmem:[%s5691 + $0x172] sm:$0xff]
        %v6225 = vld [vmem:[%s5691 + $0x182] sm:$0xff]
        %v6226 = vld [vmem:[%s5691 + $0x192] sm:$0xff]
        %v6227 = vld [vmem:[%s5691 + $0x1a2] sm:$0xff]
        %v6228 = vld [vmem:[%s5691 + $0x1b2] sm:$0xff]
        %v6229 = vld [vmem:[%s5691 + $0x1e2] sm:$0xff]
        %v6230 = vld [vmem:[%s5691 + $0x1f2] sm:$0xff]
        %v6231 = vld [vmem:[%s5691 + $0x202] sm:$0xff]
        %v6232 = vld [vmem:[%s5691 + $0x212] sm:$0xff]
        %v6233 = vld [vmem:[%s5691 + $0x222] sm:$0xff]
        %v6234 = vld [vmem:[%s5691 + $0x232] sm:$0xff]
        %v6235 = vld [vmem:[%s5691 + $0x242] sm:$0xff]
        %v6236 = vld [vmem:[%s5691 + $0x252] sm:$0xff]
        %v6237 = vld [vmem:[%s5691 + $0x282] sm:$0xff]
        %v6238 = vld [vmem:[%s5691 + $0x292] sm:$0xff]
        %v6239 = vld [vmem:[%s5691 + $0x2a2] sm:$0xff]
        %v6240 = vld [vmem:[%s5691 + $0x2b2] sm:$0xff]
        %v6241 = vld [vmem:[%s5691 + $0x2c2] sm:$0xff]
        %v6242 = vld [vmem:[%s5691 + $0x2d2] sm:$0xff]
        %v6243 = vld [vmem:[%s5691 + $0x2e2] sm:$0xff]
        %v6244 = vld [vmem:[%s5691 + $0x2f2] sm:$0xff]
        %v6245 = vld [vmem:[%s5691 + $0x322] sm:$0xff]
        %v6246 = vld [vmem:[%s5691 + $0x332] sm:$0xff]
        %v6247 = vld [vmem:[%s5691 + $0x342] sm:$0xff]
        %v6248 = vld [vmem:[%s5691 + $0x352] sm:$0xff]
        %v6249 = vld [vmem:[%s5691 + $0x362] sm:$0xff]
        %v6250 = vld [vmem:[%s5691 + $0x372] sm:$0xff]
        %v6251 = vld [vmem:[%s5691 + $0x382] sm:$0xff]
        %v6252 = vld [vmem:[%s5691 + $0x392] sm:$0xff]
        %v6253 = vld [vmem:[%s5691 + $0x3c2] sm:$0xff]
        %v6254 = vld [vmem:[%s5691 + $0x3d2] sm:$0xff]
        %v6255 = vld [vmem:[%s5691 + $0x3e2] sm:$0xff]
        %v6256 = vld [vmem:[%s5691 + $0x3f2] sm:$0xff]
        %v6257 = vld [vmem:[%s5691 + $0x402] sm:$0xff]
        %v6258 = vld [vmem:[%s5691 + $0x412] sm:$0xff]
        %v6259 = vld [vmem:[%s5691 + $0x422] sm:$0xff]
        %v6260 = vld [vmem:[%s5691 + $0x432] sm:$0xff]
        %v6261 = vld [vmem:[%s5691 + $0x462] sm:$0xff]
        %v6262 = vld [vmem:[%s5691 + $0x472] sm:$0xff]
        %v6263 = vld [vmem:[%s5691 + $0x482] sm:$0xff]
        %v6264 = vld [vmem:[%s5691 + $0x492] sm:$0xff]
        %v6265 = vld [vmem:[%s5691 + $0x4a2] sm:$0xff]
        %v6266 = vld [vmem:[%s5691 + $0x4b2] sm:$0xff]
        %v6267 = vld [vmem:[%s5691 + $0x4c2] sm:$0xff]
        %v6268 = vld [vmem:[%s5691 + $0x4d2] sm:$0xff]
        %6333 = vrot.lane.b32.xlu0 %v6205, 8
        %v6334 = vpop.permute.xlu0 %6333
        %6335 = vrot.lane.b32.xlu0 %v6206, 8
        %v6336 = vpop.permute.xlu0 %6335
        %6337 = vrot.lane.b32.xlu0 %v6207, 8
        %v6338 = vpop.permute.xlu0 %6337
        %6339 = vrot.lane.b32.xlu0 %v6208, 8
        %v6340 = vpop.permute.xlu0 %6339
        %6341 = vrot.lane.b32.xlu0 %v6209, 8
        %v6342 = vpop.permute.xlu0 %6341
        %6343 = vrot.lane.b32.xlu0 %v6210, 8
        %v6344 = vpop.permute.xlu0 %6343
        %6345 = vrot.lane.b32.xlu0 %v6211, 8
        %v6346 = vpop.permute.xlu0 %6345
        %6347 = vrot.lane.b32.xlu0 %v6212, 8
        %v6348 = vpop.permute.xlu0 %6347
        %6349 = vrot.lane.b32.xlu0 %v6213, 8
        %v6350 = vpop.permute.xlu0 %6349
        %6351 = vrot.lane.b32.xlu0 %v6214, 8
        %v6352 = vpop.permute.xlu0 %6351
        %6353 = vrot.lane.b32.xlu0 %v6215, 8
        %v6354 = vpop.permute.xlu0 %6353
        %6355 = vrot.lane.b32.xlu0 %v6216, 8
        %v6356 = vpop.permute.xlu0 %6355
        %6357 = vrot.lane.b32.xlu0 %v6217, 8
        %v6358 = vpop.permute.xlu0 %6357
        %6359 = vrot.lane.b32.xlu0 %v6218, 8
        %v6360 = vpop.permute.xlu0 %6359
        %6361 = vrot.lane.b32.xlu0 %v6219, 8
        %v6362 = vpop.permute.xlu0 %6361
        %6363 = vrot.lane.b32.xlu0 %v6220, 8
        %v6364 = vpop.permute.xlu0 %6363
        %6365 = vrot.lane.b32.xlu0 %v6221, 8
        %v6366 = vpop.permute.xlu0 %6365
        %6367 = vrot.lane.b32.xlu0 %v6222, 8
        %v6368 = vpop.permute.xlu0 %6367
        %6369 = vrot.lane.b32.xlu0 %v6223, 8
        %v6370 = vpop.permute.xlu0 %6369
        %6371 = vrot.lane.b32.xlu0 %v6224, 8
        %v6372 = vpop.permute.xlu0 %6371
        %6373 = vrot.lane.b32.xlu0 %v6225, 8
        %v6374 = vpop.permute.xlu0 %6373
        %6375 = vrot.lane.b32.xlu0 %v6226, 8
        %v6376 = vpop.permute.xlu0 %6375
        %6377 = vrot.lane.b32.xlu0 %v6227, 8
        %v6378 = vpop.permute.xlu0 %6377
        %6379 = vrot.lane.b32.xlu0 %v6228, 8
        %v6380 = vpop.permute.xlu0 %6379
        %6381 = vrot.lane.b32.xlu0 %v6229, 8
        %v6382 = vpop.permute.xlu0 %6381
        %6383 = vrot.lane.b32.xlu0 %v6230, 8
        %v6384 = vpop.permute.xlu0 %6383
        %6385 = vrot.lane.b32.xlu0 %v6231, 8
        %v6386 = vpop.permute.xlu0 %6385
        %6387 = vrot.lane.b32.xlu0 %v6232, 8
        %v6388 = vpop.permute.xlu0 %6387
        %6389 = vrot.lane.b32.xlu0 %v6233, 8
        %v6390 = vpop.permute.xlu0 %6389
        %6391 = vrot.lane.b32.xlu0 %v6234, 8
        %v6392 = vpop.permute.xlu0 %6391
        %6393 = vrot.lane.b32.xlu0 %v6235, 8
        %v6394 = vpop.permute.xlu0 %6393
        %6395 = vrot.lane.b32.xlu0 %v6236, 8
        %v6396 = vpop.permute.xlu0 %6395
        %6397 = vrot.lane.b32.xlu0 %v6237, 8
        %v6398 = vpop.permute.xlu0 %6397
        %6399 = vrot.lane.b32.xlu0 %v6238, 8
        %v6400 = vpop.permute.xlu0 %6399
        %6401 = vrot.lane.b32.xlu0 %v6239, 8
        %v6402 = vpop.permute.xlu0 %6401
        %6403 = vrot.lane.b32.xlu0 %v6240, 8
        %v6404 = vpop.permute.xlu0 %6403
        %6405 = vrot.lane.b32.xlu0 %v6241, 8
        %v6406 = vpop.permute.xlu0 %6405
        %6407 = vrot.lane.b32.xlu0 %v6242, 8
        %v6408 = vpop.permute.xlu0 %6407
        %6409 = vrot.lane.b32.xlu0 %v6243, 8
        %v6410 = vpop.permute.xlu0 %6409
        %6411 = vrot.lane.b32.xlu0 %v6244, 8
        %v6412 = vpop.permute.xlu0 %6411
        %6413 = vrot.lane.b32.xlu0 %v6245, 8
        %v6414 = vpop.permute.xlu0 %6413
        %6415 = vrot.lane.b32.xlu0 %v6246, 8
        %v6416 = vpop.permute.xlu0 %6415
        %6417 = vrot.lane.b32.xlu0 %v6247, 8
        %v6418 = vpop.permute.xlu0 %6417
        %6419 = vrot.lane.b32.xlu0 %v6248, 8
        %v6420 = vpop.permute.xlu0 %6419
        %6421 = vrot.lane.b32.xlu0 %v6249, 8
        %v6422 = vpop.permute.xlu0 %6421
        %6423 = vrot.lane.b32.xlu0 %v6250, 8
        %v6424 = vpop.permute.xlu0 %6423
        %6425 = vrot.lane.b32.xlu0 %v6251, 8
        %v6426 = vpop.permute.xlu0 %6425
        %6427 = vrot.lane.b32.xlu0 %v6252, 8
        %v6428 = vpop.permute.xlu0 %6427
        %6429 = vrot.lane.b32.xlu0 %v6253, 8
        %v6430 = vpop.permute.xlu0 %6429
        %6431 = vrot.lane.b32.xlu0 %v6254, 8
        %v6432 = vpop.permute.xlu0 %6431
        %6433 = vrot.lane.b32.xlu0 %v6255, 8
        %v6434 = vpop.permute.xlu0 %6433
        %6435 = vrot.lane.b32.xlu0 %v6256, 8
        %v6436 = vpop.permute.xlu0 %6435
        %6437 = vrot.lane.b32.xlu0 %v6257, 8
        %v6438 = vpop.permute.xlu0 %6437
        %6439 = vrot.lane.b32.xlu0 %v6258, 8
        %v6440 = vpop.permute.xlu0 %6439
        %6441 = vrot.lane.b32.xlu0 %v6259, 8
        %v6442 = vpop.permute.xlu0 %6441
        %6443 = vrot.lane.b32.xlu0 %v6260, 8
        %v6444 = vpop.permute.xlu0 %6443
        %6445 = vrot.lane.b32.xlu0 %v6261, 8
        %v6446 = vpop.permute.xlu0 %6445
        %6447 = vrot.lane.b32.xlu0 %v6262, 8
        %v6448 = vpop.permute.xlu0 %6447
        %6449 = vrot.lane.b32.xlu0 %v6263, 8
        %v6450 = vpop.permute.xlu0 %6449
        %6451 = vrot.lane.b32.xlu0 %v6264, 8
        %v6452 = vpop.permute.xlu0 %6451
        %6453 = vrot.lane.b32.xlu0 %v6265, 8
        %v6454 = vpop.permute.xlu0 %6453
        %6455 = vrot.lane.b32.xlu0 %v6266, 8
        %v6456 = vpop.permute.xlu0 %6455
        %6457 = vrot.lane.b32.xlu0 %v6267, 8
        %v6458 = vpop.permute.xlu0 %6457
        %6459 = vrot.lane.b32.xlu0 %v6268, 8
        %v6460 = vpop.permute.xlu0 %6459
        %6525 = vst.msk [vmem:[#allocation2 + $0x8] sm:$0xff] %vm617, %v6334
        %6526 = vst.msk [vmem:[#allocation2 + $0x18] sm:$0xff] %vm617, %v6336
        %6527 = vst.msk [vmem:[#allocation2 + $0x28] sm:$0xff] %vm617, %v6338
        %6528 = vst.msk [vmem:[#allocation2 + $0x38] sm:$0xff] %vm617, %v6340
        %6529 = vst.msk [vmem:[#allocation2 + $0x48] sm:$0xff] %vm617, %v6342
        %6530 = vst.msk [vmem:[#allocation2 + $0x58] sm:$0xff] %vm617, %v6344
        %6531 = vst.msk [vmem:[#allocation2 + $0x68] sm:$0xff] %vm617, %v6346
        %6532 = vst.msk [vmem:[#allocation2 + $0x78] sm:$0xff] %vm617, %v6348
        %6533 = vst.msk [vmem:[#allocation2 + $0x88] sm:$0xff] %vm617, %v6350
        %6534 = vst.msk [vmem:[#allocation2 + $0x98] sm:$0xff] %vm617, %v6352
        %6535 = vst.msk [vmem:[#allocation2 + $0xa8] sm:$0xff] %vm617, %v6354
        %6536 = vst.msk [vmem:[#allocation2 + $0xb8] sm:$0xff] %vm617, %v6356
        %6537 = vst.msk [vmem:[#allocation2 + $0xc8] sm:$0xff] %vm617, %v6358
        %6538 = vst.msk [vmem:[#allocation2 + $0xd8] sm:$0xff] %vm617, %v6360
        %6539 = vst.msk [vmem:[#allocation2 + $0xe8] sm:$0xff] %vm617, %v6362
        %6540 = vst.msk [vmem:[#allocation2 + $0xf8] sm:$0xff] %vm617, %v6364
        %6541 = vst.msk [vmem:[#allocation2 + $0x108] sm:$0xff] %vm617, %v6366
        %6542 = vst.msk [vmem:[#allocation2 + $0x118] sm:$0xff] %vm617, %v6368
        %6543 = vst.msk [vmem:[#allocation2 + $0x128] sm:$0xff] %vm617, %v6370
        %6544 = vst.msk [vmem:[#allocation2 + $0x138] sm:$0xff] %vm617, %v6372
        %6545 = vst.msk [vmem:[#allocation2 + $0x148] sm:$0xff] %vm617, %v6374
        %6546 = vst.msk [vmem:[#allocation2 + $0x158] sm:$0xff] %vm617, %v6376
        %6547 = vst.msk [vmem:[#allocation2 + $0x168] sm:$0xff] %vm617, %v6378
        %6548 = vst.msk [vmem:[#allocation2 + $0x178] sm:$0xff] %vm617, %v6380
        %6549 = vst.msk [vmem:[#allocation2 + $0x188] sm:$0xff] %vm617, %v6382
        %6550 = vst.msk [vmem:[#allocation2 + $0x198] sm:$0xff] %vm617, %v6384
        %6551 = vst.msk [vmem:[#allocation2 + $0x1a8] sm:$0xff] %vm617, %v6386
        %6552 = vst.msk [vmem:[#allocation2 + $0x1b8] sm:$0xff] %vm617, %v6388
        %6553 = vst.msk [vmem:[#allocation2 + $0x1c8] sm:$0xff] %vm617, %v6390
        %6554 = vst.msk [vmem:[#allocation2 + $0x1d8] sm:$0xff] %vm617, %v6392
        %6555 = vst.msk [vmem:[#allocation2 + $0x1e8] sm:$0xff] %vm617, %v6394
        %6556 = vst.msk [vmem:[#allocation2 + $0x1f8] sm:$0xff] %vm617, %v6396
        %6557 = vst.msk [vmem:[#allocation2 + $0x208] sm:$0xff] %vm617, %v6398
        %6558 = vst.msk [vmem:[#allocation2 + $0x218] sm:$0xff] %vm617, %v6400
        %6559 = vst.msk [vmem:[#allocation2 + $0x228] sm:$0xff] %vm617, %v6402
        %6560 = vst.msk [vmem:[#allocation2 + $0x238] sm:$0xff] %vm617, %v6404
        %6561 = vst.msk [vmem:[#allocation2 + $0x248] sm:$0xff] %vm617, %v6406
        %6562 = vst.msk [vmem:[#allocation2 + $0x258] sm:$0xff] %vm617, %v6408
        %6563 = vst.msk [vmem:[#allocation2 + $0x268] sm:$0xff] %vm617, %v6410
        %6564 = vst.msk [vmem:[#allocation2 + $0x278] sm:$0xff] %vm617, %v6412
        %6565 = vst.msk [vmem:[#allocation2 + $0x288] sm:$0xff] %vm617, %v6414
        %6566 = vst.msk [vmem:[#allocation2 + $0x298] sm:$0xff] %vm617, %v6416
        %6567 = vst.msk [vmem:[#allocation2 + $0x2a8] sm:$0xff] %vm617, %v6418
        %6568 = vst.msk [vmem:[#allocation2 + $0x2b8] sm:$0xff] %vm617, %v6420
        %6569 = vst.msk [vmem:[#allocation2 + $0x2c8] sm:$0xff] %vm617, %v6422
        %6570 = vst.msk [vmem:[#allocation2 + $0x2d8] sm:$0xff] %vm617, %v6424
        %6571 = vst.msk [vmem:[#allocation2 + $0x2e8] sm:$0xff] %vm617, %v6426
        %6572 = vst.msk [vmem:[#allocation2 + $0x2f8] sm:$0xff] %vm617, %v6428
        %6573 = vst.msk [vmem:[#allocation2 + $0x308] sm:$0xff] %vm617, %v6430
        %6574 = vst.msk [vmem:[#allocation2 + $0x318] sm:$0xff] %vm617, %v6432
        %6575 = vst.msk [vmem:[#allocation2 + $0x328] sm:$0xff] %vm617, %v6434
        %6576 = vst.msk [vmem:[#allocation2 + $0x338] sm:$0xff] %vm617, %v6436
        %6577 = vst.msk [vmem:[#allocation2 + $0x348] sm:$0xff] %vm617, %v6438
        %6578 = vst.msk [vmem:[#allocation2 + $0x358] sm:$0xff] %vm617, %v6440
        %6579 = vst.msk [vmem:[#allocation2 + $0x368] sm:$0xff] %vm617, %v6442
        %6580 = vst.msk [vmem:[#allocation2 + $0x378] sm:$0xff] %vm617, %v6444
        %6581 = vst.msk [vmem:[#allocation2 + $0x388] sm:$0xff] %vm617, %v6446
        %6582 = vst.msk [vmem:[#allocation2 + $0x398] sm:$0xff] %vm617, %v6448
        %6583 = vst.msk [vmem:[#allocation2 + $0x3a8] sm:$0xff] %vm617, %v6450
        %6584 = vst.msk [vmem:[#allocation2 + $0x3b8] sm:$0xff] %vm617, %v6452
        %6585 = vst.msk [vmem:[#allocation2 + $0x3c8] sm:$0xff] %vm617, %v6454
        %6586 = vst.msk [vmem:[#allocation2 + $0x3d8] sm:$0xff] %vm617, %v6456
        %6587 = vst.msk [vmem:[#allocation2 + $0x3e8] sm:$0xff] %vm617, %v6458
        %6588 = vst.msk [vmem:[#allocation2 + $0x3f8] sm:$0xff] %vm617, %v6460
        %s6589 = scalar_lea.vmem %s167, 320
        %v6590 = vld [vmem:[%s6589] sm:$0xff]
        %v6591 = vld [vmem:[%s6589 + $0x10] sm:$0xff]
        %v6592 = vld [vmem:[%s6589 + $0x20] sm:$0xff]
        %v6593 = vld [vmem:[%s6589 + $0x30] sm:$0xff]
        %v6594 = vld [vmem:[%s6589 + $0x40] sm:$0xff]
        %v6595 = vld [vmem:[%s6589 + $0x50] sm:$0xff]
        %v6596 = vld [vmem:[%s6589 + $0x60] sm:$0xff]
        %v6597 = vld [vmem:[%s6589 + $0x70] sm:$0xff]
        %v6598 = vld [vmem:[%s6589 + $0xa0] sm:$0xff]
        %v6599 = vld [vmem:[%s6589 + $0xb0] sm:$0xff]
        %v6600 = vld [vmem:[%s6589 + $0xc0] sm:$0xff]
        %v6601 = vld [vmem:[%s6589 + $0xd0] sm:$0xff]
        %v6602 = vld [vmem:[%s6589 + $0xe0] sm:$0xff]
        %v6603 = vld [vmem:[%s6589 + $0xf0] sm:$0xff]
        %v6604 = vld [vmem:[%s6589 + $0x100] sm:$0xff]
        %v6605 = vld [vmem:[%s6589 + $0x110] sm:$0xff]
        %v6606 = vld [vmem:[%s6589 + $0x140] sm:$0xff]
        %v6607 = vld [vmem:[%s6589 + $0x150] sm:$0xff]
        %v6608 = vld [vmem:[%s6589 + $0x160] sm:$0xff]
        %v6609 = vld [vmem:[%s6589 + $0x170] sm:$0xff]
        %v6610 = vld [vmem:[%s6589 + $0x180] sm:$0xff]
        %v6611 = vld [vmem:[%s6589 + $0x190] sm:$0xff]
        %v6612 = vld [vmem:[%s6589 + $0x1a0] sm:$0xff]
        %v6613 = vld [vmem:[%s6589 + $0x1b0] sm:$0xff]
        %v6614 = vld [vmem:[%s6589 + $0x1e0] sm:$0xff]
        %v6615 = vld [vmem:[%s6589 + $0x1f0] sm:$0xff]
        %v6616 = vld [vmem:[%s6589 + $0x200] sm:$0xff]
        %v6617 = vld [vmem:[%s6589 + $0x210] sm:$0xff]
        %v6618 = vld [vmem:[%s6589 + $0x220] sm:$0xff]
        %v6619 = vld [vmem:[%s6589 + $0x230] sm:$0xff]
        %v6620 = vld [vmem:[%s6589 + $0x240] sm:$0xff]
        %v6621 = vld [vmem:[%s6589 + $0x250] sm:$0xff]
        %v6622 = vld [vmem:[%s6589 + $0x280] sm:$0xff]
        %v6623 = vld [vmem:[%s6589 + $0x290] sm:$0xff]
        %v6624 = vld [vmem:[%s6589 + $0x2a0] sm:$0xff]
        %v6625 = vld [vmem:[%s6589 + $0x2b0] sm:$0xff]
        %v6626 = vld [vmem:[%s6589 + $0x2c0] sm:$0xff]
        %v6627 = vld [vmem:[%s6589 + $0x2d0] sm:$0xff]
        %v6628 = vld [vmem:[%s6589 + $0x2e0] sm:$0xff]
        %v6629 = vld [vmem:[%s6589 + $0x2f0] sm:$0xff]
        %v6630 = vld [vmem:[%s6589 + $0x320] sm:$0xff]
        %v6631 = vld [vmem:[%s6589 + $0x330] sm:$0xff]
        %v6632 = vld [vmem:[%s6589 + $0x340] sm:$0xff]
        %v6633 = vld [vmem:[%s6589 + $0x350] sm:$0xff]
        %v6634 = vld [vmem:[%s6589 + $0x360] sm:$0xff]
        %v6635 = vld [vmem:[%s6589 + $0x370] sm:$0xff]
        %v6636 = vld [vmem:[%s6589 + $0x380] sm:$0xff]
        %v6637 = vld [vmem:[%s6589 + $0x390] sm:$0xff]
        %v6638 = vld [vmem:[%s6589 + $0x3c0] sm:$0xff]
        %v6639 = vld [vmem:[%s6589 + $0x3d0] sm:$0xff]
        %v6640 = vld [vmem:[%s6589 + $0x3e0] sm:$0xff]
        %v6641 = vld [vmem:[%s6589 + $0x3f0] sm:$0xff]
        %v6642 = vld [vmem:[%s6589 + $0x400] sm:$0xff]
        %v6643 = vld [vmem:[%s6589 + $0x410] sm:$0xff]
        %v6644 = vld [vmem:[%s6589 + $0x420] sm:$0xff]
        %v6645 = vld [vmem:[%s6589 + $0x430] sm:$0xff]
        %v6646 = vld [vmem:[%s6589 + $0x460] sm:$0xff]
        %v6647 = vld [vmem:[%s6589 + $0x470] sm:$0xff]
        %v6648 = vld [vmem:[%s6589 + $0x480] sm:$0xff]
        %v6649 = vld [vmem:[%s6589 + $0x490] sm:$0xff]
        %v6650 = vld [vmem:[%s6589 + $0x4a0] sm:$0xff]
        %v6651 = vld [vmem:[%s6589 + $0x4b0] sm:$0xff]
        %v6652 = vld [vmem:[%s6589 + $0x4c0] sm:$0xff]
        %v6653 = vld [vmem:[%s6589 + $0x4d0] sm:$0xff]
        %6718 = vrot.lane.b32.xlu0 %v6590, 16
        %v6719 = vpop.permute.xlu0 %6718
        %6720 = vrot.lane.b32.xlu0 %v6591, 16
        %v6721 = vpop.permute.xlu0 %6720
        %6722 = vrot.lane.b32.xlu0 %v6592, 16
        %v6723 = vpop.permute.xlu0 %6722
        %6724 = vrot.lane.b32.xlu0 %v6593, 16
        %v6725 = vpop.permute.xlu0 %6724
        %6726 = vrot.lane.b32.xlu0 %v6594, 16
        %v6727 = vpop.permute.xlu0 %6726
        %6728 = vrot.lane.b32.xlu0 %v6595, 16
        %v6729 = vpop.permute.xlu0 %6728
        %6730 = vrot.lane.b32.xlu0 %v6596, 16
        %v6731 = vpop.permute.xlu0 %6730
        %6732 = vrot.lane.b32.xlu0 %v6597, 16
        %v6733 = vpop.permute.xlu0 %6732
        %6734 = vrot.lane.b32.xlu0 %v6598, 16
        %v6735 = vpop.permute.xlu0 %6734
        %6736 = vrot.lane.b32.xlu0 %v6599, 16
        %v6737 = vpop.permute.xlu0 %6736
        %6738 = vrot.lane.b32.xlu0 %v6600, 16
        %v6739 = vpop.permute.xlu0 %6738
        %6740 = vrot.lane.b32.xlu0 %v6601, 16
        %v6741 = vpop.permute.xlu0 %6740
        %6742 = vrot.lane.b32.xlu0 %v6602, 16
        %v6743 = vpop.permute.xlu0 %6742
        %6744 = vrot.lane.b32.xlu0 %v6603, 16
        %v6745 = vpop.permute.xlu0 %6744
        %6746 = vrot.lane.b32.xlu0 %v6604, 16
        %v6747 = vpop.permute.xlu0 %6746
        %6748 = vrot.lane.b32.xlu0 %v6605, 16
        %v6749 = vpop.permute.xlu0 %6748
        %6750 = vrot.lane.b32.xlu0 %v6606, 16
        %v6751 = vpop.permute.xlu0 %6750
        %6752 = vrot.lane.b32.xlu0 %v6607, 16
        %v6753 = vpop.permute.xlu0 %6752
        %6754 = vrot.lane.b32.xlu0 %v6608, 16
        %v6755 = vpop.permute.xlu0 %6754
        %6756 = vrot.lane.b32.xlu0 %v6609, 16
        %v6757 = vpop.permute.xlu0 %6756
        %6758 = vrot.lane.b32.xlu0 %v6610, 16
        %v6759 = vpop.permute.xlu0 %6758
        %6760 = vrot.lane.b32.xlu0 %v6611, 16
        %v6761 = vpop.permute.xlu0 %6760
        %6762 = vrot.lane.b32.xlu0 %v6612, 16
        %v6763 = vpop.permute.xlu0 %6762
        %6764 = vrot.lane.b32.xlu0 %v6613, 16
        %v6765 = vpop.permute.xlu0 %6764
        %6766 = vrot.lane.b32.xlu0 %v6614, 16
        %v6767 = vpop.permute.xlu0 %6766
        %6768 = vrot.lane.b32.xlu0 %v6615, 16
        %v6769 = vpop.permute.xlu0 %6768
        %6770 = vrot.lane.b32.xlu0 %v6616, 16
        %v6771 = vpop.permute.xlu0 %6770
        %6772 = vrot.lane.b32.xlu0 %v6617, 16
        %v6773 = vpop.permute.xlu0 %6772
        %6774 = vrot.lane.b32.xlu0 %v6618, 16
        %v6775 = vpop.permute.xlu0 %6774
        %6776 = vrot.lane.b32.xlu0 %v6619, 16
        %v6777 = vpop.permute.xlu0 %6776
        %6778 = vrot.lane.b32.xlu0 %v6620, 16
        %v6779 = vpop.permute.xlu0 %6778
        %6780 = vrot.lane.b32.xlu0 %v6621, 16
        %v6781 = vpop.permute.xlu0 %6780
        %6782 = vrot.lane.b32.xlu0 %v6622, 16
        %v6783 = vpop.permute.xlu0 %6782
        %6784 = vrot.lane.b32.xlu0 %v6623, 16
        %v6785 = vpop.permute.xlu0 %6784
        %6786 = vrot.lane.b32.xlu0 %v6624, 16
        %v6787 = vpop.permute.xlu0 %6786
        %6788 = vrot.lane.b32.xlu0 %v6625, 16
        %v6789 = vpop.permute.xlu0 %6788
        %6790 = vrot.lane.b32.xlu0 %v6626, 16
        %v6791 = vpop.permute.xlu0 %6790
        %6792 = vrot.lane.b32.xlu0 %v6627, 16
        %v6793 = vpop.permute.xlu0 %6792
        %6794 = vrot.lane.b32.xlu0 %v6628, 16
        %v6795 = vpop.permute.xlu0 %6794
        %6796 = vrot.lane.b32.xlu0 %v6629, 16
        %v6797 = vpop.permute.xlu0 %6796
        %6798 = vrot.lane.b32.xlu0 %v6630, 16
        %v6799 = vpop.permute.xlu0 %6798
        %6800 = vrot.lane.b32.xlu0 %v6631, 16
        %v6801 = vpop.permute.xlu0 %6800
        %6802 = vrot.lane.b32.xlu0 %v6632, 16
        %v6803 = vpop.permute.xlu0 %6802
        %6804 = vrot.lane.b32.xlu0 %v6633, 16
        %v6805 = vpop.permute.xlu0 %6804
        %6806 = vrot.lane.b32.xlu0 %v6634, 16
        %v6807 = vpop.permute.xlu0 %6806
        %6808 = vrot.lane.b32.xlu0 %v6635, 16
        %v6809 = vpop.permute.xlu0 %6808
        %6810 = vrot.lane.b32.xlu0 %v6636, 16
        %v6811 = vpop.permute.xlu0 %6810
        %6812 = vrot.lane.b32.xlu0 %v6637, 16
        %v6813 = vpop.permute.xlu0 %6812
        %6814 = vrot.lane.b32.xlu0 %v6638, 16
        %v6815 = vpop.permute.xlu0 %6814
        %6816 = vrot.lane.b32.xlu0 %v6639, 16
        %v6817 = vpop.permute.xlu0 %6816
        %6818 = vrot.lane.b32.xlu0 %v6640, 16
        %v6819 = vpop.permute.xlu0 %6818
        %6820 = vrot.lane.b32.xlu0 %v6641, 16
        %v6821 = vpop.permute.xlu0 %6820
        %6822 = vrot.lane.b32.xlu0 %v6642, 16
        %v6823 = vpop.permute.xlu0 %6822
        %6824 = vrot.lane.b32.xlu0 %v6643, 16
        %v6825 = vpop.permute.xlu0 %6824
        %6826 = vrot.lane.b32.xlu0 %v6644, 16
        %v6827 = vpop.permute.xlu0 %6826
        %6828 = vrot.lane.b32.xlu0 %v6645, 16
        %v6829 = vpop.permute.xlu0 %6828
        %6830 = vrot.lane.b32.xlu0 %v6646, 16
        %v6831 = vpop.permute.xlu0 %6830
        %6832 = vrot.lane.b32.xlu0 %v6647, 16
        %v6833 = vpop.permute.xlu0 %6832
        %6834 = vrot.lane.b32.xlu0 %v6648, 16
        %v6835 = vpop.permute.xlu0 %6834
        %6836 = vrot.lane.b32.xlu0 %v6649, 16
        %v6837 = vpop.permute.xlu0 %6836
        %6838 = vrot.lane.b32.xlu0 %v6650, 16
        %v6839 = vpop.permute.xlu0 %6838
        %6840 = vrot.lane.b32.xlu0 %v6651, 16
        %v6841 = vpop.permute.xlu0 %6840
        %6842 = vrot.lane.b32.xlu0 %v6652, 16
        %v6843 = vpop.permute.xlu0 %6842
        %6844 = vrot.lane.b32.xlu0 %v6653, 16
        %v6845 = vpop.permute.xlu0 %6844
        %6910 = vst.msk [vmem:[#allocation2 + $0x8] sm:$0xff] %vm1002, %v6719
        %6911 = vst.msk [vmem:[#allocation2 + $0x18] sm:$0xff] %vm1002, %v6721
        %6912 = vst.msk [vmem:[#allocation2 + $0x28] sm:$0xff] %vm1002, %v6723
        %6913 = vst.msk [vmem:[#allocation2 + $0x38] sm:$0xff] %vm1002, %v6725
        %6914 = vst.msk [vmem:[#allocation2 + $0x48] sm:$0xff] %vm1002, %v6727
        %6915 = vst.msk [vmem:[#allocation2 + $0x58] sm:$0xff] %vm1002, %v6729
        %6916 = vst.msk [vmem:[#allocation2 + $0x68] sm:$0xff] %vm1002, %v6731
        %6917 = vst.msk [vmem:[#allocation2 + $0x78] sm:$0xff] %vm1002, %v6733
        %6918 = vst.msk [vmem:[#allocation2 + $0x88] sm:$0xff] %vm1002, %v6735
        %6919 = vst.msk [vmem:[#allocation2 + $0x98] sm:$0xff] %vm1002, %v6737
        %6920 = vst.msk [vmem:[#allocation2 + $0xa8] sm:$0xff] %vm1002, %v6739
        %6921 = vst.msk [vmem:[#allocation2 + $0xb8] sm:$0xff] %vm1002, %v6741
        %6922 = vst.msk [vmem:[#allocation2 + $0xc8] sm:$0xff] %vm1002, %v6743
        %6923 = vst.msk [vmem:[#allocation2 + $0xd8] sm:$0xff] %vm1002, %v6745
        %6924 = vst.msk [vmem:[#allocation2 + $0xe8] sm:$0xff] %vm1002, %v6747
        %6925 = vst.msk [vmem:[#allocation2 + $0xf8] sm:$0xff] %vm1002, %v6749
        %6926 = vst.msk [vmem:[#allocation2 + $0x108] sm:$0xff] %vm1002, %v6751
        %6927 = vst.msk [vmem:[#allocation2 + $0x118] sm:$0xff] %vm1002, %v6753
        %6928 = vst.msk [vmem:[#allocation2 + $0x128] sm:$0xff] %vm1002, %v6755
        %6929 = vst.msk [vmem:[#allocation2 + $0x138] sm:$0xff] %vm1002, %v6757
        %6930 = vst.msk [vmem:[#allocation2 + $0x148] sm:$0xff] %vm1002, %v6759
        %6931 = vst.msk [vmem:[#allocation2 + $0x158] sm:$0xff] %vm1002, %v6761
        %6932 = vst.msk [vmem:[#allocation2 + $0x168] sm:$0xff] %vm1002, %v6763
        %6933 = vst.msk [vmem:[#allocation2 + $0x178] sm:$0xff] %vm1002, %v6765
        %6934 = vst.msk [vmem:[#allocation2 + $0x188] sm:$0xff] %vm1002, %v6767
        %6935 = vst.msk [vmem:[#allocation2 + $0x198] sm:$0xff] %vm1002, %v6769
        %6936 = vst.msk [vmem:[#allocation2 + $0x1a8] sm:$0xff] %vm1002, %v6771
        %6937 = vst.msk [vmem:[#allocation2 + $0x1b8] sm:$0xff] %vm1002, %v6773
        %6938 = vst.msk [vmem:[#allocation2 + $0x1c8] sm:$0xff] %vm1002, %v6775
        %6939 = vst.msk [vmem:[#allocation2 + $0x1d8] sm:$0xff] %vm1002, %v6777
        %6940 = vst.msk [vmem:[#allocation2 + $0x1e8] sm:$0xff] %vm1002, %v6779
        %6941 = vst.msk [vmem:[#allocation2 + $0x1f8] sm:$0xff] %vm1002, %v6781
        %6942 = vst.msk [vmem:[#allocation2 + $0x208] sm:$0xff] %vm1002, %v6783
        %6943 = vst.msk [vmem:[#allocation2 + $0x218] sm:$0xff] %vm1002, %v6785
        %6944 = vst.msk [vmem:[#allocation2 + $0x228] sm:$0xff] %vm1002, %v6787
        %6945 = vst.msk [vmem:[#allocation2 + $0x238] sm:$0xff] %vm1002, %v6789
        %6946 = vst.msk [vmem:[#allocation2 + $0x248] sm:$0xff] %vm1002, %v6791
        %6947 = vst.msk [vmem:[#allocation2 + $0x258] sm:$0xff] %vm1002, %v6793
        %6948 = vst.msk [vmem:[#allocation2 + $0x268] sm:$0xff] %vm1002, %v6795
        %6949 = vst.msk [vmem:[#allocation2 + $0x278] sm:$0xff] %vm1002, %v6797
        %6950 = vst.msk [vmem:[#allocation2 + $0x288] sm:$0xff] %vm1002, %v6799
        %6951 = vst.msk [vmem:[#allocation2 + $0x298] sm:$0xff] %vm1002, %v6801
        %6952 = vst.msk [vmem:[#allocation2 + $0x2a8] sm:$0xff] %vm1002, %v6803
        %6953 = vst.msk [vmem:[#allocation2 + $0x2b8] sm:$0xff] %vm1002, %v6805
        %6954 = vst.msk [vmem:[#allocation2 + $0x2c8] sm:$0xff] %vm1002, %v6807
        %6955 = vst.msk [vmem:[#allocation2 + $0x2d8] sm:$0xff] %vm1002, %v6809
        %6956 = vst.msk [vmem:[#allocation2 + $0x2e8] sm:$0xff] %vm1002, %v6811
        %6957 = vst.msk [vmem:[#allocation2 + $0x2f8] sm:$0xff] %vm1002, %v6813
        %6958 = vst.msk [vmem:[#allocation2 + $0x308] sm:$0xff] %vm1002, %v6815
        %6959 = vst.msk [vmem:[#allocation2 + $0x318] sm:$0xff] %vm1002, %v6817
        %6960 = vst.msk [vmem:[#allocation2 + $0x328] sm:$0xff] %vm1002, %v6819
        %6961 = vst.msk [vmem:[#allocation2 + $0x338] sm:$0xff] %vm1002, %v6821
        %6962 = vst.msk [vmem:[#allocation2 + $0x348] sm:$0xff] %vm1002, %v6823
        %6963 = vst.msk [vmem:[#allocation2 + $0x358] sm:$0xff] %vm1002, %v6825
        %6964 = vst.msk [vmem:[#allocation2 + $0x368] sm:$0xff] %vm1002, %v6827
        %6965 = vst.msk [vmem:[#allocation2 + $0x378] sm:$0xff] %vm1002, %v6829
        %6966 = vst.msk [vmem:[#allocation2 + $0x388] sm:$0xff] %vm1002, %v6831
        %6967 = vst.msk [vmem:[#allocation2 + $0x398] sm:$0xff] %vm1002, %v6833
        %6968 = vst.msk [vmem:[#allocation2 + $0x3a8] sm:$0xff] %vm1002, %v6835
        %6969 = vst.msk [vmem:[#allocation2 + $0x3b8] sm:$0xff] %vm1002, %v6837
        %6970 = vst.msk [vmem:[#allocation2 + $0x3c8] sm:$0xff] %vm1002, %v6839
        %6971 = vst.msk [vmem:[#allocation2 + $0x3d8] sm:$0xff] %vm1002, %v6841
        %6972 = vst.msk [vmem:[#allocation2 + $0x3e8] sm:$0xff] %vm1002, %v6843
        %6973 = vst.msk [vmem:[#allocation2 + $0x3f8] sm:$0xff] %vm1002, %v6845
        %v6974 = vld [vmem:[%s6589 + $0x1] sm:$0xff]
        %v6975 = vld [vmem:[%s6589 + $0x11] sm:$0xff]
        %v6976 = vld [vmem:[%s6589 + $0x21] sm:$0xff]
        %v6977 = vld [vmem:[%s6589 + $0x31] sm:$0xff]
        %v6978 = vld [vmem:[%s6589 + $0x41] sm:$0xff]
        %v6979 = vld [vmem:[%s6589 + $0x51] sm:$0xff]
        %v6980 = vld [vmem:[%s6589 + $0x61] sm:$0xff]
        %v6981 = vld [vmem:[%s6589 + $0x71] sm:$0xff]
        %v6982 = vld [vmem:[%s6589 + $0xa1] sm:$0xff]
        %v6983 = vld [vmem:[%s6589 + $0xb1] sm:$0xff]
        %v6984 = vld [vmem:[%s6589 + $0xc1] sm:$0xff]
        %v6985 = vld [vmem:[%s6589 + $0xd1] sm:$0xff]
        %v6986 = vld [vmem:[%s6589 + $0xe1] sm:$0xff]
        %v6987 = vld [vmem:[%s6589 + $0xf1] sm:$0xff]
        %v6988 = vld [vmem:[%s6589 + $0x101] sm:$0xff]
        %v6989 = vld [vmem:[%s6589 + $0x111] sm:$0xff]
        %v6990 = vld [vmem:[%s6589 + $0x141] sm:$0xff]
        %v6991 = vld [vmem:[%s6589 + $0x151] sm:$0xff]
        %v6992 = vld [vmem:[%s6589 + $0x161] sm:$0xff]
        %v6993 = vld [vmem:[%s6589 + $0x171] sm:$0xff]
        %v6994 = vld [vmem:[%s6589 + $0x181] sm:$0xff]
        %v6995 = vld [vmem:[%s6589 + $0x191] sm:$0xff]
        %v6996 = vld [vmem:[%s6589 + $0x1a1] sm:$0xff]
        %v6997 = vld [vmem:[%s6589 + $0x1b1] sm:$0xff]
        %v6998 = vld [vmem:[%s6589 + $0x1e1] sm:$0xff]
        %v6999 = vld [vmem:[%s6589 + $0x1f1] sm:$0xff]
        %v7000 = vld [vmem:[%s6589 + $0x201] sm:$0xff]
        %v7001 = vld [vmem:[%s6589 + $0x211] sm:$0xff]
        %v7002 = vld [vmem:[%s6589 + $0x221] sm:$0xff]
        %v7003 = vld [vmem:[%s6589 + $0x231] sm:$0xff]
        %v7004 = vld [vmem:[%s6589 + $0x241] sm:$0xff]
        %v7005 = vld [vmem:[%s6589 + $0x251] sm:$0xff]
        %v7006 = vld [vmem:[%s6589 + $0x281] sm:$0xff]
        %v7007 = vld [vmem:[%s6589 + $0x291] sm:$0xff]
        %v7008 = vld [vmem:[%s6589 + $0x2a1] sm:$0xff]
        %v7009 = vld [vmem:[%s6589 + $0x2b1] sm:$0xff]
        %v7010 = vld [vmem:[%s6589 + $0x2c1] sm:$0xff]
        %v7011 = vld [vmem:[%s6589 + $0x2d1] sm:$0xff]
        %v7012 = vld [vmem:[%s6589 + $0x2e1] sm:$0xff]
        %v7013 = vld [vmem:[%s6589 + $0x2f1] sm:$0xff]
        %v7014 = vld [vmem:[%s6589 + $0x321] sm:$0xff]
        %v7015 = vld [vmem:[%s6589 + $0x331] sm:$0xff]
        %v7016 = vld [vmem:[%s6589 + $0x341] sm:$0xff]
        %v7017 = vld [vmem:[%s6589 + $0x351] sm:$0xff]
        %v7018 = vld [vmem:[%s6589 + $0x361] sm:$0xff]
        %v7019 = vld [vmem:[%s6589 + $0x371] sm:$0xff]
        %v7020 = vld [vmem:[%s6589 + $0x381] sm:$0xff]
        %v7021 = vld [vmem:[%s6589 + $0x391] sm:$0xff]
        %v7022 = vld [vmem:[%s6589 + $0x3c1] sm:$0xff]
        %v7023 = vld [vmem:[%s6589 + $0x3d1] sm:$0xff]
        %v7024 = vld [vmem:[%s6589 + $0x3e1] sm:$0xff]
        %v7025 = vld [vmem:[%s6589 + $0x3f1] sm:$0xff]
        %v7026 = vld [vmem:[%s6589 + $0x401] sm:$0xff]
        %v7027 = vld [vmem:[%s6589 + $0x411] sm:$0xff]
        %v7028 = vld [vmem:[%s6589 + $0x421] sm:$0xff]
        %v7029 = vld [vmem:[%s6589 + $0x431] sm:$0xff]
        %v7030 = vld [vmem:[%s6589 + $0x461] sm:$0xff]
        %v7031 = vld [vmem:[%s6589 + $0x471] sm:$0xff]
        %v7032 = vld [vmem:[%s6589 + $0x481] sm:$0xff]
        %v7033 = vld [vmem:[%s6589 + $0x491] sm:$0xff]
        %v7034 = vld [vmem:[%s6589 + $0x4a1] sm:$0xff]
        %v7035 = vld [vmem:[%s6589 + $0x4b1] sm:$0xff]
        %v7036 = vld [vmem:[%s6589 + $0x4c1] sm:$0xff]
        %v7037 = vld [vmem:[%s6589 + $0x4d1] sm:$0xff]
        %7102 = vrot.lane.b32.xlu0 %v6974, 24
        %v7103 = vpop.permute.xlu0 %7102
        %7104 = vrot.lane.b32.xlu0 %v6975, 24
        %v7105 = vpop.permute.xlu0 %7104
        %7106 = vrot.lane.b32.xlu0 %v6976, 24
        %v7107 = vpop.permute.xlu0 %7106
        %7108 = vrot.lane.b32.xlu0 %v6977, 24
        %v7109 = vpop.permute.xlu0 %7108
        %7110 = vrot.lane.b32.xlu0 %v6978, 24
        %v7111 = vpop.permute.xlu0 %7110
        %7112 = vrot.lane.b32.xlu0 %v6979, 24
        %v7113 = vpop.permute.xlu0 %7112
        %7114 = vrot.lane.b32.xlu0 %v6980, 24
        %v7115 = vpop.permute.xlu0 %7114
        %7116 = vrot.lane.b32.xlu0 %v6981, 24
        %v7117 = vpop.permute.xlu0 %7116
        %7118 = vrot.lane.b32.xlu0 %v6982, 24
        %v7119 = vpop.permute.xlu0 %7118
        %7120 = vrot.lane.b32.xlu0 %v6983, 24
        %v7121 = vpop.permute.xlu0 %7120
        %7122 = vrot.lane.b32.xlu0 %v6984, 24
        %v7123 = vpop.permute.xlu0 %7122
        %7124 = vrot.lane.b32.xlu0 %v6985, 24
        %v7125 = vpop.permute.xlu0 %7124
        %7126 = vrot.lane.b32.xlu0 %v6986, 24
        %v7127 = vpop.permute.xlu0 %7126
        %7128 = vrot.lane.b32.xlu0 %v6987, 24
        %v7129 = vpop.permute.xlu0 %7128
        %7130 = vrot.lane.b32.xlu0 %v6988, 24
        %v7131 = vpop.permute.xlu0 %7130
        %7132 = vrot.lane.b32.xlu0 %v6989, 24
        %v7133 = vpop.permute.xlu0 %7132
        %7134 = vrot.lane.b32.xlu0 %v6990, 24
        %v7135 = vpop.permute.xlu0 %7134
        %7136 = vrot.lane.b32.xlu0 %v6991, 24
        %v7137 = vpop.permute.xlu0 %7136
        %7138 = vrot.lane.b32.xlu0 %v6992, 24
        %v7139 = vpop.permute.xlu0 %7138
        %7140 = vrot.lane.b32.xlu0 %v6993, 24
        %v7141 = vpop.permute.xlu0 %7140
        %7142 = vrot.lane.b32.xlu0 %v6994, 24
        %v7143 = vpop.permute.xlu0 %7142
        %7144 = vrot.lane.b32.xlu0 %v6995, 24
        %v7145 = vpop.permute.xlu0 %7144
        %7146 = vrot.lane.b32.xlu0 %v6996, 24
        %v7147 = vpop.permute.xlu0 %7146
        %7148 = vrot.lane.b32.xlu0 %v6997, 24
        %v7149 = vpop.permute.xlu0 %7148
        %7150 = vrot.lane.b32.xlu0 %v6998, 24
        %v7151 = vpop.permute.xlu0 %7150
        %7152 = vrot.lane.b32.xlu0 %v6999, 24
        %v7153 = vpop.permute.xlu0 %7152
        %7154 = vrot.lane.b32.xlu0 %v7000, 24
        %v7155 = vpop.permute.xlu0 %7154
        %7156 = vrot.lane.b32.xlu0 %v7001, 24
        %v7157 = vpop.permute.xlu0 %7156
        %7158 = vrot.lane.b32.xlu0 %v7002, 24
        %v7159 = vpop.permute.xlu0 %7158
        %7160 = vrot.lane.b32.xlu0 %v7003, 24
        %v7161 = vpop.permute.xlu0 %7160
        %7162 = vrot.lane.b32.xlu0 %v7004, 24
        %v7163 = vpop.permute.xlu0 %7162
        %7164 = vrot.lane.b32.xlu0 %v7005, 24
        %v7165 = vpop.permute.xlu0 %7164
        %7166 = vrot.lane.b32.xlu0 %v7006, 24
        %v7167 = vpop.permute.xlu0 %7166
        %7168 = vrot.lane.b32.xlu0 %v7007, 24
        %v7169 = vpop.permute.xlu0 %7168
        %7170 = vrot.lane.b32.xlu0 %v7008, 24
        %v7171 = vpop.permute.xlu0 %7170
        %7172 = vrot.lane.b32.xlu0 %v7009, 24
        %v7173 = vpop.permute.xlu0 %7172
        %7174 = vrot.lane.b32.xlu0 %v7010, 24
        %v7175 = vpop.permute.xlu0 %7174
        %7176 = vrot.lane.b32.xlu0 %v7011, 24
        %v7177 = vpop.permute.xlu0 %7176
        %7178 = vrot.lane.b32.xlu0 %v7012, 24
        %v7179 = vpop.permute.xlu0 %7178
        %7180 = vrot.lane.b32.xlu0 %v7013, 24
        %v7181 = vpop.permute.xlu0 %7180
        %7182 = vrot.lane.b32.xlu0 %v7014, 24
        %v7183 = vpop.permute.xlu0 %7182
        %7184 = vrot.lane.b32.xlu0 %v7015, 24
        %v7185 = vpop.permute.xlu0 %7184
        %7186 = vrot.lane.b32.xlu0 %v7016, 24
        %v7187 = vpop.permute.xlu0 %7186
        %7188 = vrot.lane.b32.xlu0 %v7017, 24
        %v7189 = vpop.permute.xlu0 %7188
        %7190 = vrot.lane.b32.xlu0 %v7018, 24
        %v7191 = vpop.permute.xlu0 %7190
        %7192 = vrot.lane.b32.xlu0 %v7019, 24
        %v7193 = vpop.permute.xlu0 %7192
        %7194 = vrot.lane.b32.xlu0 %v7020, 24
        %v7195 = vpop.permute.xlu0 %7194
        %7196 = vrot.lane.b32.xlu0 %v7021, 24
        %v7197 = vpop.permute.xlu0 %7196
        %7198 = vrot.lane.b32.xlu0 %v7022, 24
        %v7199 = vpop.permute.xlu0 %7198
        %7200 = vrot.lane.b32.xlu0 %v7023, 24
        %v7201 = vpop.permute.xlu0 %7200
        %7202 = vrot.lane.b32.xlu0 %v7024, 24
        %v7203 = vpop.permute.xlu0 %7202
        %7204 = vrot.lane.b32.xlu0 %v7025, 24
        %v7205 = vpop.permute.xlu0 %7204
        %7206 = vrot.lane.b32.xlu0 %v7026, 24
        %v7207 = vpop.permute.xlu0 %7206
        %7208 = vrot.lane.b32.xlu0 %v7027, 24
        %v7209 = vpop.permute.xlu0 %7208
        %7210 = vrot.lane.b32.xlu0 %v7028, 24
        %v7211 = vpop.permute.xlu0 %7210
        %7212 = vrot.lane.b32.xlu0 %v7029, 24
        %v7213 = vpop.permute.xlu0 %7212
        %7214 = vrot.lane.b32.xlu0 %v7030, 24
        %v7215 = vpop.permute.xlu0 %7214
        %7216 = vrot.lane.b32.xlu0 %v7031, 24
        %v7217 = vpop.permute.xlu0 %7216
        %7218 = vrot.lane.b32.xlu0 %v7032, 24
        %v7219 = vpop.permute.xlu0 %7218
        %7220 = vrot.lane.b32.xlu0 %v7033, 24
        %v7221 = vpop.permute.xlu0 %7220
        %7222 = vrot.lane.b32.xlu0 %v7034, 24
        %v7223 = vpop.permute.xlu0 %7222
        %7224 = vrot.lane.b32.xlu0 %v7035, 24
        %v7225 = vpop.permute.xlu0 %7224
        %7226 = vrot.lane.b32.xlu0 %v7036, 24
        %v7227 = vpop.permute.xlu0 %7226
        %7228 = vrot.lane.b32.xlu0 %v7037, 24
        %v7229 = vpop.permute.xlu0 %7228
        %7294 = vst.msk [vmem:[#allocation2 + $0x8] sm:$0xff] %vm1388, %v7103
        %7295 = vst.msk [vmem:[#allocation2 + $0x18] sm:$0xff] %vm1388, %v7105
        %7296 = vst.msk [vmem:[#allocation2 + $0x28] sm:$0xff] %vm1388, %v7107
        %7297 = vst.msk [vmem:[#allocation2 + $0x38] sm:$0xff] %vm1388, %v7109
        %7298 = vst.msk [vmem:[#allocation2 + $0x48] sm:$0xff] %vm1388, %v7111
        %7299 = vst.msk [vmem:[#allocation2 + $0x58] sm:$0xff] %vm1388, %v7113
        %7300 = vst.msk [vmem:[#allocation2 + $0x68] sm:$0xff] %vm1388, %v7115
        %7301 = vst.msk [vmem:[#allocation2 + $0x78] sm:$0xff] %vm1388, %v7117
        %7302 = vst.msk [vmem:[#allocation2 + $0x88] sm:$0xff] %vm1388, %v7119
        %7303 = vst.msk [vmem:[#allocation2 + $0x98] sm:$0xff] %vm1388, %v7121
        %7304 = vst.msk [vmem:[#allocation2 + $0xa8] sm:$0xff] %vm1388, %v7123
        %7305 = vst.msk [vmem:[#allocation2 + $0xb8] sm:$0xff] %vm1388, %v7125
        %7306 = vst.msk [vmem:[#allocation2 + $0xc8] sm:$0xff] %vm1388, %v7127
        %7307 = vst.msk [vmem:[#allocation2 + $0xd8] sm:$0xff] %vm1388, %v7129
        %7308 = vst.msk [vmem:[#allocation2 + $0xe8] sm:$0xff] %vm1388, %v7131
        %7309 = vst.msk [vmem:[#allocation2 + $0xf8] sm:$0xff] %vm1388, %v7133
        %7310 = vst.msk [vmem:[#allocation2 + $0x108] sm:$0xff] %vm1388, %v7135
        %7311 = vst.msk [vmem:[#allocation2 + $0x118] sm:$0xff] %vm1388, %v7137
        %7312 = vst.msk [vmem:[#allocation2 + $0x128] sm:$0xff] %vm1388, %v7139
        %7313 = vst.msk [vmem:[#allocation2 + $0x138] sm:$0xff] %vm1388, %v7141
        %7314 = vst.msk [vmem:[#allocation2 + $0x148] sm:$0xff] %vm1388, %v7143
        %7315 = vst.msk [vmem:[#allocation2 + $0x158] sm:$0xff] %vm1388, %v7145
        %7316 = vst.msk [vmem:[#allocation2 + $0x168] sm:$0xff] %vm1388, %v7147
        %7317 = vst.msk [vmem:[#allocation2 + $0x178] sm:$0xff] %vm1388, %v7149
        %7318 = vst.msk [vmem:[#allocation2 + $0x188] sm:$0xff] %vm1388, %v7151
        %7319 = vst.msk [vmem:[#allocation2 + $0x198] sm:$0xff] %vm1388, %v7153
        %7320 = vst.msk [vmem:[#allocation2 + $0x1a8] sm:$0xff] %vm1388, %v7155
        %7321 = vst.msk [vmem:[#allocation2 + $0x1b8] sm:$0xff] %vm1388, %v7157
        %7322 = vst.msk [vmem:[#allocation2 + $0x1c8] sm:$0xff] %vm1388, %v7159
        %7323 = vst.msk [vmem:[#allocation2 + $0x1d8] sm:$0xff] %vm1388, %v7161
        %7324 = vst.msk [vmem:[#allocation2 + $0x1e8] sm:$0xff] %vm1388, %v7163
        %7325 = vst.msk [vmem:[#allocation2 + $0x1f8] sm:$0xff] %vm1388, %v7165
        %7326 = vst.msk [vmem:[#allocation2 + $0x208] sm:$0xff] %vm1388, %v7167
        %7327 = vst.msk [vmem:[#allocation2 + $0x218] sm:$0xff] %vm1388, %v7169
        %7328 = vst.msk [vmem:[#allocation2 + $0x228] sm:$0xff] %vm1388, %v7171
        %7329 = vst.msk [vmem:[#allocation2 + $0x238] sm:$0xff] %vm1388, %v7173
        %7330 = vst.msk [vmem:[#allocation2 + $0x248] sm:$0xff] %vm1388, %v7175
        %7331 = vst.msk [vmem:[#allocation2 + $0x258] sm:$0xff] %vm1388, %v7177
        %7332 = vst.msk [vmem:[#allocation2 + $0x268] sm:$0xff] %vm1388, %v7179
        %7333 = vst.msk [vmem:[#allocation2 + $0x278] sm:$0xff] %vm1388, %v7181
        %7334 = vst.msk [vmem:[#allocation2 + $0x288] sm:$0xff] %vm1388, %v7183
        %7335 = vst.msk [vmem:[#allocation2 + $0x298] sm:$0xff] %vm1388, %v7185
        %7336 = vst.msk [vmem:[#allocation2 + $0x2a8] sm:$0xff] %vm1388, %v7187
        %7337 = vst.msk [vmem:[#allocation2 + $0x2b8] sm:$0xff] %vm1388, %v7189
        %7338 = vst.msk [vmem:[#allocation2 + $0x2c8] sm:$0xff] %vm1388, %v7191
        %7339 = vst.msk [vmem:[#allocation2 + $0x2d8] sm:$0xff] %vm1388, %v7193
        %7340 = vst.msk [vmem:[#allocation2 + $0x2e8] sm:$0xff] %vm1388, %v7195
        %7341 = vst.msk [vmem:[#allocation2 + $0x2f8] sm:$0xff] %vm1388, %v7197
        %7342 = vst.msk [vmem:[#allocation2 + $0x308] sm:$0xff] %vm1388, %v7199
        %7343 = vst.msk [vmem:[#allocation2 + $0x318] sm:$0xff] %vm1388, %v7201
        %7344 = vst.msk [vmem:[#allocation2 + $0x328] sm:$0xff] %vm1388, %v7203
        %7345 = vst.msk [vmem:[#allocation2 + $0x338] sm:$0xff] %vm1388, %v7205
        %7346 = vst.msk [vmem:[#allocation2 + $0x348] sm:$0xff] %vm1388, %v7207
        %7347 = vst.msk [vmem:[#allocation2 + $0x358] sm:$0xff] %vm1388, %v7209
        %7348 = vst.msk [vmem:[#allocation2 + $0x368] sm:$0xff] %vm1388, %v7211
        %7349 = vst.msk [vmem:[#allocation2 + $0x378] sm:$0xff] %vm1388, %v7213
        %7350 = vst.msk [vmem:[#allocation2 + $0x388] sm:$0xff] %vm1388, %v7215
        %7351 = vst.msk [vmem:[#allocation2 + $0x398] sm:$0xff] %vm1388, %v7217
        %7352 = vst.msk [vmem:[#allocation2 + $0x3a8] sm:$0xff] %vm1388, %v7219
        %7353 = vst.msk [vmem:[#allocation2 + $0x3b8] sm:$0xff] %vm1388, %v7221
        %7354 = vst.msk [vmem:[#allocation2 + $0x3c8] sm:$0xff] %vm1388, %v7223
        %7355 = vst.msk [vmem:[#allocation2 + $0x3d8] sm:$0xff] %vm1388, %v7225
        %7356 = vst.msk [vmem:[#allocation2 + $0x3e8] sm:$0xff] %vm1388, %v7227
        %7357 = vst.msk [vmem:[#allocation2 + $0x3f8] sm:$0xff] %vm1388, %v7229
        %v7358 = vld [vmem:[%s6589 + $0x2] sm:$0xff]
        %v7359 = vld [vmem:[%s6589 + $0x12] sm:$0xff]
        %v7360 = vld [vmem:[%s6589 + $0x22] sm:$0xff]
        %v7361 = vld [vmem:[%s6589 + $0x32] sm:$0xff]
        %v7362 = vld [vmem:[%s6589 + $0x42] sm:$0xff]
        %v7363 = vld [vmem:[%s6589 + $0x52] sm:$0xff]
        %v7364 = vld [vmem:[%s6589 + $0x62] sm:$0xff]
        %v7365 = vld [vmem:[%s6589 + $0x72] sm:$0xff]
        %v7366 = vld [vmem:[%s6589 + $0xa2] sm:$0xff]
        %v7367 = vld [vmem:[%s6589 + $0xb2] sm:$0xff]
        %v7368 = vld [vmem:[%s6589 + $0xc2] sm:$0xff]
        %v7369 = vld [vmem:[%s6589 + $0xd2] sm:$0xff]
        %v7370 = vld [vmem:[%s6589 + $0xe2] sm:$0xff]
        %v7371 = vld [vmem:[%s6589 + $0xf2] sm:$0xff]
        %v7372 = vld [vmem:[%s6589 + $0x102] sm:$0xff]
        %v7373 = vld [vmem:[%s6589 + $0x112] sm:$0xff]
        %v7374 = vld [vmem:[%s6589 + $0x142] sm:$0xff]
        %v7375 = vld [vmem:[%s6589 + $0x152] sm:$0xff]
        %v7376 = vld [vmem:[%s6589 + $0x162] sm:$0xff]
        %v7377 = vld [vmem:[%s6589 + $0x172] sm:$0xff]
        %v7378 = vld [vmem:[%s6589 + $0x182] sm:$0xff]
        %v7379 = vld [vmem:[%s6589 + $0x192] sm:$0xff]
        %v7380 = vld [vmem:[%s6589 + $0x1a2] sm:$0xff]
        %v7381 = vld [vmem:[%s6589 + $0x1b2] sm:$0xff]
        %v7382 = vld [vmem:[%s6589 + $0x1e2] sm:$0xff]
        %v7383 = vld [vmem:[%s6589 + $0x1f2] sm:$0xff]
        %v7384 = vld [vmem:[%s6589 + $0x202] sm:$0xff]
        %v7385 = vld [vmem:[%s6589 + $0x212] sm:$0xff]
        %v7386 = vld [vmem:[%s6589 + $0x222] sm:$0xff]
        %v7387 = vld [vmem:[%s6589 + $0x232] sm:$0xff]
        %v7388 = vld [vmem:[%s6589 + $0x242] sm:$0xff]
        %v7389 = vld [vmem:[%s6589 + $0x252] sm:$0xff]
        %v7390 = vld [vmem:[%s6589 + $0x282] sm:$0xff]
        %v7391 = vld [vmem:[%s6589 + $0x292] sm:$0xff]
        %v7392 = vld [vmem:[%s6589 + $0x2a2] sm:$0xff]
        %v7393 = vld [vmem:[%s6589 + $0x2b2] sm:$0xff]
        %v7394 = vld [vmem:[%s6589 + $0x2c2] sm:$0xff]
        %v7395 = vld [vmem:[%s6589 + $0x2d2] sm:$0xff]
        %v7396 = vld [vmem:[%s6589 + $0x2e2] sm:$0xff]
        %v7397 = vld [vmem:[%s6589 + $0x2f2] sm:$0xff]
        %v7398 = vld [vmem:[%s6589 + $0x322] sm:$0xff]
        %v7399 = vld [vmem:[%s6589 + $0x332] sm:$0xff]
        %v7400 = vld [vmem:[%s6589 + $0x342] sm:$0xff]
        %v7401 = vld [vmem:[%s6589 + $0x352] sm:$0xff]
        %v7402 = vld [vmem:[%s6589 + $0x362] sm:$0xff]
        %v7403 = vld [vmem:[%s6589 + $0x372] sm:$0xff]
        %v7404 = vld [vmem:[%s6589 + $0x382] sm:$0xff]
        %v7405 = vld [vmem:[%s6589 + $0x392] sm:$0xff]
        %v7406 = vld [vmem:[%s6589 + $0x3c2] sm:$0xff]
        %v7407 = vld [vmem:[%s6589 + $0x3d2] sm:$0xff]
        %v7408 = vld [vmem:[%s6589 + $0x3e2] sm:$0xff]
        %v7409 = vld [vmem:[%s6589 + $0x3f2] sm:$0xff]
        %v7410 = vld [vmem:[%s6589 + $0x402] sm:$0xff]
        %v7411 = vld [vmem:[%s6589 + $0x412] sm:$0xff]
        %v7412 = vld [vmem:[%s6589 + $0x422] sm:$0xff]
        %v7413 = vld [vmem:[%s6589 + $0x432] sm:$0xff]
        %v7414 = vld [vmem:[%s6589 + $0x462] sm:$0xff]
        %v7415 = vld [vmem:[%s6589 + $0x472] sm:$0xff]
        %v7416 = vld [vmem:[%s6589 + $0x482] sm:$0xff]
        %v7417 = vld [vmem:[%s6589 + $0x492] sm:$0xff]
        %v7418 = vld [vmem:[%s6589 + $0x4a2] sm:$0xff]
        %v7419 = vld [vmem:[%s6589 + $0x4b2] sm:$0xff]
        %v7420 = vld [vmem:[%s6589 + $0x4c2] sm:$0xff]
        %v7421 = vld [vmem:[%s6589 + $0x4d2] sm:$0xff]
        %7486 = vrot.lane.b32.xlu0 %v7358, 32
        %v7487 = vpop.permute.xlu0 %7486
        %7488 = vrot.lane.b32.xlu0 %v7359, 32
        %v7489 = vpop.permute.xlu0 %7488
        %7490 = vrot.lane.b32.xlu0 %v7360, 32
        %v7491 = vpop.permute.xlu0 %7490
        %7492 = vrot.lane.b32.xlu0 %v7361, 32
        %v7493 = vpop.permute.xlu0 %7492
        %7494 = vrot.lane.b32.xlu0 %v7362, 32
        %v7495 = vpop.permute.xlu0 %7494
        %7496 = vrot.lane.b32.xlu0 %v7363, 32
        %v7497 = vpop.permute.xlu0 %7496
        %7498 = vrot.lane.b32.xlu0 %v7364, 32
        %v7499 = vpop.permute.xlu0 %7498
        %7500 = vrot.lane.b32.xlu0 %v7365, 32
        %v7501 = vpop.permute.xlu0 %7500
        %7502 = vrot.lane.b32.xlu0 %v7366, 32
        %v7503 = vpop.permute.xlu0 %7502
        %7504 = vrot.lane.b32.xlu0 %v7367, 32
        %v7505 = vpop.permute.xlu0 %7504
        %7506 = vrot.lane.b32.xlu0 %v7368, 32
        %v7507 = vpop.permute.xlu0 %7506
        %7508 = vrot.lane.b32.xlu0 %v7369, 32
        %v7509 = vpop.permute.xlu0 %7508
        %7510 = vrot.lane.b32.xlu0 %v7370, 32
        %v7511 = vpop.permute.xlu0 %7510
        %7512 = vrot.lane.b32.xlu0 %v7371, 32
        %v7513 = vpop.permute.xlu0 %7512
        %7514 = vrot.lane.b32.xlu0 %v7372, 32
        %v7515 = vpop.permute.xlu0 %7514
        %7516 = vrot.lane.b32.xlu0 %v7373, 32
        %v7517 = vpop.permute.xlu0 %7516
        %7518 = vrot.lane.b32.xlu0 %v7374, 32
        %v7519 = vpop.permute.xlu0 %7518
        %7520 = vrot.lane.b32.xlu0 %v7375, 32
        %v7521 = vpop.permute.xlu0 %7520
        %7522 = vrot.lane.b32.xlu0 %v7376, 32
        %v7523 = vpop.permute.xlu0 %7522
        %7524 = vrot.lane.b32.xlu0 %v7377, 32
        %v7525 = vpop.permute.xlu0 %7524
        %7526 = vrot.lane.b32.xlu0 %v7378, 32
        %v7527 = vpop.permute.xlu0 %7526
        %7528 = vrot.lane.b32.xlu0 %v7379, 32
        %v7529 = vpop.permute.xlu0 %7528
        %7530 = vrot.lane.b32.xlu0 %v7380, 32
        %v7531 = vpop.permute.xlu0 %7530
        %7532 = vrot.lane.b32.xlu0 %v7381, 32
        %v7533 = vpop.permute.xlu0 %7532
        %7534 = vrot.lane.b32.xlu0 %v7382, 32
        %v7535 = vpop.permute.xlu0 %7534
        %7536 = vrot.lane.b32.xlu0 %v7383, 32
        %v7537 = vpop.permute.xlu0 %7536
        %7538 = vrot.lane.b32.xlu0 %v7384, 32
        %v7539 = vpop.permute.xlu0 %7538
        %7540 = vrot.lane.b32.xlu0 %v7385, 32
        %v7541 = vpop.permute.xlu0 %7540
        %7542 = vrot.lane.b32.xlu0 %v7386, 32
        %v7543 = vpop.permute.xlu0 %7542
        %7544 = vrot.lane.b32.xlu0 %v7387, 32
        %v7545 = vpop.permute.xlu0 %7544
        %7546 = vrot.lane.b32.xlu0 %v7388, 32
        %v7547 = vpop.permute.xlu0 %7546
        %7548 = vrot.lane.b32.xlu0 %v7389, 32
        %v7549 = vpop.permute.xlu0 %7548
        %7550 = vrot.lane.b32.xlu0 %v7390, 32
        %v7551 = vpop.permute.xlu0 %7550
        %7552 = vrot.lane.b32.xlu0 %v7391, 32
        %v7553 = vpop.permute.xlu0 %7552
        %7554 = vrot.lane.b32.xlu0 %v7392, 32
        %v7555 = vpop.permute.xlu0 %7554
        %7556 = vrot.lane.b32.xlu0 %v7393, 32
        %v7557 = vpop.permute.xlu0 %7556
        %7558 = vrot.lane.b32.xlu0 %v7394, 32
        %v7559 = vpop.permute.xlu0 %7558
        %7560 = vrot.lane.b32.xlu0 %v7395, 32
        %v7561 = vpop.permute.xlu0 %7560
        %7562 = vrot.lane.b32.xlu0 %v7396, 32
        %v7563 = vpop.permute.xlu0 %7562
        %7564 = vrot.lane.b32.xlu0 %v7397, 32
        %v7565 = vpop.permute.xlu0 %7564
        %7566 = vrot.lane.b32.xlu0 %v7398, 32
        %v7567 = vpop.permute.xlu0 %7566
        %7568 = vrot.lane.b32.xlu0 %v7399, 32
        %v7569 = vpop.permute.xlu0 %7568
        %7570 = vrot.lane.b32.xlu0 %v7400, 32
        %v7571 = vpop.permute.xlu0 %7570
        %7572 = vrot.lane.b32.xlu0 %v7401, 32
        %v7573 = vpop.permute.xlu0 %7572
        %7574 = vrot.lane.b32.xlu0 %v7402, 32
        %v7575 = vpop.permute.xlu0 %7574
        %7576 = vrot.lane.b32.xlu0 %v7403, 32
        %v7577 = vpop.permute.xlu0 %7576
        %7578 = vrot.lane.b32.xlu0 %v7404, 32
        %v7579 = vpop.permute.xlu0 %7578
        %7580 = vrot.lane.b32.xlu0 %v7405, 32
        %v7581 = vpop.permute.xlu0 %7580
        %7582 = vrot.lane.b32.xlu0 %v7406, 32
        %v7583 = vpop.permute.xlu0 %7582
        %7584 = vrot.lane.b32.xlu0 %v7407, 32
        %v7585 = vpop.permute.xlu0 %7584
        %7586 = vrot.lane.b32.xlu0 %v7408, 32
        %v7587 = vpop.permute.xlu0 %7586
        %7588 = vrot.lane.b32.xlu0 %v7409, 32
        %v7589 = vpop.permute.xlu0 %7588
        %7590 = vrot.lane.b32.xlu0 %v7410, 32
        %v7591 = vpop.permute.xlu0 %7590
        %7592 = vrot.lane.b32.xlu0 %v7411, 32
        %v7593 = vpop.permute.xlu0 %7592
        %7594 = vrot.lane.b32.xlu0 %v7412, 32
        %v7595 = vpop.permute.xlu0 %7594
        %7596 = vrot.lane.b32.xlu0 %v7413, 32
        %v7597 = vpop.permute.xlu0 %7596
        %7598 = vrot.lane.b32.xlu0 %v7414, 32
        %v7599 = vpop.permute.xlu0 %7598
        %7600 = vrot.lane.b32.xlu0 %v7415, 32
        %v7601 = vpop.permute.xlu0 %7600
        %7602 = vrot.lane.b32.xlu0 %v7416, 32
        %v7603 = vpop.permute.xlu0 %7602
        %7604 = vrot.lane.b32.xlu0 %v7417, 32
        %v7605 = vpop.permute.xlu0 %7604
        %7606 = vrot.lane.b32.xlu0 %v7418, 32
        %v7607 = vpop.permute.xlu0 %7606
        %7608 = vrot.lane.b32.xlu0 %v7419, 32
        %v7609 = vpop.permute.xlu0 %7608
        %7610 = vrot.lane.b32.xlu0 %v7420, 32
        %v7611 = vpop.permute.xlu0 %7610
        %7612 = vrot.lane.b32.xlu0 %v7421, 32
        %v7613 = vpop.permute.xlu0 %7612
        %7678 = vst.msk [vmem:[#allocation2 + $0x8] sm:$0xff] %vm1773, %v7487
        %7679 = vst.msk [vmem:[#allocation2 + $0x18] sm:$0xff] %vm1773, %v7489
        %7680 = vst.msk [vmem:[#allocation2 + $0x28] sm:$0xff] %vm1773, %v7491
        %7681 = vst.msk [vmem:[#allocation2 + $0x38] sm:$0xff] %vm1773, %v7493
        %7682 = vst.msk [vmem:[#allocation2 + $0x48] sm:$0xff] %vm1773, %v7495
        %7683 = vst.msk [vmem:[#allocation2 + $0x58] sm:$0xff] %vm1773, %v7497
        %7684 = vst.msk [vmem:[#allocation2 + $0x68] sm:$0xff] %vm1773, %v7499
        %7685 = vst.msk [vmem:[#allocation2 + $0x78] sm:$0xff] %vm1773, %v7501
        %7686 = vst.msk [vmem:[#allocation2 + $0x88] sm:$0xff] %vm1773, %v7503
        %7687 = vst.msk [vmem:[#allocation2 + $0x98] sm:$0xff] %vm1773, %v7505
        %7688 = vst.msk [vmem:[#allocation2 + $0xa8] sm:$0xff] %vm1773, %v7507
        %7689 = vst.msk [vmem:[#allocation2 + $0xb8] sm:$0xff] %vm1773, %v7509
        %7690 = vst.msk [vmem:[#allocation2 + $0xc8] sm:$0xff] %vm1773, %v7511
        %7691 = vst.msk [vmem:[#allocation2 + $0xd8] sm:$0xff] %vm1773, %v7513
        %7692 = vst.msk [vmem:[#allocation2 + $0xe8] sm:$0xff] %vm1773, %v7515
        %7693 = vst.msk [vmem:[#allocation2 + $0xf8] sm:$0xff] %vm1773, %v7517
        %7694 = vst.msk [vmem:[#allocation2 + $0x108] sm:$0xff] %vm1773, %v7519
        %7695 = vst.msk [vmem:[#allocation2 + $0x118] sm:$0xff] %vm1773, %v7521
        %7696 = vst.msk [vmem:[#allocation2 + $0x128] sm:$0xff] %vm1773, %v7523
        %7697 = vst.msk [vmem:[#allocation2 + $0x138] sm:$0xff] %vm1773, %v7525
        %7698 = vst.msk [vmem:[#allocation2 + $0x148] sm:$0xff] %vm1773, %v7527
        %7699 = vst.msk [vmem:[#allocation2 + $0x158] sm:$0xff] %vm1773, %v7529
        %7700 = vst.msk [vmem:[#allocation2 + $0x168] sm:$0xff] %vm1773, %v7531
        %7701 = vst.msk [vmem:[#allocation2 + $0x178] sm:$0xff] %vm1773, %v7533
        %7702 = vst.msk [vmem:[#allocation2 + $0x188] sm:$0xff] %vm1773, %v7535
        %7703 = vst.msk [vmem:[#allocation2 + $0x198] sm:$0xff] %vm1773, %v7537
        %7704 = vst.msk [vmem:[#allocation2 + $0x1a8] sm:$0xff] %vm1773, %v7539
        %7705 = vst.msk [vmem:[#allocation2 + $0x1b8] sm:$0xff] %vm1773, %v7541
        %7706 = vst.msk [vmem:[#allocation2 + $0x1c8] sm:$0xff] %vm1773, %v7543
        %7707 = vst.msk [vmem:[#allocation2 + $0x1d8] sm:$0xff] %vm1773, %v7545
        %7708 = vst.msk [vmem:[#allocation2 + $0x1e8] sm:$0xff] %vm1773, %v7547
        %7709 = vst.msk [vmem:[#allocation2 + $0x1f8] sm:$0xff] %vm1773, %v7549
        %7710 = vst.msk [vmem:[#allocation2 + $0x208] sm:$0xff] %vm1773, %v7551
        %7711 = vst.msk [vmem:[#allocation2 + $0x218] sm:$0xff] %vm1773, %v7553
        %7712 = vst.msk [vmem:[#allocation2 + $0x228] sm:$0xff] %vm1773, %v7555
        %7713 = vst.msk [vmem:[#allocation2 + $0x238] sm:$0xff] %vm1773, %v7557
        %7714 = vst.msk [vmem:[#allocation2 + $0x248] sm:$0xff] %vm1773, %v7559
        %7715 = vst.msk [vmem:[#allocation2 + $0x258] sm:$0xff] %vm1773, %v7561
        %7716 = vst.msk [vmem:[#allocation2 + $0x268] sm:$0xff] %vm1773, %v7563
        %7717 = vst.msk [vmem:[#allocation2 + $0x278] sm:$0xff] %vm1773, %v7565
        %7718 = vst.msk [vmem:[#allocation2 + $0x288] sm:$0xff] %vm1773, %v7567
        %7719 = vst.msk [vmem:[#allocation2 + $0x298] sm:$0xff] %vm1773, %v7569
        %7720 = vst.msk [vmem:[#allocation2 + $0x2a8] sm:$0xff] %vm1773, %v7571
        %7721 = vst.msk [vmem:[#allocation2 + $0x2b8] sm:$0xff] %vm1773, %v7573
        %7722 = vst.msk [vmem:[#allocation2 + $0x2c8] sm:$0xff] %vm1773, %v7575
        %7723 = vst.msk [vmem:[#allocation2 + $0x2d8] sm:$0xff] %vm1773, %v7577
        %7724 = vst.msk [vmem:[#allocation2 + $0x2e8] sm:$0xff] %vm1773, %v7579
        %7725 = vst.msk [vmem:[#allocation2 + $0x2f8] sm:$0xff] %vm1773, %v7581
        %7726 = vst.msk [vmem:[#allocation2 + $0x308] sm:$0xff] %vm1773, %v7583
        %7727 = vst.msk [vmem:[#allocation2 + $0x318] sm:$0xff] %vm1773, %v7585
        %7728 = vst.msk [vmem:[#allocation2 + $0x328] sm:$0xff] %vm1773, %v7587
        %7729 = vst.msk [vmem:[#allocation2 + $0x338] sm:$0xff] %vm1773, %v7589
        %7730 = vst.msk [vmem:[#allocation2 + $0x348] sm:$0xff] %vm1773, %v7591
        %7731 = vst.msk [vmem:[#allocation2 + $0x358] sm:$0xff] %vm1773, %v7593
        %7732 = vst.msk [vmem:[#allocation2 + $0x368] sm:$0xff] %vm1773, %v7595
        %7733 = vst.msk [vmem:[#allocation2 + $0x378] sm:$0xff] %vm1773, %v7597
        %7734 = vst.msk [vmem:[#allocation2 + $0x388] sm:$0xff] %vm1773, %v7599
        %7735 = vst.msk [vmem:[#allocation2 + $0x398] sm:$0xff] %vm1773, %v7601
        %7736 = vst.msk [vmem:[#allocation2 + $0x3a8] sm:$0xff] %vm1773, %v7603
        %7737 = vst.msk [vmem:[#allocation2 + $0x3b8] sm:$0xff] %vm1773, %v7605
        %7738 = vst.msk [vmem:[#allocation2 + $0x3c8] sm:$0xff] %vm1773, %v7607
        %7739 = vst.msk [vmem:[#allocation2 + $0x3d8] sm:$0xff] %vm1773, %v7609
        %7740 = vst.msk [vmem:[#allocation2 + $0x3e8] sm:$0xff] %vm1773, %v7611
        %7741 = vst.msk [vmem:[#allocation2 + $0x3f8] sm:$0xff] %vm1773, %v7613
        %s7742 = scalar_lea.vmem %s167, 336
        %v7743 = vld [vmem:[%s7742] sm:$0xff]
        %v7744 = vld [vmem:[%s7742 + $0x10] sm:$0xff]
        %v7745 = vld [vmem:[%s7742 + $0x20] sm:$0xff]
        %v7746 = vld [vmem:[%s7742 + $0x30] sm:$0xff]
        %v7747 = vld [vmem:[%s7742 + $0x40] sm:$0xff]
        %v7748 = vld [vmem:[%s7742 + $0x50] sm:$0xff]
        %v7749 = vld [vmem:[%s7742 + $0x60] sm:$0xff]
        %v7750 = vld [vmem:[%s7742 + $0x70] sm:$0xff]
        %v7751 = vld [vmem:[%s7742 + $0xa0] sm:$0xff]
        %v7752 = vld [vmem:[%s7742 + $0xb0] sm:$0xff]
        %v7753 = vld [vmem:[%s7742 + $0xc0] sm:$0xff]
        %v7754 = vld [vmem:[%s7742 + $0xd0] sm:$0xff]
        %v7755 = vld [vmem:[%s7742 + $0xe0] sm:$0xff]
        %v7756 = vld [vmem:[%s7742 + $0xf0] sm:$0xff]
        %v7757 = vld [vmem:[%s7742 + $0x100] sm:$0xff]
        %v7758 = vld [vmem:[%s7742 + $0x110] sm:$0xff]
        %v7759 = vld [vmem:[%s7742 + $0x140] sm:$0xff]
        %v7760 = vld [vmem:[%s7742 + $0x150] sm:$0xff]
        %v7761 = vld [vmem:[%s7742 + $0x160] sm:$0xff]
        %v7762 = vld [vmem:[%s7742 + $0x170] sm:$0xff]
        %v7763 = vld [vmem:[%s7742 + $0x180] sm:$0xff]
        %v7764 = vld [vmem:[%s7742 + $0x190] sm:$0xff]
        %v7765 = vld [vmem:[%s7742 + $0x1a0] sm:$0xff]
        %v7766 = vld [vmem:[%s7742 + $0x1b0] sm:$0xff]
        %v7767 = vld [vmem:[%s7742 + $0x1e0] sm:$0xff]
        %v7768 = vld [vmem:[%s7742 + $0x1f0] sm:$0xff]
        %v7769 = vld [vmem:[%s7742 + $0x200] sm:$0xff]
        %v7770 = vld [vmem:[%s7742 + $0x210] sm:$0xff]
        %v7771 = vld [vmem:[%s7742 + $0x220] sm:$0xff]
        %v7772 = vld [vmem:[%s7742 + $0x230] sm:$0xff]
        %v7773 = vld [vmem:[%s7742 + $0x240] sm:$0xff]
        %v7774 = vld [vmem:[%s7742 + $0x250] sm:$0xff]
        %v7775 = vld [vmem:[%s7742 + $0x280] sm:$0xff]
        %v7776 = vld [vmem:[%s7742 + $0x290] sm:$0xff]
        %v7777 = vld [vmem:[%s7742 + $0x2a0] sm:$0xff]
        %v7778 = vld [vmem:[%s7742 + $0x2b0] sm:$0xff]
        %v7779 = vld [vmem:[%s7742 + $0x2c0] sm:$0xff]
        %v7780 = vld [vmem:[%s7742 + $0x2d0] sm:$0xff]
        %v7781 = vld [vmem:[%s7742 + $0x2e0] sm:$0xff]
        %v7782 = vld [vmem:[%s7742 + $0x2f0] sm:$0xff]
        %v7783 = vld [vmem:[%s7742 + $0x320] sm:$0xff]
        %v7784 = vld [vmem:[%s7742 + $0x330] sm:$0xff]
        %v7785 = vld [vmem:[%s7742 + $0x340] sm:$0xff]
        %v7786 = vld [vmem:[%s7742 + $0x350] sm:$0xff]
        %v7787 = vld [vmem:[%s7742 + $0x360] sm:$0xff]
        %v7788 = vld [vmem:[%s7742 + $0x370] sm:$0xff]
        %v7789 = vld [vmem:[%s7742 + $0x380] sm:$0xff]
        %v7790 = vld [vmem:[%s7742 + $0x390] sm:$0xff]
        %v7791 = vld [vmem:[%s7742 + $0x3c0] sm:$0xff]
        %v7792 = vld [vmem:[%s7742 + $0x3d0] sm:$0xff]
        %v7793 = vld [vmem:[%s7742 + $0x3e0] sm:$0xff]
        %v7794 = vld [vmem:[%s7742 + $0x3f0] sm:$0xff]
        %v7795 = vld [vmem:[%s7742 + $0x400] sm:$0xff]
        %v7796 = vld [vmem:[%s7742 + $0x410] sm:$0xff]
        %v7797 = vld [vmem:[%s7742 + $0x420] sm:$0xff]
        %v7798 = vld [vmem:[%s7742 + $0x430] sm:$0xff]
        %v7799 = vld [vmem:[%s7742 + $0x460] sm:$0xff]
        %v7800 = vld [vmem:[%s7742 + $0x470] sm:$0xff]
        %v7801 = vld [vmem:[%s7742 + $0x480] sm:$0xff]
        %v7802 = vld [vmem:[%s7742 + $0x490] sm:$0xff]
        %v7803 = vld [vmem:[%s7742 + $0x4a0] sm:$0xff]
        %v7804 = vld [vmem:[%s7742 + $0x4b0] sm:$0xff]
        %v7805 = vld [vmem:[%s7742 + $0x4c0] sm:$0xff]
        %v7806 = vld [vmem:[%s7742 + $0x4d0] sm:$0xff]
        %7871 = vrot.lane.b32.xlu0 %v7743, 40
        %v7872 = vpop.permute.xlu0 %7871
        %7873 = vrot.lane.b32.xlu0 %v7744, 40
        %v7874 = vpop.permute.xlu0 %7873
        %7875 = vrot.lane.b32.xlu0 %v7745, 40
        %v7876 = vpop.permute.xlu0 %7875
        %7877 = vrot.lane.b32.xlu0 %v7746, 40
        %v7878 = vpop.permute.xlu0 %7877
        %7879 = vrot.lane.b32.xlu0 %v7747, 40
        %v7880 = vpop.permute.xlu0 %7879
        %7881 = vrot.lane.b32.xlu0 %v7748, 40
        %v7882 = vpop.permute.xlu0 %7881
        %7883 = vrot.lane.b32.xlu0 %v7749, 40
        %v7884 = vpop.permute.xlu0 %7883
        %7885 = vrot.lane.b32.xlu0 %v7750, 40
        %v7886 = vpop.permute.xlu0 %7885
        %7887 = vrot.lane.b32.xlu0 %v7751, 40
        %v7888 = vpop.permute.xlu0 %7887
        %7889 = vrot.lane.b32.xlu0 %v7752, 40
        %v7890 = vpop.permute.xlu0 %7889
        %7891 = vrot.lane.b32.xlu0 %v7753, 40
        %v7892 = vpop.permute.xlu0 %7891
        %7893 = vrot.lane.b32.xlu0 %v7754, 40
        %v7894 = vpop.permute.xlu0 %7893
        %7895 = vrot.lane.b32.xlu0 %v7755, 40
        %v7896 = vpop.permute.xlu0 %7895
        %7897 = vrot.lane.b32.xlu0 %v7756, 40
        %v7898 = vpop.permute.xlu0 %7897
        %7899 = vrot.lane.b32.xlu0 %v7757, 40
        %v7900 = vpop.permute.xlu0 %7899
        %7901 = vrot.lane.b32.xlu0 %v7758, 40
        %v7902 = vpop.permute.xlu0 %7901
        %7903 = vrot.lane.b32.xlu0 %v7759, 40
        %v7904 = vpop.permute.xlu0 %7903
        %7905 = vrot.lane.b32.xlu0 %v7760, 40
        %v7906 = vpop.permute.xlu0 %7905
        %7907 = vrot.lane.b32.xlu0 %v7761, 40
        %v7908 = vpop.permute.xlu0 %7907
        %7909 = vrot.lane.b32.xlu0 %v7762, 40
        %v7910 = vpop.permute.xlu0 %7909
        %7911 = vrot.lane.b32.xlu0 %v7763, 40
        %v7912 = vpop.permute.xlu0 %7911
        %7913 = vrot.lane.b32.xlu0 %v7764, 40
        %v7914 = vpop.permute.xlu0 %7913
        %7915 = vrot.lane.b32.xlu0 %v7765, 40
        %v7916 = vpop.permute.xlu0 %7915
        %7917 = vrot.lane.b32.xlu0 %v7766, 40
        %v7918 = vpop.permute.xlu0 %7917
        %7919 = vrot.lane.b32.xlu0 %v7767, 40
        %v7920 = vpop.permute.xlu0 %7919
        %7921 = vrot.lane.b32.xlu0 %v7768, 40
        %v7922 = vpop.permute.xlu0 %7921
        %7923 = vrot.lane.b32.xlu0 %v7769, 40
        %v7924 = vpop.permute.xlu0 %7923
        %7925 = vrot.lane.b32.xlu0 %v7770, 40
        %v7926 = vpop.permute.xlu0 %7925
        %7927 = vrot.lane.b32.xlu0 %v7771, 40
        %v7928 = vpop.permute.xlu0 %7927
        %7929 = vrot.lane.b32.xlu0 %v7772, 40
        %v7930 = vpop.permute.xlu0 %7929
        %7931 = vrot.lane.b32.xlu0 %v7773, 40
        %v7932 = vpop.permute.xlu0 %7931
        %7933 = vrot.lane.b32.xlu0 %v7774, 40
        %v7934 = vpop.permute.xlu0 %7933
        %7935 = vrot.lane.b32.xlu0 %v7775, 40
        %v7936 = vpop.permute.xlu0 %7935
        %7937 = vrot.lane.b32.xlu0 %v7776, 40
        %v7938 = vpop.permute.xlu0 %7937
        %7939 = vrot.lane.b32.xlu0 %v7777, 40
        %v7940 = vpop.permute.xlu0 %7939
        %7941 = vrot.lane.b32.xlu0 %v7778, 40
        %v7942 = vpop.permute.xlu0 %7941
        %7943 = vrot.lane.b32.xlu0 %v7779, 40
        %v7944 = vpop.permute.xlu0 %7943
        %7945 = vrot.lane.b32.xlu0 %v7780, 40
        %v7946 = vpop.permute.xlu0 %7945
        %7947 = vrot.lane.b32.xlu0 %v7781, 40
        %v7948 = vpop.permute.xlu0 %7947
        %7949 = vrot.lane.b32.xlu0 %v7782, 40
        %v7950 = vpop.permute.xlu0 %7949
        %7951 = vrot.lane.b32.xlu0 %v7783, 40
        %v7952 = vpop.permute.xlu0 %7951
        %7953 = vrot.lane.b32.xlu0 %v7784, 40
        %v7954 = vpop.permute.xlu0 %7953
        %7955 = vrot.lane.b32.xlu0 %v7785, 40
        %v7956 = vpop.permute.xlu0 %7955
        %7957 = vrot.lane.b32.xlu0 %v7786, 40
        %v7958 = vpop.permute.xlu0 %7957
        %7959 = vrot.lane.b32.xlu0 %v7787, 40
        %v7960 = vpop.permute.xlu0 %7959
        %7961 = vrot.lane.b32.xlu0 %v7788, 40
        %v7962 = vpop.permute.xlu0 %7961
        %7963 = vrot.lane.b32.xlu0 %v7789, 40
        %v7964 = vpop.permute.xlu0 %7963
        %7965 = vrot.lane.b32.xlu0 %v7790, 40
        %v7966 = vpop.permute.xlu0 %7965
        %7967 = vrot.lane.b32.xlu0 %v7791, 40
        %v7968 = vpop.permute.xlu0 %7967
        %7969 = vrot.lane.b32.xlu0 %v7792, 40
        %v7970 = vpop.permute.xlu0 %7969
        %7971 = vrot.lane.b32.xlu0 %v7793, 40
        %v7972 = vpop.permute.xlu0 %7971
        %7973 = vrot.lane.b32.xlu0 %v7794, 40
        %v7974 = vpop.permute.xlu0 %7973
        %7975 = vrot.lane.b32.xlu0 %v7795, 40
        %v7976 = vpop.permute.xlu0 %7975
        %7977 = vrot.lane.b32.xlu0 %v7796, 40
        %v7978 = vpop.permute.xlu0 %7977
        %7979 = vrot.lane.b32.xlu0 %v7797, 40
        %v7980 = vpop.permute.xlu0 %7979
        %7981 = vrot.lane.b32.xlu0 %v7798, 40
        %v7982 = vpop.permute.xlu0 %7981
        %7983 = vrot.lane.b32.xlu0 %v7799, 40
        %v7984 = vpop.permute.xlu0 %7983
        %7985 = vrot.lane.b32.xlu0 %v7800, 40
        %v7986 = vpop.permute.xlu0 %7985
        %7987 = vrot.lane.b32.xlu0 %v7801, 40
        %v7988 = vpop.permute.xlu0 %7987
        %7989 = vrot.lane.b32.xlu0 %v7802, 40
        %v7990 = vpop.permute.xlu0 %7989
        %7991 = vrot.lane.b32.xlu0 %v7803, 40
        %v7992 = vpop.permute.xlu0 %7991
        %7993 = vrot.lane.b32.xlu0 %v7804, 40
        %v7994 = vpop.permute.xlu0 %7993
        %7995 = vrot.lane.b32.xlu0 %v7805, 40
        %v7996 = vpop.permute.xlu0 %7995
        %7997 = vrot.lane.b32.xlu0 %v7806, 40
        %v7998 = vpop.permute.xlu0 %7997
        %8063 = vst.msk [vmem:[#allocation2 + $0x8] sm:$0xff] %vm2158, %v7872
        %8064 = vst.msk [vmem:[#allocation2 + $0x18] sm:$0xff] %vm2158, %v7874
        %8065 = vst.msk [vmem:[#allocation2 + $0x28] sm:$0xff] %vm2158, %v7876
        %8066 = vst.msk [vmem:[#allocation2 + $0x38] sm:$0xff] %vm2158, %v7878
        %8067 = vst.msk [vmem:[#allocation2 + $0x48] sm:$0xff] %vm2158, %v7880
        %8068 = vst.msk [vmem:[#allocation2 + $0x58] sm:$0xff] %vm2158, %v7882
        %8069 = vst.msk [vmem:[#allocation2 + $0x68] sm:$0xff] %vm2158, %v7884
        %8070 = vst.msk [vmem:[#allocation2 + $0x78] sm:$0xff] %vm2158, %v7886
        %8071 = vst.msk [vmem:[#allocation2 + $0x88] sm:$0xff] %vm2158, %v7888
        %8072 = vst.msk [vmem:[#allocation2 + $0x98] sm:$0xff] %vm2158, %v7890
        %8073 = vst.msk [vmem:[#allocation2 + $0xa8] sm:$0xff] %vm2158, %v7892
        %8074 = vst.msk [vmem:[#allocation2 + $0xb8] sm:$0xff] %vm2158, %v7894
        %8075 = vst.msk [vmem:[#allocation2 + $0xc8] sm:$0xff] %vm2158, %v7896
        %8076 = vst.msk [vmem:[#allocation2 + $0xd8] sm:$0xff] %vm2158, %v7898
        %8077 = vst.msk [vmem:[#allocation2 + $0xe8] sm:$0xff] %vm2158, %v7900
        %8078 = vst.msk [vmem:[#allocation2 + $0xf8] sm:$0xff] %vm2158, %v7902
        %8079 = vst.msk [vmem:[#allocation2 + $0x108] sm:$0xff] %vm2158, %v7904
        %8080 = vst.msk [vmem:[#allocation2 + $0x118] sm:$0xff] %vm2158, %v7906
        %8081 = vst.msk [vmem:[#allocation2 + $0x128] sm:$0xff] %vm2158, %v7908
        %8082 = vst.msk [vmem:[#allocation2 + $0x138] sm:$0xff] %vm2158, %v7910
        %8083 = vst.msk [vmem:[#allocation2 + $0x148] sm:$0xff] %vm2158, %v7912
        %8084 = vst.msk [vmem:[#allocation2 + $0x158] sm:$0xff] %vm2158, %v7914
        %8085 = vst.msk [vmem:[#allocation2 + $0x168] sm:$0xff] %vm2158, %v7916
        %8086 = vst.msk [vmem:[#allocation2 + $0x178] sm:$0xff] %vm2158, %v7918
        %8087 = vst.msk [vmem:[#allocation2 + $0x188] sm:$0xff] %vm2158, %v7920
        %8088 = vst.msk [vmem:[#allocation2 + $0x198] sm:$0xff] %vm2158, %v7922
        %8089 = vst.msk [vmem:[#allocation2 + $0x1a8] sm:$0xff] %vm2158, %v7924
        %8090 = vst.msk [vmem:[#allocation2 + $0x1b8] sm:$0xff] %vm2158, %v7926
        %8091 = vst.msk [vmem:[#allocation2 + $0x1c8] sm:$0xff] %vm2158, %v7928
        %8092 = vst.msk [vmem:[#allocation2 + $0x1d8] sm:$0xff] %vm2158, %v7930
        %8093 = vst.msk [vmem:[#allocation2 + $0x1e8] sm:$0xff] %vm2158, %v7932
        %8094 = vst.msk [vmem:[#allocation2 + $0x1f8] sm:$0xff] %vm2158, %v7934
        %8095 = vst.msk [vmem:[#allocation2 + $0x208] sm:$0xff] %vm2158, %v7936
        %8096 = vst.msk [vmem:[#allocation2 + $0x218] sm:$0xff] %vm2158, %v7938
        %8097 = vst.msk [vmem:[#allocation2 + $0x228] sm:$0xff] %vm2158, %v7940
        %8098 = vst.msk [vmem:[#allocation2 + $0x238] sm:$0xff] %vm2158, %v7942
        %8099 = vst.msk [vmem:[#allocation2 + $0x248] sm:$0xff] %vm2158, %v7944
        %8100 = vst.msk [vmem:[#allocation2 + $0x258] sm:$0xff] %vm2158, %v7946
        %8101 = vst.msk [vmem:[#allocation2 + $0x268] sm:$0xff] %vm2158, %v7948
        %8102 = vst.msk [vmem:[#allocation2 + $0x278] sm:$0xff] %vm2158, %v7950
        %8103 = vst.msk [vmem:[#allocation2 + $0x288] sm:$0xff] %vm2158, %v7952
        %8104 = vst.msk [vmem:[#allocation2 + $0x298] sm:$0xff] %vm2158, %v7954
        %8105 = vst.msk [vmem:[#allocation2 + $0x2a8] sm:$0xff] %vm2158, %v7956
        %8106 = vst.msk [vmem:[#allocation2 + $0x2b8] sm:$0xff] %vm2158, %v7958
        %8107 = vst.msk [vmem:[#allocation2 + $0x2c8] sm:$0xff] %vm2158, %v7960
        %8108 = vst.msk [vmem:[#allocation2 + $0x2d8] sm:$0xff] %vm2158, %v7962
        %8109 = vst.msk [vmem:[#allocation2 + $0x2e8] sm:$0xff] %vm2158, %v7964
        %8110 = vst.msk [vmem:[#allocation2 + $0x2f8] sm:$0xff] %vm2158, %v7966
        %8111 = vst.msk [vmem:[#allocation2 + $0x308] sm:$0xff] %vm2158, %v7968
        %8112 = vst.msk [vmem:[#allocation2 + $0x318] sm:$0xff] %vm2158, %v7970
        %8113 = vst.msk [vmem:[#allocation2 + $0x328] sm:$0xff] %vm2158, %v7972
        %8114 = vst.msk [vmem:[#allocation2 + $0x338] sm:$0xff] %vm2158, %v7974
        %8115 = vst.msk [vmem:[#allocation2 + $0x348] sm:$0xff] %vm2158, %v7976
        %8116 = vst.msk [vmem:[#allocation2 + $0x358] sm:$0xff] %vm2158, %v7978
        %8117 = vst.msk [vmem:[#allocation2 + $0x368] sm:$0xff] %vm2158, %v7980
        %8118 = vst.msk [vmem:[#allocation2 + $0x378] sm:$0xff] %vm2158, %v7982
        %8119 = vst.msk [vmem:[#allocation2 + $0x388] sm:$0xff] %vm2158, %v7984
        %8120 = vst.msk [vmem:[#allocation2 + $0x398] sm:$0xff] %vm2158, %v7986
        %8121 = vst.msk [vmem:[#allocation2 + $0x3a8] sm:$0xff] %vm2158, %v7988
        %8122 = vst.msk [vmem:[#allocation2 + $0x3b8] sm:$0xff] %vm2158, %v7990
        %8123 = vst.msk [vmem:[#allocation2 + $0x3c8] sm:$0xff] %vm2158, %v7992
        %8124 = vst.msk [vmem:[#allocation2 + $0x3d8] sm:$0xff] %vm2158, %v7994
        %8125 = vst.msk [vmem:[#allocation2 + $0x3e8] sm:$0xff] %vm2158, %v7996
        %8126 = vst.msk [vmem:[#allocation2 + $0x3f8] sm:$0xff] %vm2158, %v7998
        %v8127 = vld [vmem:[%s7742 + $0x1] sm:$0xff]
        %v8128 = vld [vmem:[%s7742 + $0x11] sm:$0xff]
        %v8129 = vld [vmem:[%s7742 + $0x21] sm:$0xff]
        %v8130 = vld [vmem:[%s7742 + $0x31] sm:$0xff]
        %v8131 = vld [vmem:[%s7742 + $0x41] sm:$0xff]
        %v8132 = vld [vmem:[%s7742 + $0x51] sm:$0xff]
        %v8133 = vld [vmem:[%s7742 + $0x61] sm:$0xff]
        %v8134 = vld [vmem:[%s7742 + $0x71] sm:$0xff]
        %v8135 = vld [vmem:[%s7742 + $0xa1] sm:$0xff]
        %v8136 = vld [vmem:[%s7742 + $0xb1] sm:$0xff]
        %v8137 = vld [vmem:[%s7742 + $0xc1] sm:$0xff]
        %v8138 = vld [vmem:[%s7742 + $0xd1] sm:$0xff]
        %v8139 = vld [vmem:[%s7742 + $0xe1] sm:$0xff]
        %v8140 = vld [vmem:[%s7742 + $0xf1] sm:$0xff]
        %v8141 = vld [vmem:[%s7742 + $0x101] sm:$0xff]
        %v8142 = vld [vmem:[%s7742 + $0x111] sm:$0xff]
        %v8143 = vld [vmem:[%s7742 + $0x141] sm:$0xff]
        %v8144 = vld [vmem:[%s7742 + $0x151] sm:$0xff]
        %v8145 = vld [vmem:[%s7742 + $0x161] sm:$0xff]
        %v8146 = vld [vmem:[%s7742 + $0x171] sm:$0xff]
        %v8147 = vld [vmem:[%s7742 + $0x181] sm:$0xff]
        %v8148 = vld [vmem:[%s7742 + $0x191] sm:$0xff]
        %v8149 = vld [vmem:[%s7742 + $0x1a1] sm:$0xff]
        %v8150 = vld [vmem:[%s7742 + $0x1b1] sm:$0xff]
        %v8151 = vld [vmem:[%s7742 + $0x1e1] sm:$0xff]
        %v8152 = vld [vmem:[%s7742 + $0x1f1] sm:$0xff]
        %v8153 = vld [vmem:[%s7742 + $0x201] sm:$0xff]
        %v8154 = vld [vmem:[%s7742 + $0x211] sm:$0xff]
        %v8155 = vld [vmem:[%s7742 + $0x221] sm:$0xff]
        %v8156 = vld [vmem:[%s7742 + $0x231] sm:$0xff]
        %v8157 = vld [vmem:[%s7742 + $0x241] sm:$0xff]
        %v8158 = vld [vmem:[%s7742 + $0x251] sm:$0xff]
        %v8159 = vld [vmem:[%s7742 + $0x281] sm:$0xff]
        %v8160 = vld [vmem:[%s7742 + $0x291] sm:$0xff]
        %v8161 = vld [vmem:[%s7742 + $0x2a1] sm:$0xff]
        %v8162 = vld [vmem:[%s7742 + $0x2b1] sm:$0xff]
        %v8163 = vld [vmem:[%s7742 + $0x2c1] sm:$0xff]
        %v8164 = vld [vmem:[%s7742 + $0x2d1] sm:$0xff]
        %v8165 = vld [vmem:[%s7742 + $0x2e1] sm:$0xff]
        %v8166 = vld [vmem:[%s7742 + $0x2f1] sm:$0xff]
        %v8167 = vld [vmem:[%s7742 + $0x321] sm:$0xff]
        %v8168 = vld [vmem:[%s7742 + $0x331] sm:$0xff]
        %v8169 = vld [vmem:[%s7742 + $0x341] sm:$0xff]
        %v8170 = vld [vmem:[%s7742 + $0x351] sm:$0xff]
        %v8171 = vld [vmem:[%s7742 + $0x361] sm:$0xff]
        %v8172 = vld [vmem:[%s7742 + $0x371] sm:$0xff]
        %v8173 = vld [vmem:[%s7742 + $0x381] sm:$0xff]
        %v8174 = vld [vmem:[%s7742 + $0x391] sm:$0xff]
        %v8175 = vld [vmem:[%s7742 + $0x3c1] sm:$0xff]
        %v8176 = vld [vmem:[%s7742 + $0x3d1] sm:$0xff]
        %v8177 = vld [vmem:[%s7742 + $0x3e1] sm:$0xff]
        %v8178 = vld [vmem:[%s7742 + $0x3f1] sm:$0xff]
        %v8179 = vld [vmem:[%s7742 + $0x401] sm:$0xff]
        %v8180 = vld [vmem:[%s7742 + $0x411] sm:$0xff]
        %v8181 = vld [vmem:[%s7742 + $0x421] sm:$0xff]
        %v8182 = vld [vmem:[%s7742 + $0x431] sm:$0xff]
        %v8183 = vld [vmem:[%s7742 + $0x461] sm:$0xff]
        %v8184 = vld [vmem:[%s7742 + $0x471] sm:$0xff]
        %v8185 = vld [vmem:[%s7742 + $0x481] sm:$0xff]
        %v8186 = vld [vmem:[%s7742 + $0x491] sm:$0xff]
        %v8187 = vld [vmem:[%s7742 + $0x4a1] sm:$0xff]
        %v8188 = vld [vmem:[%s7742 + $0x4b1] sm:$0xff]
        %v8189 = vld [vmem:[%s7742 + $0x4c1] sm:$0xff]
        %v8190 = vld [vmem:[%s7742 + $0x4d1] sm:$0xff]
        %8255 = vrot.lane.b32.xlu0 %v8127, 48
        %v8256 = vpop.permute.xlu0 %8255
        %8257 = vrot.lane.b32.xlu0 %v8128, 48
        %v8258 = vpop.permute.xlu0 %8257
        %8259 = vrot.lane.b32.xlu0 %v8129, 48
        %v8260 = vpop.permute.xlu0 %8259
        %8261 = vrot.lane.b32.xlu0 %v8130, 48
        %v8262 = vpop.permute.xlu0 %8261
        %8263 = vrot.lane.b32.xlu0 %v8131, 48
        %v8264 = vpop.permute.xlu0 %8263
        %8265 = vrot.lane.b32.xlu0 %v8132, 48
        %v8266 = vpop.permute.xlu0 %8265
        %8267 = vrot.lane.b32.xlu0 %v8133, 48
        %v8268 = vpop.permute.xlu0 %8267
        %8269 = vrot.lane.b32.xlu0 %v8134, 48
        %v8270 = vpop.permute.xlu0 %8269
        %8271 = vrot.lane.b32.xlu0 %v8135, 48
        %v8272 = vpop.permute.xlu0 %8271
        %8273 = vrot.lane.b32.xlu0 %v8136, 48
        %v8274 = vpop.permute.xlu0 %8273
        %8275 = vrot.lane.b32.xlu0 %v8137, 48
        %v8276 = vpop.permute.xlu0 %8275
        %8277 = vrot.lane.b32.xlu0 %v8138, 48
        %v8278 = vpop.permute.xlu0 %8277
        %8279 = vrot.lane.b32.xlu0 %v8139, 48
        %v8280 = vpop.permute.xlu0 %8279
        %8281 = vrot.lane.b32.xlu0 %v8140, 48
        %v8282 = vpop.permute.xlu0 %8281
        %8283 = vrot.lane.b32.xlu0 %v8141, 48
        %v8284 = vpop.permute.xlu0 %8283
        %8285 = vrot.lane.b32.xlu0 %v8142, 48
        %v8286 = vpop.permute.xlu0 %8285
        %8287 = vrot.lane.b32.xlu0 %v8143, 48
        %v8288 = vpop.permute.xlu0 %8287
        %8289 = vrot.lane.b32.xlu0 %v8144, 48
        %v8290 = vpop.permute.xlu0 %8289
        %8291 = vrot.lane.b32.xlu0 %v8145, 48
        %v8292 = vpop.permute.xlu0 %8291
        %8293 = vrot.lane.b32.xlu0 %v8146, 48
        %v8294 = vpop.permute.xlu0 %8293
        %8295 = vrot.lane.b32.xlu0 %v8147, 48
        %v8296 = vpop.permute.xlu0 %8295
        %8297 = vrot.lane.b32.xlu0 %v8148, 48
        %v8298 = vpop.permute.xlu0 %8297
        %8299 = vrot.lane.b32.xlu0 %v8149, 48
        %v8300 = vpop.permute.xlu0 %8299
        %8301 = vrot.lane.b32.xlu0 %v8150, 48
        %v8302 = vpop.permute.xlu0 %8301
        %8303 = vrot.lane.b32.xlu0 %v8151, 48
        %v8304 = vpop.permute.xlu0 %8303
        %8305 = vrot.lane.b32.xlu0 %v8152, 48
        %v8306 = vpop.permute.xlu0 %8305
        %8307 = vrot.lane.b32.xlu0 %v8153, 48
        %v8308 = vpop.permute.xlu0 %8307
        %8309 = vrot.lane.b32.xlu0 %v8154, 48
        %v8310 = vpop.permute.xlu0 %8309
        %8311 = vrot.lane.b32.xlu0 %v8155, 48
        %v8312 = vpop.permute.xlu0 %8311
        %8313 = vrot.lane.b32.xlu0 %v8156, 48
        %v8314 = vpop.permute.xlu0 %8313
        %8315 = vrot.lane.b32.xlu0 %v8157, 48
        %v8316 = vpop.permute.xlu0 %8315
        %8317 = vrot.lane.b32.xlu0 %v8158, 48
        %v8318 = vpop.permute.xlu0 %8317
        %8319 = vrot.lane.b32.xlu0 %v8159, 48
        %v8320 = vpop.permute.xlu0 %8319
        %8321 = vrot.lane.b32.xlu0 %v8160, 48
        %v8322 = vpop.permute.xlu0 %8321
        %8323 = vrot.lane.b32.xlu0 %v8161, 48
        %v8324 = vpop.permute.xlu0 %8323
        %8325 = vrot.lane.b32.xlu0 %v8162, 48
        %v8326 = vpop.permute.xlu0 %8325
        %8327 = vrot.lane.b32.xlu0 %v8163, 48
        %v8328 = vpop.permute.xlu0 %8327
        %8329 = vrot.lane.b32.xlu0 %v8164, 48
        %v8330 = vpop.permute.xlu0 %8329
        %8331 = vrot.lane.b32.xlu0 %v8165, 48
        %v8332 = vpop.permute.xlu0 %8331
        %8333 = vrot.lane.b32.xlu0 %v8166, 48
        %v8334 = vpop.permute.xlu0 %8333
        %8335 = vrot.lane.b32.xlu0 %v8167, 48
        %v8336 = vpop.permute.xlu0 %8335
        %8337 = vrot.lane.b32.xlu0 %v8168, 48
        %v8338 = vpop.permute.xlu0 %8337
        %8339 = vrot.lane.b32.xlu0 %v8169, 48
        %v8340 = vpop.permute.xlu0 %8339
        %8341 = vrot.lane.b32.xlu0 %v8170, 48
        %v8342 = vpop.permute.xlu0 %8341
        %8343 = vrot.lane.b32.xlu0 %v8171, 48
        %v8344 = vpop.permute.xlu0 %8343
        %8345 = vrot.lane.b32.xlu0 %v8172, 48
        %v8346 = vpop.permute.xlu0 %8345
        %8347 = vrot.lane.b32.xlu0 %v8173, 48
        %v8348 = vpop.permute.xlu0 %8347
        %8349 = vrot.lane.b32.xlu0 %v8174, 48
        %v8350 = vpop.permute.xlu0 %8349
        %8351 = vrot.lane.b32.xlu0 %v8175, 48
        %v8352 = vpop.permute.xlu0 %8351
        %8353 = vrot.lane.b32.xlu0 %v8176, 48
        %v8354 = vpop.permute.xlu0 %8353
        %8355 = vrot.lane.b32.xlu0 %v8177, 48
        %v8356 = vpop.permute.xlu0 %8355
        %8357 = vrot.lane.b32.xlu0 %v8178, 48
        %v8358 = vpop.permute.xlu0 %8357
        %8359 = vrot.lane.b32.xlu0 %v8179, 48
        %v8360 = vpop.permute.xlu0 %8359
        %8361 = vrot.lane.b32.xlu0 %v8180, 48
        %v8362 = vpop.permute.xlu0 %8361
        %8363 = vrot.lane.b32.xlu0 %v8181, 48
        %v8364 = vpop.permute.xlu0 %8363
        %8365 = vrot.lane.b32.xlu0 %v8182, 48
        %v8366 = vpop.permute.xlu0 %8365
        %8367 = vrot.lane.b32.xlu0 %v8183, 48
        %v8368 = vpop.permute.xlu0 %8367
        %8369 = vrot.lane.b32.xlu0 %v8184, 48
        %v8370 = vpop.permute.xlu0 %8369
        %8371 = vrot.lane.b32.xlu0 %v8185, 48
        %v8372 = vpop.permute.xlu0 %8371
        %8373 = vrot.lane.b32.xlu0 %v8186, 48
        %v8374 = vpop.permute.xlu0 %8373
        %8375 = vrot.lane.b32.xlu0 %v8187, 48
        %v8376 = vpop.permute.xlu0 %8375
        %8377 = vrot.lane.b32.xlu0 %v8188, 48
        %v8378 = vpop.permute.xlu0 %8377
        %8379 = vrot.lane.b32.xlu0 %v8189, 48
        %v8380 = vpop.permute.xlu0 %8379
        %8381 = vrot.lane.b32.xlu0 %v8190, 48
        %v8382 = vpop.permute.xlu0 %8381
        %8447 = vst.msk [vmem:[#allocation2 + $0x8] sm:$0xff] %vm2544, %v8256
        %8448 = vst.msk [vmem:[#allocation2 + $0x18] sm:$0xff] %vm2544, %v8258
        %8449 = vst.msk [vmem:[#allocation2 + $0x28] sm:$0xff] %vm2544, %v8260
        %8450 = vst.msk [vmem:[#allocation2 + $0x38] sm:$0xff] %vm2544, %v8262
        %8451 = vst.msk [vmem:[#allocation2 + $0x48] sm:$0xff] %vm2544, %v8264
        %8452 = vst.msk [vmem:[#allocation2 + $0x58] sm:$0xff] %vm2544, %v8266
        %8453 = vst.msk [vmem:[#allocation2 + $0x68] sm:$0xff] %vm2544, %v8268
        %8454 = vst.msk [vmem:[#allocation2 + $0x78] sm:$0xff] %vm2544, %v8270
        %8455 = vst.msk [vmem:[#allocation2 + $0x88] sm:$0xff] %vm2544, %v8272
        %8456 = vst.msk [vmem:[#allocation2 + $0x98] sm:$0xff] %vm2544, %v8274
        %8457 = vst.msk [vmem:[#allocation2 + $0xa8] sm:$0xff] %vm2544, %v8276
        %8458 = vst.msk [vmem:[#allocation2 + $0xb8] sm:$0xff] %vm2544, %v8278
        %8459 = vst.msk [vmem:[#allocation2 + $0xc8] sm:$0xff] %vm2544, %v8280
        %8460 = vst.msk [vmem:[#allocation2 + $0xd8] sm:$0xff] %vm2544, %v8282
        %8461 = vst.msk [vmem:[#allocation2 + $0xe8] sm:$0xff] %vm2544, %v8284
        %8462 = vst.msk [vmem:[#allocation2 + $0xf8] sm:$0xff] %vm2544, %v8286
        %8463 = vst.msk [vmem:[#allocation2 + $0x108] sm:$0xff] %vm2544, %v8288
        %8464 = vst.msk [vmem:[#allocation2 + $0x118] sm:$0xff] %vm2544, %v8290
        %8465 = vst.msk [vmem:[#allocation2 + $0x128] sm:$0xff] %vm2544, %v8292
        %8466 = vst.msk [vmem:[#allocation2 + $0x138] sm:$0xff] %vm2544, %v8294
        %8467 = vst.msk [vmem:[#allocation2 + $0x148] sm:$0xff] %vm2544, %v8296
        %8468 = vst.msk [vmem:[#allocation2 + $0x158] sm:$0xff] %vm2544, %v8298
        %8469 = vst.msk [vmem:[#allocation2 + $0x168] sm:$0xff] %vm2544, %v8300
        %8470 = vst.msk [vmem:[#allocation2 + $0x178] sm:$0xff] %vm2544, %v8302
        %8471 = vst.msk [vmem:[#allocation2 + $0x188] sm:$0xff] %vm2544, %v8304
        %8472 = vst.msk [vmem:[#allocation2 + $0x198] sm:$0xff] %vm2544, %v8306
        %8473 = vst.msk [vmem:[#allocation2 + $0x1a8] sm:$0xff] %vm2544, %v8308
        %8474 = vst.msk [vmem:[#allocation2 + $0x1b8] sm:$0xff] %vm2544, %v8310
        %8475 = vst.msk [vmem:[#allocation2 + $0x1c8] sm:$0xff] %vm2544, %v8312
        %8476 = vst.msk [vmem:[#allocation2 + $0x1d8] sm:$0xff] %vm2544, %v8314
        %8477 = vst.msk [vmem:[#allocation2 + $0x1e8] sm:$0xff] %vm2544, %v8316
        %8478 = vst.msk [vmem:[#allocation2 + $0x1f8] sm:$0xff] %vm2544, %v8318
        %8479 = vst.msk [vmem:[#allocation2 + $0x208] sm:$0xff] %vm2544, %v8320
        %8480 = vst.msk [vmem:[#allocation2 + $0x218] sm:$0xff] %vm2544, %v8322
        %8481 = vst.msk [vmem:[#allocation2 + $0x228] sm:$0xff] %vm2544, %v8324
        %8482 = vst.msk [vmem:[#allocation2 + $0x238] sm:$0xff] %vm2544, %v8326
        %8483 = vst.msk [vmem:[#allocation2 + $0x248] sm:$0xff] %vm2544, %v8328
        %8484 = vst.msk [vmem:[#allocation2 + $0x258] sm:$0xff] %vm2544, %v8330
        %8485 = vst.msk [vmem:[#allocation2 + $0x268] sm:$0xff] %vm2544, %v8332
        %8486 = vst.msk [vmem:[#allocation2 + $0x278] sm:$0xff] %vm2544, %v8334
        %8487 = vst.msk [vmem:[#allocation2 + $0x288] sm:$0xff] %vm2544, %v8336
        %8488 = vst.msk [vmem:[#allocation2 + $0x298] sm:$0xff] %vm2544, %v8338
        %8489 = vst.msk [vmem:[#allocation2 + $0x2a8] sm:$0xff] %vm2544, %v8340
        %8490 = vst.msk [vmem:[#allocation2 + $0x2b8] sm:$0xff] %vm2544, %v8342
        %8491 = vst.msk [vmem:[#allocation2 + $0x2c8] sm:$0xff] %vm2544, %v8344
        %8492 = vst.msk [vmem:[#allocation2 + $0x2d8] sm:$0xff] %vm2544, %v8346
        %8493 = vst.msk [vmem:[#allocation2 + $0x2e8] sm:$0xff] %vm2544, %v8348
        %8494 = vst.msk [vmem:[#allocation2 + $0x2f8] sm:$0xff] %vm2544, %v8350
        %8495 = vst.msk [vmem:[#allocation2 + $0x308] sm:$0xff] %vm2544, %v8352
        %8496 = vst.msk [vmem:[#allocation2 + $0x318] sm:$0xff] %vm2544, %v8354
        %8497 = vst.msk [vmem:[#allocation2 + $0x328] sm:$0xff] %vm2544, %v8356
        %8498 = vst.msk [vmem:[#allocation2 + $0x338] sm:$0xff] %vm2544, %v8358
        %8499 = vst.msk [vmem:[#allocation2 + $0x348] sm:$0xff] %vm2544, %v8360
        %8500 = vst.msk [vmem:[#allocation2 + $0x358] sm:$0xff] %vm2544, %v8362
        %8501 = vst.msk [vmem:[#allocation2 + $0x368] sm:$0xff] %vm2544, %v8364
        %8502 = vst.msk [vmem:[#allocation2 + $0x378] sm:$0xff] %vm2544, %v8366
        %8503 = vst.msk [vmem:[#allocation2 + $0x388] sm:$0xff] %vm2544, %v8368
        %8504 = vst.msk [vmem:[#allocation2 + $0x398] sm:$0xff] %vm2544, %v8370
        %8505 = vst.msk [vmem:[#allocation2 + $0x3a8] sm:$0xff] %vm2544, %v8372
        %8506 = vst.msk [vmem:[#allocation2 + $0x3b8] sm:$0xff] %vm2544, %v8374
        %8507 = vst.msk [vmem:[#allocation2 + $0x3c8] sm:$0xff] %vm2544, %v8376
        %8508 = vst.msk [vmem:[#allocation2 + $0x3d8] sm:$0xff] %vm2544, %v8378
        %8509 = vst.msk [vmem:[#allocation2 + $0x3e8] sm:$0xff] %vm2544, %v8380
        %8510 = vst.msk [vmem:[#allocation2 + $0x3f8] sm:$0xff] %vm2544, %v8382
        %v8511 = vld [vmem:[%s7742 + $0x2] sm:$0xff]
        %v8512 = vld [vmem:[%s7742 + $0x12] sm:$0xff]
        %v8513 = vld [vmem:[%s7742 + $0x22] sm:$0xff]
        %v8514 = vld [vmem:[%s7742 + $0x32] sm:$0xff]
        %v8515 = vld [vmem:[%s7742 + $0x42] sm:$0xff]
        %v8516 = vld [vmem:[%s7742 + $0x52] sm:$0xff]
        %v8517 = vld [vmem:[%s7742 + $0x62] sm:$0xff]
        %v8518 = vld [vmem:[%s7742 + $0x72] sm:$0xff]
        %v8519 = vld [vmem:[%s7742 + $0xa2] sm:$0xff]
        %v8520 = vld [vmem:[%s7742 + $0xb2] sm:$0xff]
        %v8521 = vld [vmem:[%s7742 + $0xc2] sm:$0xff]
        %v8522 = vld [vmem:[%s7742 + $0xd2] sm:$0xff]
        %v8523 = vld [vmem:[%s7742 + $0xe2] sm:$0xff]
        %v8524 = vld [vmem:[%s7742 + $0xf2] sm:$0xff]
        %v8525 = vld [vmem:[%s7742 + $0x102] sm:$0xff]
        %v8526 = vld [vmem:[%s7742 + $0x112] sm:$0xff]
        %v8527 = vld [vmem:[%s7742 + $0x142] sm:$0xff]
        %v8528 = vld [vmem:[%s7742 + $0x152] sm:$0xff]
        %v8529 = vld [vmem:[%s7742 + $0x162] sm:$0xff]
        %v8530 = vld [vmem:[%s7742 + $0x172] sm:$0xff]
        %v8531 = vld [vmem:[%s7742 + $0x182] sm:$0xff]
        %v8532 = vld [vmem:[%s7742 + $0x192] sm:$0xff]
        %v8533 = vld [vmem:[%s7742 + $0x1a2] sm:$0xff]
        %v8534 = vld [vmem:[%s7742 + $0x1b2] sm:$0xff]
        %v8535 = vld [vmem:[%s7742 + $0x1e2] sm:$0xff]
        %v8536 = vld [vmem:[%s7742 + $0x1f2] sm:$0xff]
        %v8537 = vld [vmem:[%s7742 + $0x202] sm:$0xff]
        %v8538 = vld [vmem:[%s7742 + $0x212] sm:$0xff]
        %v8539 = vld [vmem:[%s7742 + $0x222] sm:$0xff]
        %v8540 = vld [vmem:[%s7742 + $0x232] sm:$0xff]
        %v8541 = vld [vmem:[%s7742 + $0x242] sm:$0xff]
        %v8542 = vld [vmem:[%s7742 + $0x252] sm:$0xff]
        %v8543 = vld [vmem:[%s7742 + $0x282] sm:$0xff]
        %v8544 = vld [vmem:[%s7742 + $0x292] sm:$0xff]
        %v8545 = vld [vmem:[%s7742 + $0x2a2] sm:$0xff]
        %v8546 = vld [vmem:[%s7742 + $0x2b2] sm:$0xff]
        %v8547 = vld [vmem:[%s7742 + $0x2c2] sm:$0xff]
        %v8548 = vld [vmem:[%s7742 + $0x2d2] sm:$0xff]
        %v8549 = vld [vmem:[%s7742 + $0x2e2] sm:$0xff]
        %v8550 = vld [vmem:[%s7742 + $0x2f2] sm:$0xff]
        %v8551 = vld [vmem:[%s7742 + $0x322] sm:$0xff]
        %v8552 = vld [vmem:[%s7742 + $0x332] sm:$0xff]
        %v8553 = vld [vmem:[%s7742 + $0x342] sm:$0xff]
        %v8554 = vld [vmem:[%s7742 + $0x352] sm:$0xff]
        %v8555 = vld [vmem:[%s7742 + $0x362] sm:$0xff]
        %v8556 = vld [vmem:[%s7742 + $0x372] sm:$0xff]
        %v8557 = vld [vmem:[%s7742 + $0x382] sm:$0xff]
        %v8558 = vld [vmem:[%s7742 + $0x392] sm:$0xff]
        %v8559 = vld [vmem:[%s7742 + $0x3c2] sm:$0xff]
        %v8560 = vld [vmem:[%s7742 + $0x3d2] sm:$0xff]
        %v8561 = vld [vmem:[%s7742 + $0x3e2] sm:$0xff]
        %v8562 = vld [vmem:[%s7742 + $0x3f2] sm:$0xff]
        %v8563 = vld [vmem:[%s7742 + $0x402] sm:$0xff]
        %v8564 = vld [vmem:[%s7742 + $0x412] sm:$0xff]
        %v8565 = vld [vmem:[%s7742 + $0x422] sm:$0xff]
        %v8566 = vld [vmem:[%s7742 + $0x432] sm:$0xff]
        %v8567 = vld [vmem:[%s7742 + $0x462] sm:$0xff]
        %v8568 = vld [vmem:[%s7742 + $0x472] sm:$0xff]
        %v8569 = vld [vmem:[%s7742 + $0x482] sm:$0xff]
        %v8570 = vld [vmem:[%s7742 + $0x492] sm:$0xff]
        %v8571 = vld [vmem:[%s7742 + $0x4a2] sm:$0xff]
        %v8572 = vld [vmem:[%s7742 + $0x4b2] sm:$0xff]
        %v8573 = vld [vmem:[%s7742 + $0x4c2] sm:$0xff]
        %v8574 = vld [vmem:[%s7742 + $0x4d2] sm:$0xff]
        %8639 = vrot.lane.b32.xlu0 %v8511, 56
        %v8640 = vpop.permute.xlu0 %8639
        %8641 = vrot.lane.b32.xlu0 %v8512, 56
        %v8642 = vpop.permute.xlu0 %8641
        %8643 = vrot.lane.b32.xlu0 %v8513, 56
        %v8644 = vpop.permute.xlu0 %8643
        %8645 = vrot.lane.b32.xlu0 %v8514, 56
        %v8646 = vpop.permute.xlu0 %8645
        %8647 = vrot.lane.b32.xlu0 %v8515, 56
        %v8648 = vpop.permute.xlu0 %8647
        %8649 = vrot.lane.b32.xlu0 %v8516, 56
        %v8650 = vpop.permute.xlu0 %8649
        %8651 = vrot.lane.b32.xlu0 %v8517, 56
        %v8652 = vpop.permute.xlu0 %8651
        %8653 = vrot.lane.b32.xlu0 %v8518, 56
        %v8654 = vpop.permute.xlu0 %8653
        %8655 = vrot.lane.b32.xlu0 %v8519, 56
        %v8656 = vpop.permute.xlu0 %8655
        %8657 = vrot.lane.b32.xlu0 %v8520, 56
        %v8658 = vpop.permute.xlu0 %8657
        %8659 = vrot.lane.b32.xlu0 %v8521, 56
        %v8660 = vpop.permute.xlu0 %8659
        %8661 = vrot.lane.b32.xlu0 %v8522, 56
        %v8662 = vpop.permute.xlu0 %8661
        %8663 = vrot.lane.b32.xlu0 %v8523, 56
        %v8664 = vpop.permute.xlu0 %8663
        %8665 = vrot.lane.b32.xlu0 %v8524, 56
        %v8666 = vpop.permute.xlu0 %8665
        %8667 = vrot.lane.b32.xlu0 %v8525, 56
        %v8668 = vpop.permute.xlu0 %8667
        %8669 = vrot.lane.b32.xlu0 %v8526, 56
        %v8670 = vpop.permute.xlu0 %8669
        %8671 = vrot.lane.b32.xlu0 %v8527, 56
        %v8672 = vpop.permute.xlu0 %8671
        %8673 = vrot.lane.b32.xlu0 %v8528, 56
        %v8674 = vpop.permute.xlu0 %8673
        %8675 = vrot.lane.b32.xlu0 %v8529, 56
        %v8676 = vpop.permute.xlu0 %8675
        %8677 = vrot.lane.b32.xlu0 %v8530, 56
        %v8678 = vpop.permute.xlu0 %8677
        %8679 = vrot.lane.b32.xlu0 %v8531, 56
        %v8680 = vpop.permute.xlu0 %8679
        %8681 = vrot.lane.b32.xlu0 %v8532, 56
        %v8682 = vpop.permute.xlu0 %8681
        %8683 = vrot.lane.b32.xlu0 %v8533, 56
        %v8684 = vpop.permute.xlu0 %8683
        %8685 = vrot.lane.b32.xlu0 %v8534, 56
        %v8686 = vpop.permute.xlu0 %8685
        %8687 = vrot.lane.b32.xlu0 %v8535, 56
        %v8688 = vpop.permute.xlu0 %8687
        %8689 = vrot.lane.b32.xlu0 %v8536, 56
        %v8690 = vpop.permute.xlu0 %8689
        %8691 = vrot.lane.b32.xlu0 %v8537, 56
        %v8692 = vpop.permute.xlu0 %8691
        %8693 = vrot.lane.b32.xlu0 %v8538, 56
        %v8694 = vpop.permute.xlu0 %8693
        %8695 = vrot.lane.b32.xlu0 %v8539, 56
        %v8696 = vpop.permute.xlu0 %8695
        %8697 = vrot.lane.b32.xlu0 %v8540, 56
        %v8698 = vpop.permute.xlu0 %8697
        %8699 = vrot.lane.b32.xlu0 %v8541, 56
        %v8700 = vpop.permute.xlu0 %8699
        %8701 = vrot.lane.b32.xlu0 %v8542, 56
        %v8702 = vpop.permute.xlu0 %8701
        %8703 = vrot.lane.b32.xlu0 %v8543, 56
        %v8704 = vpop.permute.xlu0 %8703
        %8705 = vrot.lane.b32.xlu0 %v8544, 56
        %v8706 = vpop.permute.xlu0 %8705
        %8707 = vrot.lane.b32.xlu0 %v8545, 56
        %v8708 = vpop.permute.xlu0 %8707
        %8709 = vrot.lane.b32.xlu0 %v8546, 56
        %v8710 = vpop.permute.xlu0 %8709
        %8711 = vrot.lane.b32.xlu0 %v8547, 56
        %v8712 = vpop.permute.xlu0 %8711
        %8713 = vrot.lane.b32.xlu0 %v8548, 56
        %v8714 = vpop.permute.xlu0 %8713
        %8715 = vrot.lane.b32.xlu0 %v8549, 56
        %v8716 = vpop.permute.xlu0 %8715
        %8717 = vrot.lane.b32.xlu0 %v8550, 56
        %v8718 = vpop.permute.xlu0 %8717
        %8719 = vrot.lane.b32.xlu0 %v8551, 56
        %v8720 = vpop.permute.xlu0 %8719
        %8721 = vrot.lane.b32.xlu0 %v8552, 56
        %v8722 = vpop.permute.xlu0 %8721
        %8723 = vrot.lane.b32.xlu0 %v8553, 56
        %v8724 = vpop.permute.xlu0 %8723
        %8725 = vrot.lane.b32.xlu0 %v8554, 56
        %v8726 = vpop.permute.xlu0 %8725
        %8727 = vrot.lane.b32.xlu0 %v8555, 56
        %v8728 = vpop.permute.xlu0 %8727
        %8729 = vrot.lane.b32.xlu0 %v8556, 56
        %v8730 = vpop.permute.xlu0 %8729
        %8731 = vrot.lane.b32.xlu0 %v8557, 56
        %v8732 = vpop.permute.xlu0 %8731
        %8733 = vrot.lane.b32.xlu0 %v8558, 56
        %v8734 = vpop.permute.xlu0 %8733
        %8735 = vrot.lane.b32.xlu0 %v8559, 56
        %v8736 = vpop.permute.xlu0 %8735
        %8737 = vrot.lane.b32.xlu0 %v8560, 56
        %v8738 = vpop.permute.xlu0 %8737
        %8739 = vrot.lane.b32.xlu0 %v8561, 56
        %v8740 = vpop.permute.xlu0 %8739
        %8741 = vrot.lane.b32.xlu0 %v8562, 56
        %v8742 = vpop.permute.xlu0 %8741
        %8743 = vrot.lane.b32.xlu0 %v8563, 56
        %v8744 = vpop.permute.xlu0 %8743
        %8745 = vrot.lane.b32.xlu0 %v8564, 56
        %v8746 = vpop.permute.xlu0 %8745
        %8747 = vrot.lane.b32.xlu0 %v8565, 56
        %v8748 = vpop.permute.xlu0 %8747
        %8749 = vrot.lane.b32.xlu0 %v8566, 56
        %v8750 = vpop.permute.xlu0 %8749
        %8751 = vrot.lane.b32.xlu0 %v8567, 56
        %v8752 = vpop.permute.xlu0 %8751
        %8753 = vrot.lane.b32.xlu0 %v8568, 56
        %v8754 = vpop.permute.xlu0 %8753
        %8755 = vrot.lane.b32.xlu0 %v8569, 56
        %v8756 = vpop.permute.xlu0 %8755
        %8757 = vrot.lane.b32.xlu0 %v8570, 56
        %v8758 = vpop.permute.xlu0 %8757
        %8759 = vrot.lane.b32.xlu0 %v8571, 56
        %v8760 = vpop.permute.xlu0 %8759
        %8761 = vrot.lane.b32.xlu0 %v8572, 56
        %v8762 = vpop.permute.xlu0 %8761
        %8763 = vrot.lane.b32.xlu0 %v8573, 56
        %v8764 = vpop.permute.xlu0 %8763
        %8765 = vrot.lane.b32.xlu0 %v8574, 56
        %v8766 = vpop.permute.xlu0 %8765
        %8831 = vst.msk [vmem:[#allocation2 + $0x8] sm:$0xff] %vm2929, %v8640
        %8832 = vst.msk [vmem:[#allocation2 + $0x18] sm:$0xff] %vm2929, %v8642
        %8833 = vst.msk [vmem:[#allocation2 + $0x28] sm:$0xff] %vm2929, %v8644
        %8834 = vst.msk [vmem:[#allocation2 + $0x38] sm:$0xff] %vm2929, %v8646
        %8835 = vst.msk [vmem:[#allocation2 + $0x48] sm:$0xff] %vm2929, %v8648
        %8836 = vst.msk [vmem:[#allocation2 + $0x58] sm:$0xff] %vm2929, %v8650
        %8837 = vst.msk [vmem:[#allocation2 + $0x68] sm:$0xff] %vm2929, %v8652
        %8838 = vst.msk [vmem:[#allocation2 + $0x78] sm:$0xff] %vm2929, %v8654
        %8839 = vst.msk [vmem:[#allocation2 + $0x88] sm:$0xff] %vm2929, %v8656
        %8840 = vst.msk [vmem:[#allocation2 + $0x98] sm:$0xff] %vm2929, %v8658
        %8841 = vst.msk [vmem:[#allocation2 + $0xa8] sm:$0xff] %vm2929, %v8660
        %8842 = vst.msk [vmem:[#allocation2 + $0xb8] sm:$0xff] %vm2929, %v8662
        %8843 = vst.msk [vmem:[#allocation2 + $0xc8] sm:$0xff] %vm2929, %v8664
        %8844 = vst.msk [vmem:[#allocation2 + $0xd8] sm:$0xff] %vm2929, %v8666
        %8845 = vst.msk [vmem:[#allocation2 + $0xe8] sm:$0xff] %vm2929, %v8668
        %8846 = vst.msk [vmem:[#allocation2 + $0xf8] sm:$0xff] %vm2929, %v8670
        %8847 = vst.msk [vmem:[#allocation2 + $0x108] sm:$0xff] %vm2929, %v8672
        %8848 = vst.msk [vmem:[#allocation2 + $0x118] sm:$0xff] %vm2929, %v8674
        %8849 = vst.msk [vmem:[#allocation2 + $0x128] sm:$0xff] %vm2929, %v8676
        %8850 = vst.msk [vmem:[#allocation2 + $0x138] sm:$0xff] %vm2929, %v8678
        %8851 = vst.msk [vmem:[#allocation2 + $0x148] sm:$0xff] %vm2929, %v8680
        %8852 = vst.msk [vmem:[#allocation2 + $0x158] sm:$0xff] %vm2929, %v8682
        %8853 = vst.msk [vmem:[#allocation2 + $0x168] sm:$0xff] %vm2929, %v8684
        %8854 = vst.msk [vmem:[#allocation2 + $0x178] sm:$0xff] %vm2929, %v8686
        %8855 = vst.msk [vmem:[#allocation2 + $0x188] sm:$0xff] %vm2929, %v8688
        %8856 = vst.msk [vmem:[#allocation2 + $0x198] sm:$0xff] %vm2929, %v8690
        %8857 = vst.msk [vmem:[#allocation2 + $0x1a8] sm:$0xff] %vm2929, %v8692
        %8858 = vst.msk [vmem:[#allocation2 + $0x1b8] sm:$0xff] %vm2929, %v8694
        %8859 = vst.msk [vmem:[#allocation2 + $0x1c8] sm:$0xff] %vm2929, %v8696
        %8860 = vst.msk [vmem:[#allocation2 + $0x1d8] sm:$0xff] %vm2929, %v8698
        %8861 = vst.msk [vmem:[#allocation2 + $0x1e8] sm:$0xff] %vm2929, %v8700
        %8862 = vst.msk [vmem:[#allocation2 + $0x1f8] sm:$0xff] %vm2929, %v8702
        %8863 = vst.msk [vmem:[#allocation2 + $0x208] sm:$0xff] %vm2929, %v8704
        %8864 = vst.msk [vmem:[#allocation2 + $0x218] sm:$0xff] %vm2929, %v8706
        %8865 = vst.msk [vmem:[#allocation2 + $0x228] sm:$0xff] %vm2929, %v8708
        %8866 = vst.msk [vmem:[#allocation2 + $0x238] sm:$0xff] %vm2929, %v8710
        %8867 = vst.msk [vmem:[#allocation2 + $0x248] sm:$0xff] %vm2929, %v8712
        %8868 = vst.msk [vmem:[#allocation2 + $0x258] sm:$0xff] %vm2929, %v8714
        %8869 = vst.msk [vmem:[#allocation2 + $0x268] sm:$0xff] %vm2929, %v8716
        %8870 = vst.msk [vmem:[#allocation2 + $0x278] sm:$0xff] %vm2929, %v8718
        %8871 = vst.msk [vmem:[#allocation2 + $0x288] sm:$0xff] %vm2929, %v8720
        %8872 = vst.msk [vmem:[#allocation2 + $0x298] sm:$0xff] %vm2929, %v8722
        %8873 = vst.msk [vmem:[#allocation2 + $0x2a8] sm:$0xff] %vm2929, %v8724
        %8874 = vst.msk [vmem:[#allocation2 + $0x2b8] sm:$0xff] %vm2929, %v8726
        %8875 = vst.msk [vmem:[#allocation2 + $0x2c8] sm:$0xff] %vm2929, %v8728
        %8876 = vst.msk [vmem:[#allocation2 + $0x2d8] sm:$0xff] %vm2929, %v8730
        %8877 = vst.msk [vmem:[#allocation2 + $0x2e8] sm:$0xff] %vm2929, %v8732
        %8878 = vst.msk [vmem:[#allocation2 + $0x2f8] sm:$0xff] %vm2929, %v8734
        %8879 = vst.msk [vmem:[#allocation2 + $0x308] sm:$0xff] %vm2929, %v8736
        %8880 = vst.msk [vmem:[#allocation2 + $0x318] sm:$0xff] %vm2929, %v8738
        %8881 = vst.msk [vmem:[#allocation2 + $0x328] sm:$0xff] %vm2929, %v8740
        %8882 = vst.msk [vmem:[#allocation2 + $0x338] sm:$0xff] %vm2929, %v8742
        %8883 = vst.msk [vmem:[#allocation2 + $0x348] sm:$0xff] %vm2929, %v8744
        %8884 = vst.msk [vmem:[#allocation2 + $0x358] sm:$0xff] %vm2929, %v8746
        %8885 = vst.msk [vmem:[#allocation2 + $0x368] sm:$0xff] %vm2929, %v8748
        %8886 = vst.msk [vmem:[#allocation2 + $0x378] sm:$0xff] %vm2929, %v8750
        %8887 = vst.msk [vmem:[#allocation2 + $0x388] sm:$0xff] %vm2929, %v8752
        %8888 = vst.msk [vmem:[#allocation2 + $0x398] sm:$0xff] %vm2929, %v8754
        %8889 = vst.msk [vmem:[#allocation2 + $0x3a8] sm:$0xff] %vm2929, %v8756
        %8890 = vst.msk [vmem:[#allocation2 + $0x3b8] sm:$0xff] %vm2929, %v8758
        %8891 = vst.msk [vmem:[#allocation2 + $0x3c8] sm:$0xff] %vm2929, %v8760
        %8892 = vst.msk [vmem:[#allocation2 + $0x3d8] sm:$0xff] %vm2929, %v8762
        %8893 = vst.msk [vmem:[#allocation2 + $0x3e8] sm:$0xff] %vm2929, %v8764
        %8894 = vst.msk [vmem:[#allocation2 + $0x3f8] sm:$0xff] %vm2929, %v8766
        %s8895 = scalar_lea.vmem %s167, 352
        %v8896 = vld [vmem:[%s8895] sm:$0xff]
        %v8897 = vld [vmem:[%s8895 + $0x10] sm:$0xff]
        %v8898 = vld [vmem:[%s8895 + $0x20] sm:$0xff]
        %v8899 = vld [vmem:[%s8895 + $0x30] sm:$0xff]
        %v8900 = vld [vmem:[%s8895 + $0x40] sm:$0xff]
        %v8901 = vld [vmem:[%s8895 + $0x50] sm:$0xff]
        %v8902 = vld [vmem:[%s8895 + $0x60] sm:$0xff]
        %v8903 = vld [vmem:[%s8895 + $0x70] sm:$0xff]
        %v8904 = vld [vmem:[%s8895 + $0xa0] sm:$0xff]
        %v8905 = vld [vmem:[%s8895 + $0xb0] sm:$0xff]
        %v8906 = vld [vmem:[%s8895 + $0xc0] sm:$0xff]
        %v8907 = vld [vmem:[%s8895 + $0xd0] sm:$0xff]
        %v8908 = vld [vmem:[%s8895 + $0xe0] sm:$0xff]
        %v8909 = vld [vmem:[%s8895 + $0xf0] sm:$0xff]
        %v8910 = vld [vmem:[%s8895 + $0x100] sm:$0xff]
        %v8911 = vld [vmem:[%s8895 + $0x110] sm:$0xff]
        %v8912 = vld [vmem:[%s8895 + $0x140] sm:$0xff]
        %v8913 = vld [vmem:[%s8895 + $0x150] sm:$0xff]
        %v8914 = vld [vmem:[%s8895 + $0x160] sm:$0xff]
        %v8915 = vld [vmem:[%s8895 + $0x170] sm:$0xff]
        %v8916 = vld [vmem:[%s8895 + $0x180] sm:$0xff]
        %v8917 = vld [vmem:[%s8895 + $0x190] sm:$0xff]
        %v8918 = vld [vmem:[%s8895 + $0x1a0] sm:$0xff]
        %v8919 = vld [vmem:[%s8895 + $0x1b0] sm:$0xff]
        %v8920 = vld [vmem:[%s8895 + $0x1e0] sm:$0xff]
        %v8921 = vld [vmem:[%s8895 + $0x1f0] sm:$0xff]
        %v8922 = vld [vmem:[%s8895 + $0x200] sm:$0xff]
        %v8923 = vld [vmem:[%s8895 + $0x210] sm:$0xff]
        %v8924 = vld [vmem:[%s8895 + $0x220] sm:$0xff]
        %v8925 = vld [vmem:[%s8895 + $0x230] sm:$0xff]
        %v8926 = vld [vmem:[%s8895 + $0x240] sm:$0xff]
        %v8927 = vld [vmem:[%s8895 + $0x250] sm:$0xff]
        %v8928 = vld [vmem:[%s8895 + $0x280] sm:$0xff]
        %v8929 = vld [vmem:[%s8895 + $0x290] sm:$0xff]
        %v8930 = vld [vmem:[%s8895 + $0x2a0] sm:$0xff]
        %v8931 = vld [vmem:[%s8895 + $0x2b0] sm:$0xff]
        %v8932 = vld [vmem:[%s8895 + $0x2c0] sm:$0xff]
        %v8933 = vld [vmem:[%s8895 + $0x2d0] sm:$0xff]
        %v8934 = vld [vmem:[%s8895 + $0x2e0] sm:$0xff]
        %v8935 = vld [vmem:[%s8895 + $0x2f0] sm:$0xff]
        %v8936 = vld [vmem:[%s8895 + $0x320] sm:$0xff]
        %v8937 = vld [vmem:[%s8895 + $0x330] sm:$0xff]
        %v8938 = vld [vmem:[%s8895 + $0x340] sm:$0xff]
        %v8939 = vld [vmem:[%s8895 + $0x350] sm:$0xff]
        %v8940 = vld [vmem:[%s8895 + $0x360] sm:$0xff]
        %v8941 = vld [vmem:[%s8895 + $0x370] sm:$0xff]
        %v8942 = vld [vmem:[%s8895 + $0x380] sm:$0xff]
        %v8943 = vld [vmem:[%s8895 + $0x390] sm:$0xff]
        %v8944 = vld [vmem:[%s8895 + $0x3c0] sm:$0xff]
        %v8945 = vld [vmem:[%s8895 + $0x3d0] sm:$0xff]
        %v8946 = vld [vmem:[%s8895 + $0x3e0] sm:$0xff]
        %v8947 = vld [vmem:[%s8895 + $0x3f0] sm:$0xff]
        %v8948 = vld [vmem:[%s8895 + $0x400] sm:$0xff]
        %v8949 = vld [vmem:[%s8895 + $0x410] sm:$0xff]
        %v8950 = vld [vmem:[%s8895 + $0x420] sm:$0xff]
        %v8951 = vld [vmem:[%s8895 + $0x430] sm:$0xff]
        %v8952 = vld [vmem:[%s8895 + $0x460] sm:$0xff]
        %v8953 = vld [vmem:[%s8895 + $0x470] sm:$0xff]
        %v8954 = vld [vmem:[%s8895 + $0x480] sm:$0xff]
        %v8955 = vld [vmem:[%s8895 + $0x490] sm:$0xff]
        %v8956 = vld [vmem:[%s8895 + $0x4a0] sm:$0xff]
        %v8957 = vld [vmem:[%s8895 + $0x4b0] sm:$0xff]
        %v8958 = vld [vmem:[%s8895 + $0x4c0] sm:$0xff]
        %v8959 = vld [vmem:[%s8895 + $0x4d0] sm:$0xff]
        %9024 = vrot.lane.b32.xlu0 %v8896, 64
        %v9025 = vpop.permute.xlu0 %9024
        %9026 = vrot.lane.b32.xlu0 %v8897, 64
        %v9027 = vpop.permute.xlu0 %9026
        %9028 = vrot.lane.b32.xlu0 %v8898, 64
        %v9029 = vpop.permute.xlu0 %9028
        %9030 = vrot.lane.b32.xlu0 %v8899, 64
        %v9031 = vpop.permute.xlu0 %9030
        %9032 = vrot.lane.b32.xlu0 %v8900, 64
        %v9033 = vpop.permute.xlu0 %9032
        %9034 = vrot.lane.b32.xlu0 %v8901, 64
        %v9035 = vpop.permute.xlu0 %9034
        %9036 = vrot.lane.b32.xlu0 %v8902, 64
        %v9037 = vpop.permute.xlu0 %9036
        %9038 = vrot.lane.b32.xlu0 %v8903, 64
        %v9039 = vpop.permute.xlu0 %9038
        %9040 = vrot.lane.b32.xlu0 %v8904, 64
        %v9041 = vpop.permute.xlu0 %9040
        %9042 = vrot.lane.b32.xlu0 %v8905, 64
        %v9043 = vpop.permute.xlu0 %9042
        %9044 = vrot.lane.b32.xlu0 %v8906, 64
        %v9045 = vpop.permute.xlu0 %9044
        %9046 = vrot.lane.b32.xlu0 %v8907, 64
        %v9047 = vpop.permute.xlu0 %9046
        %9048 = vrot.lane.b32.xlu0 %v8908, 64
        %v9049 = vpop.permute.xlu0 %9048
        %9050 = vrot.lane.b32.xlu0 %v8909, 64
        %v9051 = vpop.permute.xlu0 %9050
        %9052 = vrot.lane.b32.xlu0 %v8910, 64
        %v9053 = vpop.permute.xlu0 %9052
        %9054 = vrot.lane.b32.xlu0 %v8911, 64
        %v9055 = vpop.permute.xlu0 %9054
        %9056 = vrot.lane.b32.xlu0 %v8912, 64
        %v9057 = vpop.permute.xlu0 %9056
        %9058 = vrot.lane.b32.xlu0 %v8913, 64
        %v9059 = vpop.permute.xlu0 %9058
        %9060 = vrot.lane.b32.xlu0 %v8914, 64
        %v9061 = vpop.permute.xlu0 %9060
        %9062 = vrot.lane.b32.xlu0 %v8915, 64
        %v9063 = vpop.permute.xlu0 %9062
        %9064 = vrot.lane.b32.xlu0 %v8916, 64
        %v9065 = vpop.permute.xlu0 %9064
        %9066 = vrot.lane.b32.xlu0 %v8917, 64
        %v9067 = vpop.permute.xlu0 %9066
        %9068 = vrot.lane.b32.xlu0 %v8918, 64
        %v9069 = vpop.permute.xlu0 %9068
        %9070 = vrot.lane.b32.xlu0 %v8919, 64
        %v9071 = vpop.permute.xlu0 %9070
        %9072 = vrot.lane.b32.xlu0 %v8920, 64
        %v9073 = vpop.permute.xlu0 %9072
        %9074 = vrot.lane.b32.xlu0 %v8921, 64
        %v9075 = vpop.permute.xlu0 %9074
        %9076 = vrot.lane.b32.xlu0 %v8922, 64
        %v9077 = vpop.permute.xlu0 %9076
        %9078 = vrot.lane.b32.xlu0 %v8923, 64
        %v9079 = vpop.permute.xlu0 %9078
        %9080 = vrot.lane.b32.xlu0 %v8924, 64
        %v9081 = vpop.permute.xlu0 %9080
        %9082 = vrot.lane.b32.xlu0 %v8925, 64
        %v9083 = vpop.permute.xlu0 %9082
        %9084 = vrot.lane.b32.xlu0 %v8926, 64
        %v9085 = vpop.permute.xlu0 %9084
        %9086 = vrot.lane.b32.xlu0 %v8927, 64
        %v9087 = vpop.permute.xlu0 %9086
        %9088 = vrot.lane.b32.xlu0 %v8928, 64
        %v9089 = vpop.permute.xlu0 %9088
        %9090 = vrot.lane.b32.xlu0 %v8929, 64
        %v9091 = vpop.permute.xlu0 %9090
        %9092 = vrot.lane.b32.xlu0 %v8930, 64
        %v9093 = vpop.permute.xlu0 %9092
        %9094 = vrot.lane.b32.xlu0 %v8931, 64
        %v9095 = vpop.permute.xlu0 %9094
        %9096 = vrot.lane.b32.xlu0 %v8932, 64
        %v9097 = vpop.permute.xlu0 %9096
        %9098 = vrot.lane.b32.xlu0 %v8933, 64
        %v9099 = vpop.permute.xlu0 %9098
        %9100 = vrot.lane.b32.xlu0 %v8934, 64
        %v9101 = vpop.permute.xlu0 %9100
        %9102 = vrot.lane.b32.xlu0 %v8935, 64
        %v9103 = vpop.permute.xlu0 %9102
        %9104 = vrot.lane.b32.xlu0 %v8936, 64
        %v9105 = vpop.permute.xlu0 %9104
        %9106 = vrot.lane.b32.xlu0 %v8937, 64
        %v9107 = vpop.permute.xlu0 %9106
        %9108 = vrot.lane.b32.xlu0 %v8938, 64
        %v9109 = vpop.permute.xlu0 %9108
        %9110 = vrot.lane.b32.xlu0 %v8939, 64
        %v9111 = vpop.permute.xlu0 %9110
        %9112 = vrot.lane.b32.xlu0 %v8940, 64
        %v9113 = vpop.permute.xlu0 %9112
        %9114 = vrot.lane.b32.xlu0 %v8941, 64
        %v9115 = vpop.permute.xlu0 %9114
        %9116 = vrot.lane.b32.xlu0 %v8942, 64
        %v9117 = vpop.permute.xlu0 %9116
        %9118 = vrot.lane.b32.xlu0 %v8943, 64
        %v9119 = vpop.permute.xlu0 %9118
        %9120 = vrot.lane.b32.xlu0 %v8944, 64
        %v9121 = vpop.permute.xlu0 %9120
        %9122 = vrot.lane.b32.xlu0 %v8945, 64
        %v9123 = vpop.permute.xlu0 %9122
        %9124 = vrot.lane.b32.xlu0 %v8946, 64
        %v9125 = vpop.permute.xlu0 %9124
        %9126 = vrot.lane.b32.xlu0 %v8947, 64
        %v9127 = vpop.permute.xlu0 %9126
        %9128 = vrot.lane.b32.xlu0 %v8948, 64
        %v9129 = vpop.permute.xlu0 %9128
        %9130 = vrot.lane.b32.xlu0 %v8949, 64
        %v9131 = vpop.permute.xlu0 %9130
        %9132 = vrot.lane.b32.xlu0 %v8950, 64
        %v9133 = vpop.permute.xlu0 %9132
        %9134 = vrot.lane.b32.xlu0 %v8951, 64
        %v9135 = vpop.permute.xlu0 %9134
        %9136 = vrot.lane.b32.xlu0 %v8952, 64
        %v9137 = vpop.permute.xlu0 %9136
        %9138 = vrot.lane.b32.xlu0 %v8953, 64
        %v9139 = vpop.permute.xlu0 %9138
        %9140 = vrot.lane.b32.xlu0 %v8954, 64
        %v9141 = vpop.permute.xlu0 %9140
        %9142 = vrot.lane.b32.xlu0 %v8955, 64
        %v9143 = vpop.permute.xlu0 %9142
        %9144 = vrot.lane.b32.xlu0 %v8956, 64
        %v9145 = vpop.permute.xlu0 %9144
        %9146 = vrot.lane.b32.xlu0 %v8957, 64
        %v9147 = vpop.permute.xlu0 %9146
        %9148 = vrot.lane.b32.xlu0 %v8958, 64
        %v9149 = vpop.permute.xlu0 %9148
        %9150 = vrot.lane.b32.xlu0 %v8959, 64
        %v9151 = vpop.permute.xlu0 %9150
        %9216 = vst.msk [vmem:[#allocation2 + $0x8] sm:$0xff] %vm3314, %v9025
        %9217 = vst.msk [vmem:[#allocation2 + $0x18] sm:$0xff] %vm3314, %v9027
        %9218 = vst.msk [vmem:[#allocation2 + $0x28] sm:$0xff] %vm3314, %v9029
        %9219 = vst.msk [vmem:[#allocation2 + $0x38] sm:$0xff] %vm3314, %v9031
        %9220 = vst.msk [vmem:[#allocation2 + $0x48] sm:$0xff] %vm3314, %v9033
        %9221 = vst.msk [vmem:[#allocation2 + $0x58] sm:$0xff] %vm3314, %v9035
        %9222 = vst.msk [vmem:[#allocation2 + $0x68] sm:$0xff] %vm3314, %v9037
        %9223 = vst.msk [vmem:[#allocation2 + $0x78] sm:$0xff] %vm3314, %v9039
        %9224 = vst.msk [vmem:[#allocation2 + $0x88] sm:$0xff] %vm3314, %v9041
        %9225 = vst.msk [vmem:[#allocation2 + $0x98] sm:$0xff] %vm3314, %v9043
        %9226 = vst.msk [vmem:[#allocation2 + $0xa8] sm:$0xff] %vm3314, %v9045
        %9227 = vst.msk [vmem:[#allocation2 + $0xb8] sm:$0xff] %vm3314, %v9047
        %9228 = vst.msk [vmem:[#allocation2 + $0xc8] sm:$0xff] %vm3314, %v9049
        %9229 = vst.msk [vmem:[#allocation2 + $0xd8] sm:$0xff] %vm3314, %v9051
        %9230 = vst.msk [vmem:[#allocation2 + $0xe8] sm:$0xff] %vm3314, %v9053
        %9231 = vst.msk [vmem:[#allocation2 + $0xf8] sm:$0xff] %vm3314, %v9055
        %9232 = vst.msk [vmem:[#allocation2 + $0x108] sm:$0xff] %vm3314, %v9057
        %9233 = vst.msk [vmem:[#allocation2 + $0x118] sm:$0xff] %vm3314, %v9059
        %9234 = vst.msk [vmem:[#allocation2 + $0x128] sm:$0xff] %vm3314, %v9061
        %9235 = vst.msk [vmem:[#allocation2 + $0x138] sm:$0xff] %vm3314, %v9063
        %9236 = vst.msk [vmem:[#allocation2 + $0x148] sm:$0xff] %vm3314, %v9065
        %9237 = vst.msk [vmem:[#allocation2 + $0x158] sm:$0xff] %vm3314, %v9067
        %9238 = vst.msk [vmem:[#allocation2 + $0x168] sm:$0xff] %vm3314, %v9069
        %9239 = vst.msk [vmem:[#allocation2 + $0x178] sm:$0xff] %vm3314, %v9071
        %9240 = vst.msk [vmem:[#allocation2 + $0x188] sm:$0xff] %vm3314, %v9073
        %9241 = vst.msk [vmem:[#allocation2 + $0x198] sm:$0xff] %vm3314, %v9075
        %9242 = vst.msk [vmem:[#allocation2 + $0x1a8] sm:$0xff] %vm3314, %v9077
        %9243 = vst.msk [vmem:[#allocation2 + $0x1b8] sm:$0xff] %vm3314, %v9079
        %9244 = vst.msk [vmem:[#allocation2 + $0x1c8] sm:$0xff] %vm3314, %v9081
        %9245 = vst.msk [vmem:[#allocation2 + $0x1d8] sm:$0xff] %vm3314, %v9083
        %9246 = vst.msk [vmem:[#allocation2 + $0x1e8] sm:$0xff] %vm3314, %v9085
        %9247 = vst.msk [vmem:[#allocation2 + $0x1f8] sm:$0xff] %vm3314, %v9087
        %9248 = vst.msk [vmem:[#allocation2 + $0x208] sm:$0xff] %vm3314, %v9089
        %9249 = vst.msk [vmem:[#allocation2 + $0x218] sm:$0xff] %vm3314, %v9091
        %9250 = vst.msk [vmem:[#allocation2 + $0x228] sm:$0xff] %vm3314, %v9093
        %9251 = vst.msk [vmem:[#allocation2 + $0x238] sm:$0xff] %vm3314, %v9095
        %9252 = vst.msk [vmem:[#allocation2 + $0x248] sm:$0xff] %vm3314, %v9097
        %9253 = vst.msk [vmem:[#allocation2 + $0x258] sm:$0xff] %vm3314, %v9099
        %9254 = vst.msk [vmem:[#allocation2 + $0x268] sm:$0xff] %vm3314, %v9101
        %9255 = vst.msk [vmem:[#allocation2 + $0x278] sm:$0xff] %vm3314, %v9103
        %9256 = vst.msk [vmem:[#allocation2 + $0x288] sm:$0xff] %vm3314, %v9105
        %9257 = vst.msk [vmem:[#allocation2 + $0x298] sm:$0xff] %vm3314, %v9107
        %9258 = vst.msk [vmem:[#allocation2 + $0x2a8] sm:$0xff] %vm3314, %v9109
        %9259 = vst.msk [vmem:[#allocation2 + $0x2b8] sm:$0xff] %vm3314, %v9111
        %9260 = vst.msk [vmem:[#allocation2 + $0x2c8] sm:$0xff] %vm3314, %v9113
        %9261 = vst.msk [vmem:[#allocation2 + $0x2d8] sm:$0xff] %vm3314, %v9115
        %9262 = vst.msk [vmem:[#allocation2 + $0x2e8] sm:$0xff] %vm3314, %v9117
        %9263 = vst.msk [vmem:[#allocation2 + $0x2f8] sm:$0xff] %vm3314, %v9119
        %9264 = vst.msk [vmem:[#allocation2 + $0x308] sm:$0xff] %vm3314, %v9121
        %9265 = vst.msk [vmem:[#allocation2 + $0x318] sm:$0xff] %vm3314, %v9123
        %9266 = vst.msk [vmem:[#allocation2 + $0x328] sm:$0xff] %vm3314, %v9125
        %9267 = vst.msk [vmem:[#allocation2 + $0x338] sm:$0xff] %vm3314, %v9127
        %9268 = vst.msk [vmem:[#allocation2 + $0x348] sm:$0xff] %vm3314, %v9129
        %9269 = vst.msk [vmem:[#allocation2 + $0x358] sm:$0xff] %vm3314, %v9131
        %9270 = vst.msk [vmem:[#allocation2 + $0x368] sm:$0xff] %vm3314, %v9133
        %9271 = vst.msk [vmem:[#allocation2 + $0x378] sm:$0xff] %vm3314, %v9135
        %9272 = vst.msk [vmem:[#allocation2 + $0x388] sm:$0xff] %vm3314, %v9137
        %9273 = vst.msk [vmem:[#allocation2 + $0x398] sm:$0xff] %vm3314, %v9139
        %9274 = vst.msk [vmem:[#allocation2 + $0x3a8] sm:$0xff] %vm3314, %v9141
        %9275 = vst.msk [vmem:[#allocation2 + $0x3b8] sm:$0xff] %vm3314, %v9143
        %9276 = vst.msk [vmem:[#allocation2 + $0x3c8] sm:$0xff] %vm3314, %v9145
        %9277 = vst.msk [vmem:[#allocation2 + $0x3d8] sm:$0xff] %vm3314, %v9147
        %9278 = vst.msk [vmem:[#allocation2 + $0x3e8] sm:$0xff] %vm3314, %v9149
        %9279 = vst.msk [vmem:[#allocation2 + $0x3f8] sm:$0xff] %vm3314, %v9151
        %v9280 = vld [vmem:[%s8895 + $0x1] sm:$0xff]
        %v9281 = vld [vmem:[%s8895 + $0x11] sm:$0xff]
        %v9282 = vld [vmem:[%s8895 + $0x21] sm:$0xff]
        %v9283 = vld [vmem:[%s8895 + $0x31] sm:$0xff]
        %v9284 = vld [vmem:[%s8895 + $0x41] sm:$0xff]
        %v9285 = vld [vmem:[%s8895 + $0x51] sm:$0xff]
        %v9286 = vld [vmem:[%s8895 + $0x61] sm:$0xff]
        %v9287 = vld [vmem:[%s8895 + $0x71] sm:$0xff]
        %v9288 = vld [vmem:[%s8895 + $0xa1] sm:$0xff]
        %v9289 = vld [vmem:[%s8895 + $0xb1] sm:$0xff]
        %v9290 = vld [vmem:[%s8895 + $0xc1] sm:$0xff]
        %v9291 = vld [vmem:[%s8895 + $0xd1] sm:$0xff]
        %v9292 = vld [vmem:[%s8895 + $0xe1] sm:$0xff]
        %v9293 = vld [vmem:[%s8895 + $0xf1] sm:$0xff]
        %v9294 = vld [vmem:[%s8895 + $0x101] sm:$0xff]
        %v9295 = vld [vmem:[%s8895 + $0x111] sm:$0xff]
        %v9296 = vld [vmem:[%s8895 + $0x141] sm:$0xff]
        %v9297 = vld [vmem:[%s8895 + $0x151] sm:$0xff]
        %v9298 = vld [vmem:[%s8895 + $0x161] sm:$0xff]
        %v9299 = vld [vmem:[%s8895 + $0x171] sm:$0xff]
        %v9300 = vld [vmem:[%s8895 + $0x181] sm:$0xff]
        %v9301 = vld [vmem:[%s8895 + $0x191] sm:$0xff]
        %v9302 = vld [vmem:[%s8895 + $0x1a1] sm:$0xff]
        %v9303 = vld [vmem:[%s8895 + $0x1b1] sm:$0xff]
        %v9304 = vld [vmem:[%s8895 + $0x1e1] sm:$0xff]
        %v9305 = vld [vmem:[%s8895 + $0x1f1] sm:$0xff]
        %v9306 = vld [vmem:[%s8895 + $0x201] sm:$0xff]
        %v9307 = vld [vmem:[%s8895 + $0x211] sm:$0xff]
        %v9308 = vld [vmem:[%s8895 + $0x221] sm:$0xff]
        %v9309 = vld [vmem:[%s8895 + $0x231] sm:$0xff]
        %v9310 = vld [vmem:[%s8895 + $0x241] sm:$0xff]
        %v9311 = vld [vmem:[%s8895 + $0x251] sm:$0xff]
        %v9312 = vld [vmem:[%s8895 + $0x281] sm:$0xff]
        %v9313 = vld [vmem:[%s8895 + $0x291] sm:$0xff]
        %v9314 = vld [vmem:[%s8895 + $0x2a1] sm:$0xff]
        %v9315 = vld [vmem:[%s8895 + $0x2b1] sm:$0xff]
        %v9316 = vld [vmem:[%s8895 + $0x2c1] sm:$0xff]
        %v9317 = vld [vmem:[%s8895 + $0x2d1] sm:$0xff]
        %v9318 = vld [vmem:[%s8895 + $0x2e1] sm:$0xff]
        %v9319 = vld [vmem:[%s8895 + $0x2f1] sm:$0xff]
        %v9320 = vld [vmem:[%s8895 + $0x321] sm:$0xff]
        %v9321 = vld [vmem:[%s8895 + $0x331] sm:$0xff]
        %v9322 = vld [vmem:[%s8895 + $0x341] sm:$0xff]
        %v9323 = vld [vmem:[%s8895 + $0x351] sm:$0xff]
        %v9324 = vld [vmem:[%s8895 + $0x361] sm:$0xff]
        %v9325 = vld [vmem:[%s8895 + $0x371] sm:$0xff]
        %v9326 = vld [vmem:[%s8895 + $0x381] sm:$0xff]
        %v9327 = vld [vmem:[%s8895 + $0x391] sm:$0xff]
        %v9328 = vld [vmem:[%s8895 + $0x3c1] sm:$0xff]
        %v9329 = vld [vmem:[%s8895 + $0x3d1] sm:$0xff]
        %v9330 = vld [vmem:[%s8895 + $0x3e1] sm:$0xff]
        %v9331 = vld [vmem:[%s8895 + $0x3f1] sm:$0xff]
        %v9332 = vld [vmem:[%s8895 + $0x401] sm:$0xff]
        %v9333 = vld [vmem:[%s8895 + $0x411] sm:$0xff]
        %v9334 = vld [vmem:[%s8895 + $0x421] sm:$0xff]
        %v9335 = vld [vmem:[%s8895 + $0x431] sm:$0xff]
        %v9336 = vld [vmem:[%s8895 + $0x461] sm:$0xff]
        %v9337 = vld [vmem:[%s8895 + $0x471] sm:$0xff]
        %v9338 = vld [vmem:[%s8895 + $0x481] sm:$0xff]
        %v9339 = vld [vmem:[%s8895 + $0x491] sm:$0xff]
        %v9340 = vld [vmem:[%s8895 + $0x4a1] sm:$0xff]
        %v9341 = vld [vmem:[%s8895 + $0x4b1] sm:$0xff]
        %v9342 = vld [vmem:[%s8895 + $0x4c1] sm:$0xff]
        %v9343 = vld [vmem:[%s8895 + $0x4d1] sm:$0xff]
        %9408 = vrot.lane.b32.xlu0 %v9280, 72
        %v9409 = vpop.permute.xlu0 %9408
        %9410 = vrot.lane.b32.xlu0 %v9281, 72
        %v9411 = vpop.permute.xlu0 %9410
        %9412 = vrot.lane.b32.xlu0 %v9282, 72
        %v9413 = vpop.permute.xlu0 %9412
        %9414 = vrot.lane.b32.xlu0 %v9283, 72
        %v9415 = vpop.permute.xlu0 %9414
        %9416 = vrot.lane.b32.xlu0 %v9284, 72
        %v9417 = vpop.permute.xlu0 %9416
        %9418 = vrot.lane.b32.xlu0 %v9285, 72
        %v9419 = vpop.permute.xlu0 %9418
        %9420 = vrot.lane.b32.xlu0 %v9286, 72
        %v9421 = vpop.permute.xlu0 %9420
        %9422 = vrot.lane.b32.xlu0 %v9287, 72
        %v9423 = vpop.permute.xlu0 %9422
        %9424 = vrot.lane.b32.xlu0 %v9288, 72
        %v9425 = vpop.permute.xlu0 %9424
        %9426 = vrot.lane.b32.xlu0 %v9289, 72
        %v9427 = vpop.permute.xlu0 %9426
        %9428 = vrot.lane.b32.xlu0 %v9290, 72
        %v9429 = vpop.permute.xlu0 %9428
        %9430 = vrot.lane.b32.xlu0 %v9291, 72
        %v9431 = vpop.permute.xlu0 %9430
        %9432 = vrot.lane.b32.xlu0 %v9292, 72
        %v9433 = vpop.permute.xlu0 %9432
        %9434 = vrot.lane.b32.xlu0 %v9293, 72
        %v9435 = vpop.permute.xlu0 %9434
        %9436 = vrot.lane.b32.xlu0 %v9294, 72
        %v9437 = vpop.permute.xlu0 %9436
        %9438 = vrot.lane.b32.xlu0 %v9295, 72
        %v9439 = vpop.permute.xlu0 %9438
        %9440 = vrot.lane.b32.xlu0 %v9296, 72
        %v9441 = vpop.permute.xlu0 %9440
        %9442 = vrot.lane.b32.xlu0 %v9297, 72
        %v9443 = vpop.permute.xlu0 %9442
        %9444 = vrot.lane.b32.xlu0 %v9298, 72
        %v9445 = vpop.permute.xlu0 %9444
        %9446 = vrot.lane.b32.xlu0 %v9299, 72
        %v9447 = vpop.permute.xlu0 %9446
        %9448 = vrot.lane.b32.xlu0 %v9300, 72
        %v9449 = vpop.permute.xlu0 %9448
        %9450 = vrot.lane.b32.xlu0 %v9301, 72
        %v9451 = vpop.permute.xlu0 %9450
        %9452 = vrot.lane.b32.xlu0 %v9302, 72
        %v9453 = vpop.permute.xlu0 %9452
        %9454 = vrot.lane.b32.xlu0 %v9303, 72
        %v9455 = vpop.permute.xlu0 %9454
        %9456 = vrot.lane.b32.xlu0 %v9304, 72
        %v9457 = vpop.permute.xlu0 %9456
        %9458 = vrot.lane.b32.xlu0 %v9305, 72
        %v9459 = vpop.permute.xlu0 %9458
        %9460 = vrot.lane.b32.xlu0 %v9306, 72
        %v9461 = vpop.permute.xlu0 %9460
        %9462 = vrot.lane.b32.xlu0 %v9307, 72
        %v9463 = vpop.permute.xlu0 %9462
        %9464 = vrot.lane.b32.xlu0 %v9308, 72
        %v9465 = vpop.permute.xlu0 %9464
        %9466 = vrot.lane.b32.xlu0 %v9309, 72
        %v9467 = vpop.permute.xlu0 %9466
        %9468 = vrot.lane.b32.xlu0 %v9310, 72
        %v9469 = vpop.permute.xlu0 %9468
        %9470 = vrot.lane.b32.xlu0 %v9311, 72
        %v9471 = vpop.permute.xlu0 %9470
        %9472 = vrot.lane.b32.xlu0 %v9312, 72
        %v9473 = vpop.permute.xlu0 %9472
        %9474 = vrot.lane.b32.xlu0 %v9313, 72
        %v9475 = vpop.permute.xlu0 %9474
        %9476 = vrot.lane.b32.xlu0 %v9314, 72
        %v9477 = vpop.permute.xlu0 %9476
        %9478 = vrot.lane.b32.xlu0 %v9315, 72
        %v9479 = vpop.permute.xlu0 %9478
        %9480 = vrot.lane.b32.xlu0 %v9316, 72
        %v9481 = vpop.permute.xlu0 %9480
        %9482 = vrot.lane.b32.xlu0 %v9317, 72
        %v9483 = vpop.permute.xlu0 %9482
        %9484 = vrot.lane.b32.xlu0 %v9318, 72
        %v9485 = vpop.permute.xlu0 %9484
        %9486 = vrot.lane.b32.xlu0 %v9319, 72
        %v9487 = vpop.permute.xlu0 %9486
        %9488 = vrot.lane.b32.xlu0 %v9320, 72
        %v9489 = vpop.permute.xlu0 %9488
        %9490 = vrot.lane.b32.xlu0 %v9321, 72
        %v9491 = vpop.permute.xlu0 %9490
        %9492 = vrot.lane.b32.xlu0 %v9322, 72
        %v9493 = vpop.permute.xlu0 %9492
        %9494 = vrot.lane.b32.xlu0 %v9323, 72
        %v9495 = vpop.permute.xlu0 %9494
        %9496 = vrot.lane.b32.xlu0 %v9324, 72
        %v9497 = vpop.permute.xlu0 %9496
        %9498 = vrot.lane.b32.xlu0 %v9325, 72
        %v9499 = vpop.permute.xlu0 %9498
        %9500 = vrot.lane.b32.xlu0 %v9326, 72
        %v9501 = vpop.permute.xlu0 %9500
        %9502 = vrot.lane.b32.xlu0 %v9327, 72
        %v9503 = vpop.permute.xlu0 %9502
        %9504 = vrot.lane.b32.xlu0 %v9328, 72
        %v9505 = vpop.permute.xlu0 %9504
        %9506 = vrot.lane.b32.xlu0 %v9329, 72
        %v9507 = vpop.permute.xlu0 %9506
        %9508 = vrot.lane.b32.xlu0 %v9330, 72
        %v9509 = vpop.permute.xlu0 %9508
        %9510 = vrot.lane.b32.xlu0 %v9331, 72
        %v9511 = vpop.permute.xlu0 %9510
        %9512 = vrot.lane.b32.xlu0 %v9332, 72
        %v9513 = vpop.permute.xlu0 %9512
        %9514 = vrot.lane.b32.xlu0 %v9333, 72
        %v9515 = vpop.permute.xlu0 %9514
        %9516 = vrot.lane.b32.xlu0 %v9334, 72
        %v9517 = vpop.permute.xlu0 %9516
        %9518 = vrot.lane.b32.xlu0 %v9335, 72
        %v9519 = vpop.permute.xlu0 %9518
        %9520 = vrot.lane.b32.xlu0 %v9336, 72
        %v9521 = vpop.permute.xlu0 %9520
        %9522 = vrot.lane.b32.xlu0 %v9337, 72
        %v9523 = vpop.permute.xlu0 %9522
        %9524 = vrot.lane.b32.xlu0 %v9338, 72
        %v9525 = vpop.permute.xlu0 %9524
        %9526 = vrot.lane.b32.xlu0 %v9339, 72
        %v9527 = vpop.permute.xlu0 %9526
        %9528 = vrot.lane.b32.xlu0 %v9340, 72
        %v9529 = vpop.permute.xlu0 %9528
        %9530 = vrot.lane.b32.xlu0 %v9341, 72
        %v9531 = vpop.permute.xlu0 %9530
        %9532 = vrot.lane.b32.xlu0 %v9342, 72
        %v9533 = vpop.permute.xlu0 %9532
        %9534 = vrot.lane.b32.xlu0 %v9343, 72
        %v9535 = vpop.permute.xlu0 %9534
        %9600 = vst.msk [vmem:[#allocation2 + $0x8] sm:$0xff] %vm3700, %v9409
        %9601 = vst.msk [vmem:[#allocation2 + $0x18] sm:$0xff] %vm3700, %v9411
        %9602 = vst.msk [vmem:[#allocation2 + $0x28] sm:$0xff] %vm3700, %v9413
        %9603 = vst.msk [vmem:[#allocation2 + $0x38] sm:$0xff] %vm3700, %v9415
        %9604 = vst.msk [vmem:[#allocation2 + $0x48] sm:$0xff] %vm3700, %v9417
        %9605 = vst.msk [vmem:[#allocation2 + $0x58] sm:$0xff] %vm3700, %v9419
        %9606 = vst.msk [vmem:[#allocation2 + $0x68] sm:$0xff] %vm3700, %v9421
        %9607 = vst.msk [vmem:[#allocation2 + $0x78] sm:$0xff] %vm3700, %v9423
        %9608 = vst.msk [vmem:[#allocation2 + $0x88] sm:$0xff] %vm3700, %v9425
        %9609 = vst.msk [vmem:[#allocation2 + $0x98] sm:$0xff] %vm3700, %v9427
        %9610 = vst.msk [vmem:[#allocation2 + $0xa8] sm:$0xff] %vm3700, %v9429
        %9611 = vst.msk [vmem:[#allocation2 + $0xb8] sm:$0xff] %vm3700, %v9431
        %9612 = vst.msk [vmem:[#allocation2 + $0xc8] sm:$0xff] %vm3700, %v9433
        %9613 = vst.msk [vmem:[#allocation2 + $0xd8] sm:$0xff] %vm3700, %v9435
        %9614 = vst.msk [vmem:[#allocation2 + $0xe8] sm:$0xff] %vm3700, %v9437
        %9615 = vst.msk [vmem:[#allocation2 + $0xf8] sm:$0xff] %vm3700, %v9439
        %9616 = vst.msk [vmem:[#allocation2 + $0x108] sm:$0xff] %vm3700, %v9441
        %9617 = vst.msk [vmem:[#allocation2 + $0x118] sm:$0xff] %vm3700, %v9443
        %9618 = vst.msk [vmem:[#allocation2 + $0x128] sm:$0xff] %vm3700, %v9445
        %9619 = vst.msk [vmem:[#allocation2 + $0x138] sm:$0xff] %vm3700, %v9447
        %9620 = vst.msk [vmem:[#allocation2 + $0x148] sm:$0xff] %vm3700, %v9449
        %9621 = vst.msk [vmem:[#allocation2 + $0x158] sm:$0xff] %vm3700, %v9451
        %9622 = vst.msk [vmem:[#allocation2 + $0x168] sm:$0xff] %vm3700, %v9453
        %9623 = vst.msk [vmem:[#allocation2 + $0x178] sm:$0xff] %vm3700, %v9455
        %9624 = vst.msk [vmem:[#allocation2 + $0x188] sm:$0xff] %vm3700, %v9457
        %9625 = vst.msk [vmem:[#allocation2 + $0x198] sm:$0xff] %vm3700, %v9459
        %9626 = vst.msk [vmem:[#allocation2 + $0x1a8] sm:$0xff] %vm3700, %v9461
        %9627 = vst.msk [vmem:[#allocation2 + $0x1b8] sm:$0xff] %vm3700, %v9463
        %9628 = vst.msk [vmem:[#allocation2 + $0x1c8] sm:$0xff] %vm3700, %v9465
        %9629 = vst.msk [vmem:[#allocation2 + $0x1d8] sm:$0xff] %vm3700, %v9467
        %9630 = vst.msk [vmem:[#allocation2 + $0x1e8] sm:$0xff] %vm3700, %v9469
        %9631 = vst.msk [vmem:[#allocation2 + $0x1f8] sm:$0xff] %vm3700, %v9471
        %9632 = vst.msk [vmem:[#allocation2 + $0x208] sm:$0xff] %vm3700, %v9473
        %9633 = vst.msk [vmem:[#allocation2 + $0x218] sm:$0xff] %vm3700, %v9475
        %9634 = vst.msk [vmem:[#allocation2 + $0x228] sm:$0xff] %vm3700, %v9477
        %9635 = vst.msk [vmem:[#allocation2 + $0x238] sm:$0xff] %vm3700, %v9479
        %9636 = vst.msk [vmem:[#allocation2 + $0x248] sm:$0xff] %vm3700, %v9481
        %9637 = vst.msk [vmem:[#allocation2 + $0x258] sm:$0xff] %vm3700, %v9483
        %9638 = vst.msk [vmem:[#allocation2 + $0x268] sm:$0xff] %vm3700, %v9485
        %9639 = vst.msk [vmem:[#allocation2 + $0x278] sm:$0xff] %vm3700, %v9487
        %9640 = vst.msk [vmem:[#allocation2 + $0x288] sm:$0xff] %vm3700, %v9489
        %9641 = vst.msk [vmem:[#allocation2 + $0x298] sm:$0xff] %vm3700, %v9491
        %9642 = vst.msk [vmem:[#allocation2 + $0x2a8] sm:$0xff] %vm3700, %v9493
        %9643 = vst.msk [vmem:[#allocation2 + $0x2b8] sm:$0xff] %vm3700, %v9495
        %9644 = vst.msk [vmem:[#allocation2 + $0x2c8] sm:$0xff] %vm3700, %v9497
        %9645 = vst.msk [vmem:[#allocation2 + $0x2d8] sm:$0xff] %vm3700, %v9499
        %9646 = vst.msk [vmem:[#allocation2 + $0x2e8] sm:$0xff] %vm3700, %v9501
        %9647 = vst.msk [vmem:[#allocation2 + $0x2f8] sm:$0xff] %vm3700, %v9503
        %9648 = vst.msk [vmem:[#allocation2 + $0x308] sm:$0xff] %vm3700, %v9505
        %9649 = vst.msk [vmem:[#allocation2 + $0x318] sm:$0xff] %vm3700, %v9507
        %9650 = vst.msk [vmem:[#allocation2 + $0x328] sm:$0xff] %vm3700, %v9509
        %9651 = vst.msk [vmem:[#allocation2 + $0x338] sm:$0xff] %vm3700, %v9511
        %9652 = vst.msk [vmem:[#allocation2 + $0x348] sm:$0xff] %vm3700, %v9513
        %9653 = vst.msk [vmem:[#allocation2 + $0x358] sm:$0xff] %vm3700, %v9515
        %9654 = vst.msk [vmem:[#allocation2 + $0x368] sm:$0xff] %vm3700, %v9517
        %9655 = vst.msk [vmem:[#allocation2 + $0x378] sm:$0xff] %vm3700, %v9519
        %9656 = vst.msk [vmem:[#allocation2 + $0x388] sm:$0xff] %vm3700, %v9521
        %9657 = vst.msk [vmem:[#allocation2 + $0x398] sm:$0xff] %vm3700, %v9523
        %9658 = vst.msk [vmem:[#allocation2 + $0x3a8] sm:$0xff] %vm3700, %v9525
        %9659 = vst.msk [vmem:[#allocation2 + $0x3b8] sm:$0xff] %vm3700, %v9527
        %9660 = vst.msk [vmem:[#allocation2 + $0x3c8] sm:$0xff] %vm3700, %v9529
        %9661 = vst.msk [vmem:[#allocation2 + $0x3d8] sm:$0xff] %vm3700, %v9531
        %9662 = vst.msk [vmem:[#allocation2 + $0x3e8] sm:$0xff] %vm3700, %v9533
        %9663 = vst.msk [vmem:[#allocation2 + $0x3f8] sm:$0xff] %vm3700, %v9535
        %v9664 = vld [vmem:[%s8895 + $0x2] sm:$0xff]
        %v9665 = vld [vmem:[%s8895 + $0x12] sm:$0xff]
        %v9666 = vld [vmem:[%s8895 + $0x22] sm:$0xff]
        %v9667 = vld [vmem:[%s8895 + $0x32] sm:$0xff]
        %v9668 = vld [vmem:[%s8895 + $0x42] sm:$0xff]
        %v9669 = vld [vmem:[%s8895 + $0x52] sm:$0xff]
        %v9670 = vld [vmem:[%s8895 + $0x62] sm:$0xff]
        %v9671 = vld [vmem:[%s8895 + $0x72] sm:$0xff]
        %v9672 = vld [vmem:[%s8895 + $0xa2] sm:$0xff]
        %v9673 = vld [vmem:[%s8895 + $0xb2] sm:$0xff]
        %v9674 = vld [vmem:[%s8895 + $0xc2] sm:$0xff]
        %v9675 = vld [vmem:[%s8895 + $0xd2] sm:$0xff]
        %v9676 = vld [vmem:[%s8895 + $0xe2] sm:$0xff]
        %v9677 = vld [vmem:[%s8895 + $0xf2] sm:$0xff]
        %v9678 = vld [vmem:[%s8895 + $0x102] sm:$0xff]
        %v9679 = vld [vmem:[%s8895 + $0x112] sm:$0xff]
        %v9680 = vld [vmem:[%s8895 + $0x142] sm:$0xff]
        %v9681 = vld [vmem:[%s8895 + $0x152] sm:$0xff]
        %v9682 = vld [vmem:[%s8895 + $0x162] sm:$0xff]
        %v9683 = vld [vmem:[%s8895 + $0x172] sm:$0xff]
        %v9684 = vld [vmem:[%s8895 + $0x182] sm:$0xff]
        %v9685 = vld [vmem:[%s8895 + $0x192] sm:$0xff]
        %v9686 = vld [vmem:[%s8895 + $0x1a2] sm:$0xff]
        %v9687 = vld [vmem:[%s8895 + $0x1b2] sm:$0xff]
        %v9688 = vld [vmem:[%s8895 + $0x1e2] sm:$0xff]
        %v9689 = vld [vmem:[%s8895 + $0x1f2] sm:$0xff]
        %v9690 = vld [vmem:[%s8895 + $0x202] sm:$0xff]
        %v9691 = vld [vmem:[%s8895 + $0x212] sm:$0xff]
        %v9692 = vld [vmem:[%s8895 + $0x222] sm:$0xff]
        %v9693 = vld [vmem:[%s8895 + $0x232] sm:$0xff]
        %v9694 = vld [vmem:[%s8895 + $0x242] sm:$0xff]
        %v9695 = vld [vmem:[%s8895 + $0x252] sm:$0xff]
        %v9696 = vld [vmem:[%s8895 + $0x282] sm:$0xff]
        %v9697 = vld [vmem:[%s8895 + $0x292] sm:$0xff]
        %v9698 = vld [vmem:[%s8895 + $0x2a2] sm:$0xff]
        %v9699 = vld [vmem:[%s8895 + $0x2b2] sm:$0xff]
        %v9700 = vld [vmem:[%s8895 + $0x2c2] sm:$0xff]
        %v9701 = vld [vmem:[%s8895 + $0x2d2] sm:$0xff]
        %v9702 = vld [vmem:[%s8895 + $0x2e2] sm:$0xff]
        %v9703 = vld [vmem:[%s8895 + $0x2f2] sm:$0xff]
        %v9704 = vld [vmem:[%s8895 + $0x322] sm:$0xff]
        %v9705 = vld [vmem:[%s8895 + $0x332] sm:$0xff]
        %v9706 = vld [vmem:[%s8895 + $0x342] sm:$0xff]
        %v9707 = vld [vmem:[%s8895 + $0x352] sm:$0xff]
        %v9708 = vld [vmem:[%s8895 + $0x362] sm:$0xff]
        %v9709 = vld [vmem:[%s8895 + $0x372] sm:$0xff]
        %v9710 = vld [vmem:[%s8895 + $0x382] sm:$0xff]
        %v9711 = vld [vmem:[%s8895 + $0x392] sm:$0xff]
        %v9712 = vld [vmem:[%s8895 + $0x3c2] sm:$0xff]
        %v9713 = vld [vmem:[%s8895 + $0x3d2] sm:$0xff]
        %v9714 = vld [vmem:[%s8895 + $0x3e2] sm:$0xff]
        %v9715 = vld [vmem:[%s8895 + $0x3f2] sm:$0xff]
        %v9716 = vld [vmem:[%s8895 + $0x402] sm:$0xff]
        %v9717 = vld [vmem:[%s8895 + $0x412] sm:$0xff]
        %v9718 = vld [vmem:[%s8895 + $0x422] sm:$0xff]
        %v9719 = vld [vmem:[%s8895 + $0x432] sm:$0xff]
        %v9720 = vld [vmem:[%s8895 + $0x462] sm:$0xff]
        %v9721 = vld [vmem:[%s8895 + $0x472] sm:$0xff]
        %v9722 = vld [vmem:[%s8895 + $0x482] sm:$0xff]
        %v9723 = vld [vmem:[%s8895 + $0x492] sm:$0xff]
        %v9724 = vld [vmem:[%s8895 + $0x4a2] sm:$0xff]
        %v9725 = vld [vmem:[%s8895 + $0x4b2] sm:$0xff]
        %v9726 = vld [vmem:[%s8895 + $0x4c2] sm:$0xff]
        %v9727 = vld [vmem:[%s8895 + $0x4d2] sm:$0xff]
        %9792 = vrot.lane.b32.xlu0 %v9664, 80
        %v9793 = vpop.permute.xlu0 %9792
        %9794 = vrot.lane.b32.xlu0 %v9665, 80
        %v9795 = vpop.permute.xlu0 %9794
        %9796 = vrot.lane.b32.xlu0 %v9666, 80
        %v9797 = vpop.permute.xlu0 %9796
        %9798 = vrot.lane.b32.xlu0 %v9667, 80
        %v9799 = vpop.permute.xlu0 %9798
        %9800 = vrot.lane.b32.xlu0 %v9668, 80
        %v9801 = vpop.permute.xlu0 %9800
        %9802 = vrot.lane.b32.xlu0 %v9669, 80
        %v9803 = vpop.permute.xlu0 %9802
        %9804 = vrot.lane.b32.xlu0 %v9670, 80
        %v9805 = vpop.permute.xlu0 %9804
        %9806 = vrot.lane.b32.xlu0 %v9671, 80
        %v9807 = vpop.permute.xlu0 %9806
        %9808 = vrot.lane.b32.xlu0 %v9672, 80
        %v9809 = vpop.permute.xlu0 %9808
        %9810 = vrot.lane.b32.xlu0 %v9673, 80
        %v9811 = vpop.permute.xlu0 %9810
        %9812 = vrot.lane.b32.xlu0 %v9674, 80
        %v9813 = vpop.permute.xlu0 %9812
        %9814 = vrot.lane.b32.xlu0 %v9675, 80
        %v9815 = vpop.permute.xlu0 %9814
        %9816 = vrot.lane.b32.xlu0 %v9676, 80
        %v9817 = vpop.permute.xlu0 %9816
        %9818 = vrot.lane.b32.xlu0 %v9677, 80
        %v9819 = vpop.permute.xlu0 %9818
        %9820 = vrot.lane.b32.xlu0 %v9678, 80
        %v9821 = vpop.permute.xlu0 %9820
        %9822 = vrot.lane.b32.xlu0 %v9679, 80
        %v9823 = vpop.permute.xlu0 %9822
        %9824 = vrot.lane.b32.xlu0 %v9680, 80
        %v9825 = vpop.permute.xlu0 %9824
        %9826 = vrot.lane.b32.xlu0 %v9681, 80
        %v9827 = vpop.permute.xlu0 %9826
        %9828 = vrot.lane.b32.xlu0 %v9682, 80
        %v9829 = vpop.permute.xlu0 %9828
        %9830 = vrot.lane.b32.xlu0 %v9683, 80
        %v9831 = vpop.permute.xlu0 %9830
        %9832 = vrot.lane.b32.xlu0 %v9684, 80
        %v9833 = vpop.permute.xlu0 %9832
        %9834 = vrot.lane.b32.xlu0 %v9685, 80
        %v9835 = vpop.permute.xlu0 %9834
        %9836 = vrot.lane.b32.xlu0 %v9686, 80
        %v9837 = vpop.permute.xlu0 %9836
        %9838 = vrot.lane.b32.xlu0 %v9687, 80
        %v9839 = vpop.permute.xlu0 %9838
        %9840 = vrot.lane.b32.xlu0 %v9688, 80
        %v9841 = vpop.permute.xlu0 %9840
        %9842 = vrot.lane.b32.xlu0 %v9689, 80
        %v9843 = vpop.permute.xlu0 %9842
        %9844 = vrot.lane.b32.xlu0 %v9690, 80
        %v9845 = vpop.permute.xlu0 %9844
        %9846 = vrot.lane.b32.xlu0 %v9691, 80
        %v9847 = vpop.permute.xlu0 %9846
        %9848 = vrot.lane.b32.xlu0 %v9692, 80
        %v9849 = vpop.permute.xlu0 %9848
        %9850 = vrot.lane.b32.xlu0 %v9693, 80
        %v9851 = vpop.permute.xlu0 %9850
        %9852 = vrot.lane.b32.xlu0 %v9694, 80
        %v9853 = vpop.permute.xlu0 %9852
        %9854 = vrot.lane.b32.xlu0 %v9695, 80
        %v9855 = vpop.permute.xlu0 %9854
        %9856 = vrot.lane.b32.xlu0 %v9696, 80
        %v9857 = vpop.permute.xlu0 %9856
        %9858 = vrot.lane.b32.xlu0 %v9697, 80
        %v9859 = vpop.permute.xlu0 %9858
        %9860 = vrot.lane.b32.xlu0 %v9698, 80
        %v9861 = vpop.permute.xlu0 %9860
        %9862 = vrot.lane.b32.xlu0 %v9699, 80
        %v9863 = vpop.permute.xlu0 %9862
        %9864 = vrot.lane.b32.xlu0 %v9700, 80
        %v9865 = vpop.permute.xlu0 %9864
        %9866 = vrot.lane.b32.xlu0 %v9701, 80
        %v9867 = vpop.permute.xlu0 %9866
        %9868 = vrot.lane.b32.xlu0 %v9702, 80
        %v9869 = vpop.permute.xlu0 %9868
        %9870 = vrot.lane.b32.xlu0 %v9703, 80
        %v9871 = vpop.permute.xlu0 %9870
        %9872 = vrot.lane.b32.xlu0 %v9704, 80
        %v9873 = vpop.permute.xlu0 %9872
        %9874 = vrot.lane.b32.xlu0 %v9705, 80
        %v9875 = vpop.permute.xlu0 %9874
        %9876 = vrot.lane.b32.xlu0 %v9706, 80
        %v9877 = vpop.permute.xlu0 %9876
        %9878 = vrot.lane.b32.xlu0 %v9707, 80
        %v9879 = vpop.permute.xlu0 %9878
        %9880 = vrot.lane.b32.xlu0 %v9708, 80
        %v9881 = vpop.permute.xlu0 %9880
        %9882 = vrot.lane.b32.xlu0 %v9709, 80
        %v9883 = vpop.permute.xlu0 %9882
        %9884 = vrot.lane.b32.xlu0 %v9710, 80
        %v9885 = vpop.permute.xlu0 %9884
        %9886 = vrot.lane.b32.xlu0 %v9711, 80
        %v9887 = vpop.permute.xlu0 %9886
        %9888 = vrot.lane.b32.xlu0 %v9712, 80
        %v9889 = vpop.permute.xlu0 %9888
        %9890 = vrot.lane.b32.xlu0 %v9713, 80
        %v9891 = vpop.permute.xlu0 %9890
        %9892 = vrot.lane.b32.xlu0 %v9714, 80
        %v9893 = vpop.permute.xlu0 %9892
        %9894 = vrot.lane.b32.xlu0 %v9715, 80
        %v9895 = vpop.permute.xlu0 %9894
        %9896 = vrot.lane.b32.xlu0 %v9716, 80
        %v9897 = vpop.permute.xlu0 %9896
        %9898 = vrot.lane.b32.xlu0 %v9717, 80
        %v9899 = vpop.permute.xlu0 %9898
        %9900 = vrot.lane.b32.xlu0 %v9718, 80
        %v9901 = vpop.permute.xlu0 %9900
        %9902 = vrot.lane.b32.xlu0 %v9719, 80
        %v9903 = vpop.permute.xlu0 %9902
        %9904 = vrot.lane.b32.xlu0 %v9720, 80
        %v9905 = vpop.permute.xlu0 %9904
        %9906 = vrot.lane.b32.xlu0 %v9721, 80
        %v9907 = vpop.permute.xlu0 %9906
        %9908 = vrot.lane.b32.xlu0 %v9722, 80
        %v9909 = vpop.permute.xlu0 %9908
        %9910 = vrot.lane.b32.xlu0 %v9723, 80
        %v9911 = vpop.permute.xlu0 %9910
        %9912 = vrot.lane.b32.xlu0 %v9724, 80
        %v9913 = vpop.permute.xlu0 %9912
        %9914 = vrot.lane.b32.xlu0 %v9725, 80
        %v9915 = vpop.permute.xlu0 %9914
        %9916 = vrot.lane.b32.xlu0 %v9726, 80
        %v9917 = vpop.permute.xlu0 %9916
        %9918 = vrot.lane.b32.xlu0 %v9727, 80
        %v9919 = vpop.permute.xlu0 %9918
        %9984 = vst.msk [vmem:[#allocation2 + $0x8] sm:$0xff] %vm4085, %v9793
        %9985 = vst.msk [vmem:[#allocation2 + $0x18] sm:$0xff] %vm4085, %v9795
        %9986 = vst.msk [vmem:[#allocation2 + $0x28] sm:$0xff] %vm4085, %v9797
        %9987 = vst.msk [vmem:[#allocation2 + $0x38] sm:$0xff] %vm4085, %v9799
        %9988 = vst.msk [vmem:[#allocation2 + $0x48] sm:$0xff] %vm4085, %v9801
        %9989 = vst.msk [vmem:[#allocation2 + $0x58] sm:$0xff] %vm4085, %v9803
        %9990 = vst.msk [vmem:[#allocation2 + $0x68] sm:$0xff] %vm4085, %v9805
        %9991 = vst.msk [vmem:[#allocation2 + $0x78] sm:$0xff] %vm4085, %v9807
        %9992 = vst.msk [vmem:[#allocation2 + $0x88] sm:$0xff] %vm4085, %v9809
        %9993 = vst.msk [vmem:[#allocation2 + $0x98] sm:$0xff] %vm4085, %v9811
        %9994 = vst.msk [vmem:[#allocation2 + $0xa8] sm:$0xff] %vm4085, %v9813
        %9995 = vst.msk [vmem:[#allocation2 + $0xb8] sm:$0xff] %vm4085, %v9815
        %9996 = vst.msk [vmem:[#allocation2 + $0xc8] sm:$0xff] %vm4085, %v9817
        %9997 = vst.msk [vmem:[#allocation2 + $0xd8] sm:$0xff] %vm4085, %v9819
        %9998 = vst.msk [vmem:[#allocation2 + $0xe8] sm:$0xff] %vm4085, %v9821
        %9999 = vst.msk [vmem:[#allocation2 + $0xf8] sm:$0xff] %vm4085, %v9823
        %10000 = vst.msk [vmem:[#allocation2 + $0x108] sm:$0xff] %vm4085, %v9825
        %10001 = vst.msk [vmem:[#allocation2 + $0x118] sm:$0xff] %vm4085, %v9827
        %10002 = vst.msk [vmem:[#allocation2 + $0x128] sm:$0xff] %vm4085, %v9829
        %10003 = vst.msk [vmem:[#allocation2 + $0x138] sm:$0xff] %vm4085, %v9831
        %10004 = vst.msk [vmem:[#allocation2 + $0x148] sm:$0xff] %vm4085, %v9833
        %10005 = vst.msk [vmem:[#allocation2 + $0x158] sm:$0xff] %vm4085, %v9835
        %10006 = vst.msk [vmem:[#allocation2 + $0x168] sm:$0xff] %vm4085, %v9837
        %10007 = vst.msk [vmem:[#allocation2 + $0x178] sm:$0xff] %vm4085, %v9839
        %10008 = vst.msk [vmem:[#allocation2 + $0x188] sm:$0xff] %vm4085, %v9841
        %10009 = vst.msk [vmem:[#allocation2 + $0x198] sm:$0xff] %vm4085, %v9843
        %10010 = vst.msk [vmem:[#allocation2 + $0x1a8] sm:$0xff] %vm4085, %v9845
        %10011 = vst.msk [vmem:[#allocation2 + $0x1b8] sm:$0xff] %vm4085, %v9847
        %10012 = vst.msk [vmem:[#allocation2 + $0x1c8] sm:$0xff] %vm4085, %v9849
        %10013 = vst.msk [vmem:[#allocation2 + $0x1d8] sm:$0xff] %vm4085, %v9851
        %10014 = vst.msk [vmem:[#allocation2 + $0x1e8] sm:$0xff] %vm4085, %v9853
        %10015 = vst.msk [vmem:[#allocation2 + $0x1f8] sm:$0xff] %vm4085, %v9855
        %10016 = vst.msk [vmem:[#allocation2 + $0x208] sm:$0xff] %vm4085, %v9857
        %10017 = vst.msk [vmem:[#allocation2 + $0x218] sm:$0xff] %vm4085, %v9859
        %10018 = vst.msk [vmem:[#allocation2 + $0x228] sm:$0xff] %vm4085, %v9861
        %10019 = vst.msk [vmem:[#allocation2 + $0x238] sm:$0xff] %vm4085, %v9863
        %10020 = vst.msk [vmem:[#allocation2 + $0x248] sm:$0xff] %vm4085, %v9865
        %10021 = vst.msk [vmem:[#allocation2 + $0x258] sm:$0xff] %vm4085, %v9867
        %10022 = vst.msk [vmem:[#allocation2 + $0x268] sm:$0xff] %vm4085, %v9869
        %10023 = vst.msk [vmem:[#allocation2 + $0x278] sm:$0xff] %vm4085, %v9871
        %10024 = vst.msk [vmem:[#allocation2 + $0x288] sm:$0xff] %vm4085, %v9873
        %10025 = vst.msk [vmem:[#allocation2 + $0x298] sm:$0xff] %vm4085, %v9875
        %10026 = vst.msk [vmem:[#allocation2 + $0x2a8] sm:$0xff] %vm4085, %v9877
        %10027 = vst.msk [vmem:[#allocation2 + $0x2b8] sm:$0xff] %vm4085, %v9879
        %10028 = vst.msk [vmem:[#allocation2 + $0x2c8] sm:$0xff] %vm4085, %v9881
        %10029 = vst.msk [vmem:[#allocation2 + $0x2d8] sm:$0xff] %vm4085, %v9883
        %10030 = vst.msk [vmem:[#allocation2 + $0x2e8] sm:$0xff] %vm4085, %v9885
        %10031 = vst.msk [vmem:[#allocation2 + $0x2f8] sm:$0xff] %vm4085, %v9887
        %10032 = vst.msk [vmem:[#allocation2 + $0x308] sm:$0xff] %vm4085, %v9889
        %10033 = vst.msk [vmem:[#allocation2 + $0x318] sm:$0xff] %vm4085, %v9891
        %10034 = vst.msk [vmem:[#allocation2 + $0x328] sm:$0xff] %vm4085, %v9893
        %10035 = vst.msk [vmem:[#allocation2 + $0x338] sm:$0xff] %vm4085, %v9895
        %10036 = vst.msk [vmem:[#allocation2 + $0x348] sm:$0xff] %vm4085, %v9897
        %10037 = vst.msk [vmem:[#allocation2 + $0x358] sm:$0xff] %vm4085, %v9899
        %10038 = vst.msk [vmem:[#allocation2 + $0x368] sm:$0xff] %vm4085, %v9901
        %10039 = vst.msk [vmem:[#allocation2 + $0x378] sm:$0xff] %vm4085, %v9903
        %10040 = vst.msk [vmem:[#allocation2 + $0x388] sm:$0xff] %vm4085, %v9905
        %10041 = vst.msk [vmem:[#allocation2 + $0x398] sm:$0xff] %vm4085, %v9907
        %10042 = vst.msk [vmem:[#allocation2 + $0x3a8] sm:$0xff] %vm4085, %v9909
        %10043 = vst.msk [vmem:[#allocation2 + $0x3b8] sm:$0xff] %vm4085, %v9911
        %10044 = vst.msk [vmem:[#allocation2 + $0x3c8] sm:$0xff] %vm4085, %v9913
        %10045 = vst.msk [vmem:[#allocation2 + $0x3d8] sm:$0xff] %vm4085, %v9915
        %10046 = vst.msk [vmem:[#allocation2 + $0x3e8] sm:$0xff] %vm4085, %v9917
        %10047 = vst.msk [vmem:[#allocation2 + $0x3f8] sm:$0xff] %vm4085, %v9919
        %v10048 = vld [vmem:[#allocation2] sm:$0xff]
        %v10049 = vld [vmem:[#allocation2 + $0x8] sm:$0xff]
        %v10050 = vld [vmem:[#allocation2 + $0x10] sm:$0xff]
        %v10051 = vld [vmem:[#allocation2 + $0x18] sm:$0xff]
        %v10052 = vld [vmem:[#allocation2 + $0x20] sm:$0xff]
        %v10053 = vld [vmem:[#allocation2 + $0x28] sm:$0xff]
        %v10054 = vld [vmem:[#allocation2 + $0x30] sm:$0xff]
        %v10055 = vld [vmem:[#allocation2 + $0x38] sm:$0xff]
        %v10056 = vld [vmem:[#allocation2 + $0x40] sm:$0xff]
        %v10057 = vld [vmem:[#allocation2 + $0x48] sm:$0xff]
        %v10058 = vld [vmem:[#allocation2 + $0x50] sm:$0xff]
        %v10059 = vld [vmem:[#allocation2 + $0x58] sm:$0xff]
        %v10060 = vld [vmem:[#allocation2 + $0x60] sm:$0xff]
        %v10061 = vld [vmem:[#allocation2 + $0x68] sm:$0xff]
        %v10062 = vld [vmem:[#allocation2 + $0x70] sm:$0xff]
        %v10063 = vld [vmem:[#allocation2 + $0x78] sm:$0xff]
        %v10064 = vld [vmem:[#allocation2 + $0x80] sm:$0xff]
        %v10065 = vld [vmem:[#allocation2 + $0x88] sm:$0xff]
        %v10066 = vld [vmem:[#allocation2 + $0x90] sm:$0xff]
        %v10067 = vld [vmem:[#allocation2 + $0x98] sm:$0xff]
        %v10068 = vld [vmem:[#allocation2 + $0xa0] sm:$0xff]
        %v10069 = vld [vmem:[#allocation2 + $0xa8] sm:$0xff]
        %v10070 = vld [vmem:[#allocation2 + $0xb0] sm:$0xff]
        %v10071 = vld [vmem:[#allocation2 + $0xb8] sm:$0xff]
        %v10072 = vld [vmem:[#allocation2 + $0xc0] sm:$0xff]
        %v10073 = vld [vmem:[#allocation2 + $0xc8] sm:$0xff]
        %v10074 = vld [vmem:[#allocation2 + $0xd0] sm:$0xff]
        %v10075 = vld [vmem:[#allocation2 + $0xd8] sm:$0xff]
        %v10076 = vld [vmem:[#allocation2 + $0xe0] sm:$0xff]
        %v10077 = vld [vmem:[#allocation2 + $0xe8] sm:$0xff]
        %v10078 = vld [vmem:[#allocation2 + $0xf0] sm:$0xff]
        %v10079 = vld [vmem:[#allocation2 + $0xf8] sm:$0xff]
        %v10080 = vld [vmem:[#allocation2 + $0x100] sm:$0xff]
        %v10081 = vld [vmem:[#allocation2 + $0x108] sm:$0xff]
        %v10082 = vld [vmem:[#allocation2 + $0x110] sm:$0xff]
        %v10083 = vld [vmem:[#allocation2 + $0x118] sm:$0xff]
        %v10084 = vld [vmem:[#allocation2 + $0x120] sm:$0xff]
        %v10085 = vld [vmem:[#allocation2 + $0x128] sm:$0xff]
        %v10086 = vld [vmem:[#allocation2 + $0x130] sm:$0xff]
        %v10087 = vld [vmem:[#allocation2 + $0x138] sm:$0xff]
        %v10088 = vld [vmem:[#allocation2 + $0x140] sm:$0xff]
        %v10089 = vld [vmem:[#allocation2 + $0x148] sm:$0xff]
        %v10090 = vld [vmem:[#allocation2 + $0x150] sm:$0xff]
        %v10091 = vld [vmem:[#allocation2 + $0x158] sm:$0xff]
        %v10092 = vld [vmem:[#allocation2 + $0x160] sm:$0xff]
        %v10093 = vld [vmem:[#allocation2 + $0x168] sm:$0xff]
        %v10094 = vld [vmem:[#allocation2 + $0x170] sm:$0xff]
        %v10095 = vld [vmem:[#allocation2 + $0x178] sm:$0xff]
        %v10096 = vld [vmem:[#allocation2 + $0x180] sm:$0xff]
        %v10097 = vld [vmem:[#allocation2 + $0x188] sm:$0xff]
        %v10098 = vld [vmem:[#allocation2 + $0x190] sm:$0xff]
        %v10099 = vld [vmem:[#allocation2 + $0x198] sm:$0xff]
        %v10100 = vld [vmem:[#allocation2 + $0x1a0] sm:$0xff]
        %v10101 = vld [vmem:[#allocation2 + $0x1a8] sm:$0xff]
        %v10102 = vld [vmem:[#allocation2 + $0x1b0] sm:$0xff]
        %v10103 = vld [vmem:[#allocation2 + $0x1b8] sm:$0xff]
        %v10104 = vld [vmem:[#allocation2 + $0x1c0] sm:$0xff]
        %v10105 = vld [vmem:[#allocation2 + $0x1c8] sm:$0xff]
        %v10106 = vld [vmem:[#allocation2 + $0x1d0] sm:$0xff]
        %v10107 = vld [vmem:[#allocation2 + $0x1d8] sm:$0xff]
        %v10108 = vld [vmem:[#allocation2 + $0x1e0] sm:$0xff]
        %v10109 = vld [vmem:[#allocation2 + $0x1e8] sm:$0xff]
        %v10110 = vld [vmem:[#allocation2 + $0x1f0] sm:$0xff]
        %v10111 = vld [vmem:[#allocation2 + $0x1f8] sm:$0xff]
        %v10112 = vld [vmem:[#allocation2 + $0x200] sm:$0xff]
        %v10113 = vld [vmem:[#allocation2 + $0x208] sm:$0xff]
        %v10114 = vld [vmem:[#allocation2 + $0x210] sm:$0xff]
        %v10115 = vld [vmem:[#allocation2 + $0x218] sm:$0xff]
        %v10116 = vld [vmem:[#allocation2 + $0x220] sm:$0xff]
        %v10117 = vld [vmem:[#allocation2 + $0x228] sm:$0xff]
        %v10118 = vld [vmem:[#allocation2 + $0x230] sm:$0xff]
        %v10119 = vld [vmem:[#allocation2 + $0x238] sm:$0xff]
        %v10120 = vld [vmem:[#allocation2 + $0x240] sm:$0xff]
        %v10121 = vld [vmem:[#allocation2 + $0x248] sm:$0xff]
        %v10122 = vld [vmem:[#allocation2 + $0x250] sm:$0xff]
        %v10123 = vld [vmem:[#allocation2 + $0x258] sm:$0xff]
        %v10124 = vld [vmem:[#allocation2 + $0x260] sm:$0xff]
        %v10125 = vld [vmem:[#allocation2 + $0x268] sm:$0xff]
        %v10126 = vld [vmem:[#allocation2 + $0x270] sm:$0xff]
        %v10127 = vld [vmem:[#allocation2 + $0x278] sm:$0xff]
        %v10128 = vld [vmem:[#allocation2 + $0x280] sm:$0xff]
        %v10129 = vld [vmem:[#allocation2 + $0x288] sm:$0xff]
        %v10130 = vld [vmem:[#allocation2 + $0x290] sm:$0xff]
        %v10131 = vld [vmem:[#allocation2 + $0x298] sm:$0xff]
        %v10132 = vld [vmem:[#allocation2 + $0x2a0] sm:$0xff]
        %v10133 = vld [vmem:[#allocation2 + $0x2a8] sm:$0xff]
        %v10134 = vld [vmem:[#allocation2 + $0x2b0] sm:$0xff]
        %v10135 = vld [vmem:[#allocation2 + $0x2b8] sm:$0xff]
        %v10136 = vld [vmem:[#allocation2 + $0x2c0] sm:$0xff]
        %v10137 = vld [vmem:[#allocation2 + $0x2c8] sm:$0xff]
        %v10138 = vld [vmem:[#allocation2 + $0x2d0] sm:$0xff]
        %v10139 = vld [vmem:[#allocation2 + $0x2d8] sm:$0xff]
        %v10140 = vld [vmem:[#allocation2 + $0x2e0] sm:$0xff]
        %v10141 = vld [vmem:[#allocation2 + $0x2e8] sm:$0xff]
        %v10142 = vld [vmem:[#allocation2 + $0x2f0] sm:$0xff]
        %v10143 = vld [vmem:[#allocation2 + $0x2f8] sm:$0xff]
        %v10144 = vld [vmem:[#allocation2 + $0x300] sm:$0xff]
        %v10145 = vld [vmem:[#allocation2 + $0x308] sm:$0xff]
        %v10146 = vld [vmem:[#allocation2 + $0x310] sm:$0xff]
        %v10147 = vld [vmem:[#allocation2 + $0x318] sm:$0xff]
        %v10148 = vld [vmem:[#allocation2 + $0x320] sm:$0xff]
        %v10149 = vld [vmem:[#allocation2 + $0x328] sm:$0xff]
        %v10150 = vld [vmem:[#allocation2 + $0x330] sm:$0xff]
        %v10151 = vld [vmem:[#allocation2 + $0x338] sm:$0xff]
        %v10152 = vld [vmem:[#allocation2 + $0x340] sm:$0xff]
        %v10153 = vld [vmem:[#allocation2 + $0x348] sm:$0xff]
        %v10154 = vld [vmem:[#allocation2 + $0x350] sm:$0xff]
        %v10155 = vld [vmem:[#allocation2 + $0x358] sm:$0xff]
        %v10156 = vld [vmem:[#allocation2 + $0x360] sm:$0xff]
        %v10157 = vld [vmem:[#allocation2 + $0x368] sm:$0xff]
        %v10158 = vld [vmem:[#allocation2 + $0x370] sm:$0xff]
        %v10159 = vld [vmem:[#allocation2 + $0x378] sm:$0xff]
        %v10160 = vld [vmem:[#allocation2 + $0x380] sm:$0xff]
        %v10161 = vld [vmem:[#allocation2 + $0x388] sm:$0xff]
        %v10162 = vld [vmem:[#allocation2 + $0x390] sm:$0xff]
        %v10163 = vld [vmem:[#allocation2 + $0x398] sm:$0xff]
        %v10164 = vld [vmem:[#allocation2 + $0x3a0] sm:$0xff]
        %v10165 = vld [vmem:[#allocation2 + $0x3a8] sm:$0xff]
        %v10166 = vld [vmem:[#allocation2 + $0x3b0] sm:$0xff]
        %v10167 = vld [vmem:[#allocation2 + $0x3b8] sm:$0xff]
        %v10168 = vld [vmem:[#allocation2 + $0x3c0] sm:$0xff]
        %v10169 = vld [vmem:[#allocation2 + $0x3c8] sm:$0xff]
        %v10170 = vld [vmem:[#allocation2 + $0x3d0] sm:$0xff]
        %v10171 = vld [vmem:[#allocation2 + $0x3d8] sm:$0xff]
        %v10172 = vld [vmem:[#allocation2 + $0x3e0] sm:$0xff]
        %v10173 = vld [vmem:[#allocation2 + $0x3e8] sm:$0xff]
        %v10174 = vld [vmem:[#allocation2 + $0x3f0] sm:$0xff]
        %v10175 = vld [vmem:[#allocation2 + $0x3f8] sm:$0xff]
        %v10176 = vld [vmem:[%s1] sm:$0xff]
        %v10177 = vld [vmem:[%s1 + $0x8] sm:$0xff]
        %v10178 = vld [vmem:[%s1 + $0x10] sm:$0xff]
        %v10179 = vld [vmem:[%s1 + $0x18] sm:$0xff]
        %v10180 = vld [vmem:[%s1 + $0x20] sm:$0xff]
        %v10181 = vld [vmem:[%s1 + $0x28] sm:$0xff]
        %v10182 = vld [vmem:[%s1 + $0x30] sm:$0xff]
        %v10183 = vld [vmem:[%s1 + $0x38] sm:$0xff]
        %v10184 = vld [vmem:[%s1 + $0x40] sm:$0xff]
        %v10185 = vld [vmem:[%s1 + $0x48] sm:$0xff]
        %v10186 = vld [vmem:[%s1 + $0x50] sm:$0xff]
        %v10187 = vld [vmem:[%s1 + $0x58] sm:$0xff]
        %v10188 = vld [vmem:[%s1 + $0x60] sm:$0xff]
        %v10189 = vld [vmem:[%s1 + $0x68] sm:$0xff]
        %v10190 = vld [vmem:[%s1 + $0x70] sm:$0xff]
        %v10191 = vld [vmem:[%s1 + $0x78] sm:$0xff]
        %v10192 = vld [vmem:[%s1 + $0x80] sm:$0xff]
        %v10193 = vld [vmem:[%s1 + $0x88] sm:$0xff]
        %v10194 = vld [vmem:[%s1 + $0x90] sm:$0xff]
        %v10195 = vld [vmem:[%s1 + $0x98] sm:$0xff]
        %v10196 = vld [vmem:[%s1 + $0xa0] sm:$0xff]
        %v10197 = vld [vmem:[%s1 + $0xa8] sm:$0xff]
        %v10198 = vld [vmem:[%s1 + $0xb0] sm:$0xff]
        %v10199 = vld [vmem:[%s1 + $0xb8] sm:$0xff]
        %v10200 = vld [vmem:[%s1 + $0xc0] sm:$0xff]
        %v10201 = vld [vmem:[%s1 + $0xc8] sm:$0xff]
        %v10202 = vld [vmem:[%s1 + $0xd0] sm:$0xff]
        %vm10203 = vcmask 719872
        %v10205 = vsel %vm10203, %v10049, 0
        %v10208 = vsel %vm10203, %v10051, 0
        %v10211 = vsel %vm10203, %v10053, 0
        %v10214 = vsel %vm10203, %v10055, 0
        %v10217 = vsel %vm10203, %v10057, 0
        %v10220 = vsel %vm10203, %v10059, 0
        %v10223 = vsel %vm10203, %v10061, 0
        %v10226 = vsel %vm10203, %v10063, 0
        %v10229 = vsel %vm10203, %v10065, 0
        %v10232 = vsel %vm10203, %v10067, 0
        %v10235 = vsel %vm10203, %v10069, 0
        %v10238 = vsel %vm10203, %v10071, 0
        %v10241 = vsel %vm10203, %v10073, 0
        %v10244 = vsel %vm10203, %v10075, 0
        %v10247 = vsel %vm10203, %v10077, 0
        %v10250 = vsel %vm10203, %v10079, 0
        %v10253 = vsel %vm10203, %v10081, 0
        %v10256 = vsel %vm10203, %v10083, 0
        %v10259 = vsel %vm10203, %v10085, 0
        %v10262 = vsel %vm10203, %v10087, 0
        %v10265 = vsel %vm10203, %v10089, 0
        %v10268 = vsel %vm10203, %v10091, 0
        %v10271 = vsel %vm10203, %v10093, 0
        %v10274 = vsel %vm10203, %v10095, 0
        %v10277 = vsel %vm10203, %v10097, 0
        %v10280 = vsel %vm10203, %v10099, 0
        %v10283 = vsel %vm10203, %v10101, 0
        %v10286 = vsel %vm10203, %v10103, 0
        %v10289 = vsel %vm10203, %v10105, 0
        %v10292 = vsel %vm10203, %v10107, 0
        %v10295 = vsel %vm10203, %v10109, 0
        %v10298 = vsel %vm10203, %v10111, 0
        %v10301 = vsel %vm10203, %v10113, 0
        %v10304 = vsel %vm10203, %v10115, 0
        %v10307 = vsel %vm10203, %v10117, 0
        %v10310 = vsel %vm10203, %v10119, 0
        %v10313 = vsel %vm10203, %v10121, 0
        %v10316 = vsel %vm10203, %v10123, 0
        %v10319 = vsel %vm10203, %v10125, 0
        %v10322 = vsel %vm10203, %v10127, 0
        %v10325 = vsel %vm10203, %v10129, 0
        %v10328 = vsel %vm10203, %v10131, 0
        %v10331 = vsel %vm10203, %v10133, 0
        %v10334 = vsel %vm10203, %v10135, 0
        %v10337 = vsel %vm10203, %v10137, 0
        %v10340 = vsel %vm10203, %v10139, 0
        %v10343 = vsel %vm10203, %v10141, 0
        %v10346 = vsel %vm10203, %v10143, 0
        %v10349 = vsel %vm10203, %v10145, 0
        %v10352 = vsel %vm10203, %v10147, 0
        %v10355 = vsel %vm10203, %v10149, 0
        %v10358 = vsel %vm10203, %v10151, 0
        %v10361 = vsel %vm10203, %v10153, 0
        %v10364 = vsel %vm10203, %v10155, 0
        %v10367 = vsel %vm10203, %v10157, 0
        %v10370 = vsel %vm10203, %v10159, 0
        %v10373 = vsel %vm10203, %v10161, 0
        %v10376 = vsel %vm10203, %v10163, 0
        %v10379 = vsel %vm10203, %v10165, 0
        %v10382 = vsel %vm10203, %v10167, 0
        %v10385 = vsel %vm10203, %v10169, 0
        %v10388 = vsel %vm10203, %v10171, 0
        %v10391 = vsel %vm10203, %v10173, 0
        %v10394 = vsel %vm10203, %v10175, 0
        %10396 = vmatpush.msra.mxu0 %v10191
        %10397 = vmatpush.msra.mxu0 %v10190
        %10398 = vmatpush.msra.mxu0 %v10189
        %10399 = vmatpush.msra.mxu0 %v10188
        %10400 = vmatpush.msra.mxu0 %v10187
        %10401 = vmatpush.msra.mxu0 %v10186
        %10402 = vmatpush.msra.mxu0 %v10185
        %10403 = vmatpush.msra.mxu0 %v10184
        %10404 = vmatpush.msra.mxu0 %v10183
        %10405 = vmatpush.msra.mxu0 %v10182
        %10406 = vmatpush.msra.mxu0 %v10181
        %10407 = vmatpush.msra.mxu0 %v10180
        %10408 = vmatpush.msra.mxu0 %v10179
        %10409 = vmatpush.msra.mxu0 %v10178
        %10410 = vmatpush.msra.mxu0 %v10177
        %10411 = vmatpush.msra.mxu0 %v10176
        %10412 = vmatmul.f32.gmra.mxu0 %v10048
        %v10413 = vpop.f32.mrf.mxu0
        %v10414 = vadd.f32 0.0, %v10413
        %10415 = vmatmul.f32.gmra.mxu0 %v10050
        %v10416 = vpop.f32.mrf.mxu0
        %v10417 = vadd.f32 0.0, %v10416
        %10418 = vmatmul.f32.gmra.mxu0 %v10052
        %v10419 = vpop.f32.mrf.mxu0
        %v10420 = vadd.f32 0.0, %v10419
        %10421 = vmatmul.f32.gmra.mxu0 %v10054
        %v10422 = vpop.f32.mrf.mxu0
        %v10423 = vadd.f32 0.0, %v10422
        %10424 = vmatmul.f32.gmra.mxu0 %v10056
        %v10425 = vpop.f32.mrf.mxu0
        %v10426 = vadd.f32 0.0, %v10425
        %10427 = vmatmul.f32.gmra.mxu0 %v10058
        %v10428 = vpop.f32.mrf.mxu0
        %v10429 = vadd.f32 0.0, %v10428
        %10430 = vmatmul.f32.gmra.mxu0 %v10060
        %v10431 = vpop.f32.mrf.mxu0
        %v10432 = vadd.f32 0.0, %v10431
        %10433 = vmatmul.f32.gmra.mxu0 %v10062
        %v10434 = vpop.f32.mrf.mxu0
        %v10435 = vadd.f32 0.0, %v10434
        %10436 = vmatmul.f32.gmra.mxu0 %v10064
        %v10437 = vpop.f32.mrf.mxu0
        %v10438 = vadd.f32 0.0, %v10437
        %10439 = vmatmul.f32.gmra.mxu0 %v10066
        %v10440 = vpop.f32.mrf.mxu0
        %v10441 = vadd.f32 0.0, %v10440
        %10442 = vmatmul.f32.gmra.mxu0 %v10068
        %v10443 = vpop.f32.mrf.mxu0
        %v10444 = vadd.f32 0.0, %v10443
        %10445 = vmatmul.f32.gmra.mxu0 %v10070
        %v10446 = vpop.f32.mrf.mxu0
        %v10447 = vadd.f32 0.0, %v10446
        %10448 = vmatmul.f32.gmra.mxu0 %v10072
        %v10449 = vpop.f32.mrf.mxu0
        %v10450 = vadd.f32 0.0, %v10449
        %10451 = vmatmul.f32.gmra.mxu0 %v10074
        %v10452 = vpop.f32.mrf.mxu0
        %v10453 = vadd.f32 0.0, %v10452
        %10454 = vmatmul.f32.gmra.mxu0 %v10076
        %v10455 = vpop.f32.mrf.mxu0
        %v10456 = vadd.f32 0.0, %v10455
        %10457 = vmatmul.f32.gmra.mxu0 %v10078
        %v10458 = vpop.f32.mrf.mxu0
        %v10459 = vadd.f32 0.0, %v10458
        %10460 = vmatmul.f32.gmra.mxu0 %v10080
        %v10461 = vpop.f32.mrf.mxu0
        %v10462 = vadd.f32 0.0, %v10461
        %10463 = vmatmul.f32.gmra.mxu0 %v10082
        %v10464 = vpop.f32.mrf.mxu0
        %v10465 = vadd.f32 0.0, %v10464
        %10466 = vmatmul.f32.gmra.mxu0 %v10084
        %v10467 = vpop.f32.mrf.mxu0
        %v10468 = vadd.f32 0.0, %v10467
        %10469 = vmatmul.f32.gmra.mxu0 %v10086
        %v10470 = vpop.f32.mrf.mxu0
        %v10471 = vadd.f32 0.0, %v10470
        %10472 = vmatmul.f32.gmra.mxu0 %v10088
        %v10473 = vpop.f32.mrf.mxu0
        %v10474 = vadd.f32 0.0, %v10473
        %10475 = vmatmul.f32.gmra.mxu0 %v10090
        %v10476 = vpop.f32.mrf.mxu0
        %v10477 = vadd.f32 0.0, %v10476
        %10478 = vmatmul.f32.gmra.mxu0 %v10092
        %v10479 = vpop.f32.mrf.mxu0
        %v10480 = vadd.f32 0.0, %v10479
        %10481 = vmatmul.f32.gmra.mxu0 %v10094
        %v10482 = vpop.f32.mrf.mxu0
        %v10483 = vadd.f32 0.0, %v10482
        %10484 = vmatmul.f32.gmra.mxu0 %v10096
        %v10485 = vpop.f32.mrf.mxu0
        %v10486 = vadd.f32 0.0, %v10485
        %10487 = vmatmul.f32.gmra.mxu0 %v10098
        %v10488 = vpop.f32.mrf.mxu0
        %v10489 = vadd.f32 0.0, %v10488
        %10490 = vmatmul.f32.gmra.mxu0 %v10100
        %v10491 = vpop.f32.mrf.mxu0
        %v10492 = vadd.f32 0.0, %v10491
        %10493 = vmatmul.f32.gmra.mxu0 %v10102
        %v10494 = vpop.f32.mrf.mxu0
        %v10495 = vadd.f32 0.0, %v10494
        %10496 = vmatmul.f32.gmra.mxu0 %v10104
        %v10497 = vpop.f32.mrf.mxu0
        %v10498 = vadd.f32 0.0, %v10497
        %10499 = vmatmul.f32.gmra.mxu0 %v10106
        %v10500 = vpop.f32.mrf.mxu0
        %v10501 = vadd.f32 0.0, %v10500
        %10502 = vmatmul.f32.gmra.mxu0 %v10108
        %v10503 = vpop.f32.mrf.mxu0
        %v10504 = vadd.f32 0.0, %v10503
        %10505 = vmatmul.f32.gmra.mxu0 %v10110
        %v10506 = vpop.f32.mrf.mxu0
        %v10507 = vadd.f32 0.0, %v10506
        %10508 = vmatmul.f32.gmra.mxu0 %v10112
        %v10509 = vpop.f32.mrf.mxu0
        %v10510 = vadd.f32 0.0, %v10509
        %10511 = vmatmul.f32.gmra.mxu0 %v10114
        %v10512 = vpop.f32.mrf.mxu0
        %v10513 = vadd.f32 0.0, %v10512
        %10514 = vmatmul.f32.gmra.mxu0 %v10116
        %v10515 = vpop.f32.mrf.mxu0
        %v10516 = vadd.f32 0.0, %v10515
        %10517 = vmatmul.f32.gmra.mxu0 %v10118
        %v10518 = vpop.f32.mrf.mxu0
        %v10519 = vadd.f32 0.0, %v10518
        %10520 = vmatmul.f32.gmra.mxu0 %v10120
        %v10521 = vpop.f32.mrf.mxu0
        %v10522 = vadd.f32 0.0, %v10521
        %10523 = vmatmul.f32.gmra.mxu0 %v10122
        %v10524 = vpop.f32.mrf.mxu0
        %v10525 = vadd.f32 0.0, %v10524
        %10526 = vmatmul.f32.gmra.mxu0 %v10124
        %v10527 = vpop.f32.mrf.mxu0
        %v10528 = vadd.f32 0.0, %v10527
        %10529 = vmatmul.f32.gmra.mxu0 %v10126
        %v10530 = vpop.f32.mrf.mxu0
        %v10531 = vadd.f32 0.0, %v10530
        %10532 = vmatmul.f32.gmra.mxu0 %v10128
        %v10533 = vpop.f32.mrf.mxu0
        %v10534 = vadd.f32 0.0, %v10533
        %10535 = vmatmul.f32.gmra.mxu0 %v10130
        %v10536 = vpop.f32.mrf.mxu0
        %v10537 = vadd.f32 0.0, %v10536
        %10538 = vmatmul.f32.gmra.mxu0 %v10132
        %v10539 = vpop.f32.mrf.mxu0
        %v10540 = vadd.f32 0.0, %v10539
        %10541 = vmatmul.f32.gmra.mxu0 %v10134
        %v10542 = vpop.f32.mrf.mxu0
        %v10543 = vadd.f32 0.0, %v10542
        %10544 = vmatmul.f32.gmra.mxu0 %v10136
        %v10545 = vpop.f32.mrf.mxu0
        %v10546 = vadd.f32 0.0, %v10545
        %10547 = vmatmul.f32.gmra.mxu0 %v10138
        %v10548 = vpop.f32.mrf.mxu0
        %v10549 = vadd.f32 0.0, %v10548
        %10550 = vmatmul.f32.gmra.mxu0 %v10140
        %v10551 = vpop.f32.mrf.mxu0
        %v10552 = vadd.f32 0.0, %v10551
        %10553 = vmatmul.f32.gmra.mxu0 %v10142
        %v10554 = vpop.f32.mrf.mxu0
        %v10555 = vadd.f32 0.0, %v10554
        %10556 = vmatmul.f32.gmra.mxu0 %v10144
        %v10557 = vpop.f32.mrf.mxu0
        %v10558 = vadd.f32 0.0, %v10557
        %10559 = vmatmul.f32.gmra.mxu0 %v10146
        %v10560 = vpop.f32.mrf.mxu0
        %v10561 = vadd.f32 0.0, %v10560
        %10562 = vmatmul.f32.gmra.mxu0 %v10148
        %v10563 = vpop.f32.mrf.mxu0
        %v10564 = vadd.f32 0.0, %v10563
        %10565 = vmatmul.f32.gmra.mxu0 %v10150
        %v10566 = vpop.f32.mrf.mxu0
        %v10567 = vadd.f32 0.0, %v10566
        %10568 = vmatmul.f32.gmra.mxu0 %v10152
        %v10569 = vpop.f32.mrf.mxu0
        %v10570 = vadd.f32 0.0, %v10569
        %10571 = vmatmul.f32.gmra.mxu0 %v10154
        %v10572 = vpop.f32.mrf.mxu0
        %v10573 = vadd.f32 0.0, %v10572
        %10574 = vmatmul.f32.gmra.mxu0 %v10156
        %v10575 = vpop.f32.mrf.mxu0
        %v10576 = vadd.f32 0.0, %v10575
        %10577 = vmatmul.f32.gmra.mxu0 %v10158
        %v10578 = vpop.f32.mrf.mxu0
        %v10579 = vadd.f32 0.0, %v10578
        %10580 = vmatmul.f32.gmra.mxu0 %v10160
        %v10581 = vpop.f32.mrf.mxu0
        %v10582 = vadd.f32 0.0, %v10581
        %10583 = vmatmul.f32.gmra.mxu0 %v10162
        %v10584 = vpop.f32.mrf.mxu0
        %v10585 = vadd.f32 0.0, %v10584
        %10586 = vmatmul.f32.gmra.mxu0 %v10164
        %v10587 = vpop.f32.mrf.mxu0
        %v10588 = vadd.f32 0.0, %v10587
        %10589 = vmatmul.f32.gmra.mxu0 %v10166
        %v10590 = vpop.f32.mrf.mxu0
        %v10591 = vadd.f32 0.0, %v10590
        %10592 = vmatmul.f32.gmra.mxu0 %v10168
        %v10593 = vpop.f32.mrf.mxu0
        %v10594 = vadd.f32 0.0, %v10593
        %10595 = vmatmul.f32.gmra.mxu0 %v10170
        %v10596 = vpop.f32.mrf.mxu0
        %v10597 = vadd.f32 0.0, %v10596
        %10598 = vmatmul.f32.gmra.mxu0 %v10172
        %v10599 = vpop.f32.mrf.mxu0
        %v10600 = vadd.f32 0.0, %v10599
        %10601 = vmatmul.f32.gmra.mxu0 %v10174
        %v10602 = vpop.f32.mrf.mxu0
        %v10603 = vadd.f32 0.0, %v10602
        %10604 = vdwg.mxu0
        %10605 = vmatpush.msra.mxu0 0.0
        %10606 = vmatpush.msra.mxu0 0.0
        %10607 = vmatpush.msra.mxu0 0.0
        %10608 = vmatpush.msra.mxu0 0.0
        %10609 = vmatpush.msra.mxu0 0.0
        %10610 = vmatpush.msra.mxu0 %v10202
        %10611 = vmatpush.msra.mxu0 %v10201
        %10612 = vmatpush.msra.mxu0 %v10200
        %10613 = vmatpush.msra.mxu0 %v10199
        %10614 = vmatpush.msra.mxu0 %v10198
        %10615 = vmatpush.msra.mxu0 %v10197
        %10616 = vmatpush.msra.mxu0 %v10196
        %10617 = vmatpush.msra.mxu0 %v10195
        %10618 = vmatpush.msra.mxu0 %v10194
        %10619 = vmatpush.msra.mxu0 %v10193
        %10620 = vmatpush.msra.mxu0 %v10192
        %10621 = vmatmul.f32.gmra.mxu0 %v10205
        %v10622 = vpop.f32.mrf.mxu0
        %v10623 = vadd.f32 %v10414, %v10622
        %10624 = vmatmul.f32.gmra.mxu0 %v10208
        %v10625 = vpop.f32.mrf.mxu0
        %v10626 = vadd.f32 %v10417, %v10625
        %10627 = vmatmul.f32.gmra.mxu0 %v10211
        %v10628 = vpop.f32.mrf.mxu0
        %v10629 = vadd.f32 %v10420, %v10628
        %10630 = vmatmul.f32.gmra.mxu0 %v10214
        %v10631 = vpop.f32.mrf.mxu0
        %v10632 = vadd.f32 %v10423, %v10631
        %10633 = vmatmul.f32.gmra.mxu0 %v10217
        %v10634 = vpop.f32.mrf.mxu0
        %v10635 = vadd.f32 %v10426, %v10634
        %10636 = vmatmul.f32.gmra.mxu0 %v10220
        %v10637 = vpop.f32.mrf.mxu0
        %v10638 = vadd.f32 %v10429, %v10637
        %10639 = vmatmul.f32.gmra.mxu0 %v10223
        %v10640 = vpop.f32.mrf.mxu0
        %v10641 = vadd.f32 %v10432, %v10640
        %10642 = vmatmul.f32.gmra.mxu0 %v10226
        %v10643 = vpop.f32.mrf.mxu0
        %v10644 = vadd.f32 %v10435, %v10643
        %10645 = vmatmul.f32.gmra.mxu0 %v10229
        %v10646 = vpop.f32.mrf.mxu0
        %v10647 = vadd.f32 %v10438, %v10646
        %10648 = vmatmul.f32.gmra.mxu0 %v10232
        %v10649 = vpop.f32.mrf.mxu0
        %v10650 = vadd.f32 %v10441, %v10649
        %10651 = vmatmul.f32.gmra.mxu0 %v10235
        %v10652 = vpop.f32.mrf.mxu0
        %v10653 = vadd.f32 %v10444, %v10652
        %10654 = vmatmul.f32.gmra.mxu0 %v10238
        %v10655 = vpop.f32.mrf.mxu0
        %v10656 = vadd.f32 %v10447, %v10655
        %10657 = vmatmul.f32.gmra.mxu0 %v10241
        %v10658 = vpop.f32.mrf.mxu0
        %v10659 = vadd.f32 %v10450, %v10658
        %10660 = vmatmul.f32.gmra.mxu0 %v10244
        %v10661 = vpop.f32.mrf.mxu0
        %v10662 = vadd.f32 %v10453, %v10661
        %10663 = vmatmul.f32.gmra.mxu0 %v10247
        %v10664 = vpop.f32.mrf.mxu0
        %v10665 = vadd.f32 %v10456, %v10664
        %10666 = vmatmul.f32.gmra.mxu0 %v10250
        %v10667 = vpop.f32.mrf.mxu0
        %v10668 = vadd.f32 %v10459, %v10667
        %10669 = vmatmul.f32.gmra.mxu0 %v10253
        %v10670 = vpop.f32.mrf.mxu0
        %v10671 = vadd.f32 %v10462, %v10670
        %10672 = vmatmul.f32.gmra.mxu0 %v10256
        %v10673 = vpop.f32.mrf.mxu0
        %v10674 = vadd.f32 %v10465, %v10673
        %10675 = vmatmul.f32.gmra.mxu0 %v10259
        %v10676 = vpop.f32.mrf.mxu0
        %v10677 = vadd.f32 %v10468, %v10676
        %10678 = vmatmul.f32.gmra.mxu0 %v10262
        %v10679 = vpop.f32.mrf.mxu0
        %v10680 = vadd.f32 %v10471, %v10679
        %10681 = vmatmul.f32.gmra.mxu0 %v10265
        %v10682 = vpop.f32.mrf.mxu0
        %v10683 = vadd.f32 %v10474, %v10682
        %10684 = vmatmul.f32.gmra.mxu0 %v10268
        %v10685 = vpop.f32.mrf.mxu0
        %v10686 = vadd.f32 %v10477, %v10685
        %10687 = vmatmul.f32.gmra.mxu0 %v10271
        %v10688 = vpop.f32.mrf.mxu0
        %v10689 = vadd.f32 %v10480, %v10688
        %10690 = vmatmul.f32.gmra.mxu0 %v10274
        %v10691 = vpop.f32.mrf.mxu0
        %v10692 = vadd.f32 %v10483, %v10691
        %10693 = vmatmul.f32.gmra.mxu0 %v10277
        %v10694 = vpop.f32.mrf.mxu0
        %v10695 = vadd.f32 %v10486, %v10694
        %10696 = vmatmul.f32.gmra.mxu0 %v10280
        %v10697 = vpop.f32.mrf.mxu0
        %v10698 = vadd.f32 %v10489, %v10697
        %10699 = vmatmul.f32.gmra.mxu0 %v10283
        %v10700 = vpop.f32.mrf.mxu0
        %v10701 = vadd.f32 %v10492, %v10700
        %10702 = vmatmul.f32.gmra.mxu0 %v10286
        %v10703 = vpop.f32.mrf.mxu0
        %v10704 = vadd.f32 %v10495, %v10703
        %10705 = vmatmul.f32.gmra.mxu0 %v10289
        %v10706 = vpop.f32.mrf.mxu0
        %v10707 = vadd.f32 %v10498, %v10706
        %10708 = vmatmul.f32.gmra.mxu0 %v10292
        %v10709 = vpop.f32.mrf.mxu0
        %v10710 = vadd.f32 %v10501, %v10709
        %10711 = vmatmul.f32.gmra.mxu0 %v10295
        %v10712 = vpop.f32.mrf.mxu0
        %v10713 = vadd.f32 %v10504, %v10712
        %10714 = vmatmul.f32.gmra.mxu0 %v10298
        %v10715 = vpop.f32.mrf.mxu0
        %v10716 = vadd.f32 %v10507, %v10715
        %10717 = vmatmul.f32.gmra.mxu0 %v10301
        %v10718 = vpop.f32.mrf.mxu0
        %v10719 = vadd.f32 %v10510, %v10718
        %10720 = vmatmul.f32.gmra.mxu0 %v10304
        %v10721 = vpop.f32.mrf.mxu0
        %v10722 = vadd.f32 %v10513, %v10721
        %10723 = vmatmul.f32.gmra.mxu0 %v10307
        %v10724 = vpop.f32.mrf.mxu0
        %v10725 = vadd.f32 %v10516, %v10724
        %10726 = vmatmul.f32.gmra.mxu0 %v10310
        %v10727 = vpop.f32.mrf.mxu0
        %v10728 = vadd.f32 %v10519, %v10727
        %10729 = vmatmul.f32.gmra.mxu0 %v10313
        %v10730 = vpop.f32.mrf.mxu0
        %v10731 = vadd.f32 %v10522, %v10730
        %10732 = vmatmul.f32.gmra.mxu0 %v10316
        %v10733 = vpop.f32.mrf.mxu0
        %v10734 = vadd.f32 %v10525, %v10733
        %10735 = vmatmul.f32.gmra.mxu0 %v10319
        %v10736 = vpop.f32.mrf.mxu0
        %v10737 = vadd.f32 %v10528, %v10736
        %10738 = vmatmul.f32.gmra.mxu0 %v10322
        %v10739 = vpop.f32.mrf.mxu0
        %v10740 = vadd.f32 %v10531, %v10739
        %10741 = vmatmul.f32.gmra.mxu0 %v10325
        %v10742 = vpop.f32.mrf.mxu0
        %v10743 = vadd.f32 %v10534, %v10742
        %10744 = vmatmul.f32.gmra.mxu0 %v10328
        %v10745 = vpop.f32.mrf.mxu0
        %v10746 = vadd.f32 %v10537, %v10745
        %10747 = vmatmul.f32.gmra.mxu0 %v10331
        %v10748 = vpop.f32.mrf.mxu0
        %v10749 = vadd.f32 %v10540, %v10748
        %10750 = vmatmul.f32.gmra.mxu0 %v10334
        %v10751 = vpop.f32.mrf.mxu0
        %v10752 = vadd.f32 %v10543, %v10751
        %10753 = vmatmul.f32.gmra.mxu0 %v10337
        %v10754 = vpop.f32.mrf.mxu0
        %v10755 = vadd.f32 %v10546, %v10754
        %10756 = vmatmul.f32.gmra.mxu0 %v10340
        %v10757 = vpop.f32.mrf.mxu0
        %v10758 = vadd.f32 %v10549, %v10757
        %10759 = vmatmul.f32.gmra.mxu0 %v10343
        %v10760 = vpop.f32.mrf.mxu0
        %v10761 = vadd.f32 %v10552, %v10760
        %10762 = vmatmul.f32.gmra.mxu0 %v10346
        %v10763 = vpop.f32.mrf.mxu0
        %v10764 = vadd.f32 %v10555, %v10763
        %10765 = vmatmul.f32.gmra.mxu0 %v10349
        %v10766 = vpop.f32.mrf.mxu0
        %v10767 = vadd.f32 %v10558, %v10766
        %10768 = vmatmul.f32.gmra.mxu0 %v10352
        %v10769 = vpop.f32.mrf.mxu0
        %v10770 = vadd.f32 %v10561, %v10769
        %10771 = vmatmul.f32.gmra.mxu0 %v10355
        %v10772 = vpop.f32.mrf.mxu0
        %v10773 = vadd.f32 %v10564, %v10772
        %10774 = vmatmul.f32.gmra.mxu0 %v10358
        %v10775 = vpop.f32.mrf.mxu0
        %v10776 = vadd.f32 %v10567, %v10775
        %10777 = vmatmul.f32.gmra.mxu0 %v10361
        %v10778 = vpop.f32.mrf.mxu0
        %v10779 = vadd.f32 %v10570, %v10778
        %10780 = vmatmul.f32.gmra.mxu0 %v10364
        %v10781 = vpop.f32.mrf.mxu0
        %v10782 = vadd.f32 %v10573, %v10781
        %10783 = vmatmul.f32.gmra.mxu0 %v10367
        %v10784 = vpop.f32.mrf.mxu0
        %v10785 = vadd.f32 %v10576, %v10784
        %10786 = vmatmul.f32.gmra.mxu0 %v10370
        %v10787 = vpop.f32.mrf.mxu0
        %v10788 = vadd.f32 %v10579, %v10787
        %10789 = vmatmul.f32.gmra.mxu0 %v10373
        %v10790 = vpop.f32.mrf.mxu0
        %v10791 = vadd.f32 %v10582, %v10790
        %10792 = vmatmul.f32.gmra.mxu0 %v10376
        %v10793 = vpop.f32.mrf.mxu0
        %v10794 = vadd.f32 %v10585, %v10793
        %10795 = vmatmul.f32.gmra.mxu0 %v10379
        %v10796 = vpop.f32.mrf.mxu0
        %v10797 = vadd.f32 %v10588, %v10796
        %10798 = vmatmul.f32.gmra.mxu0 %v10382
        %v10799 = vpop.f32.mrf.mxu0
        %v10800 = vadd.f32 %v10591, %v10799
        %10801 = vmatmul.f32.gmra.mxu0 %v10385
        %v10802 = vpop.f32.mrf.mxu0
        %v10803 = vadd.f32 %v10594, %v10802
        %10804 = vmatmul.f32.gmra.mxu0 %v10388
        %v10805 = vpop.f32.mrf.mxu0
        %v10806 = vadd.f32 %v10597, %v10805
        %10807 = vmatmul.f32.gmra.mxu0 %v10391
        %v10808 = vpop.f32.mrf.mxu0
        %v10809 = vadd.f32 %v10600, %v10808
        %10810 = vmatmul.f32.gmra.mxu0 %v10394
        %v10811 = vpop.f32.mrf.mxu0
        %v10812 = vadd.f32 %v10603, %v10811
        %10813 = vdwg.mxu0
        %10814 = vst [vmem:[%s160] sm:$0xff] %v10623
        %10815 = vst [vmem:[%s160 + $0x8] sm:$0xff] %v10626
        %10816 = vst [vmem:[%s160 + $0x10] sm:$0xff] %v10629
        %10817 = vst [vmem:[%s160 + $0x18] sm:$0xff] %v10632
        %10818 = vst [vmem:[%s160 + $0x20] sm:$0xff] %v10635
        %10819 = vst [vmem:[%s160 + $0x28] sm:$0xff] %v10638
        %10820 = vst [vmem:[%s160 + $0x30] sm:$0xff] %v10641
        %10821 = vst [vmem:[%s160 + $0x38] sm:$0xff] %v10644
        %10822 = vst [vmem:[%s160 + $0x40] sm:$0xff] %v10647
        %10823 = vst [vmem:[%s160 + $0x48] sm:$0xff] %v10650
        %10824 = vst [vmem:[%s160 + $0x50] sm:$0xff] %v10653
        %10825 = vst [vmem:[%s160 + $0x58] sm:$0xff] %v10656
        %10826 = vst [vmem:[%s160 + $0x60] sm:$0xff] %v10659
        %10827 = vst [vmem:[%s160 + $0x68] sm:$0xff] %v10662
        %10828 = vst [vmem:[%s160 + $0x70] sm:$0xff] %v10665
        %10829 = vst [vmem:[%s160 + $0x78] sm:$0xff] %v10668
        %10830 = vst [vmem:[%s160 + $0x80] sm:$0xff] %v10671
        %10831 = vst [vmem:[%s160 + $0x88] sm:$0xff] %v10674
        %10832 = vst [vmem:[%s160 + $0x90] sm:$0xff] %v10677
        %10833 = vst [vmem:[%s160 + $0x98] sm:$0xff] %v10680
        %10834 = vst [vmem:[%s160 + $0xa0] sm:$0xff] %v10683
        %10835 = vst [vmem:[%s160 + $0xa8] sm:$0xff] %v10686
        %10836 = vst [vmem:[%s160 + $0xb0] sm:$0xff] %v10689
        %10837 = vst [vmem:[%s160 + $0xb8] sm:$0xff] %v10692
        %10838 = vst [vmem:[%s160 + $0xc0] sm:$0xff] %v10695
        %10839 = vst [vmem:[%s160 + $0xc8] sm:$0xff] %v10698
        %10840 = vst [vmem:[%s160 + $0xd0] sm:$0xff] %v10701
        %10841 = vst [vmem:[%s160 + $0xd8] sm:$0xff] %v10704
        %10842 = vst [vmem:[%s160 + $0xe0] sm:$0xff] %v10707
        %10843 = vst [vmem:[%s160 + $0xe8] sm:$0xff] %v10710
        %10844 = vst [vmem:[%s160 + $0xf0] sm:$0xff] %v10713
        %10845 = vst [vmem:[%s160 + $0xf8] sm:$0xff] %v10716
        %10846 = vst [vmem:[%s160 + $0x100] sm:$0xff] %v10719
        %10847 = vst [vmem:[%s160 + $0x108] sm:$0xff] %v10722
        %10848 = vst [vmem:[%s160 + $0x110] sm:$0xff] %v10725
        %10849 = vst [vmem:[%s160 + $0x118] sm:$0xff] %v10728
        %10850 = vst [vmem:[%s160 + $0x120] sm:$0xff] %v10731
        %10851 = vst [vmem:[%s160 + $0x128] sm:$0xff] %v10734
        %10852 = vst [vmem:[%s160 + $0x130] sm:$0xff] %v10737
        %10853 = vst [vmem:[%s160 + $0x138] sm:$0xff] %v10740
        %10854 = vst [vmem:[%s160 + $0x140] sm:$0xff] %v10743
        %10855 = vst [vmem:[%s160 + $0x148] sm:$0xff] %v10746
        %10856 = vst [vmem:[%s160 + $0x150] sm:$0xff] %v10749
        %10857 = vst [vmem:[%s160 + $0x158] sm:$0xff] %v10752
        %10858 = vst [vmem:[%s160 + $0x160] sm:$0xff] %v10755
        %10859 = vst [vmem:[%s160 + $0x168] sm:$0xff] %v10758
        %10860 = vst [vmem:[%s160 + $0x170] sm:$0xff] %v10761
        %10861 = vst [vmem:[%s160 + $0x178] sm:$0xff] %v10764
        %10862 = vst [vmem:[%s160 + $0x180] sm:$0xff] %v10767
        %10863 = vst [vmem:[%s160 + $0x188] sm:$0xff] %v10770
        %10864 = vst [vmem:[%s160 + $0x190] sm:$0xff] %v10773
        %10865 = vst [vmem:[%s160 + $0x198] sm:$0xff] %v10776
        %10866 = vst [vmem:[%s160 + $0x1a0] sm:$0xff] %v10779
        %10867 = vst [vmem:[%s160 + $0x1a8] sm:$0xff] %v10782
        %10868 = vst [vmem:[%s160 + $0x1b0] sm:$0xff] %v10785
        %10869 = vst [vmem:[%s160 + $0x1b8] sm:$0xff] %v10788
        %10870 = vst [vmem:[%s160 + $0x1c0] sm:$0xff] %v10791
        %10871 = vst [vmem:[%s160 + $0x1c8] sm:$0xff] %v10794
        %10872 = vst [vmem:[%s160 + $0x1d0] sm:$0xff] %v10797
        %10873 = vst [vmem:[%s160 + $0x1d8] sm:$0xff] %v10800
        %10874 = vst [vmem:[%s160 + $0x1e0] sm:$0xff] %v10803
        %10875 = vst [vmem:[%s160 + $0x1e8] sm:$0xff] %v10806
        %10876 = vst [vmem:[%s160 + $0x1f0] sm:$0xff] %v10809
        %10877 = vst [vmem:[%s160 + $0x1f8] sm:$0xff] %v10812
        %p10878 = scmp.eq.s32.totalorder %s19, 0
        // Predicated region
        $region29: #{tpu_custom_call.1} parent=27 // pred_check
          %p10879 = pneg %p10878
        $region30: #{tpu_custom_call.1} parent=27 // pred_check_branch
          %10881 = sbr.rel (%p10879) target = $region32
        $region31: #{tpu_custom_call.1} parent=27 // pred_region
          %10882 = vst [vmem:[#allocation5] sm:$0x3] 0.0
        $region32: #{tpu_custom_call.1} parent=27 // pred_fallthru
          _
        %v10883 = vadd.f32 %v10623, %v10626
        %v10884 = vadd.f32 %v10883, %v10629
        %v10885 = vadd.f32 %v10884, %v10632
        %v10886 = vadd.f32 %v10885, %v10635
        %v10887 = vadd.f32 %v10886, %v10638
        %v10888 = vadd.f32 %v10887, %v10641
        %v10889 = vadd.f32 %v10888, %v10644
        %v10890 = vadd.f32 %v10889, %v10647
        %v10891 = vadd.f32 %v10890, %v10650
        %v10892 = vadd.f32 %v10891, %v10653
        %v10893 = vadd.f32 %v10892, %v10656
        %v10894 = vadd.f32 %v10893, %v10659
        %v10895 = vadd.f32 %v10894, %v10662
        %v10896 = vadd.f32 %v10895, %v10665
        %v10897 = vadd.f32 %v10896, %v10668
        %v10898 = vadd.f32 %v10897, %v10671
        %v10899 = vadd.f32 %v10898, %v10674
        %v10900 = vadd.f32 %v10899, %v10677
        %v10901 = vadd.f32 %v10900, %v10680
        %v10902 = vadd.f32 %v10901, %v10683
        %v10903 = vadd.f32 %v10902, %v10686
        %v10904 = vadd.f32 %v10903, %v10689
        %v10905 = vadd.f32 %v10904, %v10692
        %v10906 = vadd.f32 %v10905, %v10695
        %v10907 = vadd.f32 %v10906, %v10698
        %v10908 = vadd.f32 %v10907, %v10701
        %v10909 = vadd.f32 %v10908, %v10704
        %v10910 = vadd.f32 %v10909, %v10707
        %v10911 = vadd.f32 %v10910, %v10710
        %v10912 = vadd.f32 %v10911, %v10713
        %v10913 = vadd.f32 %v10912, %v10716
        %v10914 = vadd.f32 %v10913, %v10719
        %v10915 = vadd.f32 %v10914, %v10722
        %v10916 = vadd.f32 %v10915, %v10725
        %v10917 = vadd.f32 %v10916, %v10728
        %v10918 = vadd.f32 %v10917, %v10731
        %v10919 = vadd.f32 %v10918, %v10734
        %v10920 = vadd.f32 %v10919, %v10737
        %v10921 = vadd.f32 %v10920, %v10740
        %v10922 = vadd.f32 %v10921, %v10743
        %v10923 = vadd.f32 %v10922, %v10746
        %v10924 = vadd.f32 %v10923, %v10749
        %v10925 = vadd.f32 %v10924, %v10752
        %v10926 = vadd.f32 %v10925, %v10755
        %v10927 = vadd.f32 %v10926, %v10758
        %v10928 = vadd.f32 %v10927, %v10761
        %v10929 = vadd.f32 %v10928, %v10764
        %v10930 = vadd.f32 %v10929, %v10767
        %v10931 = vadd.f32 %v10930, %v10770
        %v10932 = vadd.f32 %v10931, %v10773
        %v10933 = vadd.f32 %v10932, %v10776
        %v10934 = vadd.f32 %v10933, %v10779
        %v10935 = vadd.f32 %v10934, %v10782
        %v10936 = vadd.f32 %v10935, %v10785
        %v10937 = vadd.f32 %v10936, %v10788
        %v10938 = vadd.f32 %v10937, %v10791
        %v10939 = vadd.f32 %v10938, %v10794
        %v10940 = vadd.f32 %v10939, %v10797
        %v10941 = vadd.f32 %v10940, %v10800
        %v10942 = vadd.f32 %v10941, %v10803
        %v10943 = vadd.f32 %v10942, %v10806
        %v10944 = vadd.f32 %v10943, %v10809
        %v10945 = vadd.f32 %v10944, %v10812
        %v10946 = vrot.slane %v10945, 4
        %v10947 = vadd.f32 %v10945, %v10946
        %v10948 = vrot.slane %v10947, 2
        %v10949 = vadd.f32 %v10947, %v10948
        %v10950 = vrot.slane %v10949, 1
        %v10951 = vadd.f32 %v10949, %v10950
        %v10952 = vmul.f32 %v10623, %v10623
        %v10953 = vmul.f32 %v10626, %v10626
        %v10954 = vmul.f32 %v10629, %v10629
        %v10955 = vmul.f32 %v10632, %v10632
        %v10956 = vmul.f32 %v10635, %v10635
        %v10957 = vmul.f32 %v10638, %v10638
        %v10958 = vmul.f32 %v10641, %v10641
        %v10959 = vmul.f32 %v10644, %v10644
        %v10960 = vmul.f32 %v10647, %v10647
        %v10961 = vmul.f32 %v10650, %v10650
        %v10962 = vmul.f32 %v10653, %v10653
        %v10963 = vmul.f32 %v10656, %v10656
        %v10964 = vmul.f32 %v10659, %v10659
        %v10965 = vmul.f32 %v10662, %v10662
        %v10966 = vmul.f32 %v10665, %v10665
        %v10967 = vmul.f32 %v10668, %v10668
        %v10968 = vmul.f32 %v10671, %v10671
        %v10969 = vmul.f32 %v10674, %v10674
        %v10970 = vmul.f32 %v10677, %v10677
        %v10971 = vmul.f32 %v10680, %v10680
        %v10972 = vmul.f32 %v10683, %v10683
        %v10973 = vmul.f32 %v10686, %v10686
        %v10974 = vmul.f32 %v10689, %v10689
        %v10975 = vmul.f32 %v10692, %v10692
        %v10976 = vmul.f32 %v10695, %v10695
        %v10977 = vmul.f32 %v10698, %v10698
        %v10978 = vmul.f32 %v10701, %v10701
        %v10979 = vmul.f32 %v10704, %v10704
        %v10980 = vmul.f32 %v10707, %v10707
        %v10981 = vmul.f32 %v10710, %v10710
        %v10982 = vmul.f32 %v10713, %v10713
        %v10983 = vmul.f32 %v10716, %v10716
        %v10984 = vmul.f32 %v10719, %v10719
        %v10985 = vmul.f32 %v10722, %v10722
        %v10986 = vmul.f32 %v10725, %v10725
        %v10987 = vmul.f32 %v10728, %v10728
        %v10988 = vmul.f32 %v10731, %v10731
        %v10989 = vmul.f32 %v10734, %v10734
        %v10990 = vmul.f32 %v10737, %v10737
        %v10991 = vmul.f32 %v10740, %v10740
        %v10992 = vmul.f32 %v10743, %v10743
        %v10993 = vmul.f32 %v10746, %v10746
        %v10994 = vmul.f32 %v10749, %v10749
        %v10995 = vmul.f32 %v10752, %v10752
        %v10996 = vmul.f32 %v10755, %v10755
        %v10997 = vmul.f32 %v10758, %v10758
        %v10998 = vmul.f32 %v10761, %v10761
        %v10999 = vmul.f32 %v10764, %v10764
        %v11000 = vmul.f32 %v10767, %v10767
        %v11001 = vmul.f32 %v10770, %v10770
        %v11002 = vmul.f32 %v10773, %v10773
        %v11003 = vmul.f32 %v10776, %v10776
        %v11004 = vmul.f32 %v10779, %v10779
        %v11005 = vmul.f32 %v10782, %v10782
        %v11006 = vmul.f32 %v10785, %v10785
        %v11007 = vmul.f32 %v10788, %v10788
        %v11008 = vmul.f32 %v10791, %v10791
        %v11009 = vmul.f32 %v10794, %v10794
        %v11010 = vmul.f32 %v10797, %v10797
        %v11011 = vmul.f32 %v10800, %v10800
        %v11012 = vmul.f32 %v10803, %v10803
        %v11013 = vmul.f32 %v10806, %v10806
        %v11014 = vmul.f32 %v10809, %v10809
        %v11015 = vmul.f32 %v10812, %v10812
        %v11016 = vadd.f32 %v10952, %v10953
        %v11017 = vadd.f32 %v11016, %v10954
        %v11018 = vadd.f32 %v11017, %v10955
        %v11019 = vadd.f32 %v11018, %v10956
        %v11020 = vadd.f32 %v11019, %v10957
        %v11021 = vadd.f32 %v11020, %v10958
        %v11022 = vadd.f32 %v11021, %v10959
        %v11023 = vadd.f32 %v11022, %v10960
        %v11024 = vadd.f32 %v11023, %v10961
        %v11025 = vadd.f32 %v11024, %v10962
        %v11026 = vadd.f32 %v11025, %v10963
        %v11027 = vadd.f32 %v11026, %v10964
        %v11028 = vadd.f32 %v11027, %v10965
        %v11029 = vadd.f32 %v11028, %v10966
        %v11030 = vadd.f32 %v11029, %v10967
        %v11031 = vadd.f32 %v11030, %v10968
        %v11032 = vadd.f32 %v11031, %v10969
        %v11033 = vadd.f32 %v11032, %v10970
        %v11034 = vadd.f32 %v11033, %v10971
        %v11035 = vadd.f32 %v11034, %v10972
        %v11036 = vadd.f32 %v11035, %v10973
        %v11037 = vadd.f32 %v11036, %v10974
        %v11038 = vadd.f32 %v11037, %v10975
        %v11039 = vadd.f32 %v11038, %v10976
        %v11040 = vadd.f32 %v11039, %v10977
        %v11041 = vadd.f32 %v11040, %v10978
        %v11042 = vadd.f32 %v11041, %v10979
        %v11043 = vadd.f32 %v11042, %v10980
        %v11044 = vadd.f32 %v11043, %v10981
        %v11045 = vadd.f32 %v11044, %v10982
        %v11046 = vadd.f32 %v11045, %v10983
        %v11047 = vadd.f32 %v11046, %v10984
        %v11048 = vadd.f32 %v11047, %v10985
        %v11049 = vadd.f32 %v11048, %v10986
        %v11050 = vadd.f32 %v11049, %v10987
        %v11051 = vadd.f32 %v11050, %v10988
        %v11052 = vadd.f32 %v11051, %v10989
        %v11053 = vadd.f32 %v11052, %v10990
        %v11054 = vadd.f32 %v11053, %v10991
        %v11055 = vadd.f32 %v11054, %v10992
        %v11056 = vadd.f32 %v11055, %v10993
        %v11057 = vadd.f32 %v11056, %v10994
        %v11058 = vadd.f32 %v11057, %v10995
        %v11059 = vadd.f32 %v11058, %v10996
        %v11060 = vadd.f32 %v11059, %v10997
        %v11061 = vadd.f32 %v11060, %v10998
        %v11062 = vadd.f32 %v11061, %v10999
        %v11063 = vadd.f32 %v11062, %v11000
        %v11064 = vadd.f32 %v11063, %v11001
        %v11065 = vadd.f32 %v11064, %v11002
        %v11066 = vadd.f32 %v11065, %v11003
        %v11067 = vadd.f32 %v11066, %v11004
        %v11068 = vadd.f32 %v11067, %v11005
        %v11069 = vadd.f32 %v11068, %v11006
        %v11070 = vadd.f32 %v11069, %v11007
        %v11071 = vadd.f32 %v11070, %v11008
        %v11072 = vadd.f32 %v11071, %v11009
        %v11073 = vadd.f32 %v11072, %v11010
        %v11074 = vadd.f32 %v11073, %v11011
        %v11075 = vadd.f32 %v11074, %v11012
        %v11076 = vadd.f32 %v11075, %v11013
        %v11077 = vadd.f32 %v11076, %v11014
        %v11078 = vadd.f32 %v11077, %v11015
        %v11079 = vrot.slane %v11078, 4
        %v11080 = vadd.f32 %v11078, %v11079
        %v11081 = vrot.slane %v11080, 2
        %v11082 = vadd.f32 %v11080, %v11081
        %v11083 = vrot.slane %v11082, 1
        %v11084 = vadd.f32 %v11082, %v11083
        %vm11085 = vcmask 1040384
        %v11086 = vsel %vm11085, %v10951, %v11084
        %v11087 = vld [vmem:[#allocation5] sm:$0x3]
        %v11088 = vadd.f32 %v11087, %v11086
        %11089 = vst [vmem:[#allocation5] sm:$0x3] %v11088
        %s11090 = sand.u32 %s74, 1
        %s11091 = scalar_lea.sflag [#allocation4], %s11090
        %s11092 = sand.u32 %s74, 1
        %s11093 = smul.addr %s11092, 512
        %s11094 = scalar_lea.vmem [#allocation3], %s11093
        // Predicated region
        $region33: #{tpu_custom_call.1} parent=27 // pred_check
          %p11095 = pneg %p84
        $region34: #{tpu_custom_call.1} parent=27 // pred_check_branch
          %11097 = sbr.rel (%p11095) target = $region36
        $region35: #{tpu_custom_call.1} parent=27 // pred_region
          %11099 = vsyncadd %s11091, 0
          %s11100 = smul.addr %s19, 64
          %s11101 = smul.addr %s11100, 8
          %s11102 = scalar_lea.hbm %s2, %s11101
          %s11103 = sshll.u32 %s11094, 4
          %s11104 = int_to_ptr.vmem [resolvable:$true] %s11103
          %s11105 = sshll.u32 %s11102, 4
          %s11106 = int_to_ptr.hbm [resolvable:$true] %s11105
          %11111 = dma.vmem_to_hbm [thread:$0]  %s11104, 8192, %s11106, %s11091, 128, 128, 8
        $region36: #{tpu_custom_call.1} parent=27 // pred_fallthru
          _
        // Predicated region
        $region37: #{tpu_custom_call.1} parent=27 // pred_check
          %p11112 = pneg %p105
        $region38: #{tpu_custom_call.1} parent=27 // pred_check_branch
          %11114 = sbr.rel (%p11112) target = $region40
        $region39: #{tpu_custom_call.1} parent=27 // pred_region
          %11116 = vsyncadd [#allocation6], 0
          %s11118 = sshll.u32 [#allocation5], 4
          %s11119 = int_to_ptr.vmem [resolvable:$true] %s11118
          %s11120 = sshll.u32 %s3, 4
          %s11121 = int_to_ptr.hbm [resolvable:$true] %s11120
          %11123 = dma.vmem_to_hbm [thread:$0]  %s11119, 32, %s11121, [#allocation6]
        $region40: #{tpu_custom_call.1} parent=27 // pred_fallthru
          _
        // Predicated region
        $region41: #{tpu_custom_call.1} parent=27 // pred_check
          %p11124 = pneg %p105
        $region42: #{tpu_custom_call.1} parent=27 // pred_check_branch
          %11126 = sbr.rel (%p11124) target = $region44
        $region43: #{tpu_custom_call.1} parent=27 // pred_region
          %11128 = dma.done [#allocation6], 32
        $region44: #{tpu_custom_call.1} parent=27 // pred_fallthru
          _
      $region28: #{tpu_custom_call.1} parent=5 // pred_fallthru
        _
      %p11129 = scmp.le.s32.totalorder 2, %s14
      // Predicated region
      $region45: #{tpu_custom_call.1} parent=5 // pred_check
        %p11130 = pneg %p11129
      $region46: #{tpu_custom_call.1} parent=5 // pred_check_branch
        %11132 = sbr.rel (%p11130) target = $region48
      $region47: #{tpu_custom_call.1} parent=5 // pred_region
        %s11133 = ssub.s32 %s14, 2
        // Predicated region
        $region49: #{tpu_custom_call.1} parent=47 // pred_check
          %p11134 = pneg %p90
        $region50: #{tpu_custom_call.1} parent=47 // pred_check_branch
          %11136 = sbr.rel (%p11134) target = $region52
        $region51: #{tpu_custom_call.1} parent=47 // pred_region
          %s11137 = sand.u32 %s75, 1
          %s11138 = scalar_lea.sflag [#allocation4], %s11137
          %s11139 = sand.u32 %s75, 1
          %s11140 = smul.addr %s11139, 512
          %s11141 = scalar_lea.vmem [#allocation3], %s11140
          %11143 = dma.done %s11138, 8192
        $region52: #{tpu_custom_call.1} parent=47 // pred_fallthru
          _
      $region48: #{tpu_custom_call.1} parent=5 // pred_fallthru
        _
    $region6: #{tpu_custom_call.1} parent=1 // loop_footer
      %s18 = sadd.s32 1, %s14
    $region7: #{tpu_custom_call.1} parent=1 // loop_footer_branch
      %13 = sbr.rel target = $region3
    $region8: #{tpu_custom_call.1} parent=1 // loop_exit
      _
    %11144 = vsyncpa [#allocation4], 1
    %s11145 = scalar_lea.sflag [#allocation4], 1
    %11146 = vsyncpa %s11145, 1
    %11147 = vsyncpa [#allocation6], 1

</llo_original>
